<compile_context>
chip_gen: v6e
topology: v6e:2x2x1
jax: 0.10.0
libtpu: 0.0.40
codegen_flags: <defaults>
</compile_context>

<pallas_src>
import functools

import jax
import jax.numpy as jnp
from jax.experimental import pallas as pl
from jax.experimental.pallas import tpu as pltpu

LANES = 128            # vreg lane width
BF16_ROWS = 16         # bf16 vregs pack (16, 128): pad batch to a multiple of 16
_MAX_FULL_UNROLL = 8   # chunk lengths above this use lax.fori_loop(unroll=2)
_LOOP_UNROLL = 2


def _round_up(x, m):
    return (x + m - 1) // m * m


def _vmem_budget_bytes():
    """Generation-aware scoped-VMEM budget (trace-time query, safe fallback)."""
    cap = None
    try:
        cap = int(pltpu.get_tpu_info().vmem_capacity_bytes)
    except Exception:
        cap = None
    if not cap:
        cap = 64 * 1024 * 1024          # conservative fallback: v7x-sized VMEM
    # 3/4 of physical, capped at 96 MiB: ~48 MiB on v7x (64 MiB VMEM),
    # 96 MiB on v5e/v6e (128 MiB VMEM).
    return int(min(cap * 3 // 4, 96 * 1024 * 1024))


def _pick_time_chunk(T, Bp, Hp, vmem_budget):
    """VMEM-budget-driven time-chunk length (no divisibility requirement)."""
    # Per-grid-step pipeline footprint:
    #   gx inputs : 2 dirs x 2 buffers x tc x Bp x 4Hp x 2B (bf16)
    #   h outputs : 2 dirs x 2 buffers x tc x Bp x  Hp x 2B (bf16)
    #   W_hh      : 2 dirs x 2 buffers x Hp x 4Hp x 2B      (constant block idx)
    #   scratch   : (bf16 h + f32 c) per direction
    weights = 2 * 2 * Hp * 4 * Hp * 2
    scratch = 2 * Bp * Hp * (2 + 4)
    per_step = 2 * 2 * Bp * 5 * Hp * 2
    avail = vmem_budget - weights - scratch
    return int(max(1, min(T, avail // per_step)))


# ------------------------------ Pallas kernel ------------------------------ #
def _lstm_step(gx_ref, t_local, w_ref, h_ref, c_ref, out_ref, valid, hp):
    """One direction's timestep: gates = gx[t] + h @ W_hh; update h/c; store h.

    The (Bp, 4Hp) MXU result is consumed in 128-lane strips so only a few vregs
    of gate math are live at once.  `valid` masks the recurrent-state update for
    out-of-range steps of a partial (remainder) time chunk; out-of-range output
    rows land in the block's OOB padding and are dropped by the writeback.
    """
    mm = jnp.dot(h_ref[...], w_ref[...], preferred_element_type=jnp.float32)
    for s in range(hp // LANES):
        lo = s * LANES

        def gate(k, _lo=lo):
            off = k * hp + _lo
            return (mm[:, off:off + LANES]
                    + gx_ref[t_local, :, off:off + LANES].astype(jnp.float32))

        i_g = jax.nn.sigmoid(gate(0))
        f_g = jax.nn.sigmoid(gate(1))
        g_g = jnp.tanh(gate(2))
        o_g = jax.nn.sigmoid(gate(3))
        c_prev = c_ref[:, lo:lo + LANES]
        c_new = f_g * c_prev + i_g * g_g
        h_new = o_g * jnp.tanh(c_new)
        h_bf = h_new.astype(h_ref.dtype)
        c_ref[:, lo:lo + LANES] = jnp.where(valid, c_new, c_prev)
        h_ref[:, lo:lo + LANES] = jnp.where(valid, h_bf, h_ref[:, lo:lo + LANES])
        out_ref[t_local, :, lo:lo + LANES] = h_bf


def _bilstm_chunk_kernel(gxf_ref, gxb_ref, whf_ref, whb_ref,
                         outf_ref, outb_ref,
                         h_f, c_f, h_b, c_b, *, seq_len, time_chunk):
    """One time-chunk of a fused bidirectional LSTM layer.

    Grid axis 0 walks time chunks sequentially; h/c scratch carries the
    recurrence across chunks.  The backward direction's blocks are already
    chunk-reversed by the index_maps, so local index tc-1-i corresponds to
    global time running backward from T-1.
    """
    chunk = pl.program_id(0)
    nc = pl.num_programs(0)
    tc = time_chunk
    hp = h_f.shape[-1]

    @pl.when(chunk == 0)
    def _():
        h_f[...] = jnp.zeros_like(h_f)
        c_f[...] = jnp.zeros_like(c_f)
        h_b[...] = jnp.zeros_like(h_b)
        c_b[...] = jnp.zeros_like(c_b)

    fwd_base = chunk * tc                 # global time of fwd local index 0
    bwd_base = (nc - 1 - chunk) * tc      # global time of bwd local index 0

    def body(i, carry):
        # Forward direction, local time i (global fwd_base + i).
        _lstm_step(gxf_ref, i, whf_ref, h_f, c_f, outf_ref,
                   fwd_base + i < seq_len, hp)
        # Backward direction, local time tc-1-i.  Keeping both directions in
        # one body lets the scheduler hide each direction's serial latency
        # under the other's MXU/EUP work.
        j = tc - 1 - i
        _lstm_step(gxb_ref, j, whb_ref, h_b, c_b, outb_ref,
                   bwd_base + j < seq_len, hp)
        return carry

    if tc <= _MAX_FULL_UNROLL:
        for i in range(tc):
            body(i, 0)
    else:
        jax.lax.fori_loop(0, tc, body, 0, unroll=_LOOP_UNROLL)


def _bilstm_layer(gx, whh_t_f, whh_t_b, time_chunk, vmem_budget):
    """Fused bidirectional LSTM recurrence over precomputed input gates.

    gx:       (T, Bp, 8*Hp) bf16 -- [fwd | bwd] input gates (time-forward)
    whh_*_t:  (Hp, 4*Hp)    bf16 -- recurrent weights, pre-transposed
    returns   (fwd_h, bwd_h), each (T, Bp, Hp) bf16
    """
    T, Bp, G2 = gx.shape
    Hp = whh_t_f.shape[0]
    G = 4 * Hp
    assert G2 == 2 * G
    tc = time_chunk
    nc = pl.cdiv(T, tc)

    # gx holds both directions' gates along the last axis; the two in_specs
    # pick different halves via the last block index, and the backward spec
    # reverses chunk order so no x[::-1] HBM copy is ever materialized.
    gx_spec_f = pl.BlockSpec((tc, Bp, G), lambda c: (c, 0, 0))
    gx_spec_b = pl.BlockSpec((tc, Bp, G), lambda c: (nc - 1 - c, 0, 1))
    # TODO(synk): pipeline_mode=pl.Buffered(1) would drop the redundant second
    #             weight buffer (constant index map); kept default for lowering
    #             compatibility and accounted for in the VMEM budget instead.
    w_spec = pl.BlockSpec((Hp, G), lambda c: (0, 0))
    out_spec_f = pl.BlockSpec((tc, Bp, Hp), lambda c: (c, 0, 0))
    out_spec_b = pl.BlockSpec((tc, Bp, Hp), lambda c: (nc - 1 - c, 0, 0))

    kernel = functools.partial(_bilstm_chunk_kernel, seq_len=T, time_chunk=tc)
    return pl.pallas_call(
        kernel,
        out_shape=(jax.ShapeDtypeStruct((T, Bp, Hp), jnp.bfloat16),
                   jax.ShapeDtypeStruct((T, Bp, Hp), jnp.bfloat16)),
        grid_spec=pltpu.PrefetchScalarGridSpec(
            num_scalar_prefetch=0,
            grid=(nc,),
            in_specs=[gx_spec_f, gx_spec_b, w_spec, w_spec],
            out_specs=[out_spec_f, out_spec_b],
            scratch_shapes=[pltpu.VMEM((Bp, Hp), jnp.bfloat16),   # h_f
                            pltpu.VMEM((Bp, Hp), jnp.float32),    # c_f
                            pltpu.VMEM((Bp, Hp), jnp.bfloat16),   # h_b
                            pltpu.VMEM((Bp, Hp), jnp.float32)],   # c_b
        ),
        compiler_params=pltpu.CompilerParams(
            # Time is a recurrence -> strictly sequential grid.
            dimension_semantics=("arbitrary",),
            vmem_limit_bytes=int(vmem_budget)),
    )(gx, gx, whh_t_f, whh_t_b)


# --------------------------- Parameter creation ---------------------------- #
def _pad_gate_axis(m, H, Hp):
    """Spread PyTorch's packed [i|f|g|o] gate axis (size 4H, last dim of m) onto
    a 4*Hp axis so every gate block starts at a lane-aligned offset."""
    out = jnp.zeros(m.shape[:-1] + (4 * Hp,), m.dtype)
    for g in range(4):
        out = out.at[..., g * Hp:g * Hp + H].set(m[..., g * H:(g + 1) * H])
    return out


def init_params(key, n_words, n_embed, n_hidden, n_layers):
    """Random parameters in PyTorch layout, repacked/padded for the kernel."""
    H = n_hidden
    Hp = _round_up(H, LANES)

    params = {}
    key, k_emb = jax.random.split(key)
    params["embed"] = (jax.random.normal(k_emb, (n_words, n_embed),
                                         dtype=jnp.float32) * 0.1)

    bound = 1.0 / float(H) ** 0.5
    layers = []
    for layer in range(n_layers):
        d_in = n_embed if layer == 0 else 2 * H
        whh, bias_parts, wih_parts = [], [], []
        for _ in range(2):  # forward, backward directions
            key, k1, k2, k3, k4 = jax.random.split(key, 5)
            w_ih = jax.random.uniform(k1, (4 * H, d_in), minval=-bound, maxval=bound)
            w_hh = jax.random.uniform(k2, (4 * H, H), minval=-bound, maxval=bound)
            b_ih = jax.random.uniform(k3, (4 * H,), minval=-bound, maxval=bound)
            b_hh = jax.random.uniform(k4, (4 * H,), minval=-bound, maxval=bound)

            # W_hh^T with rows padded to Hp and gate axis padded to 4*Hp; the
            # padded rows/cols are zero so padded hidden lanes stay exactly 0.
            whh_t = jnp.zeros((Hp, 4 * Hp), jnp.float32)
            whh_t = whh_t.at[:H, :].set(_pad_gate_axis(w_hh.T, H, Hp))
            whh.append(whh_t.astype(jnp.bfloat16))
            bias_parts.append(_pad_gate_axis((b_ih + b_hh)[None, :], H, Hp))
            wih_parts.append(_pad_gate_axis(w_ih.T, H, Hp))       # (d_in, 4Hp)

        lp = {"whh_t_f": whh[0], "whh_t_b": whh[1],
              # Combined bias for both directions: (1, 8Hp).
              "b": jnp.concatenate(bias_parts, axis=-1).astype(jnp.float32)}
        if layer == 0:
            # Combined input projection: x @ (E, 8Hp) -> [fwd | bwd] gates.
            lp["wih_t"] = jnp.concatenate(wih_parts, axis=-1).astype(jnp.bfloat16)
        else:
            # Split W_ih^T into the half multiplying the previous layer's fwd
            # hidden state and the half multiplying the bwd hidden state, each
            # combined across directions, so inner layers never materialize
            # concat([fwd, bwd]).
            def pad_rows(m):
                return jnp.zeros((Hp, m.shape[-1]), m.dtype).at[:H].set(m)
            lp["wih_t_hf"] = jnp.concatenate(
                [pad_rows(w[:H]) for w in wih_parts], axis=-1).astype(jnp.bfloat16)
            lp["wih_t_hb"] = jnp.concatenate(
                [pad_rows(w[H:]) for w in wih_parts], axis=-1).astype(jnp.bfloat16)
        layers.append(lp)
    params["lstm"] = layers
    return params


# ------------------------------ Forward pass ------------------------------- #
def _forward_impl(words, params, n_words, n_hidden, layer_fn, time_chunk_cap):
    """words: (B, T) int32  ->  (B, T, 2*n_hidden) float32"""
    B, T = words.shape
    H = n_hidden

    # pad_index == -1 branch: fill pads with n_words-1 *before* building the
    # mask, so the mask is all-True and pack/pad_packed_sequence is identity.
    words = jnp.where(words == -1, n_words - 1, words)
    embed = jnp.take(params["embed"], words, axis=0)            # (B, T, E)

    # Time-major for the recurrence; batch padded to a bf16-packing multiple
    # (16 rows); activations kept in bf16 between layers (f32 accumulation).
    x = jnp.transpose(embed, (1, 0, 2))                         # (T, B, E)
    Bp = _round_up(B, BF16_ROWS)
    if Bp != B:
        x = jnp.pad(x, ((0, 0), (0, Bp - B), (0, 0)))
    x = x.astype(jnp.bfloat16)

    Hp = params["lstm"][0]["whh_t_f"].shape[0]
    budget = _vmem_budget_bytes()
    tc = _pick_time_chunk(T, Bp, Hp, budget)
    if time_chunk_cap is not None:
        tc = max(1, min(tc, int(time_chunk_cap)))

    fwd_h = bwd_h = None
    for li, lp in enumerate(params["lstm"]):
        # Input projection hoisted out of the recurrence: ONE fused matmul per
        # LHS over the whole sequence producing both directions' gates.
        if li == 0:
            gx = jnp.einsum("tbe,eg->tbg", x, lp["wih_t"],
                            preferred_element_type=jnp.float32)
        else:
            gx = (jnp.einsum("tbh,hg->tbg", fwd_h, lp["wih_t_hf"],
                             preferred_element_type=jnp.float32)
                  + jnp.einsum("tbh,hg->tbg", bwd_h, lp["wih_t_hb"],
                               preferred_element_type=jnp.float32))
        gx = (gx + lp["b"]).astype(jnp.bfloat16)                # (T, Bp, 8Hp)
        fwd_h, bwd_h = layer_fn(gx, lp["whh_t_f"], lp["whh_t_b"], tc, budget)

    out = jnp.concatenate([fwd_h[:, :B, :H], bwd_h[:, :B, :H]], axis=-1)
    out = jnp.transpose(out, (1, 0, 2)).astype(jnp.float32)     # (B, T, 2H)
    # SharedDropout: identity in eval mode.
    return out


@functools.partial(jax.jit,
                   static_argnames=("n_words", "n_hidden", "time_chunk_cap"))
def lstm_encoder_forward(words, params, *, n_words, n_hidden,
                         time_chunk_cap=None):
    return _forward_impl(words, params, n_words, n_hidden,
                         _bilstm_layer, time_chunk_cap)


# ------------------------- Pure-JAX reference path ------------------------- #
def _bilstm_layer_ref(gx, whh_t_f, whh_t_b, tc, budget):
    """lax.scan reference with the same dtype strategy as the kernel."""
    del tc, budget
    Hp = whh_t_f.shape[0]
    gx_f, gx_b = gx[..., :4 * Hp], gx[..., 4 * Hp:]

    def run(gxd, whh_t):
        Bp = gxd.shape[1]

        def step(carry, g_x):
            h, c = carry
            gates = g_x.astype(jnp.float32) + jnp.dot(
                h, whh_t, preferred_element_type=jnp.float32)
            i = jax.nn.sigmoid(gates[:, :Hp])
            f = jax.nn.sigmoid(gates[:, Hp:2 * Hp])
            g = jnp.tanh(gates[:, 2 * Hp:3 * Hp])
            o = jax.nn.sigmoid(gates[:, 3 * Hp:])
            c_new = f * c + i * g
            h_new = (o * jnp.tanh(c_new)).astype(jnp.bfloat16)
            return (h_new, c_new), h_new

        init = (jnp.zeros((Bp, Hp), jnp.bfloat16),
                jnp.zeros((Bp, Hp), jnp.float32))
        _, hs = jax.lax.scan(step, init, gxd)
        return hs

    fwd = run(gx_f, whh_t_f)
    bwd = run(gx_b[::-1], whh_t_b)[::-1]
    return fwd, bwd


def lstm_encoder_reference(words, params, *, n_words, n_hidden):
    return _forward_impl(words, params, n_words, n_hidden,
                         _bilstm_layer_ref, None)


# ---------------------------------- Main ----------------------------------- #
if __name__ == "__main__":
    N_WORDS = 100
    N_EMBED = 32
    N_HIDDEN = 32
    N_LAYERS = 3
    BATCH = 2

    key = jax.random.PRNGKey(0)
    key, k_params = jax.random.split(key)
    params = init_params(k_params, N_WORDS, N_EMBED, N_HIDDEN, N_LAYERS)

    # Case 1: T=8 -> single chunk, fully-unrolled recurrence path.
    key, k1 = jax.random.split(key)
    words1 = jax.random.randint(k1, (BATCH, 8), 0, N_WORDS, dtype=jnp.int32)
    words1 = words1.at[1, 7].set(-1).at[1, 6].set(-1)   # "pad" (-1) tokens

    out1 = lstm_encoder_forward(words1, params, n_words=N_WORDS,
                                n_hidden=N_HIDDEN)
    out1 = jax.block_until_ready(out1)
    assert out1.shape == (BATCH, 8, 2 * N_HIDDEN), out1.shape
    assert out1.dtype == jnp.float32
    assert bool(jnp.all(jnp.isfinite(out1)))
    ref1 = lstm_encoder_reference(words1, params, n_words=N_WORDS,
                                  n_hidden=N_HIDDEN)
    assert bool(jnp.allclose(out1, ref1, atol=2e-2, rtol=2e-2)), (
        "max abs diff", float(jnp.max(jnp.abs(out1 - ref1))))

    # Case 2: T=13 with a forced chunk of 12 -> exercises the remainder chunk
    # (partial blocks + masked state updates) and the fori_loop recurrence path.
    key, k2 = jax.random.split(key)
    words2 = jax.random.randint(k2, (BATCH, 13), 0, N_WORDS, dtype=jnp.int32)
    words2 = words2.at[0, 12].set(-1)

    out2 = lstm_encoder_forward(words2, params, n_words=N_WORDS,
                                n_hidden=N_HIDDEN, time_chunk_cap=12)
    out2 = jax.block_until_ready(out2)
    assert out2.shape == (BATCH, 13, 2 * N_HIDDEN), out2.shape
    assert out2.dtype == jnp.float32
    assert bool(jnp.all(jnp.isfinite(out2)))
    ref2 = lstm_encoder_reference(words2, params, n_words=N_WORDS,
                                  n_hidden=N_HIDDEN)
    assert bool(jnp.allclose(out2, ref2, atol=2e-2, rtol=2e-2)), (
        "max abs diff", float(jnp.max(jnp.abs(out2 - ref2))))

    print("KERNEL_OK")
</pallas_src>

<mosaic_0001>
module attributes {stable_mosaic.version = 11 : i64} {
  func.func @_bilstm_chunk_kernel(%arg0: i32, %arg1: memref<8x16x512xbf16, #tpu.memory_space<vmem>>, %arg2: memref<8x16x512xbf16, #tpu.memory_space<vmem>>, %arg3: memref<128x512xbf16, #tpu.memory_space<vmem>>, %arg4: memref<128x512xbf16, #tpu.memory_space<vmem>>, %arg5: memref<8x16x128xbf16, #tpu.memory_space<vmem>>, %arg6: memref<8x16x128xbf16, #tpu.memory_space<vmem>>, %arg7: memref<16x128xbf16, #tpu.memory_space<vmem>>, %arg8: memref<16x128xf32, #tpu.memory_space<vmem>>, %arg9: memref<16x128xbf16, #tpu.memory_space<vmem>>, %arg10: memref<16x128xf32, #tpu.memory_space<vmem>>) attributes {dimension_semantics = [#tpu.dimension_semantics<arbitrary>], iteration_bounds = array<i64: 1>, scalar_prefetch = 0 : i64, scratch_operands = 4 : i64, tpu.core_type = #tpu.core_type<tc>, window_params = [{transform_indices = @transform_0, window_bounds = array<i64: 8, 16, 512>}, {transform_indices = @transform_1, window_bounds = array<i64: 8, 16, 512>}, {pipeline_mode = #tpu.pipeline_mode<synchronous>, transform_indices = @transform_2, window_bounds = array<i64: 128, 512>}, {pipeline_mode = #tpu.pipeline_mode<synchronous>, transform_indices = @transform_3, window_bounds = array<i64: 128, 512>}, {transform_indices = @transform_4, window_bounds = array<i64: 8, 16, 128>}, {transform_indices = @transform_5, window_bounds = array<i64: 8, 16, 128>}]} {
    %c0_i32 = arith.constant 0 : i32
    %0 = arith.cmpi eq, %arg0, %c0_i32 : i32
    %1 = arith.extui %0 : i1 to i32
    %c0_i32_0 = arith.constant 0 : i32
    %2 = arith.cmpi ne, %1, %c0_i32_0 : i32
    scf.if %2 {
      %cst_512 = arith.constant 0.000000e+00 : bf16
      %902 = vector.broadcast %cst_512 : bf16 to vector<16x128xbf16>
      %c0_513 = arith.constant 0 : index
      %c0_514 = arith.constant 0 : index
      %903 = vector.load %arg7[%c0_513, %c0_514] : memref<16x128xbf16, #tpu.memory_space<vmem>>, vector<16x128xbf16>
      tpu.vector_store %arg7[%c0_513, %c0_514], %902 {strides = array<i32>} : memref<16x128xbf16, #tpu.memory_space<vmem>>, vector<16x128xbf16>,
      %cst_515 = arith.constant 0.000000e+00 : f32
      %904 = vector.broadcast %cst_515 : f32 to vector<16x128xf32>
      %c0_516 = arith.constant 0 : index
      %c0_517 = arith.constant 0 : index
      %905 = vector.load %arg8[%c0_516, %c0_517] : memref<16x128xf32, #tpu.memory_space<vmem>>, vector<16x128xf32>
      tpu.vector_store %arg8[%c0_516, %c0_517], %904 {strides = array<i32>} : memref<16x128xf32, #tpu.memory_space<vmem>>, vector<16x128xf32>,
      %cst_518 = arith.constant 0.000000e+00 : bf16
      %906 = vector.broadcast %cst_518 : bf16 to vector<16x128xbf16>
      %c0_519 = arith.constant 0 : index
      %c0_520 = arith.constant 0 : index
      %907 = vector.load %arg9[%c0_519, %c0_520] : memref<16x128xbf16, #tpu.memory_space<vmem>>, vector<16x128xbf16>
      tpu.vector_store %arg9[%c0_519, %c0_520], %906 {strides = array<i32>} : memref<16x128xbf16, #tpu.memory_space<vmem>>, vector<16x128xbf16>,
      %cst_521 = arith.constant 0.000000e+00 : f32
      %908 = vector.broadcast %cst_521 : f32 to vector<16x128xf32>
      %c0_522 = arith.constant 0 : index
      %c0_523 = arith.constant 0 : index
      %909 = vector.load %arg10[%c0_522, %c0_523] : memref<16x128xf32, #tpu.memory_space<vmem>>, vector<16x128xf32>
      tpu.vector_store %arg10[%c0_522, %c0_523], %908 {strides = array<i32>} : memref<16x128xf32, #tpu.memory_space<vmem>>, vector<16x128xf32>,
    } else {
    }
    %c8_i32 = arith.constant 8 : i32
    %3 = arith.muli %arg0, %c8_i32 : i32
    %c0_i32_1 = arith.constant 0 : i32
    %4 = arith.subi %c0_i32_1, %arg0 : i32
    %c8_i32_2 = arith.constant 8 : i32
    %5 = arith.muli %4, %c8_i32_2 : i32
    %c0_i32_3 = arith.constant 0 : i32
    %6 = arith.addi %3, %c0_i32_3 : i32
    %c8_i32_4 = arith.constant 8 : i32
    %7 = arith.cmpi slt, %6, %c8_i32_4 : i32
    %c0 = arith.constant 0 : index
    %c0_5 = arith.constant 0 : index
    %8 = vector.load %arg7[%c0, %c0_5] : memref<16x128xbf16, #tpu.memory_space<vmem>>, vector<16x128xbf16>
    %c0_6 = arith.constant 0 : index
    %c0_7 = arith.constant 0 : index
    %9 = vector.load %arg3[%c0_6, %c0_7] : memref<128x512xbf16, #tpu.memory_space<vmem>>, vector<128x512xbf16>
    %cst = arith.constant dense<0.000000e+00> : vector<16x512xf32>
    %10 = tpu.matmul %8, %9, %cst {dimension_numbers = #tpu.dot_dimension_numbers<[1], [0], [0], [1], [0, 0, 1, 1], [], []>} : vector<16x128xbf16>, vector<128x512xbf16>, vector<16x512xf32> -> vector<16x512xf32>
    %11 = vector.extract_strided_slice %10 {offsets = [0, 0], sizes = [16, 128], strides = [1, 1]} : vector<16x512xf32> to vector<16x128xf32>
    %c0_8 = arith.constant 0 : index
    %c0_9 = arith.constant 0 : index
    %c0_10 = arith.constant 0 : index
    %12 = vector.load %arg1[%c0_8, %c0_9, %c0_10] : memref<8x16x512xbf16, #tpu.memory_space<vmem>>, vector<1x16x128xbf16>
    %13 = vector.shape_cast %12 : vector<1x16x128xbf16> to vector<16x128xbf16>
    %14 = arith.extf %13 : vector<16x128xbf16> to vector<16x128xf32>
    %15 = arith.addf %11, %14 : vector<16x128xf32>
    %16 = arith.negf %15 : vector<16x128xf32>
    %17 = math.exp %16 : vector<16x128xf32>
    %cst_11 = arith.constant 1.000000e+00 : f32
    %18 = vector.broadcast %cst_11 : f32 to vector<16x128xf32>
    %19 = arith.addf %18, %17 : vector<16x128xf32>
    %20 = arith.divf %18, %19 : vector<16x128xf32>
    %21 = vector.extract_strided_slice %10 {offsets = [0, 128], sizes = [16, 128], strides = [1, 1]} : vector<16x512xf32> to vector<16x128xf32>
    %c0_12 = arith.constant 0 : index
    %c0_13 = arith.constant 0 : index
    %c128 = arith.constant 128 : index
    %22 = vector.load %arg1[%c0_12, %c0_13, %c128] : memref<8x16x512xbf16, #tpu.memory_space<vmem>>, vector<1x16x128xbf16>
    %23 = vector.shape_cast %22 : vector<1x16x128xbf16> to vector<16x128xbf16>
    %24 = arith.extf %23 : vector<16x128xbf16> to vector<16x128xf32>
    %25 = arith.addf %21, %24 : vector<16x128xf32>
    %26 = arith.negf %25 : vector<16x128xf32>
    %27 = math.exp %26 : vector<16x128xf32>
    %cst_14 = arith.constant 1.000000e+00 : f32
    %28 = vector.broadcast %cst_14 : f32 to vector<16x128xf32>
    %29 = arith.addf %28, %27 : vector<16x128xf32>
    %30 = arith.divf %28, %29 : vector<16x128xf32>
    %31 = vector.extract_strided_slice %10 {offsets = [0, 256], sizes = [16, 128], strides = [1, 1]} : vector<16x512xf32> to vector<16x128xf32>
    %c0_15 = arith.constant 0 : index
    %c0_16 = arith.constant 0 : index
    %c256 = arith.constant 256 : index
    %32 = vector.load %arg1[%c0_15, %c0_16, %c256] : memref<8x16x512xbf16, #tpu.memory_space<vmem>>, vector<1x16x128xbf16>
    %33 = vector.shape_cast %32 : vector<1x16x128xbf16> to vector<16x128xbf16>
    %34 = arith.extf %33 : vector<16x128xbf16> to vector<16x128xf32>
    %35 = arith.addf %31, %34 : vector<16x128xf32>
    %36 = math.tanh %35 : vector<16x128xf32>
    %37 = vector.extract_strided_slice %10 {offsets = [0, 384], sizes = [16, 128], strides = [1, 1]} : vector<16x512xf32> to vector<16x128xf32>
    %c0_17 = arith.constant 0 : index
    %c0_18 = arith.constant 0 : index
    %c384 = arith.constant 384 : index
    %38 = vector.load %arg1[%c0_17, %c0_18, %c384] : memref<8x16x512xbf16, #tpu.memory_space<vmem>>, vector<1x16x128xbf16>
    %39 = vector.shape_cast %38 : vector<1x16x128xbf16> to vector<16x128xbf16>
    %40 = arith.extf %39 : vector<16x128xbf16> to vector<16x128xf32>
    %41 = arith.addf %37, %40 : vector<16x128xf32>
    %42 = arith.negf %41 : vector<16x128xf32>
    %43 = math.exp %42 : vector<16x128xf32>
    %cst_19 = arith.constant 1.000000e+00 : f32
    %44 = vector.broadcast %cst_19 : f32 to vector<16x128xf32>
    %45 = arith.addf %44, %43 : vector<16x128xf32>
    %46 = arith.divf %44, %45 : vector<16x128xf32>
    %c0_20 = arith.constant 0 : index
    %c0_21 = arith.constant 0 : index
    %47 = vector.load %arg8[%c0_20, %c0_21] : memref<16x128xf32, #tpu.memory_space<vmem>>, vector<16x128xf32>
    %48 = arith.mulf %30, %47 : vector<16x128xf32>
    %49 = arith.mulf %20, %36 : vector<16x128xf32>
    %50 = arith.addf %48, %49 : vector<16x128xf32>
    %51 = math.tanh %50 : vector<16x128xf32>
    %52 = arith.mulf %46, %51 : vector<16x128xf32>
    %53 = arith.truncf %52 : vector<16x128xf32> to vector<16x128xbf16>
    %54 = arith.select %7, %50, %47 : vector<16x128xf32>
    %c0_22 = arith.constant 0 : index
    %c0_23 = arith.constant 0 : index
    %55 = vector.load %arg8[%c0_22, %c0_23] : memref<16x128xf32, #tpu.memory_space<vmem>>, vector<16x128xf32>
    tpu.vector_store %arg8[%c0_22, %c0_23], %54 {strides = array<i32>} : memref<16x128xf32, #tpu.memory_space<vmem>>, vector<16x128xf32>,
    %c0_24 = arith.constant 0 : index
    %c0_25 = arith.constant 0 : index
    %56 = vector.load %arg7[%c0_24, %c0_25] : memref<16x128xbf16, #tpu.memory_space<vmem>>, vector<16x128xbf16>
    %57 = arith.select %7, %53, %56 : vector<16x128xbf16>
    %c0_26 = arith.constant 0 : index
    %c0_27 = arith.constant 0 : index
    %58 = vector.load %arg7[%c0_26, %c0_27] : memref<16x128xbf16, #tpu.memory_space<vmem>>, vector<16x128xbf16>
    tpu.vector_store %arg7[%c0_26, %c0_27], %57 {strides = array<i32>} : memref<16x128xbf16, #tpu.memory_space<vmem>>, vector<16x128xbf16>,
    %c0_28 = arith.constant 0 : index
    %c0_29 = arith.constant 0 : index
    %c0_30 = arith.constant 0 : index
    %59 = vector.load %arg5[%c0_28, %c0_29, %c0_30] : memref<8x16x128xbf16, #tpu.memory_space<vmem>>, vector<1x16x128xbf16>
    %60 = vector.shape_cast %59 : vector<1x16x128xbf16> to vector<16x128xbf16>
    %61 = vector.shape_cast %53 : vector<16x128xbf16> to vector<1x16x128xbf16>
    tpu.vector_store %arg5[%c0_28, %c0_29, %c0_30], %61 {strides = array<i32>} : memref<8x16x128xbf16, #tpu.memory_space<vmem>>, vector<1x16x128xbf16>,
    %c7_i32 = arith.constant 7 : i32
    %62 = arith.addi %5, %c7_i32 : i32
    %c8_i32_31 = arith.constant 8 : i32
    %63 = arith.cmpi slt, %62, %c8_i32_31 : i32
    %c0_32 = arith.constant 0 : index
    %c0_33 = arith.constant 0 : index
    %64 = vector.load %arg9[%c0_32, %c0_33] : memref<16x128xbf16, #tpu.memory_space<vmem>>, vector<16x128xbf16>
    %c0_34 = arith.constant 0 : index
    %c0_35 = arith.constant 0 : index
    %65 = vector.load %arg4[%c0_34, %c0_35] : memref<128x512xbf16, #tpu.memory_space<vmem>>, vector<128x512xbf16>
    %cst_36 = arith.constant dense<0.000000e+00> : vector<16x512xf32>
    %66 = tpu.matmul %64, %65, %cst_36 {dimension_numbers = #tpu.dot_dimension_numbers<[1], [0], [0], [1], [0, 0, 1, 1], [], []>} : vector<16x128xbf16>, vector<128x512xbf16>, vector<16x512xf32> -> vector<16x512xf32>
    %67 = vector.extract_strided_slice %66 {offsets = [0, 0], sizes = [16, 128], strides = [1, 1]} : vector<16x512xf32> to vector<16x128xf32>
    %c7 = arith.constant 7 : index
    %c0_37 = arith.constant 0 : index
    %c0_38 = arith.constant 0 : index
    %68 = vector.load %arg2[%c7, %c0_37, %c0_38] : memref<8x16x512xbf16, #tpu.memory_space<vmem>>, vector<1x16x128xbf16>
    %69 = vector.shape_cast %68 : vector<1x16x128xbf16> to vector<16x128xbf16>
    %70 = arith.extf %69 : vector<16x128xbf16> to vector<16x128xf32>
    %71 = arith.addf %67, %70 : vector<16x128xf32>
    %72 = arith.negf %71 : vector<16x128xf32>
    %73 = math.exp %72 : vector<16x128xf32>
    %cst_39 = arith.constant 1.000000e+00 : f32
    %74 = vector.broadcast %cst_39 : f32 to vector<16x128xf32>
    %75 = arith.addf %74, %73 : vector<16x128xf32>
    %76 = arith.divf %74, %75 : vector<16x128xf32>
    %77 = vector.extract_strided_slice %66 {offsets = [0, 128], sizes = [16, 128], strides = [1, 1]} : vector<16x512xf32> to vector<16x128xf32>
    %c7_40 = arith.constant 7 : index
    %c0_41 = arith.constant 0 : index
    %c128_42 = arith.constant 128 : index
    %78 = vector.load %arg2[%c7_40, %c0_41, %c128_42] : memref<8x16x512xbf16, #tpu.memory_space<vmem>>, vector<1x16x128xbf16>
    %79 = vector.shape_cast %78 : vector<1x16x128xbf16> to vector<16x128xbf16>
    %80 = arith.extf %79 : vector<16x128xbf16> to vector<16x128xf32>
    %81 = arith.addf %77, %80 : vector<16x128xf32>
    %82 = arith.negf %81 : vector<16x128xf32>
    %83 = math.exp %82 : vector<16x128xf32>
    %cst_43 = arith.constant 1.000000e+00 : f32
    %84 = vector.broadcast %cst_43 : f32 to vector<16x128xf32>
    %85 = arith.addf %84, %83 : vector<16x128xf32>
    %86 = arith.divf %84, %85 : vector<16x128xf32>
    %87 = vector.extract_strided_slice %66 {offsets = [0, 256], sizes = [16, 128], strides = [1, 1]} : vector<16x512xf32> to vector<16x128xf32>
    %c7_44 = arith.constant 7 : index
    %c0_45 = arith.constant 0 : index
    %c256_46 = arith.constant 256 : index
    %88 = vector.load %arg2[%c7_44, %c0_45, %c256_46] : memref<8x16x512xbf16, #tpu.memory_space<vmem>>, vector<1x16x128xbf16>
    %89 = vector.shape_cast %88 : vector<1x16x128xbf16> to vector<16x128xbf16>
    %90 = arith.extf %89 : vector<16x128xbf16> to vector<16x128xf32>
    %91 = arith.addf %87, %90 : vector<16x128xf32>
    %92 = math.tanh %91 : vector<16x128xf32>
    %93 = vector.extract_strided_slice %66 {offsets = [0, 384], sizes = [16, 128], strides = [1, 1]} : vector<16x512xf32> to vector<16x128xf32>
    %c7_47 = arith.constant 7 : index
    %c0_48 = arith.constant 0 : index
    %c384_49 = arith.constant 384 : index
    %94 = vector.load %arg2[%c7_47, %c0_48, %c384_49] : memref<8x16x512xbf16, #tpu.memory_space<vmem>>, vector<1x16x128xbf16>
    %95 = vector.shape_cast %94 : vector<1x16x128xbf16> to vector<16x128xbf16>
    %96 = arith.extf %95 : vector<16x128xbf16> to vector<16x128xf32>
    %97 = arith.addf %93, %96 : vector<16x128xf32>
    %98 = arith.negf %97 : vector<16x128xf32>
    %99 = math.exp %98 : vector<16x128xf32>
    %cst_50 = arith.constant 1.000000e+00 : f32
    %100 = vector.broadcast %cst_50 : f32 to vector<16x128xf32>
    %101 = arith.addf %100, %99 : vector<16x128xf32>
    %102 = arith.divf %100, %101 : vector<16x128xf32>
    %c0_51 = arith.constant 0 : index
    %c0_52 = arith.constant 0 : index
    %103 = vector.load %arg10[%c0_51, %c0_52] : memref<16x128xf32, #tpu.memory_space<vmem>>, vector<16x128xf32>
    %104 = arith.mulf %86, %103 : vector<16x128xf32>
    %105 = arith.mulf %76, %92 : vector<16x128xf32>
    %106 = arith.addf %104, %105 : vector<16x128xf32>
    %107 = math.tanh %106 : vector<16x128xf32>
    %108 = arith.mulf %102, %107 : vector<16x128xf32>
    %109 = arith.truncf %108 : vector<16x128xf32> to vector<16x128xbf16>
    %110 = arith.select %63, %106, %103 : vector<16x128xf32>
    %c0_53 = arith.constant 0 : index
    %c0_54 = arith.constant 0 : index
    %111 = vector.load %arg10[%c0_53, %c0_54] : memref<16x128xf32, #tpu.memory_space<vmem>>, vector<16x128xf32>
    tpu.vector_store %arg10[%c0_53, %c0_54], %110 {strides = array<i32>} : memref<16x128xf32, #tpu.memory_space<vmem>>, vector<16x128xf32>,
    %c0_55 = arith.constant 0 : index
    %c0_56 = arith.constant 0 : index
    %112 = vector.load %arg9[%c0_55, %c0_56] : memref<16x128xbf16, #tpu.memory_space<vmem>>, vector<16x128xbf16>
    %113 = arith.select %63, %109, %112 : vector<16x128xbf16>
    %c0_57 = arith.constant 0 : index
    %c0_58 = arith.constant 0 : index
    %114 = vector.load %arg9[%c0_57, %c0_58] : memref<16x128xbf16, #tpu.memory_space<vmem>>, vector<16x128xbf16>
    tpu.vector_store %arg9[%c0_57, %c0_58], %113 {strides = array<i32>} : memref<16x128xbf16, #tpu.memory_space<vmem>>, vector<16x128xbf16>,
    %c7_59 = arith.constant 7 : index
    %c0_60 = arith.constant 0 : index
    %c0_61 = arith.constant 0 : index
    %115 = vector.load %arg6[%c7_59, %c0_60, %c0_61] : memref<8x16x128xbf16, #tpu.memory_space<vmem>>, vector<1x16x128xbf16>
    %116 = vector.shape_cast %115 : vector<1x16x128xbf16> to vector<16x128xbf16>
    %117 = vector.shape_cast %109 : vector<16x128xbf16> to vector<1x16x128xbf16>
    tpu.vector_store %arg6[%c7_59, %c0_60, %c0_61], %117 {strides = array<i32>} : memref<8x16x128xbf16, #tpu.memory_space<vmem>>, vector<1x16x128xbf16>,
    %c1_i32 = arith.constant 1 : i32
    %118 = arith.addi %3, %c1_i32 : i32
    %c8_i32_62 = arith.constant 8 : i32
    %119 = arith.cmpi slt, %118, %c8_i32_62 : i32
    %c0_63 = arith.constant 0 : index
    %c0_64 = arith.constant 0 : index
    %120 = vector.load %arg7[%c0_63, %c0_64] : memref<16x128xbf16, #tpu.memory_space<vmem>>, vector<16x128xbf16>
    %c0_65 = arith.constant 0 : index
    %c0_66 = arith.constant 0 : index
    %121 = vector.load %arg3[%c0_65, %c0_66] : memref<128x512xbf16, #tpu.memory_space<vmem>>, vector<128x512xbf16>
    %cst_67 = arith.constant dense<0.000000e+00> : vector<16x512xf32>
    %122 = tpu.matmul %120, %121, %cst_67 {dimension_numbers = #tpu.dot_dimension_numbers<[1], [0], [0], [1], [0, 0, 1, 1], [], []>} : vector<16x128xbf16>, vector<128x512xbf16>, vector<16x512xf32> -> vector<16x512xf32>
    %123 = vector.extract_strided_slice %122 {offsets = [0, 0], sizes = [16, 128], strides = [1, 1]} : vector<16x512xf32> to vector<16x128xf32>
    %c1 = arith.constant 1 : index
    %c0_68 = arith.constant 0 : index
    %c0_69 = arith.constant 0 : index
    %124 = vector.load %arg1[%c1, %c0_68, %c0_69] : memref<8x16x512xbf16, #tpu.memory_space<vmem>>, vector<1x16x128xbf16>
    %125 = vector.shape_cast %124 : vector<1x16x128xbf16> to vector<16x128xbf16>
    %126 = arith.extf %125 : vector<16x128xbf16> to vector<16x128xf32>
    %127 = arith.addf %123, %126 : vector<16x128xf32>
    %128 = arith.negf %127 : vector<16x128xf32>
    %129 = math.exp %128 : vector<16x128xf32>
    %cst_70 = arith.constant 1.000000e+00 : f32
    %130 = vector.broadcast %cst_70 : f32 to vector<16x128xf32>
    %131 = arith.addf %130, %129 : vector<16x128xf32>
    %132 = arith.divf %130, %131 : vector<16x128xf32>
    %133 = vector.extract_strided_slice %122 {offsets = [0, 128], sizes = [16, 128], strides = [1, 1]} : vector<16x512xf32> to vector<16x128xf32>
    %c1_71 = arith.constant 1 : index
    %c0_72 = arith.constant 0 : index
    %c128_73 = arith.constant 128 : index
    %134 = vector.load %arg1[%c1_71, %c0_72, %c128_73] : memref<8x16x512xbf16, #tpu.memory_space<vmem>>, vector<1x16x128xbf16>
    %135 = vector.shape_cast %134 : vector<1x16x128xbf16> to vector<16x128xbf16>
    %136 = arith.extf %135 : vector<16x128xbf16> to vector<16x128xf32>
    %137 = arith.addf %133, %136 : vector<16x128xf32>
    %138 = arith.negf %137 : vector<16x128xf32>
    %139 = math.exp %138 : vector<16x128xf32>
    %cst_74 = arith.constant 1.000000e+00 : f32
    %140 = vector.broadcast %cst_74 : f32 to vector<16x128xf32>
    %141 = arith.addf %140, %139 : vector<16x128xf32>
    %142 = arith.divf %140, %141 : vector<16x128xf32>
    %143 = vector.extract_strided_slice %122 {offsets = [0, 256], sizes = [16, 128], strides = [1, 1]} : vector<16x512xf32> to vector<16x128xf32>
    %c1_75 = arith.constant 1 : index
    %c0_76 = arith.constant 0 : index
    %c256_77 = arith.constant 256 : index
    %144 = vector.load %arg1[%c1_75, %c0_76, %c256_77] : memref<8x16x512xbf16, #tpu.memory_space<vmem>>, vector<1x16x128xbf16>
    %145 = vector.shape_cast %144 : vector<1x16x128xbf16> to vector<16x128xbf16>
    %146 = arith.extf %145 : vector<16x128xbf16> to vector<16x128xf32>
    %147 = arith.addf %143, %146 : vector<16x128xf32>
    %148 = math.tanh %147 : vector<16x128xf32>
    %149 = vector.extract_strided_slice %122 {offsets = [0, 384], sizes = [16, 128], strides = [1, 1]} : vector<16x512xf32> to vector<16x128xf32>
    %c1_78 = arith.constant 1 : index
    %c0_79 = arith.constant 0 : index
    %c384_80 = arith.constant 384 : index
    %150 = vector.load %arg1[%c1_78, %c0_79, %c384_80] : memref<8x16x512xbf16, #tpu.memory_space<vmem>>, vector<1x16x128xbf16>
    %151 = vector.shape_cast %150 : vector<1x16x128xbf16> to vector<16x128xbf16>
    %152 = arith.extf %151 : vector<16x128xbf16> to vector<16x128xf32>
    %153 = arith.addf %149, %152 : vector<16x128xf32>
    %154 = arith.negf %153 : vector<16x128xf32>
    %155 = math.exp %154 : vector<16x128xf32>
    %cst_81 = arith.constant 1.000000e+00 : f32
    %156 = vector.broadcast %cst_81 : f32 to vector<16x128xf32>
    %157 = arith.addf %156, %155 : vector<16x128xf32>
    %158 = arith.divf %156, %157 : vector<16x128xf32>
    %c0_82 = arith.constant 0 : index
    %c0_83 = arith.constant 0 : index
    %159 = vector.load %arg8[%c0_82, %c0_83] : memref<16x128xf32, #tpu.memory_space<vmem>>, vector<16x128xf32>
    %160 = arith.mulf %142, %159 : vector<16x128xf32>
    %161 = arith.mulf %132, %148 : vector<16x128xf32>
    %162 = arith.addf %160, %161 : vector<16x128xf32>
    %163 = math.tanh %162 : vector<16x128xf32>
    %164 = arith.mulf %158, %163 : vector<16x128xf32>
    %165 = arith.truncf %164 : vector<16x128xf32> to vector<16x128xbf16>
    %166 = arith.select %119, %162, %159 : vector<16x128xf32>
    %c0_84 = arith.constant 0 : index
    %c0_85 = arith.constant 0 : index
    %167 = vector.load %arg8[%c0_84, %c0_85] : memref<16x128xf32, #tpu.memory_space<vmem>>, vector<16x128xf32>
    tpu.vector_store %arg8[%c0_84, %c0_85], %166 {strides = array<i32>} : memref<16x128xf32, #tpu.memory_space<vmem>>, vector<16x128xf32>,
    %c0_86 = arith.constant 0 : index
    %c0_87 = arith.constant 0 : index
    %168 = vector.load %arg7[%c0_86, %c0_87] : memref<16x128xbf16, #tpu.memory_space<vmem>>, vector<16x128xbf16>
    %169 = arith.select %119, %165, %168 : vector<16x128xbf16>
    %c0_88 = arith.constant 0 : index
    %c0_89 = arith.constant 0 : index
    %170 = vector.load %arg7[%c0_88, %c0_89] : memref<16x128xbf16, #tpu.memory_space<vmem>>, vector<16x128xbf16>
    tpu.vector_store %arg7[%c0_88, %c0_89], %169 {strides = array<i32>} : memref<16x128xbf16, #tpu.memory_space<vmem>>, vector<16x128xbf16>,
    %c1_90 = arith.constant 1 : index
    %c0_91 = arith.constant 0 : index
    %c0_92 = arith.constant 0 : index
    %171 = vector.load %arg5[%c1_90, %c0_91, %c0_92] : memref<8x16x128xbf16, #tpu.memory_space<vmem>>, vector<1x16x128xbf16>
    %172 = vector.shape_cast %171 : vector<1x16x128xbf16> to vector<16x128xbf16>
    %173 = vector.shape_cast %165 : vector<16x128xbf16> to vector<1x16x128xbf16>
    tpu.vector_store %arg5[%c1_90, %c0_91, %c0_92], %173 {strides = array<i32>} : memref<8x16x128xbf16, #tpu.memory_space<vmem>>, vector<1x16x128xbf16>,
    %c6_i32 = arith.constant 6 : i32
    %174 = arith.addi %5, %c6_i32 : i32
    %c8_i32_93 = arith.constant 8 : i32
    %175 = arith.cmpi slt, %174, %c8_i32_93 : i32
    %c0_94 = arith.constant 0 : index
    %c0_95 = arith.constant 0 : index
    %176 = vector.load %arg9[%c0_94, %c0_95] : memref<16x128xbf16, #tpu.memory_space<vmem>>, vector<16x128xbf16>
    %c0_96 = arith.constant 0 : index
    %c0_97 = arith.constant 0 : index
    %177 = vector.load %arg4[%c0_96, %c0_97] : memref<128x512xbf16, #tpu.memory_space<vmem>>, vector<128x512xbf16>
    %cst_98 = arith.constant dense<0.000000e+00> : vector<16x512xf32>
    %178 = tpu.matmul %176, %177, %cst_98 {dimension_numbers = #tpu.dot_dimension_numbers<[1], [0], [0], [1], [0, 0, 1, 1], [], []>} : vector<16x128xbf16>, vector<128x512xbf16>, vector<16x512xf32> -> vector<16x512xf32>
    %179 = vector.extract_strided_slice %178 {offsets = [0, 0], sizes = [16, 128], strides = [1, 1]} : vector<16x512xf32> to vector<16x128xf32>
    %c6 = arith.constant 6 : index
    %c0_99 = arith.constant 0 : index
    %c0_100 = arith.constant 0 : index
    %180 = vector.load %arg2[%c6, %c0_99, %c0_100] : memref<8x16x512xbf16, #tpu.memory_space<vmem>>, vector<1x16x128xbf16>
    %181 = vector.shape_cast %180 : vector<1x16x128xbf16> to vector<16x128xbf16>
    %182 = arith.extf %181 : vector<16x128xbf16> to vector<16x128xf32>
    %183 = arith.addf %179, %182 : vector<16x128xf32>
    %184 = arith.negf %183 : vector<16x128xf32>
    %185 = math.exp %184 : vector<16x128xf32>
    %cst_101 = arith.constant 1.000000e+00 : f32
    %186 = vector.broadcast %cst_101 : f32 to vector<16x128xf32>
    %187 = arith.addf %186, %185 : vector<16x128xf32>
    %188 = arith.divf %186, %187 : vector<16x128xf32>
    %189 = vector.extract_strided_slice %178 {offsets = [0, 128], sizes = [16, 128], strides = [1, 1]} : vector<16x512xf32> to vector<16x128xf32>
    %c6_102 = arith.constant 6 : index
    %c0_103 = arith.constant 0 : index
    %c128_104 = arith.constant 128 : index
    %190 = vector.load %arg2[%c6_102, %c0_103, %c128_104] : memref<8x16x512xbf16, #tpu.memory_space<vmem>>, vector<1x16x128xbf16>
    %191 = vector.shape_cast %190 : vector<1x16x128xbf16> to vector<16x128xbf16>
    %192 = arith.extf %191 : vector<16x128xbf16> to vector<16x128xf32>
    %193 = arith.addf %189, %192 : vector<16x128xf32>
    %194 = arith.negf %193 : vector<16x128xf32>
    %195 = math.exp %194 : vector<16x128xf32>
    %cst_105 = arith.constant 1.000000e+00 : f32
    %196 = vector.broadcast %cst_105 : f32 to vector<16x128xf32>
    %197 = arith.addf %196, %195 : vector<16x128xf32>
    %198 = arith.divf %196, %197 : vector<16x128xf32>
    %199 = vector.extract_strided_slice %178 {offsets = [0, 256], sizes = [16, 128], strides = [1, 1]} : vector<16x512xf32> to vector<16x128xf32>
    %c6_106 = arith.constant 6 : index
    %c0_107 = arith.constant 0 : index
    %c256_108 = arith.constant 256 : index
    %200 = vector.load %arg2[%c6_106, %c0_107, %c256_108] : memref<8x16x512xbf16, #tpu.memory_space<vmem>>, vector<1x16x128xbf16>
    %201 = vector.shape_cast %200 : vector<1x16x128xbf16> to vector<16x128xbf16>
    %202 = arith.extf %201 : vector<16x128xbf16> to vector<16x128xf32>
    %203 = arith.addf %199, %202 : vector<16x128xf32>
    %204 = math.tanh %203 : vector<16x128xf32>
    %205 = vector.extract_strided_slice %178 {offsets = [0, 384], sizes = [16, 128], strides = [1, 1]} : vector<16x512xf32> to vector<16x128xf32>
    %c6_109 = arith.constant 6 : index
    %c0_110 = arith.constant 0 : index
    %c384_111 = arith.constant 384 : index
    %206 = vector.load %arg2[%c6_109, %c0_110, %c384_111] : memref<8x16x512xbf16, #tpu.memory_space<vmem>>, vector<1x16x128xbf16>
    %207 = vector.shape_cast %206 : vector<1x16x128xbf16> to vector<16x128xbf16>
    %208 = arith.extf %207 : vector<16x128xbf16> to vector<16x128xf32>
    %209 = arith.addf %205, %208 : vector<16x128xf32>
    %210 = arith.negf %209 : vector<16x128xf32>
    %211 = math.exp %210 : vector<16x128xf32>
    %cst_112 = arith.constant 1.000000e+00 : f32
    %212 = vector.broadcast %cst_112 : f32 to vector<16x128xf32>
    %213 = arith.addf %212, %211 : vector<16x128xf32>
    %214 = arith.divf %212, %213 : vector<16x128xf32>
    %c0_113 = arith.constant 0 : index
    %c0_114 = arith.constant 0 : index
    %215 = vector.load %arg10[%c0_113, %c0_114] : memref<16x128xf32, #tpu.memory_space<vmem>>, vector<16x128xf32>
    %216 = arith.mulf %198, %215 : vector<16x128xf32>
    %217 = arith.mulf %188, %204 : vector<16x128xf32>
    %218 = arith.addf %216, %217 : vector<16x128xf32>
    %219 = math.tanh %218 : vector<16x128xf32>
    %220 = arith.mulf %214, %219 : vector<16x128xf32>
    %221 = arith.truncf %220 : vector<16x128xf32> to vector<16x128xbf16>
    %222 = arith.select %175, %218, %215 : vector<16x128xf32>
    %c0_115 = arith.constant 0 : index
    %c0_116 = arith.constant 0 : index
    %223 = vector.load %arg10[%c0_115, %c0_116] : memref<16x128xf32, #tpu.memory_space<vmem>>, vector<16x128xf32>
    tpu.vector_store %arg10[%c0_115, %c0_116], %222 {strides = array<i32>} : memref<16x128xf32, #tpu.memory_space<vmem>>, vector<16x128xf32>,
    %c0_117 = arith.constant 0 : index
    %c0_118 = arith.constant 0 : index
    %224 = vector.load %arg9[%c0_117, %c0_118] : memref<16x128xbf16, #tpu.memory_space<vmem>>, vector<16x128xbf16>
    %225 = arith.select %175, %221, %224 : vector<16x128xbf16>
    %c0_119 = arith.constant 0 : index
    %c0_120 = arith.constant 0 : index
    %226 = vector.load %arg9[%c0_119, %c0_120] : memref<16x128xbf16, #tpu.memory_space<vmem>>, vector<16x128xbf16>
    tpu.vector_store %arg9[%c0_119, %c0_120], %225 {strides = array<i32>} : memref<16x128xbf16, #tpu.memory_space<vmem>>, vector<16x128xbf16>,
    %c6_121 = arith.constant 6 : index
    %c0_122 = arith.constant 0 : index
    %c0_123 = arith.constant 0 : index
    %227 = vector.load %arg6[%c6_121, %c0_122, %c0_123] : memref<8x16x128xbf16, #tpu.memory_space<vmem>>, vector<1x16x128xbf16>
    %228 = vector.shape_cast %227 : vector<1x16x128xbf16> to vector<16x128xbf16>
    %229 = vector.shape_cast %221 : vector<16x128xbf16> to vector<1x16x128xbf16>
    tpu.vector_store %arg6[%c6_121, %c0_122, %c0_123], %229 {strides = array<i32>} : memref<8x16x128xbf16, #tpu.memory_space<vmem>>, vector<1x16x128xbf16>,
    %c2_i32 = arith.constant 2 : i32
    %230 = arith.addi %3, %c2_i32 : i32
    %c8_i32_124 = arith.constant 8 : i32
    %231 = arith.cmpi slt, %230, %c8_i32_124 : i32
    %c0_125 = arith.constant 0 : index
    %c0_126 = arith.constant 0 : index
    %232 = vector.load %arg7[%c0_125, %c0_126] : memref<16x128xbf16, #tpu.memory_space<vmem>>, vector<16x128xbf16>
    %c0_127 = arith.constant 0 : index
    %c0_128 = arith.constant 0 : index
    %233 = vector.load %arg3[%c0_127, %c0_128] : memref<128x512xbf16, #tpu.memory_space<vmem>>, vector<128x512xbf16>
    %cst_129 = arith.constant dense<0.000000e+00> : vector<16x512xf32>
    %234 = tpu.matmul %232, %233, %cst_129 {dimension_numbers = #tpu.dot_dimension_numbers<[1], [0], [0], [1], [0, 0, 1, 1], [], []>} : vector<16x128xbf16>, vector<128x512xbf16>, vector<16x512xf32> -> vector<16x512xf32>
    %235 = vector.extract_strided_slice %234 {offsets = [0, 0], sizes = [16, 128], strides = [1, 1]} : vector<16x512xf32> to vector<16x128xf32>
    %c2 = arith.constant 2 : index
    %c0_130 = arith.constant 0 : index
    %c0_131 = arith.constant 0 : index
    %236 = vector.load %arg1[%c2, %c0_130, %c0_131] : memref<8x16x512xbf16, #tpu.memory_space<vmem>>, vector<1x16x128xbf16>
    %237 = vector.shape_cast %236 : vector<1x16x128xbf16> to vector<16x128xbf16>
    %238 = arith.extf %237 : vector<16x128xbf16> to vector<16x128xf32>
    %239 = arith.addf %235, %238 : vector<16x128xf32>
    %240 = arith.negf %239 : vector<16x128xf32>
    %241 = math.exp %240 : vector<16x128xf32>
    %cst_132 = arith.constant 1.000000e+00 : f32
    %242 = vector.broadcast %cst_132 : f32 to vector<16x128xf32>
    %243 = arith.addf %242, %241 : vector<16x128xf32>
    %244 = arith.divf %242, %243 : vector<16x128xf32>
    %245 = vector.extract_strided_slice %234 {offsets = [0, 128], sizes = [16, 128], strides = [1, 1]} : vector<16x512xf32> to vector<16x128xf32>
    %c2_133 = arith.constant 2 : index
    %c0_134 = arith.constant 0 : index
    %c128_135 = arith.constant 128 : index
    %246 = vector.load %arg1[%c2_133, %c0_134, %c128_135] : memref<8x16x512xbf16, #tpu.memory_space<vmem>>, vector<1x16x128xbf16>
    %247 = vector.shape_cast %246 : vector<1x16x128xbf16> to vector<16x128xbf16>
    %248 = arith.extf %247 : vector<16x128xbf16> to vector<16x128xf32>
    %249 = arith.addf %245, %248 : vector<16x128xf32>
    %250 = arith.negf %249 : vector<16x128xf32>
    %251 = math.exp %250 : vector<16x128xf32>
    %cst_136 = arith.constant 1.000000e+00 : f32
    %252 = vector.broadcast %cst_136 : f32 to vector<16x128xf32>
    %253 = arith.addf %252, %251 : vector<16x128xf32>
    %254 = arith.divf %252, %253 : vector<16x128xf32>
    %255 = vector.extract_strided_slice %234 {offsets = [0, 256], sizes = [16, 128], strides = [1, 1]} : vector<16x512xf32> to vector<16x128xf32>
    %c2_137 = arith.constant 2 : index
    %c0_138 = arith.constant 0 : index
    %c256_139 = arith.constant 256 : index
    %256 = vector.load %arg1[%c2_137, %c0_138, %c256_139] : memref<8x16x512xbf16, #tpu.memory_space<vmem>>, vector<1x16x128xbf16>
    %257 = vector.shape_cast %256 : vector<1x16x128xbf16> to vector<16x128xbf16>
    %258 = arith.extf %257 : vector<16x128xbf16> to vector<16x128xf32>
    %259 = arith.addf %255, %258 : vector<16x128xf32>
    %260 = math.tanh %259 : vector<16x128xf32>
    %261 = vector.extract_strided_slice %234 {offsets = [0, 384], sizes = [16, 128], strides = [1, 1]} : vector<16x512xf32> to vector<16x128xf32>
    %c2_140 = arith.constant 2 : index
    %c0_141 = arith.constant 0 : index
    %c384_142 = arith.constant 384 : index
    %262 = vector.load %arg1[%c2_140, %c0_141, %c384_142] : memref<8x16x512xbf16, #tpu.memory_space<vmem>>, vector<1x16x128xbf16>
    %263 = vector.shape_cast %262 : vector<1x16x128xbf16> to vector<16x128xbf16>
    %264 = arith.extf %263 : vector<16x128xbf16> to vector<16x128xf32>
    %265 = arith.addf %261, %264 : vector<16x128xf32>
    %266 = arith.negf %265 : vector<16x128xf32>
    %267 = math.exp %266 : vector<16x128xf32>
    %cst_143 = arith.constant 1.000000e+00 : f32
    %268 = vector.broadcast %cst_143 : f32 to vector<16x128xf32>
    %269 = arith.addf %268, %267 : vector<16x128xf32>
    %270 = arith.divf %268, %269 : vector<16x128xf32>
    %c0_144 = arith.constant 0 : index
    %c0_145 = arith.constant 0 : index
    %271 = vector.load %arg8[%c0_144, %c0_145] : memref<16x128xf32, #tpu.memory_space<vmem>>, vector<16x128xf32>
    %272 = arith.mulf %254, %271 : vector<16x128xf32>
    %273 = arith.mulf %244, %260 : vector<16x128xf32>
    %274 = arith.addf %272, %273 : vector<16x128xf32>
    %275 = math.tanh %274 : vector<16x128xf32>
    %276 = arith.mulf %270, %275 : vector<16x128xf32>
    %277 = arith.truncf %276 : vector<16x128xf32> to vector<16x128xbf16>
    %278 = arith.select %231, %274, %271 : vector<16x128xf32>
    %c0_146 = arith.constant 0 : index
    %c0_147 = arith.constant 0 : index
    %279 = vector.load %arg8[%c0_146, %c0_147] : memref<16x128xf32, #tpu.memory_space<vmem>>, vector<16x128xf32>
    tpu.vector_store %arg8[%c0_146, %c0_147], %278 {strides = array<i32>} : memref<16x128xf32, #tpu.memory_space<vmem>>, vector<16x128xf32>,
    %c0_148 = arith.constant 0 : index
    %c0_149 = arith.constant 0 : index
    %280 = vector.load %arg7[%c0_148, %c0_149] : memref<16x128xbf16, #tpu.memory_space<vmem>>, vector<16x128xbf16>
    %281 = arith.select %231, %277, %280 : vector<16x128xbf16>
    %c0_150 = arith.constant 0 : index
    %c0_151 = arith.constant 0 : index
    %282 = vector.load %arg7[%c0_150, %c0_151] : memref<16x128xbf16, #tpu.memory_space<vmem>>, vector<16x128xbf16>
    tpu.vector_store %arg7[%c0_150, %c0_151], %281 {strides = array<i32>} : memref<16x128xbf16, #tpu.memory_space<vmem>>, vector<16x128xbf16>,
    %c2_152 = arith.constant 2 : index
    %c0_153 = arith.constant 0 : index
    %c0_154 = arith.constant 0 : index
    %283 = vector.load %arg5[%c2_152, %c0_153, %c0_154] : memref<8x16x128xbf16, #tpu.memory_space<vmem>>, vector<1x16x128xbf16>
    %284 = vector.shape_cast %283 : vector<1x16x128xbf16> to vector<16x128xbf16>
    %285 = vector.shape_cast %277 : vector<16x128xbf16> to vector<1x16x128xbf16>
    tpu.vector_store %arg5[%c2_152, %c0_153, %c0_154], %285 {strides = array<i32>} : memref<8x16x128xbf16, #tpu.memory_space<vmem>>, vector<1x16x128xbf16>,
    %c5_i32 = arith.constant 5 : i32
    %286 = arith.addi %5, %c5_i32 : i32
    %c8_i32_155 = arith.constant 8 : i32
    %287 = arith.cmpi slt, %286, %c8_i32_155 : i32
    %c0_156 = arith.constant 0 : index
    %c0_157 = arith.constant 0 : index
    %288 = vector.load %arg9[%c0_156, %c0_157] : memref<16x128xbf16, #tpu.memory_space<vmem>>, vector<16x128xbf16>
    %c0_158 = arith.constant 0 : index
    %c0_159 = arith.constant 0 : index
    %289 = vector.load %arg4[%c0_158, %c0_159] : memref<128x512xbf16, #tpu.memory_space<vmem>>, vector<128x512xbf16>
    %cst_160 = arith.constant dense<0.000000e+00> : vector<16x512xf32>
    %290 = tpu.matmul %288, %289, %cst_160 {dimension_numbers = #tpu.dot_dimension_numbers<[1], [0], [0], [1], [0, 0, 1, 1], [], []>} : vector<16x128xbf16>, vector<128x512xbf16>, vector<16x512xf32> -> vector<16x512xf32>
    %291 = vector.extract_strided_slice %290 {offsets = [0, 0], sizes = [16, 128], strides = [1, 1]} : vector<16x512xf32> to vector<16x128xf32>
    %c5 = arith.constant 5 : index
    %c0_161 = arith.constant 0 : index
    %c0_162 = arith.constant 0 : index
    %292 = vector.load %arg2[%c5, %c0_161, %c0_162] : memref<8x16x512xbf16, #tpu.memory_space<vmem>>, vector<1x16x128xbf16>
    %293 = vector.shape_cast %292 : vector<1x16x128xbf16> to vector<16x128xbf16>
    %294 = arith.extf %293 : vector<16x128xbf16> to vector<16x128xf32>
    %295 = arith.addf %291, %294 : vector<16x128xf32>
    %296 = arith.negf %295 : vector<16x128xf32>
    %297 = math.exp %296 : vector<16x128xf32>
    %cst_163 = arith.constant 1.000000e+00 : f32
    %298 = vector.broadcast %cst_163 : f32 to vector<16x128xf32>
    %299 = arith.addf %298, %297 : vector<16x128xf32>
    %300 = arith.divf %298, %299 : vector<16x128xf32>
    %301 = vector.extract_strided_slice %290 {offsets = [0, 128], sizes = [16, 128], strides = [1, 1]} : vector<16x512xf32> to vector<16x128xf32>
    %c5_164 = arith.constant 5 : index
    %c0_165 = arith.constant 0 : index
    %c128_166 = arith.constant 128 : index
    %302 = vector.load %arg2[%c5_164, %c0_165, %c128_166] : memref<8x16x512xbf16, #tpu.memory_space<vmem>>, vector<1x16x128xbf16>
    %303 = vector.shape_cast %302 : vector<1x16x128xbf16> to vector<16x128xbf16>
    %304 = arith.extf %303 : vector<16x128xbf16> to vector<16x128xf32>
    %305 = arith.addf %301, %304 : vector<16x128xf32>
    %306 = arith.negf %305 : vector<16x128xf32>
    %307 = math.exp %306 : vector<16x128xf32>
    %cst_167 = arith.constant 1.000000e+00 : f32
    %308 = vector.broadcast %cst_167 : f32 to vector<16x128xf32>
    %309 = arith.addf %308, %307 : vector<16x128xf32>
    %310 = arith.divf %308, %309 : vector<16x128xf32>
    %311 = vector.extract_strided_slice %290 {offsets = [0, 256], sizes = [16, 128], strides = [1, 1]} : vector<16x512xf32> to vector<16x128xf32>
    %c5_168 = arith.constant 5 : index
    %c0_169 = arith.constant 0 : index
    %c256_170 = arith.constant 256 : index
    %312 = vector.load %arg2[%c5_168, %c0_169, %c256_170] : memref<8x16x512xbf16, #tpu.memory_space<vmem>>, vector<1x16x128xbf16>
    %313 = vector.shape_cast %312 : vector<1x16x128xbf16> to vector<16x128xbf16>
    %314 = arith.extf %313 : vector<16x128xbf16> to vector<16x128xf32>
    %315 = arith.addf %311, %314 : vector<16x128xf32>
    %316 = math.tanh %315 : vector<16x128xf32>
    %317 = vector.extract_strided_slice %290 {offsets = [0, 384], sizes = [16, 128], strides = [1, 1]} : vector<16x512xf32> to vector<16x128xf32>
    %c5_171 = arith.constant 5 : index
    %c0_172 = arith.constant 0 : index
    %c384_173 = arith.constant 384 : index
    %318 = vector.load %arg2[%c5_171, %c0_172, %c384_173] : memref<8x16x512xbf16, #tpu.memory_space<vmem>>, vector<1x16x128xbf16>
    %319 = vector.shape_cast %318 : vector<1x16x128xbf16> to vector<16x128xbf16>
    %320 = arith.extf %319 : vector<16x128xbf16> to vector<16x128xf32>
    %321 = arith.addf %317, %320 : vector<16x128xf32>
    %322 = arith.negf %321 : vector<16x128xf32>
    %323 = math.exp %322 : vector<16x128xf32>
    %cst_174 = arith.constant 1.000000e+00 : f32
    %324 = vector.broadcast %cst_174 : f32 to vector<16x128xf32>
    %325 = arith.addf %324, %323 : vector<16x128xf32>
    %326 = arith.divf %324, %325 : vector<16x128xf32>
    %c0_175 = arith.constant 0 : index
    %c0_176 = arith.constant 0 : index
    %327 = vector.load %arg10[%c0_175, %c0_176] : memref<16x128xf32, #tpu.memory_space<vmem>>, vector<16x128xf32>
    %328 = arith.mulf %310, %327 : vector<16x128xf32>
    %329 = arith.mulf %300, %316 : vector<16x128xf32>
    %330 = arith.addf %328, %329 : vector<16x128xf32>
    %331 = math.tanh %330 : vector<16x128xf32>
    %332 = arith.mulf %326, %331 : vector<16x128xf32>
    %333 = arith.truncf %332 : vector<16x128xf32> to vector<16x128xbf16>
    %334 = arith.select %287, %330, %327 : vector<16x128xf32>
    %c0_177 = arith.constant 0 : index
    %c0_178 = arith.constant 0 : index
    %335 = vector.load %arg10[%c0_177, %c0_178] : memref<16x128xf32, #tpu.memory_space<vmem>>, vector<16x128xf32>
    tpu.vector_store %arg10[%c0_177, %c0_178], %334 {strides = array<i32>} : memref<16x128xf32, #tpu.memory_space<vmem>>, vector<16x128xf32>,
    %c0_179 = arith.constant 0 : index
    %c0_180 = arith.constant 0 : index
    %336 = vector.load %arg9[%c0_179, %c0_180] : memref<16x128xbf16, #tpu.memory_space<vmem>>, vector<16x128xbf16>
    %337 = arith.select %287, %333, %336 : vector<16x128xbf16>
    %c0_181 = arith.constant 0 : index
    %c0_182 = arith.constant 0 : index
    %338 = vector.load %arg9[%c0_181, %c0_182] : memref<16x128xbf16, #tpu.memory_space<vmem>>, vector<16x128xbf16>
    tpu.vector_store %arg9[%c0_181, %c0_182], %337 {strides = array<i32>} : memref<16x128xbf16, #tpu.memory_space<vmem>>, vector<16x128xbf16>,
    %c5_183 = arith.constant 5 : index
    %c0_184 = arith.constant 0 : index
    %c0_185 = arith.constant 0 : index
    %339 = vector.load %arg6[%c5_183, %c0_184, %c0_185] : memref<8x16x128xbf16, #tpu.memory_space<vmem>>, vector<1x16x128xbf16>
    %340 = vector.shape_cast %339 : vector<1x16x128xbf16> to vector<16x128xbf16>
    %341 = vector.shape_cast %333 : vector<16x128xbf16> to vector<1x16x128xbf16>
    tpu.vector_store %arg6[%c5_183, %c0_184, %c0_185], %341 {strides = array<i32>} : memref<8x16x128xbf16, #tpu.memory_space<vmem>>, vector<1x16x128xbf16>,
    %c3_i32 = arith.constant 3 : i32
    %342 = arith.addi %3, %c3_i32 : i32
    %c8_i32_186 = arith.constant 8 : i32
    %343 = arith.cmpi slt, %342, %c8_i32_186 : i32
    %c0_187 = arith.constant 0 : index
    %c0_188 = arith.constant 0 : index
    %344 = vector.load %arg7[%c0_187, %c0_188] : memref<16x128xbf16, #tpu.memory_space<vmem>>, vector<16x128xbf16>
    %c0_189 = arith.constant 0 : index
    %c0_190 = arith.constant 0 : index
    %345 = vector.load %arg3[%c0_189, %c0_190] : memref<128x512xbf16, #tpu.memory_space<vmem>>, vector<128x512xbf16>
    %cst_191 = arith.constant dense<0.000000e+00> : vector<16x512xf32>
    %346 = tpu.matmul %344, %345, %cst_191 {dimension_numbers = #tpu.dot_dimension_numbers<[1], [0], [0], [1], [0, 0, 1, 1], [], []>} : vector<16x128xbf16>, vector<128x512xbf16>, vector<16x512xf32> -> vector<16x512xf32>
    %347 = vector.extract_strided_slice %346 {offsets = [0, 0], sizes = [16, 128], strides = [1, 1]} : vector<16x512xf32> to vector<16x128xf32>
    %c3 = arith.constant 3 : index
    %c0_192 = arith.constant 0 : index
    %c0_193 = arith.constant 0 : index
    %348 = vector.load %arg1[%c3, %c0_192, %c0_193] : memref<8x16x512xbf16, #tpu.memory_space<vmem>>, vector<1x16x128xbf16>
    %349 = vector.shape_cast %348 : vector<1x16x128xbf16> to vector<16x128xbf16>
    %350 = arith.extf %349 : vector<16x128xbf16> to vector<16x128xf32>
    %351 = arith.addf %347, %350 : vector<16x128xf32>
    %352 = arith.negf %351 : vector<16x128xf32>
    %353 = math.exp %352 : vector<16x128xf32>
    %cst_194 = arith.constant 1.000000e+00 : f32
    %354 = vector.broadcast %cst_194 : f32 to vector<16x128xf32>
    %355 = arith.addf %354, %353 : vector<16x128xf32>
    %356 = arith.divf %354, %355 : vector<16x128xf32>
    %357 = vector.extract_strided_slice %346 {offsets = [0, 128], sizes = [16, 128], strides = [1, 1]} : vector<16x512xf32> to vector<16x128xf32>
    %c3_195 = arith.constant 3 : index
    %c0_196 = arith.constant 0 : index
    %c128_197 = arith.constant 128 : index
    %358 = vector.load %arg1[%c3_195, %c0_196, %c128_197] : memref<8x16x512xbf16, #tpu.memory_space<vmem>>, vector<1x16x128xbf16>
    %359 = vector.shape_cast %358 : vector<1x16x128xbf16> to vector<16x128xbf16>
    %360 = arith.extf %359 : vector<16x128xbf16> to vector<16x128xf32>
    %361 = arith.addf %357, %360 : vector<16x128xf32>
    %362 = arith.negf %361 : vector<16x128xf32>
    %363 = math.exp %362 : vector<16x128xf32>
    %cst_198 = arith.constant 1.000000e+00 : f32
    %364 = vector.broadcast %cst_198 : f32 to vector<16x128xf32>
    %365 = arith.addf %364, %363 : vector<16x128xf32>
    %366 = arith.divf %364, %365 : vector<16x128xf32>
    %367 = vector.extract_strided_slice %346 {offsets = [0, 256], sizes = [16, 128], strides = [1, 1]} : vector<16x512xf32> to vector<16x128xf32>
    %c3_199 = arith.constant 3 : index
    %c0_200 = arith.constant 0 : index
    %c256_201 = arith.constant 256 : index
    %368 = vector.load %arg1[%c3_199, %c0_200, %c256_201] : memref<8x16x512xbf16, #tpu.memory_space<vmem>>, vector<1x16x128xbf16>
    %369 = vector.shape_cast %368 : vector<1x16x128xbf16> to vector<16x128xbf16>
    %370 = arith.extf %369 : vector<16x128xbf16> to vector<16x128xf32>
    %371 = arith.addf %367, %370 : vector<16x128xf32>
    %372 = math.tanh %371 : vector<16x128xf32>
    %373 = vector.extract_strided_slice %346 {offsets = [0, 384], sizes = [16, 128], strides = [1, 1]} : vector<16x512xf32> to vector<16x128xf32>
    %c3_202 = arith.constant 3 : index
    %c0_203 = arith.constant 0 : index
    %c384_204 = arith.constant 384 : index
    %374 = vector.load %arg1[%c3_202, %c0_203, %c384_204] : memref<8x16x512xbf16, #tpu.memory_space<vmem>>, vector<1x16x128xbf16>
    %375 = vector.shape_cast %374 : vector<1x16x128xbf16> to vector<16x128xbf16>
    %376 = arith.extf %375 : vector<16x128xbf16> to vector<16x128xf32>
    %377 = arith.addf %373, %376 : vector<16x128xf32>
    %378 = arith.negf %377 : vector<16x128xf32>
    %379 = math.exp %378 : vector<16x128xf32>
    %cst_205 = arith.constant 1.000000e+00 : f32
    %380 = vector.broadcast %cst_205 : f32 to vector<16x128xf32>
    %381 = arith.addf %380, %379 : vector<16x128xf32>
    %382 = arith.divf %380, %381 : vector<16x128xf32>
    %c0_206 = arith.constant 0 : index
    %c0_207 = arith.constant 0 : index
    %383 = vector.load %arg8[%c0_206, %c0_207] : memref<16x128xf32, #tpu.memory_space<vmem>>, vector<16x128xf32>
    %384 = arith.mulf %366, %383 : vector<16x128xf32>
    %385 = arith.mulf %356, %372 : vector<16x128xf32>
    %386 = arith.addf %384, %385 : vector<16x128xf32>
    %387 = math.tanh %386 : vector<16x128xf32>
    %388 = arith.mulf %382, %387 : vector<16x128xf32>
    %389 = arith.truncf %388 : vector<16x128xf32> to vector<16x128xbf16>
    %390 = arith.select %343, %386, %383 : vector<16x128xf32>
    %c0_208 = arith.constant 0 : index
    %c0_209 = arith.constant 0 : index
    %391 = vector.load %arg8[%c0_208, %c0_209] : memref<16x128xf32, #tpu.memory_space<vmem>>, vector<16x128xf32>
    tpu.vector_store %arg8[%c0_208, %c0_209], %390 {strides = array<i32>} : memref<16x128xf32, #tpu.memory_space<vmem>>, vector<16x128xf32>,
    %c0_210 = arith.constant 0 : index
    %c0_211 = arith.constant 0 : index
    %392 = vector.load %arg7[%c0_210, %c0_211] : memref<16x128xbf16, #tpu.memory_space<vmem>>, vector<16x128xbf16>
    %393 = arith.select %343, %389, %392 : vector<16x128xbf16>
    %c0_212 = arith.constant 0 : index
    %c0_213 = arith.constant 0 : index
    %394 = vector.load %arg7[%c0_212, %c0_213] : memref<16x128xbf16, #tpu.memory_space<vmem>>, vector<16x128xbf16>
    tpu.vector_store %arg7[%c0_212, %c0_213], %393 {strides = array<i32>} : memref<16x128xbf16, #tpu.memory_space<vmem>>, vector<16x128xbf16>,
    %c3_214 = arith.constant 3 : index
    %c0_215 = arith.constant 0 : index
    %c0_216 = arith.constant 0 : index
    %395 = vector.load %arg5[%c3_214, %c0_215, %c0_216] : memref<8x16x128xbf16, #tpu.memory_space<vmem>>, vector<1x16x128xbf16>
    %396 = vector.shape_cast %395 : vector<1x16x128xbf16> to vector<16x128xbf16>
    %397 = vector.shape_cast %389 : vector<16x128xbf16> to vector<1x16x128xbf16>
    tpu.vector_store %arg5[%c3_214, %c0_215, %c0_216], %397 {strides = array<i32>} : memref<8x16x128xbf16, #tpu.memory_space<vmem>>, vector<1x16x128xbf16>,
    %c4_i32 = arith.constant 4 : i32
    %398 = arith.addi %5, %c4_i32 : i32
    %c8_i32_217 = arith.constant 8 : i32
    %399 = arith.cmpi slt, %398, %c8_i32_217 : i32
    %c0_218 = arith.constant 0 : index
    %c0_219 = arith.constant 0 : index
    %400 = vector.load %arg9[%c0_218, %c0_219] : memref<16x128xbf16, #tpu.memory_space<vmem>>, vector<16x128xbf16>
    %c0_220 = arith.constant 0 : index
    %c0_221 = arith.constant 0 : index
    %401 = vector.load %arg4[%c0_220, %c0_221] : memref<128x512xbf16, #tpu.memory_space<vmem>>, vector<128x512xbf16>
    %cst_222 = arith.constant dense<0.000000e+00> : vector<16x512xf32>
    %402 = tpu.matmul %400, %401, %cst_222 {dimension_numbers = #tpu.dot_dimension_numbers<[1], [0], [0], [1], [0, 0, 1, 1], [], []>} : vector<16x128xbf16>, vector<128x512xbf16>, vector<16x512xf32> -> vector<16x512xf32>
    %403 = vector.extract_strided_slice %402 {offsets = [0, 0], sizes = [16, 128], strides = [1, 1]} : vector<16x512xf32> to vector<16x128xf32>
    %c4 = arith.constant 4 : index
    %c0_223 = arith.constant 0 : index
    %c0_224 = arith.constant 0 : index
    %404 = vector.load %arg2[%c4, %c0_223, %c0_224] : memref<8x16x512xbf16, #tpu.memory_space<vmem>>, vector<1x16x128xbf16>
    %405 = vector.shape_cast %404 : vector<1x16x128xbf16> to vector<16x128xbf16>
    %406 = arith.extf %405 : vector<16x128xbf16> to vector<16x128xf32>
    %407 = arith.addf %403, %406 : vector<16x128xf32>
    %408 = arith.negf %407 : vector<16x128xf32>
    %409 = math.exp %408 : vector<16x128xf32>
    %cst_225 = arith.constant 1.000000e+00 : f32
    %410 = vector.broadcast %cst_225 : f32 to vector<16x128xf32>
    %411 = arith.addf %410, %409 : vector<16x128xf32>
    %412 = arith.divf %410, %411 : vector<16x128xf32>
    %413 = vector.extract_strided_slice %402 {offsets = [0, 128], sizes = [16, 128], strides = [1, 1]} : vector<16x512xf32> to vector<16x128xf32>
    %c4_226 = arith.constant 4 : index
    %c0_227 = arith.constant 0 : index
    %c128_228 = arith.constant 128 : index
    %414 = vector.load %arg2[%c4_226, %c0_227, %c128_228] : memref<8x16x512xbf16, #tpu.memory_space<vmem>>, vector<1x16x128xbf16>
    %415 = vector.shape_cast %414 : vector<1x16x128xbf16> to vector<16x128xbf16>
    %416 = arith.extf %415 : vector<16x128xbf16> to vector<16x128xf32>
    %417 = arith.addf %413, %416 : vector<16x128xf32>
    %418 = arith.negf %417 : vector<16x128xf32>
    %419 = math.exp %418 : vector<16x128xf32>
    %cst_229 = arith.constant 1.000000e+00 : f32
    %420 = vector.broadcast %cst_229 : f32 to vector<16x128xf32>
    %421 = arith.addf %420, %419 : vector<16x128xf32>
    %422 = arith.divf %420, %421 : vector<16x128xf32>
    %423 = vector.extract_strided_slice %402 {offsets = [0, 256], sizes = [16, 128], strides = [1, 1]} : vector<16x512xf32> to vector<16x128xf32>
    %c4_230 = arith.constant 4 : index
    %c0_231 = arith.constant 0 : index
    %c256_232 = arith.constant 256 : index
    %424 = vector.load %arg2[%c4_230, %c0_231, %c256_232] : memref<8x16x512xbf16, #tpu.memory_space<vmem>>, vector<1x16x128xbf16>
    %425 = vector.shape_cast %424 : vector<1x16x128xbf16> to vector<16x128xbf16>
    %426 = arith.extf %425 : vector<16x128xbf16> to vector<16x128xf32>
    %427 = arith.addf %423, %426 : vector<16x128xf32>
    %428 = math.tanh %427 : vector<16x128xf32>
    %429 = vector.extract_strided_slice %402 {offsets = [0, 384], sizes = [16, 128], strides = [1, 1]} : vector<16x512xf32> to vector<16x128xf32>
    %c4_233 = arith.constant 4 : index
    %c0_234 = arith.constant 0 : index
    %c384_235 = arith.constant 384 : index
    %430 = vector.load %arg2[%c4_233, %c0_234, %c384_235] : memref<8x16x512xbf16, #tpu.memory_space<vmem>>, vector<1x16x128xbf16>
    %431 = vector.shape_cast %430 : vector<1x16x128xbf16> to vector<16x128xbf16>
    %432 = arith.extf %431 : vector<16x128xbf16> to vector<16x128xf32>
    %433 = arith.addf %429, %432 : vector<16x128xf32>
    %434 = arith.negf %433 : vector<16x128xf32>
    %435 = math.exp %434 : vector<16x128xf32>
    %cst_236 = arith.constant 1.000000e+00 : f32
    %436 = vector.broadcast %cst_236 : f32 to vector<16x128xf32>
    %437 = arith.addf %436, %435 : vector<16x128xf32>
    %438 = arith.divf %436, %437 : vector<16x128xf32>
    %c0_237 = arith.constant 0 : index
    %c0_238 = arith.constant 0 : index
    %439 = vector.load %arg10[%c0_237, %c0_238] : memref<16x128xf32, #tpu.memory_space<vmem>>, vector<16x128xf32>
    %440 = arith.mulf %422, %439 : vector<16x128xf32>
    %441 = arith.mulf %412, %428 : vector<16x128xf32>
    %442 = arith.addf %440, %441 : vector<16x128xf32>
    %443 = math.tanh %442 : vector<16x128xf32>
    %444 = arith.mulf %438, %443 : vector<16x128xf32>
    %445 = arith.truncf %444 : vector<16x128xf32> to vector<16x128xbf16>
    %446 = arith.select %399, %442, %439 : vector<16x128xf32>
    %c0_239 = arith.constant 0 : index
    %c0_240 = arith.constant 0 : index
    %447 = vector.load %arg10[%c0_239, %c0_240] : memref<16x128xf32, #tpu.memory_space<vmem>>, vector<16x128xf32>
    tpu.vector_store %arg10[%c0_239, %c0_240], %446 {strides = array<i32>} : memref<16x128xf32, #tpu.memory_space<vmem>>, vector<16x128xf32>,
    %c0_241 = arith.constant 0 : index
    %c0_242 = arith.constant 0 : index
    %448 = vector.load %arg9[%c0_241, %c0_242] : memref<16x128xbf16, #tpu.memory_space<vmem>>, vector<16x128xbf16>
    %449 = arith.select %399, %445, %448 : vector<16x128xbf16>
    %c0_243 = arith.constant 0 : index
    %c0_244 = arith.constant 0 : index
    %450 = vector.load %arg9[%c0_243, %c0_244] : memref<16x128xbf16, #tpu.memory_space<vmem>>, vector<16x128xbf16>
    tpu.vector_store %arg9[%c0_243, %c0_244], %449 {strides = array<i32>} : memref<16x128xbf16, #tpu.memory_space<vmem>>, vector<16x128xbf16>,
    %c4_245 = arith.constant 4 : index
    %c0_246 = arith.constant 0 : index
    %c0_247 = arith.constant 0 : index
    %451 = vector.load %arg6[%c4_245, %c0_246, %c0_247] : memref<8x16x128xbf16, #tpu.memory_space<vmem>>, vector<1x16x128xbf16>
    %452 = vector.shape_cast %451 : vector<1x16x128xbf16> to vector<16x128xbf16>
    %453 = vector.shape_cast %445 : vector<16x128xbf16> to vector<1x16x128xbf16>
    tpu.vector_store %arg6[%c4_245, %c0_246, %c0_247], %453 {strides = array<i32>} : memref<8x16x128xbf16, #tpu.memory_space<vmem>>, vector<1x16x128xbf16>,
    %c4_i32_248 = arith.constant 4 : i32
    %454 = arith.addi %3, %c4_i32_248 : i32
    %c8_i32_249 = arith.constant 8 : i32
    %455 = arith.cmpi slt, %454, %c8_i32_249 : i32
    %c0_250 = arith.constant 0 : index
    %c0_251 = arith.constant 0 : index
    %456 = vector.load %arg7[%c0_250, %c0_251] : memref<16x128xbf16, #tpu.memory_space<vmem>>, vector<16x128xbf16>
    %c0_252 = arith.constant 0 : index
    %c0_253 = arith.constant 0 : index
    %457 = vector.load %arg3[%c0_252, %c0_253] : memref<128x512xbf16, #tpu.memory_space<vmem>>, vector<128x512xbf16>
    %cst_254 = arith.constant dense<0.000000e+00> : vector<16x512xf32>
    %458 = tpu.matmul %456, %457, %cst_254 {dimension_numbers = #tpu.dot_dimension_numbers<[1], [0], [0], [1], [0, 0, 1, 1], [], []>} : vector<16x128xbf16>, vector<128x512xbf16>, vector<16x512xf32> -> vector<16x512xf32>
    %459 = vector.extract_strided_slice %458 {offsets = [0, 0], sizes = [16, 128], strides = [1, 1]} : vector<16x512xf32> to vector<16x128xf32>
    %c4_255 = arith.constant 4 : index
    %c0_256 = arith.constant 0 : index
    %c0_257 = arith.constant 0 : index
    %460 = vector.load %arg1[%c4_255, %c0_256, %c0_257] : memref<8x16x512xbf16, #tpu.memory_space<vmem>>, vector<1x16x128xbf16>
    %461 = vector.shape_cast %460 : vector<1x16x128xbf16> to vector<16x128xbf16>
    %462 = arith.extf %461 : vector<16x128xbf16> to vector<16x128xf32>
    %463 = arith.addf %459, %462 : vector<16x128xf32>
    %464 = arith.negf %463 : vector<16x128xf32>
    %465 = math.exp %464 : vector<16x128xf32>
    %cst_258 = arith.constant 1.000000e+00 : f32
    %466 = vector.broadcast %cst_258 : f32 to vector<16x128xf32>
    %467 = arith.addf %466, %465 : vector<16x128xf32>
    %468 = arith.divf %466, %467 : vector<16x128xf32>
    %469 = vector.extract_strided_slice %458 {offsets = [0, 128], sizes = [16, 128], strides = [1, 1]} : vector<16x512xf32> to vector<16x128xf32>
    %c4_259 = arith.constant 4 : index
    %c0_260 = arith.constant 0 : index
    %c128_261 = arith.constant 128 : index
    %470 = vector.load %arg1[%c4_259, %c0_260, %c128_261] : memref<8x16x512xbf16, #tpu.memory_space<vmem>>, vector<1x16x128xbf16>
    %471 = vector.shape_cast %470 : vector<1x16x128xbf16> to vector<16x128xbf16>
    %472 = arith.extf %471 : vector<16x128xbf16> to vector<16x128xf32>
    %473 = arith.addf %469, %472 : vector<16x128xf32>
    %474 = arith.negf %473 : vector<16x128xf32>
    %475 = math.exp %474 : vector<16x128xf32>
    %cst_262 = arith.constant 1.000000e+00 : f32
    %476 = vector.broadcast %cst_262 : f32 to vector<16x128xf32>
    %477 = arith.addf %476, %475 : vector<16x128xf32>
    %478 = arith.divf %476, %477 : vector<16x128xf32>
    %479 = vector.extract_strided_slice %458 {offsets = [0, 256], sizes = [16, 128], strides = [1, 1]} : vector<16x512xf32> to vector<16x128xf32>
    %c4_263 = arith.constant 4 : index
    %c0_264 = arith.constant 0 : index
    %c256_265 = arith.constant 256 : index
    %480 = vector.load %arg1[%c4_263, %c0_264, %c256_265] : memref<8x16x512xbf16, #tpu.memory_space<vmem>>, vector<1x16x128xbf16>
    %481 = vector.shape_cast %480 : vector<1x16x128xbf16> to vector<16x128xbf16>
    %482 = arith.extf %481 : vector<16x128xbf16> to vector<16x128xf32>
    %483 = arith.addf %479, %482 : vector<16x128xf32>
    %484 = math.tanh %483 : vector<16x128xf32>
    %485 = vector.extract_strided_slice %458 {offsets = [0, 384], sizes = [16, 128], strides = [1, 1]} : vector<16x512xf32> to vector<16x128xf32>
    %c4_266 = arith.constant 4 : index
    %c0_267 = arith.constant 0 : index
    %c384_268 = arith.constant 384 : index
    %486 = vector.load %arg1[%c4_266, %c0_267, %c384_268] : memref<8x16x512xbf16, #tpu.memory_space<vmem>>, vector<1x16x128xbf16>
    %487 = vector.shape_cast %486 : vector<1x16x128xbf16> to vector<16x128xbf16>
    %488 = arith.extf %487 : vector<16x128xbf16> to vector<16x128xf32>
    %489 = arith.addf %485, %488 : vector<16x128xf32>
    %490 = arith.negf %489 : vector<16x128xf32>
    %491 = math.exp %490 : vector<16x128xf32>
    %cst_269 = arith.constant 1.000000e+00 : f32
    %492 = vector.broadcast %cst_269 : f32 to vector<16x128xf32>
    %493 = arith.addf %492, %491 : vector<16x128xf32>
    %494 = arith.divf %492, %493 : vector<16x128xf32>
    %c0_270 = arith.constant 0 : index
    %c0_271 = arith.constant 0 : index
    %495 = vector.load %arg8[%c0_270, %c0_271] : memref<16x128xf32, #tpu.memory_space<vmem>>, vector<16x128xf32>
    %496 = arith.mulf %478, %495 : vector<16x128xf32>
    %497 = arith.mulf %468, %484 : vector<16x128xf32>
    %498 = arith.addf %496, %497 : vector<16x128xf32>
    %499 = math.tanh %498 : vector<16x128xf32>
    %500 = arith.mulf %494, %499 : vector<16x128xf32>
    %501 = arith.truncf %500 : vector<16x128xf32> to vector<16x128xbf16>
    %502 = arith.select %455, %498, %495 : vector<16x128xf32>
    %c0_272 = arith.constant 0 : index
    %c0_273 = arith.constant 0 : index
    %503 = vector.load %arg8[%c0_272, %c0_273] : memref<16x128xf32, #tpu.memory_space<vmem>>, vector<16x128xf32>
    tpu.vector_store %arg8[%c0_272, %c0_273], %502 {strides = array<i32>} : memref<16x128xf32, #tpu.memory_space<vmem>>, vector<16x128xf32>,
    %c0_274 = arith.constant 0 : index
    %c0_275 = arith.constant 0 : index
    %504 = vector.load %arg7[%c0_274, %c0_275] : memref<16x128xbf16, #tpu.memory_space<vmem>>, vector<16x128xbf16>
    %505 = arith.select %455, %501, %504 : vector<16x128xbf16>
    %c0_276 = arith.constant 0 : index
    %c0_277 = arith.constant 0 : index
    %506 = vector.load %arg7[%c0_276, %c0_277] : memref<16x128xbf16, #tpu.memory_space<vmem>>, vector<16x128xbf16>
    tpu.vector_store %arg7[%c0_276, %c0_277], %505 {strides = array<i32>} : memref<16x128xbf16, #tpu.memory_space<vmem>>, vector<16x128xbf16>,
    %c4_278 = arith.constant 4 : index
    %c0_279 = arith.constant 0 : index
    %c0_280 = arith.constant 0 : index
    %507 = vector.load %arg5[%c4_278, %c0_279, %c0_280] : memref<8x16x128xbf16, #tpu.memory_space<vmem>>, vector<1x16x128xbf16>
    %508 = vector.shape_cast %507 : vector<1x16x128xbf16> to vector<16x128xbf16>
    %509 = vector.shape_cast %501 : vector<16x128xbf16> to vector<1x16x128xbf16>
    tpu.vector_store %arg5[%c4_278, %c0_279, %c0_280], %509 {strides = array<i32>} : memref<8x16x128xbf16, #tpu.memory_space<vmem>>, vector<1x16x128xbf16>,
    %c3_i32_281 = arith.constant 3 : i32
    %510 = arith.addi %5, %c3_i32_281 : i32
    %c8_i32_282 = arith.constant 8 : i32
    %511 = arith.cmpi slt, %510, %c8_i32_282 : i32
    %c0_283 = arith.constant 0 : index
    %c0_284 = arith.constant 0 : index
    %512 = vector.load %arg9[%c0_283, %c0_284] : memref<16x128xbf16, #tpu.memory_space<vmem>>, vector<16x128xbf16>
    %c0_285 = arith.constant 0 : index
    %c0_286 = arith.constant 0 : index
    %513 = vector.load %arg4[%c0_285, %c0_286] : memref<128x512xbf16, #tpu.memory_space<vmem>>, vector<128x512xbf16>
    %cst_287 = arith.constant dense<0.000000e+00> : vector<16x512xf32>
    %514 = tpu.matmul %512, %513, %cst_287 {dimension_numbers = #tpu.dot_dimension_numbers<[1], [0], [0], [1], [0, 0, 1, 1], [], []>} : vector<16x128xbf16>, vector<128x512xbf16>, vector<16x512xf32> -> vector<16x512xf32>
    %515 = vector.extract_strided_slice %514 {offsets = [0, 0], sizes = [16, 128], strides = [1, 1]} : vector<16x512xf32> to vector<16x128xf32>
    %c3_288 = arith.constant 3 : index
    %c0_289 = arith.constant 0 : index
    %c0_290 = arith.constant 0 : index
    %516 = vector.load %arg2[%c3_288, %c0_289, %c0_290] : memref<8x16x512xbf16, #tpu.memory_space<vmem>>, vector<1x16x128xbf16>
    %517 = vector.shape_cast %516 : vector<1x16x128xbf16> to vector<16x128xbf16>
    %518 = arith.extf %517 : vector<16x128xbf16> to vector<16x128xf32>
    %519 = arith.addf %515, %518 : vector<16x128xf32>
    %520 = arith.negf %519 : vector<16x128xf32>
    %521 = math.exp %520 : vector<16x128xf32>
    %cst_291 = arith.constant 1.000000e+00 : f32
    %522 = vector.broadcast %cst_291 : f32 to vector<16x128xf32>
    %523 = arith.addf %522, %521 : vector<16x128xf32>
    %524 = arith.divf %522, %523 : vector<16x128xf32>
    %525 = vector.extract_strided_slice %514 {offsets = [0, 128], sizes = [16, 128], strides = [1, 1]} : vector<16x512xf32> to vector<16x128xf32>
    %c3_292 = arith.constant 3 : index
    %c0_293 = arith.constant 0 : index
    %c128_294 = arith.constant 128 : index
    %526 = vector.load %arg2[%c3_292, %c0_293, %c128_294] : memref<8x16x512xbf16, #tpu.memory_space<vmem>>, vector<1x16x128xbf16>
    %527 = vector.shape_cast %526 : vector<1x16x128xbf16> to vector<16x128xbf16>
    %528 = arith.extf %527 : vector<16x128xbf16> to vector<16x128xf32>
    %529 = arith.addf %525, %528 : vector<16x128xf32>
    %530 = arith.negf %529 : vector<16x128xf32>
    %531 = math.exp %530 : vector<16x128xf32>
    %cst_295 = arith.constant 1.000000e+00 : f32
    %532 = vector.broadcast %cst_295 : f32 to vector<16x128xf32>
    %533 = arith.addf %532, %531 : vector<16x128xf32>
    %534 = arith.divf %532, %533 : vector<16x128xf32>
    %535 = vector.extract_strided_slice %514 {offsets = [0, 256], sizes = [16, 128], strides = [1, 1]} : vector<16x512xf32> to vector<16x128xf32>
    %c3_296 = arith.constant 3 : index
    %c0_297 = arith.constant 0 : index
    %c256_298 = arith.constant 256 : index
    %536 = vector.load %arg2[%c3_296, %c0_297, %c256_298] : memref<8x16x512xbf16, #tpu.memory_space<vmem>>, vector<1x16x128xbf16>
    %537 = vector.shape_cast %536 : vector<1x16x128xbf16> to vector<16x128xbf16>
    %538 = arith.extf %537 : vector<16x128xbf16> to vector<16x128xf32>
    %539 = arith.addf %535, %538 : vector<16x128xf32>
    %540 = math.tanh %539 : vector<16x128xf32>
    %541 = vector.extract_strided_slice %514 {offsets = [0, 384], sizes = [16, 128], strides = [1, 1]} : vector<16x512xf32> to vector<16x128xf32>
    %c3_299 = arith.constant 3 : index
    %c0_300 = arith.constant 0 : index
    %c384_301 = arith.constant 384 : index
    %542 = vector.load %arg2[%c3_299, %c0_300, %c384_301] : memref<8x16x512xbf16, #tpu.memory_space<vmem>>, vector<1x16x128xbf16>
    %543 = vector.shape_cast %542 : vector<1x16x128xbf16> to vector<16x128xbf16>
    %544 = arith.extf %543 : vector<16x128xbf16> to vector<16x128xf32>
    %545 = arith.addf %541, %544 : vector<16x128xf32>
    %546 = arith.negf %545 : vector<16x128xf32>
    %547 = math.exp %546 : vector<16x128xf32>
    %cst_302 = arith.constant 1.000000e+00 : f32
    %548 = vector.broadcast %cst_302 : f32 to vector<16x128xf32>
    %549 = arith.addf %548, %547 : vector<16x128xf32>
    %550 = arith.divf %548, %549 : vector<16x128xf32>
    %c0_303 = arith.constant 0 : index
    %c0_304 = arith.constant 0 : index
    %551 = vector.load %arg10[%c0_303, %c0_304] : memref<16x128xf32, #tpu.memory_space<vmem>>, vector<16x128xf32>
    %552 = arith.mulf %534, %551 : vector<16x128xf32>
    %553 = arith.mulf %524, %540 : vector<16x128xf32>
    %554 = arith.addf %552, %553 : vector<16x128xf32>
    %555 = math.tanh %554 : vector<16x128xf32>
    %556 = arith.mulf %550, %555 : vector<16x128xf32>
    %557 = arith.truncf %556 : vector<16x128xf32> to vector<16x128xbf16>
    %558 = arith.select %511, %554, %551 : vector<16x128xf32>
    %c0_305 = arith.constant 0 : index
    %c0_306 = arith.constant 0 : index
    %559 = vector.load %arg10[%c0_305, %c0_306] : memref<16x128xf32, #tpu.memory_space<vmem>>, vector<16x128xf32>
    tpu.vector_store %arg10[%c0_305, %c0_306], %558 {strides = array<i32>} : memref<16x128xf32, #tpu.memory_space<vmem>>, vector<16x128xf32>,
    %c0_307 = arith.constant 0 : index
    %c0_308 = arith.constant 0 : index
    %560 = vector.load %arg9[%c0_307, %c0_308] : memref<16x128xbf16, #tpu.memory_space<vmem>>, vector<16x128xbf16>
    %561 = arith.select %511, %557, %560 : vector<16x128xbf16>
    %c0_309 = arith.constant 0 : index
    %c0_310 = arith.constant 0 : index
    %562 = vector.load %arg9[%c0_309, %c0_310] : memref<16x128xbf16, #tpu.memory_space<vmem>>, vector<16x128xbf16>
    tpu.vector_store %arg9[%c0_309, %c0_310], %561 {strides = array<i32>} : memref<16x128xbf16, #tpu.memory_space<vmem>>, vector<16x128xbf16>,
    %c3_311 = arith.constant 3 : index
    %c0_312 = arith.constant 0 : index
    %c0_313 = arith.constant 0 : index
    %563 = vector.load %arg6[%c3_311, %c0_312, %c0_313] : memref<8x16x128xbf16, #tpu.memory_space<vmem>>, vector<1x16x128xbf16>
    %564 = vector.shape_cast %563 : vector<1x16x128xbf16> to vector<16x128xbf16>
    %565 = vector.shape_cast %557 : vector<16x128xbf16> to vector<1x16x128xbf16>
    tpu.vector_store %arg6[%c3_311, %c0_312, %c0_313], %565 {strides = array<i32>} : memref<8x16x128xbf16, #tpu.memory_space<vmem>>, vector<1x16x128xbf16>,
    %c5_i32_314 = arith.constant 5 : i32
    %566 = arith.addi %3, %c5_i32_314 : i32
    %c8_i32_315 = arith.constant 8 : i32
    %567 = arith.cmpi slt, %566, %c8_i32_315 : i32
    %c0_316 = arith.constant 0 : index
    %c0_317 = arith.constant 0 : index
    %568 = vector.load %arg7[%c0_316, %c0_317] : memref<16x128xbf16, #tpu.memory_space<vmem>>, vector<16x128xbf16>
    %c0_318 = arith.constant 0 : index
    %c0_319 = arith.constant 0 : index
    %569 = vector.load %arg3[%c0_318, %c0_319] : memref<128x512xbf16, #tpu.memory_space<vmem>>, vector<128x512xbf16>
    %cst_320 = arith.constant dense<0.000000e+00> : vector<16x512xf32>
    %570 = tpu.matmul %568, %569, %cst_320 {dimension_numbers = #tpu.dot_dimension_numbers<[1], [0], [0], [1], [0, 0, 1, 1], [], []>} : vector<16x128xbf16>, vector<128x512xbf16>, vector<16x512xf32> -> vector<16x512xf32>
    %571 = vector.extract_strided_slice %570 {offsets = [0, 0], sizes = [16, 128], strides = [1, 1]} : vector<16x512xf32> to vector<16x128xf32>
    %c5_321 = arith.constant 5 : index
    %c0_322 = arith.constant 0 : index
    %c0_323 = arith.constant 0 : index
    %572 = vector.load %arg1[%c5_321, %c0_322, %c0_323] : memref<8x16x512xbf16, #tpu.memory_space<vmem>>, vector<1x16x128xbf16>
    %573 = vector.shape_cast %572 : vector<1x16x128xbf16> to vector<16x128xbf16>
    %574 = arith.extf %573 : vector<16x128xbf16> to vector<16x128xf32>
    %575 = arith.addf %571, %574 : vector<16x128xf32>
    %576 = arith.negf %575 : vector<16x128xf32>
    %577 = math.exp %576 : vector<16x128xf32>
    %cst_324 = arith.constant 1.000000e+00 : f32
    %578 = vector.broadcast %cst_324 : f32 to vector<16x128xf32>
    %579 = arith.addf %578, %577 : vector<16x128xf32>
    %580 = arith.divf %578, %579 : vector<16x128xf32>
    %581 = vector.extract_strided_slice %570 {offsets = [0, 128], sizes = [16, 128], strides = [1, 1]} : vector<16x512xf32> to vector<16x128xf32>
    %c5_325 = arith.constant 5 : index
    %c0_326 = arith.constant 0 : index
    %c128_327 = arith.constant 128 : index
    %582 = vector.load %arg1[%c5_325, %c0_326, %c128_327] : memref<8x16x512xbf16, #tpu.memory_space<vmem>>, vector<1x16x128xbf16>
    %583 = vector.shape_cast %582 : vector<1x16x128xbf16> to vector<16x128xbf16>
    %584 = arith.extf %583 : vector<16x128xbf16> to vector<16x128xf32>
    %585 = arith.addf %581, %584 : vector<16x128xf32>
    %586 = arith.negf %585 : vector<16x128xf32>
    %587 = math.exp %586 : vector<16x128xf32>
    %cst_328 = arith.constant 1.000000e+00 : f32
    %588 = vector.broadcast %cst_328 : f32 to vector<16x128xf32>
    %589 = arith.addf %588, %587 : vector<16x128xf32>
    %590 = arith.divf %588, %589 : vector<16x128xf32>
    %591 = vector.extract_strided_slice %570 {offsets = [0, 256], sizes = [16, 128], strides = [1, 1]} : vector<16x512xf32> to vector<16x128xf32>
    %c5_329 = arith.constant 5 : index
    %c0_330 = arith.constant 0 : index
    %c256_331 = arith.constant 256 : index
    %592 = vector.load %arg1[%c5_329, %c0_330, %c256_331] : memref<8x16x512xbf16, #tpu.memory_space<vmem>>, vector<1x16x128xbf16>
    %593 = vector.shape_cast %592 : vector<1x16x128xbf16> to vector<16x128xbf16>
    %594 = arith.extf %593 : vector<16x128xbf16> to vector<16x128xf32>
    %595 = arith.addf %591, %594 : vector<16x128xf32>
    %596 = math.tanh %595 : vector<16x128xf32>
    %597 = vector.extract_strided_slice %570 {offsets = [0, 384], sizes = [16, 128], strides = [1, 1]} : vector<16x512xf32> to vector<16x128xf32>
    %c5_332 = arith.constant 5 : index
    %c0_333 = arith.constant 0 : index
    %c384_334 = arith.constant 384 : index
    %598 = vector.load %arg1[%c5_332, %c0_333, %c384_334] : memref<8x16x512xbf16, #tpu.memory_space<vmem>>, vector<1x16x128xbf16>
    %599 = vector.shape_cast %598 : vector<1x16x128xbf16> to vector<16x128xbf16>
    %600 = arith.extf %599 : vector<16x128xbf16> to vector<16x128xf32>
    %601 = arith.addf %597, %600 : vector<16x128xf32>
    %602 = arith.negf %601 : vector<16x128xf32>
    %603 = math.exp %602 : vector<16x128xf32>
    %cst_335 = arith.constant 1.000000e+00 : f32
    %604 = vector.broadcast %cst_335 : f32 to vector<16x128xf32>
    %605 = arith.addf %604, %603 : vector<16x128xf32>
    %606 = arith.divf %604, %605 : vector<16x128xf32>
    %c0_336 = arith.constant 0 : index
    %c0_337 = arith.constant 0 : index
    %607 = vector.load %arg8[%c0_336, %c0_337] : memref<16x128xf32, #tpu.memory_space<vmem>>, vector<16x128xf32>
    %608 = arith.mulf %590, %607 : vector<16x128xf32>
    %609 = arith.mulf %580, %596 : vector<16x128xf32>
    %610 = arith.addf %608, %609 : vector<16x128xf32>
    %611 = math.tanh %610 : vector<16x128xf32>
    %612 = arith.mulf %606, %611 : vector<16x128xf32>
    %613 = arith.truncf %612 : vector<16x128xf32> to vector<16x128xbf16>
    %614 = arith.select %567, %610, %607 : vector<16x128xf32>
    %c0_338 = arith.constant 0 : index
    %c0_339 = arith.constant 0 : index
    %615 = vector.load %arg8[%c0_338, %c0_339] : memref<16x128xf32, #tpu.memory_space<vmem>>, vector<16x128xf32>
    tpu.vector_store %arg8[%c0_338, %c0_339], %614 {strides = array<i32>} : memref<16x128xf32, #tpu.memory_space<vmem>>, vector<16x128xf32>,
    %c0_340 = arith.constant 0 : index
    %c0_341 = arith.constant 0 : index
    %616 = vector.load %arg7[%c0_340, %c0_341] : memref<16x128xbf16, #tpu.memory_space<vmem>>, vector<16x128xbf16>
    %617 = arith.select %567, %613, %616 : vector<16x128xbf16>
    %c0_342 = arith.constant 0 : index
    %c0_343 = arith.constant 0 : index
    %618 = vector.load %arg7[%c0_342, %c0_343] : memref<16x128xbf16, #tpu.memory_space<vmem>>, vector<16x128xbf16>
    tpu.vector_store %arg7[%c0_342, %c0_343], %617 {strides = array<i32>} : memref<16x128xbf16, #tpu.memory_space<vmem>>, vector<16x128xbf16>,
    %c5_344 = arith.constant 5 : index
    %c0_345 = arith.constant 0 : index
    %c0_346 = arith.constant 0 : index
    %619 = vector.load %arg5[%c5_344, %c0_345, %c0_346] : memref<8x16x128xbf16, #tpu.memory_space<vmem>>, vector<1x16x128xbf16>
    %620 = vector.shape_cast %619 : vector<1x16x128xbf16> to vector<16x128xbf16>
    %621 = vector.shape_cast %613 : vector<16x128xbf16> to vector<1x16x128xbf16>
    tpu.vector_store %arg5[%c5_344, %c0_345, %c0_346], %621 {strides = array<i32>} : memref<8x16x128xbf16, #tpu.memory_space<vmem>>, vector<1x16x128xbf16>,
    %c2_i32_347 = arith.constant 2 : i32
    %622 = arith.addi %5, %c2_i32_347 : i32
    %c8_i32_348 = arith.constant 8 : i32
    %623 = arith.cmpi slt, %622, %c8_i32_348 : i32
    %c0_349 = arith.constant 0 : index
    %c0_350 = arith.constant 0 : index
    %624 = vector.load %arg9[%c0_349, %c0_350] : memref<16x128xbf16, #tpu.memory_space<vmem>>, vector<16x128xbf16>
    %c0_351 = arith.constant 0 : index
    %c0_352 = arith.constant 0 : index
    %625 = vector.load %arg4[%c0_351, %c0_352] : memref<128x512xbf16, #tpu.memory_space<vmem>>, vector<128x512xbf16>
    %cst_353 = arith.constant dense<0.000000e+00> : vector<16x512xf32>
    %626 = tpu.matmul %624, %625, %cst_353 {dimension_numbers = #tpu.dot_dimension_numbers<[1], [0], [0], [1], [0, 0, 1, 1], [], []>} : vector<16x128xbf16>, vector<128x512xbf16>, vector<16x512xf32> -> vector<16x512xf32>
    %627 = vector.extract_strided_slice %626 {offsets = [0, 0], sizes = [16, 128], strides = [1, 1]} : vector<16x512xf32> to vector<16x128xf32>
    %c2_354 = arith.constant 2 : index
    %c0_355 = arith.constant 0 : index
    %c0_356 = arith.constant 0 : index
    %628 = vector.load %arg2[%c2_354, %c0_355, %c0_356] : memref<8x16x512xbf16, #tpu.memory_space<vmem>>, vector<1x16x128xbf16>
    %629 = vector.shape_cast %628 : vector<1x16x128xbf16> to vector<16x128xbf16>
    %630 = arith.extf %629 : vector<16x128xbf16> to vector<16x128xf32>
    %631 = arith.addf %627, %630 : vector<16x128xf32>
    %632 = arith.negf %631 : vector<16x128xf32>
    %633 = math.exp %632 : vector<16x128xf32>
    %cst_357 = arith.constant 1.000000e+00 : f32
    %634 = vector.broadcast %cst_357 : f32 to vector<16x128xf32>
    %635 = arith.addf %634, %633 : vector<16x128xf32>
    %636 = arith.divf %634, %635 : vector<16x128xf32>
    %637 = vector.extract_strided_slice %626 {offsets = [0, 128], sizes = [16, 128], strides = [1, 1]} : vector<16x512xf32> to vector<16x128xf32>
    %c2_358 = arith.constant 2 : index
    %c0_359 = arith.constant 0 : index
    %c128_360 = arith.constant 128 : index
    %638 = vector.load %arg2[%c2_358, %c0_359, %c128_360] : memref<8x16x512xbf16, #tpu.memory_space<vmem>>, vector<1x16x128xbf16>
    %639 = vector.shape_cast %638 : vector<1x16x128xbf16> to vector<16x128xbf16>
    %640 = arith.extf %639 : vector<16x128xbf16> to vector<16x128xf32>
    %641 = arith.addf %637, %640 : vector<16x128xf32>
    %642 = arith.negf %641 : vector<16x128xf32>
    %643 = math.exp %642 : vector<16x128xf32>
    %cst_361 = arith.constant 1.000000e+00 : f32
    %644 = vector.broadcast %cst_361 : f32 to vector<16x128xf32>
    %645 = arith.addf %644, %643 : vector<16x128xf32>
    %646 = arith.divf %644, %645 : vector<16x128xf32>
    %647 = vector.extract_strided_slice %626 {offsets = [0, 256], sizes = [16, 128], strides = [1, 1]} : vector<16x512xf32> to vector<16x128xf32>
    %c2_362 = arith.constant 2 : index
    %c0_363 = arith.constant 0 : index
    %c256_364 = arith.constant 256 : index
    %648 = vector.load %arg2[%c2_362, %c0_363, %c256_364] : memref<8x16x512xbf16, #tpu.memory_space<vmem>>, vector<1x16x128xbf16>
    %649 = vector.shape_cast %648 : vector<1x16x128xbf16> to vector<16x128xbf16>
    %650 = arith.extf %649 : vector<16x128xbf16> to vector<16x128xf32>
    %651 = arith.addf %647, %650 : vector<16x128xf32>
    %652 = math.tanh %651 : vector<16x128xf32>
    %653 = vector.extract_strided_slice %626 {offsets = [0, 384], sizes = [16, 128], strides = [1, 1]} : vector<16x512xf32> to vector<16x128xf32>
    %c2_365 = arith.constant 2 : index
    %c0_366 = arith.constant 0 : index
    %c384_367 = arith.constant 384 : index
    %654 = vector.load %arg2[%c2_365, %c0_366, %c384_367] : memref<8x16x512xbf16, #tpu.memory_space<vmem>>, vector<1x16x128xbf16>
    %655 = vector.shape_cast %654 : vector<1x16x128xbf16> to vector<16x128xbf16>
    %656 = arith.extf %655 : vector<16x128xbf16> to vector<16x128xf32>
    %657 = arith.addf %653, %656 : vector<16x128xf32>
    %658 = arith.negf %657 : vector<16x128xf32>
    %659 = math.exp %658 : vector<16x128xf32>
    %cst_368 = arith.constant 1.000000e+00 : f32
    %660 = vector.broadcast %cst_368 : f32 to vector<16x128xf32>
    %661 = arith.addf %660, %659 : vector<16x128xf32>
    %662 = arith.divf %660, %661 : vector<16x128xf32>
    %c0_369 = arith.constant 0 : index
    %c0_370 = arith.constant 0 : index
    %663 = vector.load %arg10[%c0_369, %c0_370] : memref<16x128xf32, #tpu.memory_space<vmem>>, vector<16x128xf32>
    %664 = arith.mulf %646, %663 : vector<16x128xf32>
    %665 = arith.mulf %636, %652 : vector<16x128xf32>
    %666 = arith.addf %664, %665 : vector<16x128xf32>
    %667 = math.tanh %666 : vector<16x128xf32>
    %668 = arith.mulf %662, %667 : vector<16x128xf32>
    %669 = arith.truncf %668 : vector<16x128xf32> to vector<16x128xbf16>
    %670 = arith.select %623, %666, %663 : vector<16x128xf32>
    %c0_371 = arith.constant 0 : index
    %c0_372 = arith.constant 0 : index
    %671 = vector.load %arg10[%c0_371, %c0_372] : memref<16x128xf32, #tpu.memory_space<vmem>>, vector<16x128xf32>
    tpu.vector_store %arg10[%c0_371, %c0_372], %670 {strides = array<i32>} : memref<16x128xf32, #tpu.memory_space<vmem>>, vector<16x128xf32>,
    %c0_373 = arith.constant 0 : index
    %c0_374 = arith.constant 0 : index
    %672 = vector.load %arg9[%c0_373, %c0_374] : memref<16x128xbf16, #tpu.memory_space<vmem>>, vector<16x128xbf16>
    %673 = arith.select %623, %669, %672 : vector<16x128xbf16>
    %c0_375 = arith.constant 0 : index
    %c0_376 = arith.constant 0 : index
    %674 = vector.load %arg9[%c0_375, %c0_376] : memref<16x128xbf16, #tpu.memory_space<vmem>>, vector<16x128xbf16>
    tpu.vector_store %arg9[%c0_375, %c0_376], %673 {strides = array<i32>} : memref<16x128xbf16, #tpu.memory_space<vmem>>, vector<16x128xbf16>,
    %c2_377 = arith.constant 2 : index
    %c0_378 = arith.constant 0 : index
    %c0_379 = arith.constant 0 : index
    %675 = vector.load %arg6[%c2_377, %c0_378, %c0_379] : memref<8x16x128xbf16, #tpu.memory_space<vmem>>, vector<1x16x128xbf16>
    %676 = vector.shape_cast %675 : vector<1x16x128xbf16> to vector<16x128xbf16>
    %677 = vector.shape_cast %669 : vector<16x128xbf16> to vector<1x16x128xbf16>
    tpu.vector_store %arg6[%c2_377, %c0_378, %c0_379], %677 {strides = array<i32>} : memref<8x16x128xbf16, #tpu.memory_space<vmem>>, vector<1x16x128xbf16>,
    %c6_i32_380 = arith.constant 6 : i32
    %678 = arith.addi %3, %c6_i32_380 : i32
    %c8_i32_381 = arith.constant 8 : i32
    %679 = arith.cmpi slt, %678, %c8_i32_381 : i32
    %c0_382 = arith.constant 0 : index
    %c0_383 = arith.constant 0 : index
    %680 = vector.load %arg7[%c0_382, %c0_383] : memref<16x128xbf16, #tpu.memory_space<vmem>>, vector<16x128xbf16>
    %c0_384 = arith.constant 0 : index
    %c0_385 = arith.constant 0 : index
    %681 = vector.load %arg3[%c0_384, %c0_385] : memref<128x512xbf16, #tpu.memory_space<vmem>>, vector<128x512xbf16>
    %cst_386 = arith.constant dense<0.000000e+00> : vector<16x512xf32>
    %682 = tpu.matmul %680, %681, %cst_386 {dimension_numbers = #tpu.dot_dimension_numbers<[1], [0], [0], [1], [0, 0, 1, 1], [], []>} : vector<16x128xbf16>, vector<128x512xbf16>, vector<16x512xf32> -> vector<16x512xf32>
    %683 = vector.extract_strided_slice %682 {offsets = [0, 0], sizes = [16, 128], strides = [1, 1]} : vector<16x512xf32> to vector<16x128xf32>
    %c6_387 = arith.constant 6 : index
    %c0_388 = arith.constant 0 : index
    %c0_389 = arith.constant 0 : index
    %684 = vector.load %arg1[%c6_387, %c0_388, %c0_389] : memref<8x16x512xbf16, #tpu.memory_space<vmem>>, vector<1x16x128xbf16>
    %685 = vector.shape_cast %684 : vector<1x16x128xbf16> to vector<16x128xbf16>
    %686 = arith.extf %685 : vector<16x128xbf16> to vector<16x128xf32>
    %687 = arith.addf %683, %686 : vector<16x128xf32>
    %688 = arith.negf %687 : vector<16x128xf32>
    %689 = math.exp %688 : vector<16x128xf32>
    %cst_390 = arith.constant 1.000000e+00 : f32
    %690 = vector.broadcast %cst_390 : f32 to vector<16x128xf32>
    %691 = arith.addf %690, %689 : vector<16x128xf32>
    %692 = arith.divf %690, %691 : vector<16x128xf32>
    %693 = vector.extract_strided_slice %682 {offsets = [0, 128], sizes = [16, 128], strides = [1, 1]} : vector<16x512xf32> to vector<16x128xf32>
    %c6_391 = arith.constant 6 : index
    %c0_392 = arith.constant 0 : index
    %c128_393 = arith.constant 128 : index
    %694 = vector.load %arg1[%c6_391, %c0_392, %c128_393] : memref<8x16x512xbf16, #tpu.memory_space<vmem>>, vector<1x16x128xbf16>
    %695 = vector.shape_cast %694 : vector<1x16x128xbf16> to vector<16x128xbf16>
    %696 = arith.extf %695 : vector<16x128xbf16> to vector<16x128xf32>
    %697 = arith.addf %693, %696 : vector<16x128xf32>
    %698 = arith.negf %697 : vector<16x128xf32>
    %699 = math.exp %698 : vector<16x128xf32>
    %cst_394 = arith.constant 1.000000e+00 : f32
    %700 = vector.broadcast %cst_394 : f32 to vector<16x128xf32>
    %701 = arith.addf %700, %699 : vector<16x128xf32>
    %702 = arith.divf %700, %701 : vector<16x128xf32>
    %703 = vector.extract_strided_slice %682 {offsets = [0, 256], sizes = [16, 128], strides = [1, 1]} : vector<16x512xf32> to vector<16x128xf32>
    %c6_395 = arith.constant 6 : index
    %c0_396 = arith.constant 0 : index
    %c256_397 = arith.constant 256 : index
    %704 = vector.load %arg1[%c6_395, %c0_396, %c256_397] : memref<8x16x512xbf16, #tpu.memory_space<vmem>>, vector<1x16x128xbf16>
    %705 = vector.shape_cast %704 : vector<1x16x128xbf16> to vector<16x128xbf16>
    %706 = arith.extf %705 : vector<16x128xbf16> to vector<16x128xf32>
    %707 = arith.addf %703, %706 : vector<16x128xf32>
    %708 = math.tanh %707 : vector<16x128xf32>
    %709 = vector.extract_strided_slice %682 {offsets = [0, 384], sizes = [16, 128], strides = [1, 1]} : vector<16x512xf32> to vector<16x128xf32>
    %c6_398 = arith.constant 6 : index
    %c0_399 = arith.constant 0 : index
    %c384_400 = arith.constant 384 : index
    %710 = vector.load %arg1[%c6_398, %c0_399, %c384_400] : memref<8x16x512xbf16, #tpu.memory_space<vmem>>, vector<1x16x128xbf16>
    %711 = vector.shape_cast %710 : vector<1x16x128xbf16> to vector<16x128xbf16>
    %712 = arith.extf %711 : vector<16x128xbf16> to vector<16x128xf32>
    %713 = arith.addf %709, %712 : vector<16x128xf32>
    %714 = arith.negf %713 : vector<16x128xf32>
    %715 = math.exp %714 : vector<16x128xf32>
    %cst_401 = arith.constant 1.000000e+00 : f32
    %716 = vector.broadcast %cst_401 : f32 to vector<16x128xf32>
    %717 = arith.addf %716, %715 : vector<16x128xf32>
    %718 = arith.divf %716, %717 : vector<16x128xf32>
    %c0_402 = arith.constant 0 : index
    %c0_403 = arith.constant 0 : index
    %719 = vector.load %arg8[%c0_402, %c0_403] : memref<16x128xf32, #tpu.memory_space<vmem>>, vector<16x128xf32>
    %720 = arith.mulf %702, %719 : vector<16x128xf32>
    %721 = arith.mulf %692, %708 : vector<16x128xf32>
    %722 = arith.addf %720, %721 : vector<16x128xf32>
    %723 = math.tanh %722 : vector<16x128xf32>
    %724 = arith.mulf %718, %723 : vector<16x128xf32>
    %725 = arith.truncf %724 : vector<16x128xf32> to vector<16x128xbf16>
    %726 = arith.select %679, %722, %719 : vector<16x128xf32>
    %c0_404 = arith.constant 0 : index
    %c0_405 = arith.constant 0 : index
    %727 = vector.load %arg8[%c0_404, %c0_405] : memref<16x128xf32, #tpu.memory_space<vmem>>, vector<16x128xf32>
    tpu.vector_store %arg8[%c0_404, %c0_405], %726 {strides = array<i32>} : memref<16x128xf32, #tpu.memory_space<vmem>>, vector<16x128xf32>,
    %c0_406 = arith.constant 0 : index
    %c0_407 = arith.constant 0 : index
    %728 = vector.load %arg7[%c0_406, %c0_407] : memref<16x128xbf16, #tpu.memory_space<vmem>>, vector<16x128xbf16>
    %729 = arith.select %679, %725, %728 : vector<16x128xbf16>
    %c0_408 = arith.constant 0 : index
    %c0_409 = arith.constant 0 : index
    %730 = vector.load %arg7[%c0_408, %c0_409] : memref<16x128xbf16, #tpu.memory_space<vmem>>, vector<16x128xbf16>
    tpu.vector_store %arg7[%c0_408, %c0_409], %729 {strides = array<i32>} : memref<16x128xbf16, #tpu.memory_space<vmem>>, vector<16x128xbf16>,
    %c6_410 = arith.constant 6 : index
    %c0_411 = arith.constant 0 : index
    %c0_412 = arith.constant 0 : index
    %731 = vector.load %arg5[%c6_410, %c0_411, %c0_412] : memref<8x16x128xbf16, #tpu.memory_space<vmem>>, vector<1x16x128xbf16>
    %732 = vector.shape_cast %731 : vector<1x16x128xbf16> to vector<16x128xbf16>
    %733 = vector.shape_cast %725 : vector<16x128xbf16> to vector<1x16x128xbf16>
    tpu.vector_store %arg5[%c6_410, %c0_411, %c0_412], %733 {strides = array<i32>} : memref<8x16x128xbf16, #tpu.memory_space<vmem>>, vector<1x16x128xbf16>,
    %c1_i32_413 = arith.constant 1 : i32
    %734 = arith.addi %5, %c1_i32_413 : i32
    %c8_i32_414 = arith.constant 8 : i32
    %735 = arith.cmpi slt, %734, %c8_i32_414 : i32
    %c0_415 = arith.constant 0 : index
    %c0_416 = arith.constant 0 : index
    %736 = vector.load %arg9[%c0_415, %c0_416] : memref<16x128xbf16, #tpu.memory_space<vmem>>, vector<16x128xbf16>
    %c0_417 = arith.constant 0 : index
    %c0_418 = arith.constant 0 : index
    %737 = vector.load %arg4[%c0_417, %c0_418] : memref<128x512xbf16, #tpu.memory_space<vmem>>, vector<128x512xbf16>
    %cst_419 = arith.constant dense<0.000000e+00> : vector<16x512xf32>
    %738 = tpu.matmul %736, %737, %cst_419 {dimension_numbers = #tpu.dot_dimension_numbers<[1], [0], [0], [1], [0, 0, 1, 1], [], []>} : vector<16x128xbf16>, vector<128x512xbf16>, vector<16x512xf32> -> vector<16x512xf32>
    %739 = vector.extract_strided_slice %738 {offsets = [0, 0], sizes = [16, 128], strides = [1, 1]} : vector<16x512xf32> to vector<16x128xf32>
    %c1_420 = arith.constant 1 : index
    %c0_421 = arith.constant 0 : index
    %c0_422 = arith.constant 0 : index
    %740 = vector.load %arg2[%c1_420, %c0_421, %c0_422] : memref<8x16x512xbf16, #tpu.memory_space<vmem>>, vector<1x16x128xbf16>
    %741 = vector.shape_cast %740 : vector<1x16x128xbf16> to vector<16x128xbf16>
    %742 = arith.extf %741 : vector<16x128xbf16> to vector<16x128xf32>
    %743 = arith.addf %739, %742 : vector<16x128xf32>
    %744 = arith.negf %743 : vector<16x128xf32>
    %745 = math.exp %744 : vector<16x128xf32>
    %cst_423 = arith.constant 1.000000e+00 : f32
    %746 = vector.broadcast %cst_423 : f32 to vector<16x128xf32>
    %747 = arith.addf %746, %745 : vector<16x128xf32>
    %748 = arith.divf %746, %747 : vector<16x128xf32>
    %749 = vector.extract_strided_slice %738 {offsets = [0, 128], sizes = [16, 128], strides = [1, 1]} : vector<16x512xf32> to vector<16x128xf32>
    %c1_424 = arith.constant 1 : index
    %c0_425 = arith.constant 0 : index
    %c128_426 = arith.constant 128 : index
    %750 = vector.load %arg2[%c1_424, %c0_425, %c128_426] : memref<8x16x512xbf16, #tpu.memory_space<vmem>>, vector<1x16x128xbf16>
    %751 = vector.shape_cast %750 : vector<1x16x128xbf16> to vector<16x128xbf16>
    %752 = arith.extf %751 : vector<16x128xbf16> to vector<16x128xf32>
    %753 = arith.addf %749, %752 : vector<16x128xf32>
    %754 = arith.negf %753 : vector<16x128xf32>
    %755 = math.exp %754 : vector<16x128xf32>
    %cst_427 = arith.constant 1.000000e+00 : f32
    %756 = vector.broadcast %cst_427 : f32 to vector<16x128xf32>
    %757 = arith.addf %756, %755 : vector<16x128xf32>
    %758 = arith.divf %756, %757 : vector<16x128xf32>
    %759 = vector.extract_strided_slice %738 {offsets = [0, 256], sizes = [16, 128], strides = [1, 1]} : vector<16x512xf32> to vector<16x128xf32>
    %c1_428 = arith.constant 1 : index
    %c0_429 = arith.constant 0 : index
    %c256_430 = arith.constant 256 : index
    %760 = vector.load %arg2[%c1_428, %c0_429, %c256_430] : memref<8x16x512xbf16, #tpu.memory_space<vmem>>, vector<1x16x128xbf16>
    %761 = vector.shape_cast %760 : vector<1x16x128xbf16> to vector<16x128xbf16>
    %762 = arith.extf %761 : vector<16x128xbf16> to vector<16x128xf32>
    %763 = arith.addf %759, %762 : vector<16x128xf32>
    %764 = math.tanh %763 : vector<16x128xf32>
    %765 = vector.extract_strided_slice %738 {offsets = [0, 384], sizes = [16, 128], strides = [1, 1]} : vector<16x512xf32> to vector<16x128xf32>
    %c1_431 = arith.constant 1 : index
    %c0_432 = arith.constant 0 : index
    %c384_433 = arith.constant 384 : index
    %766 = vector.load %arg2[%c1_431, %c0_432, %c384_433] : memref<8x16x512xbf16, #tpu.memory_space<vmem>>, vector<1x16x128xbf16>
    %767 = vector.shape_cast %766 : vector<1x16x128xbf16> to vector<16x128xbf16>
    %768 = arith.extf %767 : vector<16x128xbf16> to vector<16x128xf32>
    %769 = arith.addf %765, %768 : vector<16x128xf32>
    %770 = arith.negf %769 : vector<16x128xf32>
    %771 = math.exp %770 : vector<16x128xf32>
    %cst_434 = arith.constant 1.000000e+00 : f32
    %772 = vector.broadcast %cst_434 : f32 to vector<16x128xf32>
    %773 = arith.addf %772, %771 : vector<16x128xf32>
    %774 = arith.divf %772, %773 : vector<16x128xf32>
    %c0_435 = arith.constant 0 : index
    %c0_436 = arith.constant 0 : index
    %775 = vector.load %arg10[%c0_435, %c0_436] : memref<16x128xf32, #tpu.memory_space<vmem>>, vector<16x128xf32>
    %776 = arith.mulf %758, %775 : vector<16x128xf32>
    %777 = arith.mulf %748, %764 : vector<16x128xf32>
    %778 = arith.addf %776, %777 : vector<16x128xf32>
    %779 = math.tanh %778 : vector<16x128xf32>
    %780 = arith.mulf %774, %779 : vector<16x128xf32>
    %781 = arith.truncf %780 : vector<16x128xf32> to vector<16x128xbf16>
    %782 = arith.select %735, %778, %775 : vector<16x128xf32>
    %c0_437 = arith.constant 0 : index
    %c0_438 = arith.constant 0 : index
    %783 = vector.load %arg10[%c0_437, %c0_438] : memref<16x128xf32, #tpu.memory_space<vmem>>, vector<16x128xf32>
    tpu.vector_store %arg10[%c0_437, %c0_438], %782 {strides = array<i32>} : memref<16x128xf32, #tpu.memory_space<vmem>>, vector<16x128xf32>,
    %c0_439 = arith.constant 0 : index
    %c0_440 = arith.constant 0 : index
    %784 = vector.load %arg9[%c0_439, %c0_440] : memref<16x128xbf16, #tpu.memory_space<vmem>>, vector<16x128xbf16>
    %785 = arith.select %735, %781, %784 : vector<16x128xbf16>
    %c0_441 = arith.constant 0 : index
    %c0_442 = arith.constant 0 : index
    %786 = vector.load %arg9[%c0_441, %c0_442] : memref<16x128xbf16, #tpu.memory_space<vmem>>, vector<16x128xbf16>
    tpu.vector_store %arg9[%c0_441, %c0_442], %785 {strides = array<i32>} : memref<16x128xbf16, #tpu.memory_space<vmem>>, vector<16x128xbf16>,
    %c1_443 = arith.constant 1 : index
    %c0_444 = arith.constant 0 : index
    %c0_445 = arith.constant 0 : index
    %787 = vector.load %arg6[%c1_443, %c0_444, %c0_445] : memref<8x16x128xbf16, #tpu.memory_space<vmem>>, vector<1x16x128xbf16>
    %788 = vector.shape_cast %787 : vector<1x16x128xbf16> to vector<16x128xbf16>
    %789 = vector.shape_cast %781 : vector<16x128xbf16> to vector<1x16x128xbf16>
    tpu.vector_store %arg6[%c1_443, %c0_444, %c0_445], %789 {strides = array<i32>} : memref<8x16x128xbf16, #tpu.memory_space<vmem>>, vector<1x16x128xbf16>,
    %c7_i32_446 = arith.constant 7 : i32
    %790 = arith.addi %3, %c7_i32_446 : i32
    %c8_i32_447 = arith.constant 8 : i32
    %791 = arith.cmpi slt, %790, %c8_i32_447 : i32
    %c0_448 = arith.constant 0 : index
    %c0_449 = arith.constant 0 : index
    %792 = vector.load %arg7[%c0_448, %c0_449] : memref<16x128xbf16, #tpu.memory_space<vmem>>, vector<16x128xbf16>
    %c0_450 = arith.constant 0 : index
    %c0_451 = arith.constant 0 : index
    %793 = vector.load %arg3[%c0_450, %c0_451] : memref<128x512xbf16, #tpu.memory_space<vmem>>, vector<128x512xbf16>
    %cst_452 = arith.constant dense<0.000000e+00> : vector<16x512xf32>
    %794 = tpu.matmul %792, %793, %cst_452 {dimension_numbers = #tpu.dot_dimension_numbers<[1], [0], [0], [1], [0, 0, 1, 1], [], []>} : vector<16x128xbf16>, vector<128x512xbf16>, vector<16x512xf32> -> vector<16x512xf32>
    %795 = vector.extract_strided_slice %794 {offsets = [0, 0], sizes = [16, 128], strides = [1, 1]} : vector<16x512xf32> to vector<16x128xf32>
    %c7_453 = arith.constant 7 : index
    %c0_454 = arith.constant 0 : index
    %c0_455 = arith.constant 0 : index
    %796 = vector.load %arg1[%c7_453, %c0_454, %c0_455] : memref<8x16x512xbf16, #tpu.memory_space<vmem>>, vector<1x16x128xbf16>
    %797 = vector.shape_cast %796 : vector<1x16x128xbf16> to vector<16x128xbf16>
    %798 = arith.extf %797 : vector<16x128xbf16> to vector<16x128xf32>
    %799 = arith.addf %795, %798 : vector<16x128xf32>
    %800 = arith.negf %799 : vector<16x128xf32>
    %801 = math.exp %800 : vector<16x128xf32>
    %cst_456 = arith.constant 1.000000e+00 : f32
    %802 = vector.broadcast %cst_456 : f32 to vector<16x128xf32>
    %803 = arith.addf %802, %801 : vector<16x128xf32>
    %804 = arith.divf %802, %803 : vector<16x128xf32>
    %805 = vector.extract_strided_slice %794 {offsets = [0, 128], sizes = [16, 128], strides = [1, 1]} : vector<16x512xf32> to vector<16x128xf32>
    %c7_457 = arith.constant 7 : index
    %c0_458 = arith.constant 0 : index
    %c128_459 = arith.constant 128 : index
    %806 = vector.load %arg1[%c7_457, %c0_458, %c128_459] : memref<8x16x512xbf16, #tpu.memory_space<vmem>>, vector<1x16x128xbf16>
    %807 = vector.shape_cast %806 : vector<1x16x128xbf16> to vector<16x128xbf16>
    %808 = arith.extf %807 : vector<16x128xbf16> to vector<16x128xf32>
    %809 = arith.addf %805, %808 : vector<16x128xf32>
    %810 = arith.negf %809 : vector<16x128xf32>
    %811 = math.exp %810 : vector<16x128xf32>
    %cst_460 = arith.constant 1.000000e+00 : f32
    %812 = vector.broadcast %cst_460 : f32 to vector<16x128xf32>
    %813 = arith.addf %812, %811 : vector<16x128xf32>
    %814 = arith.divf %812, %813 : vector<16x128xf32>
    %815 = vector.extract_strided_slice %794 {offsets = [0, 256], sizes = [16, 128], strides = [1, 1]} : vector<16x512xf32> to vector<16x128xf32>
    %c7_461 = arith.constant 7 : index
    %c0_462 = arith.constant 0 : index
    %c256_463 = arith.constant 256 : index
    %816 = vector.load %arg1[%c7_461, %c0_462, %c256_463] : memref<8x16x512xbf16, #tpu.memory_space<vmem>>, vector<1x16x128xbf16>
    %817 = vector.shape_cast %816 : vector<1x16x128xbf16> to vector<16x128xbf16>
    %818 = arith.extf %817 : vector<16x128xbf16> to vector<16x128xf32>
    %819 = arith.addf %815, %818 : vector<16x128xf32>
    %820 = math.tanh %819 : vector<16x128xf32>
    %821 = vector.extract_strided_slice %794 {offsets = [0, 384], sizes = [16, 128], strides = [1, 1]} : vector<16x512xf32> to vector<16x128xf32>
    %c7_464 = arith.constant 7 : index
    %c0_465 = arith.constant 0 : index
    %c384_466 = arith.constant 384 : index
    %822 = vector.load %arg1[%c7_464, %c0_465, %c384_466] : memref<8x16x512xbf16, #tpu.memory_space<vmem>>, vector<1x16x128xbf16>
    %823 = vector.shape_cast %822 : vector<1x16x128xbf16> to vector<16x128xbf16>
    %824 = arith.extf %823 : vector<16x128xbf16> to vector<16x128xf32>
    %825 = arith.addf %821, %824 : vector<16x128xf32>
    %826 = arith.negf %825 : vector<16x128xf32>
    %827 = math.exp %826 : vector<16x128xf32>
    %cst_467 = arith.constant 1.000000e+00 : f32
    %828 = vector.broadcast %cst_467 : f32 to vector<16x128xf32>
    %829 = arith.addf %828, %827 : vector<16x128xf32>
    %830 = arith.divf %828, %829 : vector<16x128xf32>
    %c0_468 = arith.constant 0 : index
    %c0_469 = arith.constant 0 : index
    %831 = vector.load %arg8[%c0_468, %c0_469] : memref<16x128xf32, #tpu.memory_space<vmem>>, vector<16x128xf32>
    %832 = arith.mulf %814, %831 : vector<16x128xf32>
    %833 = arith.mulf %804, %820 : vector<16x128xf32>
    %834 = arith.addf %832, %833 : vector<16x128xf32>
    %835 = math.tanh %834 : vector<16x128xf32>
    %836 = arith.mulf %830, %835 : vector<16x128xf32>
    %837 = arith.truncf %836 : vector<16x128xf32> to vector<16x128xbf16>
    %838 = arith.select %791, %834, %831 : vector<16x128xf32>
    %c0_470 = arith.constant 0 : index
    %c0_471 = arith.constant 0 : index
    %839 = vector.load %arg8[%c0_470, %c0_471] : memref<16x128xf32, #tpu.memory_space<vmem>>, vector<16x128xf32>
    tpu.vector_store %arg8[%c0_470, %c0_471], %838 {strides = array<i32>} : memref<16x128xf32, #tpu.memory_space<vmem>>, vector<16x128xf32>,
    %c0_472 = arith.constant 0 : index
    %c0_473 = arith.constant 0 : index
    %840 = vector.load %arg7[%c0_472, %c0_473] : memref<16x128xbf16, #tpu.memory_space<vmem>>, vector<16x128xbf16>
    %841 = arith.select %791, %837, %840 : vector<16x128xbf16>
    %c0_474 = arith.constant 0 : index
    %c0_475 = arith.constant 0 : index
    %842 = vector.load %arg7[%c0_474, %c0_475] : memref<16x128xbf16, #tpu.memory_space<vmem>>, vector<16x128xbf16>
    tpu.vector_store %arg7[%c0_474, %c0_475], %841 {strides = array<i32>} : memref<16x128xbf16, #tpu.memory_space<vmem>>, vector<16x128xbf16>,
    %c7_476 = arith.constant 7 : index
    %c0_477 = arith.constant 0 : index
    %c0_478 = arith.constant 0 : index
    %843 = vector.load %arg5[%c7_476, %c0_477, %c0_478] : memref<8x16x128xbf16, #tpu.memory_space<vmem>>, vector<1x16x128xbf16>
    %844 = vector.shape_cast %843 : vector<1x16x128xbf16> to vector<16x128xbf16>
    %845 = vector.shape_cast %837 : vector<16x128xbf16> to vector<1x16x128xbf16>
    tpu.vector_store %arg5[%c7_476, %c0_477, %c0_478], %845 {strides = array<i32>} : memref<8x16x128xbf16, #tpu.memory_space<vmem>>, vector<1x16x128xbf16>,
    %c0_i32_479 = arith.constant 0 : i32
    %846 = arith.addi %5, %c0_i32_479 : i32
    %c8_i32_480 = arith.constant 8 : i32
    %847 = arith.cmpi slt, %846, %c8_i32_480 : i32
    %c0_481 = arith.constant 0 : index
    %c0_482 = arith.constant 0 : index
    %848 = vector.load %arg9[%c0_481, %c0_482] : memref<16x128xbf16, #tpu.memory_space<vmem>>, vector<16x128xbf16>
    %c0_483 = arith.constant 0 : index
    %c0_484 = arith.constant 0 : index
    %849 = vector.load %arg4[%c0_483, %c0_484] : memref<128x512xbf16, #tpu.memory_space<vmem>>, vector<128x512xbf16>
    %cst_485 = arith.constant dense<0.000000e+00> : vector<16x512xf32>
    %850 = tpu.matmul %848, %849, %cst_485 {dimension_numbers = #tpu.dot_dimension_numbers<[1], [0], [0], [1], [0, 0, 1, 1], [], []>} : vector<16x128xbf16>, vector<128x512xbf16>, vector<16x512xf32> -> vector<16x512xf32>
    %851 = vector.extract_strided_slice %850 {offsets = [0, 0], sizes = [16, 128], strides = [1, 1]} : vector<16x512xf32> to vector<16x128xf32>
    %c0_486 = arith.constant 0 : index
    %c0_487 = arith.constant 0 : index
    %c0_488 = arith.constant 0 : index
    %852 = vector.load %arg2[%c0_486, %c0_487, %c0_488] : memref<8x16x512xbf16, #tpu.memory_space<vmem>>, vector<1x16x128xbf16>
    %853 = vector.shape_cast %852 : vector<1x16x128xbf16> to vector<16x128xbf16>
    %854 = arith.extf %853 : vector<16x128xbf16> to vector<16x128xf32>
    %855 = arith.addf %851, %854 : vector<16x128xf32>
    %856 = arith.negf %855 : vector<16x128xf32>
    %857 = math.exp %856 : vector<16x128xf32>
    %cst_489 = arith.constant 1.000000e+00 : f32
    %858 = vector.broadcast %cst_489 : f32 to vector<16x128xf32>
    %859 = arith.addf %858, %857 : vector<16x128xf32>
    %860 = arith.divf %858, %859 : vector<16x128xf32>
    %861 = vector.extract_strided_slice %850 {offsets = [0, 128], sizes = [16, 128], strides = [1, 1]} : vector<16x512xf32> to vector<16x128xf32>
    %c0_490 = arith.constant 0 : index
    %c0_491 = arith.constant 0 : index
    %c128_492 = arith.constant 128 : index
    %862 = vector.load %arg2[%c0_490, %c0_491, %c128_492] : memref<8x16x512xbf16, #tpu.memory_space<vmem>>, vector<1x16x128xbf16>
    %863 = vector.shape_cast %862 : vector<1x16x128xbf16> to vector<16x128xbf16>
    %864 = arith.extf %863 : vector<16x128xbf16> to vector<16x128xf32>
    %865 = arith.addf %861, %864 : vector<16x128xf32>
    %866 = arith.negf %865 : vector<16x128xf32>
    %867 = math.exp %866 : vector<16x128xf32>
    %cst_493 = arith.constant 1.000000e+00 : f32
    %868 = vector.broadcast %cst_493 : f32 to vector<16x128xf32>
    %869 = arith.addf %868, %867 : vector<16x128xf32>
    %870 = arith.divf %868, %869 : vector<16x128xf32>
    %871 = vector.extract_strided_slice %850 {offsets = [0, 256], sizes = [16, 128], strides = [1, 1]} : vector<16x512xf32> to vector<16x128xf32>
    %c0_494 = arith.constant 0 : index
    %c0_495 = arith.constant 0 : index
    %c256_496 = arith.constant 256 : index
    %872 = vector.load %arg2[%c0_494, %c0_495, %c256_496] : memref<8x16x512xbf16, #tpu.memory_space<vmem>>, vector<1x16x128xbf16>
    %873 = vector.shape_cast %872 : vector<1x16x128xbf16> to vector<16x128xbf16>
    %874 = arith.extf %873 : vector<16x128xbf16> to vector<16x128xf32>
    %875 = arith.addf %871, %874 : vector<16x128xf32>
    %876 = math.tanh %875 : vector<16x128xf32>
    %877 = vector.extract_strided_slice %850 {offsets = [0, 384], sizes = [16, 128], strides = [1, 1]} : vector<16x512xf32> to vector<16x128xf32>
    %c0_497 = arith.constant 0 : index
    %c0_498 = arith.constant 0 : index
    %c384_499 = arith.constant 384 : index
    %878 = vector.load %arg2[%c0_497, %c0_498, %c384_499] : memref<8x16x512xbf16, #tpu.memory_space<vmem>>, vector<1x16x128xbf16>
    %879 = vector.shape_cast %878 : vector<1x16x128xbf16> to vector<16x128xbf16>
    %880 = arith.extf %879 : vector<16x128xbf16> to vector<16x128xf32>
    %881 = arith.addf %877, %880 : vector<16x128xf32>
    %882 = arith.negf %881 : vector<16x128xf32>
    %883 = math.exp %882 : vector<16x128xf32>
    %cst_500 = arith.constant 1.000000e+00 : f32
    %884 = vector.broadcast %cst_500 : f32 to vector<16x128xf32>
    %885 = arith.addf %884, %883 : vector<16x128xf32>
    %886 = arith.divf %884, %885 : vector<16x128xf32>
    %c0_501 = arith.constant 0 : index
    %c0_502 = arith.constant 0 : index
    %887 = vector.load %arg10[%c0_501, %c0_502] : memref<16x128xf32, #tpu.memory_space<vmem>>, vector<16x128xf32>
    %888 = arith.mulf %870, %887 : vector<16x128xf32>
    %889 = arith.mulf %860, %876 : vector<16x128xf32>
    %890 = arith.addf %888, %889 : vector<16x128xf32>
    %891 = math.tanh %890 : vector<16x128xf32>
    %892 = arith.mulf %886, %891 : vector<16x128xf32>
    %893 = arith.truncf %892 : vector<16x128xf32> to vector<16x128xbf16>
    %894 = arith.select %847, %890, %887 : vector<16x128xf32>
    %c0_503 = arith.constant 0 : index
    %c0_504 = arith.constant 0 : index
    %895 = vector.load %arg10[%c0_503, %c0_504] : memref<16x128xf32, #tpu.memory_space<vmem>>, vector<16x128xf32>
    tpu.vector_store %arg10[%c0_503, %c0_504], %894 {strides = array<i32>} : memref<16x128xf32, #tpu.memory_space<vmem>>, vector<16x128xf32>,
    %c0_505 = arith.constant 0 : index
    %c0_506 = arith.constant 0 : index
    %896 = vector.load %arg9[%c0_505, %c0_506] : memref<16x128xbf16, #tpu.memory_space<vmem>>, vector<16x128xbf16>
    %897 = arith.select %847, %893, %896 : vector<16x128xbf16>
    %c0_507 = arith.constant 0 : index
    %c0_508 = arith.constant 0 : index
    %898 = vector.load %arg9[%c0_507, %c0_508] : memref<16x128xbf16, #tpu.memory_space<vmem>>, vector<16x128xbf16>
    tpu.vector_store %arg9[%c0_507, %c0_508], %897 {strides = array<i32>} : memref<16x128xbf16, #tpu.memory_space<vmem>>, vector<16x128xbf16>,
    %c0_509 = arith.constant 0 : index
    %c0_510 = arith.constant 0 : index
    %c0_511 = arith.constant 0 : index
    %899 = vector.load %arg6[%c0_509, %c0_510, %c0_511] : memref<8x16x128xbf16, #tpu.memory_space<vmem>>, vector<1x16x128xbf16>
    %900 = vector.shape_cast %899 : vector<1x16x128xbf16> to vector<16x128xbf16>
    %901 = vector.shape_cast %893 : vector<16x128xbf16> to vector<1x16x128xbf16>
    tpu.vector_store %arg6[%c0_509, %c0_510, %c0_511], %901 {strides = array<i32>} : memref<8x16x128xbf16, #tpu.memory_space<vmem>>, vector<1x16x128xbf16>,
    return
  }
  func.func @transform_0(%arg0: i32) -> (i32, i32, i32) {
    %c0_i32 = arith.constant 0 : i32
    %c0_i32_0 = arith.constant 0 : i32
    %c0_i32_1 = arith.constant 0 : i32
    return %arg0, %c0_i32, %c0_i32_0 : i32, i32, i32
  }
  func.func @transform_1(%arg0: i32) -> (i32, i32, i32) {
    %c0_i32 = arith.constant 0 : i32
    %0 = arith.subi %c0_i32, %arg0 : i32
    %c0_i32_0 = arith.constant 0 : i32
    %c1_i32 = arith.constant 1 : i32
    %c0_i32_1 = arith.constant 0 : i32
    return %0, %c0_i32_0, %c1_i32 : i32, i32, i32
  }
  func.func @transform_2(%arg0: i32) -> (i32, i32) {
    %c0_i32 = arith.constant 0 : i32
    %c0_i32_0 = arith.constant 0 : i32
    %c0_i32_1 = arith.constant 0 : i32
    return %c0_i32, %c0_i32_0 : i32, i32
  }
  func.func @transform_3(%arg0: i32) -> (i32, i32) {
    %c0_i32 = arith.constant 0 : i32
    %c0_i32_0 = arith.constant 0 : i32
    %c0_i32_1 = arith.constant 0 : i32
    return %c0_i32, %c0_i32_0 : i32, i32
  }
  func.func @transform_4(%arg0: i32) -> (i32, i32, i32) {
    %c0_i32 = arith.constant 0 : i32
    %c0_i32_0 = arith.constant 0 : i32
    %c0_i32_1 = arith.constant 0 : i32
    return %arg0, %c0_i32, %c0_i32_0 : i32, i32, i32
  }
  func.func @transform_5(%arg0: i32) -> (i32, i32, i32) {
    %c0_i32 = arith.constant 0 : i32
    %0 = arith.subi %c0_i32, %arg0 : i32
    %c0_i32_0 = arith.constant 0 : i32
    %c0_i32_1 = arith.constant 0 : i32
    %c0_i32_2 = arith.constant 0 : i32
    return %0, %c0_i32_0, %c0_i32_1 : i32, i32, i32
  }
}

</mosaic_0001>

<llo_original>
// kernel: lstm_encoder_forward.3
$region0: #{lstm_encoder_forward.3}
  #allocation0 [shape = 'u32[]', space=smem, size = 0x4, offset = 0x4, fixed_abs, tag = 'smem constant byte address 0x4 - core index']
  #allocation1 [shape = 'u32[144,128]{1,0:T(1,128)}', space=vmem, size = 0x12000, scoped, tag = 'internal scratch']
  #allocation2 [shape = 'bf16[16,128]{1,0:T(8,128)(2,1)}', space=vmem, size = 0x1000, scoped, tag = 'scratch operand']
  #allocation3 [shape = 'f32[16,128]{1,0:T(8,128)}', space=vmem, size = 0x2000, scoped, tag = 'scratch operand']
  #allocation4 [shape = 'bf16[16,128]{1,0:T(8,128)(2,1)}', space=vmem, size = 0x1000, scoped, tag = 'scratch operand']
  #allocation5 [shape = 'f32[16,128]{1,0:T(8,128)}', space=vmem, size = 0x2000, scoped, tag = 'scratch operand']
  %s0 = inlined_call_operand.vmem [shape: bf16[8,16,1024], index: 0, kind: input, shape index: {}, may-alias: {0,1}]
  %s1 = inlined_call_operand.vmem [shape: bf16[8,16,1024], index: 1, kind: input, shape index: {}, may-alias: {0,1}]
  %s2 = inlined_call_operand.vmem [shape: bf16[128,512], index: 2, kind: input, shape index: {}]
  %s3 = inlined_call_operand.vmem [shape: bf16[128,512], index: 3, kind: input, shape index: {}]
  %s4 = inlined_call_operand.vmem [shape: bf16[8,16,128], index: 4, kind: output, shape index: {0}]
  %s5 = inlined_call_operand.vmem [shape: bf16[8,16,128], index: 5, kind: output, shape index: {1}]
  %6 = xla_tuple %s4, %s5
  %s7 = sld [smem:[#allocation0]]
  $region84: #{lstm_encoder_forward.3} parent=0
    _
  %s9 = ssub.s32 1, %s7
  %s10 = scalar_select 0, %s9, %s7
  $region1: #{lstm_encoder_forward.3} parent=0
    #allocation6 [shape = 'u8[131072]{0}', space=vmem, size = 0x20000, scoped, tag = 'input window, operand 0, single buffered']
    #allocation7 [shape = 'u8[131072]{0}', space=vmem, size = 0x20000, scoped, tag = 'input window, operand 1, single buffered']
    // Predicated region
    $region2: #{lstm_encoder_forward.3} parent=1 // pred_check
      _
    $region3: #{lstm_encoder_forward.3} parent=1 // pred_check_branch
      %12 = sbr.rel (0) target = $region5
    $region4: #{lstm_encoder_forward.3} parent=1 // pred_region
      // Predicated region
      $region6: #{lstm_encoder_forward.3} parent=4 // pred_check
        _
      $region7: #{lstm_encoder_forward.3} parent=4 // pred_check_branch
        %14 = sbr.rel (0) target = $region9
      $region8: #{lstm_encoder_forward.3} parent=4 // pred_region
        // Predicated region
        $region10: #{lstm_encoder_forward.3} parent=8 // pred_check
          _
        $region11: #{lstm_encoder_forward.3} parent=8 // pred_check_branch
          %16 = sbr.rel (0) target = $region13
        $region12: #{lstm_encoder_forward.3} parent=8 // pred_region
          loop: start=0, step=1, limit=1
          $region14: #{lstm_encoder_forward.3} parent=12 // loop_pre_header
            _
          $region15: #{lstm_encoder_forward.3} parent=12 // loop_header
            %s18 = sphi 0, %s22
            %p19 = scmp.ge.s32.totalorder %s18, 1
            %s23 = sphi %s0, %s0
            %s24 = sphi [#allocation6], [#allocation6]
          $region16: #{lstm_encoder_forward.3} parent=12 // loop_header_branch
            %21 = sbr.rel (%p19) target = $region20
          $region17: #{lstm_encoder_forward.3} parent=12 // loop_body
            %v25 = vld [vmem:[%s23] sm:$0xff]
            %26 = vst [vmem:[%s24] sm:$0xff] %v25
            %v27 = vld [vmem:[%s23 + $0x8] sm:$0xff]
            %28 = vst [vmem:[%s24 + $0x8] sm:$0xff] %v27
            %v29 = vld [vmem:[%s23 + $0x20] sm:$0xff]
            %30 = vst [vmem:[%s24 + $0x10] sm:$0xff] %v29
            %v31 = vld [vmem:[%s23 + $0x28] sm:$0xff]
            %32 = vst [vmem:[%s24 + $0x18] sm:$0xff] %v31
            %v33 = vld [vmem:[%s23 + $0x40] sm:$0xff]
            %34 = vst [vmem:[%s24 + $0x20] sm:$0xff] %v33
            %v35 = vld [vmem:[%s23 + $0x48] sm:$0xff]
            %36 = vst [vmem:[%s24 + $0x28] sm:$0xff] %v35
            %v37 = vld [vmem:[%s23 + $0x60] sm:$0xff]
            %38 = vst [vmem:[%s24 + $0x30] sm:$0xff] %v37
            %v39 = vld [vmem:[%s23 + $0x68] sm:$0xff]
            %40 = vst [vmem:[%s24 + $0x38] sm:$0xff] %v39
            %v41 = vld [vmem:[%s23 + $0x80] sm:$0xff]
            %42 = vst [vmem:[%s24 + $0x40] sm:$0xff] %v41
            %v43 = vld [vmem:[%s23 + $0x88] sm:$0xff]
            %44 = vst [vmem:[%s24 + $0x48] sm:$0xff] %v43
            %v45 = vld [vmem:[%s23 + $0xa0] sm:$0xff]
            %46 = vst [vmem:[%s24 + $0x50] sm:$0xff] %v45
            %v47 = vld [vmem:[%s23 + $0xa8] sm:$0xff]
            %48 = vst [vmem:[%s24 + $0x58] sm:$0xff] %v47
            %v49 = vld [vmem:[%s23 + $0xc0] sm:$0xff]
            %50 = vst [vmem:[%s24 + $0x60] sm:$0xff] %v49
            %v51 = vld [vmem:[%s23 + $0xc8] sm:$0xff]
            %52 = vst [vmem:[%s24 + $0x68] sm:$0xff] %v51
            %v53 = vld [vmem:[%s23 + $0xe0] sm:$0xff]
            %54 = vst [vmem:[%s24 + $0x70] sm:$0xff] %v53
            %v55 = vld [vmem:[%s23 + $0xe8] sm:$0xff]
            %56 = vst [vmem:[%s24 + $0x78] sm:$0xff] %v55
            %v57 = vld [vmem:[%s23 + $0x100] sm:$0xff]
            %58 = vst [vmem:[%s24 + $0x80] sm:$0xff] %v57
            %v59 = vld [vmem:[%s23 + $0x108] sm:$0xff]
            %60 = vst [vmem:[%s24 + $0x88] sm:$0xff] %v59
            %v61 = vld [vmem:[%s23 + $0x120] sm:$0xff]
            %62 = vst [vmem:[%s24 + $0x90] sm:$0xff] %v61
            %v63 = vld [vmem:[%s23 + $0x128] sm:$0xff]
            %64 = vst [vmem:[%s24 + $0x98] sm:$0xff] %v63
            %v65 = vld [vmem:[%s23 + $0x140] sm:$0xff]
            %66 = vst [vmem:[%s24 + $0xa0] sm:$0xff] %v65
            %v67 = vld [vmem:[%s23 + $0x148] sm:$0xff]
            %68 = vst [vmem:[%s24 + $0xa8] sm:$0xff] %v67
            %v69 = vld [vmem:[%s23 + $0x160] sm:$0xff]
            %70 = vst [vmem:[%s24 + $0xb0] sm:$0xff] %v69
            %v71 = vld [vmem:[%s23 + $0x168] sm:$0xff]
            %72 = vst [vmem:[%s24 + $0xb8] sm:$0xff] %v71
            %v73 = vld [vmem:[%s23 + $0x180] sm:$0xff]
            %74 = vst [vmem:[%s24 + $0xc0] sm:$0xff] %v73
            %v75 = vld [vmem:[%s23 + $0x188] sm:$0xff]
            %76 = vst [vmem:[%s24 + $0xc8] sm:$0xff] %v75
            %v77 = vld [vmem:[%s23 + $0x1a0] sm:$0xff]
            %78 = vst [vmem:[%s24 + $0xd0] sm:$0xff] %v77
            %v79 = vld [vmem:[%s23 + $0x1a8] sm:$0xff]
            %80 = vst [vmem:[%s24 + $0xd8] sm:$0xff] %v79
            %v81 = vld [vmem:[%s23 + $0x1c0] sm:$0xff]
            %82 = vst [vmem:[%s24 + $0xe0] sm:$0xff] %v81
            %v83 = vld [vmem:[%s23 + $0x1c8] sm:$0xff]
            %84 = vst [vmem:[%s24 + $0xe8] sm:$0xff] %v83
            %v85 = vld [vmem:[%s23 + $0x1e0] sm:$0xff]
            %86 = vst [vmem:[%s24 + $0xf0] sm:$0xff] %v85
            %v87 = vld [vmem:[%s23 + $0x1e8] sm:$0xff]
            %88 = vst [vmem:[%s24 + $0xf8] sm:$0xff] %v87
          $region18: #{lstm_encoder_forward.3} parent=12 // loop_footer
            %s22 = sadd.s32 1, %s18
          $region19: #{lstm_encoder_forward.3} parent=12 // loop_footer_branch
            %17 = sbr.rel target = $region15
          $region20: #{lstm_encoder_forward.3} parent=12 // loop_exit
            _
        $region13: #{lstm_encoder_forward.3} parent=8 // pred_fallthru
          _
        // Predicated region
        $region21: #{lstm_encoder_forward.3} parent=8 // pred_check
          _
        $region22: #{lstm_encoder_forward.3} parent=8 // pred_check_branch
          %90 = sbr.rel target = $region24
        $region23: #{lstm_encoder_forward.3} parent=8 // pred_region
          _
        $region24: #{lstm_encoder_forward.3} parent=8 // pred_fallthru
          _
      $region9: #{lstm_encoder_forward.3} parent=4 // pred_fallthru
        _
      %91 = vnop
    $region5: #{lstm_encoder_forward.3} parent=1 // pred_fallthru
      _
    // Predicated region
    $region25: #{lstm_encoder_forward.3} parent=1 // pred_check
      _
    $region26: #{lstm_encoder_forward.3} parent=1 // pred_check_branch
      %93 = sbr.rel (0) target = $region28
    $region27: #{lstm_encoder_forward.3} parent=1 // pred_region
      %s94 = ssub.s32 0, 0
      %s95 = smul.u32 8, %s94
      %s96 = smul.addr %s95, 16
      %s97 = sadd.s32 4, %s96
      %s98 = smul.addr %s97, 4
      %s99 = scalar_lea.vmem %s1, %s98
      // Predicated region
      $region29: #{lstm_encoder_forward.3} parent=27 // pred_check
        _
      $region30: #{lstm_encoder_forward.3} parent=27 // pred_check_branch
        %101 = sbr.rel (0) target = $region32
      $region31: #{lstm_encoder_forward.3} parent=27 // pred_region
        // Predicated region
        $region33: #{lstm_encoder_forward.3} parent=31 // pred_check
          _
        $region34: #{lstm_encoder_forward.3} parent=31 // pred_check_branch
          %103 = sbr.rel (0) target = $region36
        $region35: #{lstm_encoder_forward.3} parent=31 // pred_region
          loop: start=0, step=1, limit=1
          $region37: #{lstm_encoder_forward.3} parent=35 // loop_pre_header
            _
          $region38: #{lstm_encoder_forward.3} parent=35 // loop_header
            %s105 = sphi 0, %s109
            %p106 = scmp.ge.s32.totalorder %s105, 1
            %s110 = sphi %s99, %s99
            %s111 = sphi [#allocation7], [#allocation7]
          $region39: #{lstm_encoder_forward.3} parent=35 // loop_header_branch
            %108 = sbr.rel (%p106) target = $region43
          $region40: #{lstm_encoder_forward.3} parent=35 // loop_body
            %v112 = vld [vmem:[%s110] sm:$0xff]
            %113 = vst [vmem:[%s111] sm:$0xff] %v112
            %v114 = vld [vmem:[%s110 + $0x8] sm:$0xff]
            %115 = vst [vmem:[%s111 + $0x8] sm:$0xff] %v114
            %v116 = vld [vmem:[%s110 + $0x20] sm:$0xff]
            %117 = vst [vmem:[%s111 + $0x10] sm:$0xff] %v116
            %v118 = vld [vmem:[%s110 + $0x28] sm:$0xff]
            %119 = vst [vmem:[%s111 + $0x18] sm:$0xff] %v118
            %v120 = vld [vmem:[%s110 + $0x40] sm:$0xff]
            %121 = vst [vmem:[%s111 + $0x20] sm:$0xff] %v120
            %v122 = vld [vmem:[%s110 + $0x48] sm:$0xff]
            %123 = vst [vmem:[%s111 + $0x28] sm:$0xff] %v122
            %v124 = vld [vmem:[%s110 + $0x60] sm:$0xff]
            %125 = vst [vmem:[%s111 + $0x30] sm:$0xff] %v124
            %v126 = vld [vmem:[%s110 + $0x68] sm:$0xff]
            %127 = vst [vmem:[%s111 + $0x38] sm:$0xff] %v126
            %v128 = vld [vmem:[%s110 + $0x80] sm:$0xff]
            %129 = vst [vmem:[%s111 + $0x40] sm:$0xff] %v128
            %v130 = vld [vmem:[%s110 + $0x88] sm:$0xff]
            %131 = vst [vmem:[%s111 + $0x48] sm:$0xff] %v130
            %v132 = vld [vmem:[%s110 + $0xa0] sm:$0xff]
            %133 = vst [vmem:[%s111 + $0x50] sm:$0xff] %v132
            %v134 = vld [vmem:[%s110 + $0xa8] sm:$0xff]
            %135 = vst [vmem:[%s111 + $0x58] sm:$0xff] %v134
            %v136 = vld [vmem:[%s110 + $0xc0] sm:$0xff]
            %137 = vst [vmem:[%s111 + $0x60] sm:$0xff] %v136
            %v138 = vld [vmem:[%s110 + $0xc8] sm:$0xff]
            %139 = vst [vmem:[%s111 + $0x68] sm:$0xff] %v138
            %v140 = vld [vmem:[%s110 + $0xe0] sm:$0xff]
            %141 = vst [vmem:[%s111 + $0x70] sm:$0xff] %v140
            %v142 = vld [vmem:[%s110 + $0xe8] sm:$0xff]
            %143 = vst [vmem:[%s111 + $0x78] sm:$0xff] %v142
            %v144 = vld [vmem:[%s110 + $0x100] sm:$0xff]
            %145 = vst [vmem:[%s111 + $0x80] sm:$0xff] %v144
            %v146 = vld [vmem:[%s110 + $0x108] sm:$0xff]
            %147 = vst [vmem:[%s111 + $0x88] sm:$0xff] %v146
            %v148 = vld [vmem:[%s110 + $0x120] sm:$0xff]
            %149 = vst [vmem:[%s111 + $0x90] sm:$0xff] %v148
            %v150 = vld [vmem:[%s110 + $0x128] sm:$0xff]
            %151 = vst [vmem:[%s111 + $0x98] sm:$0xff] %v150
            %v152 = vld [vmem:[%s110 + $0x140] sm:$0xff]
            %153 = vst [vmem:[%s111 + $0xa0] sm:$0xff] %v152
            %v154 = vld [vmem:[%s110 + $0x148] sm:$0xff]
            %155 = vst [vmem:[%s111 + $0xa8] sm:$0xff] %v154
            %v156 = vld [vmem:[%s110 + $0x160] sm:$0xff]
            %157 = vst [vmem:[%s111 + $0xb0] sm:$0xff] %v156
            %v158 = vld [vmem:[%s110 + $0x168] sm:$0xff]
            %159 = vst [vmem:[%s111 + $0xb8] sm:$0xff] %v158
            %v160 = vld [vmem:[%s110 + $0x180] sm:$0xff]
            %161 = vst [vmem:[%s111 + $0xc0] sm:$0xff] %v160
            %v162 = vld [vmem:[%s110 + $0x188] sm:$0xff]
            %163 = vst [vmem:[%s111 + $0xc8] sm:$0xff] %v162
            %v164 = vld [vmem:[%s110 + $0x1a0] sm:$0xff]
            %165 = vst [vmem:[%s111 + $0xd0] sm:$0xff] %v164
            %v166 = vld [vmem:[%s110 + $0x1a8] sm:$0xff]
            %167 = vst [vmem:[%s111 + $0xd8] sm:$0xff] %v166
            %v168 = vld [vmem:[%s110 + $0x1c0] sm:$0xff]
            %169 = vst [vmem:[%s111 + $0xe0] sm:$0xff] %v168
            %v170 = vld [vmem:[%s110 + $0x1c8] sm:$0xff]
            %171 = vst [vmem:[%s111 + $0xe8] sm:$0xff] %v170
            %v172 = vld [vmem:[%s110 + $0x1e0] sm:$0xff]
            %173 = vst [vmem:[%s111 + $0xf0] sm:$0xff] %v172
            %v174 = vld [vmem:[%s110 + $0x1e8] sm:$0xff]
            %175 = vst [vmem:[%s111 + $0xf8] sm:$0xff] %v174
          $region41: #{lstm_encoder_forward.3} parent=35 // loop_footer
            %s109 = sadd.s32 1, %s105
          $region42: #{lstm_encoder_forward.3} parent=35 // loop_footer_branch
            %104 = sbr.rel target = $region38
          $region43: #{lstm_encoder_forward.3} parent=35 // loop_exit
            _
        $region36: #{lstm_encoder_forward.3} parent=31 // pred_fallthru
          _
        // Predicated region
        $region44: #{lstm_encoder_forward.3} parent=31 // pred_check
          _
        $region45: #{lstm_encoder_forward.3} parent=31 // pred_check_branch
          %177 = sbr.rel target = $region47
        $region46: #{lstm_encoder_forward.3} parent=31 // pred_region
          _
        $region47: #{lstm_encoder_forward.3} parent=31 // pred_fallthru
          _
      $region32: #{lstm_encoder_forward.3} parent=27 // pred_fallthru
        _
      %178 = vnop
    $region28: #{lstm_encoder_forward.3} parent=1 // pred_fallthru
      _
    // Predicated region
    $region48: #{lstm_encoder_forward.3} parent=1 // pred_check
      _
    $region49: #{lstm_encoder_forward.3} parent=1 // pred_check_branch
      %180 = sbr.rel (0) target = $region51
    $region50: #{lstm_encoder_forward.3} parent=1 // pred_region
      _
    $region51: #{lstm_encoder_forward.3} parent=1 // pred_fallthru
      _
    // Predicated region
    $region52: #{lstm_encoder_forward.3} parent=1 // pred_check
      _
    $region53: #{lstm_encoder_forward.3} parent=1 // pred_check_branch
      %182 = sbr.rel (0) target = $region55
    $region54: #{lstm_encoder_forward.3} parent=1 // pred_region
      _
    $region55: #{lstm_encoder_forward.3} parent=1 // pred_fallthru
      _
    // Predicated region
    $region56: #{lstm_encoder_forward.3} parent=1 // pred_check
      _
    $region57: #{lstm_encoder_forward.3} parent=1 // pred_check_branch
      %184 = sbr.rel (0) target = $region59
    $region58: #{lstm_encoder_forward.3} parent=1 // pred_region
      _
    $region59: #{lstm_encoder_forward.3} parent=1 // pred_fallthru
      _
    // Predicated region
    $region60: #{lstm_encoder_forward.3} parent=1 // pred_check
      _
    $region61: #{lstm_encoder_forward.3} parent=1 // pred_check_branch
      %186 = sbr.rel (0) target = $region63
    $region62: #{lstm_encoder_forward.3} parent=1 // pred_region
      _
    $region63: #{lstm_encoder_forward.3} parent=1 // pred_fallthru
      _
    %s187 = ssub.s32 0, 0
    %s188 = smul.u32 8, %s187
    %p189 = scmp.lt.s32.totalorder %s188, 7
    %s190 = scalar_select %p189, %s188, 7
    %s191 = smul.addr %s190, 2
    %s192 = smul.addr %s191, 4
    %s193 = scalar_lea.vmem %s5, %s192
    %s194 = ssub.s32 0, 0
    %s195 = smul.u32 8, %s194
    %s196 = ssub.s32 0, 0
    %s197 = smul.u32 8, %s196
    %p198 = scmp.lt.s32.totalorder %s197, 7
    %s199 = scalar_select %p198, %s197, 7
    %s200 = smul.addr %s199, 2
    %s201 = smul.addr %s200, 4
    %s202 = scalar_lea.vmem %s5, %s201
    %s203 = ssub.s32 0, 0
    %s204 = smul.u32 8, %s203
    %p206 = scmp.eq.s32.totalorder 0, 0
    // Predicated region
    $region64: #{lstm_encoder_forward.3} parent=1 // pred_check
      %p207 = pneg %p206
    $region65: #{lstm_encoder_forward.3} parent=1 // pred_check_branch
      %209 = sbr.rel (%p207) target = $region67
    $region66: #{lstm_encoder_forward.3} parent=1 // pred_region
      %210 = vst [vmem:[#allocation2] sm:$0xf] 0
      %211 = vst [vmem:[#allocation2 + $0x4] sm:$0xf] 0
      %212 = vst [vmem:[#allocation3] sm:$0xff] 0.0
      %213 = vst [vmem:[#allocation3 + $0x8] sm:$0xff] 0.0
      %214 = vst [vmem:[#allocation4] sm:$0xf] 0
      %215 = vst [vmem:[#allocation4 + $0x4] sm:$0xf] 0
      %216 = vst [vmem:[#allocation5] sm:$0xff] 0.0
      %217 = vst [vmem:[#allocation5 + $0x8] sm:$0xff] 0.0
    $region67: #{lstm_encoder_forward.3} parent=1 // pred_fallthru
      _
    %s218 = smul.u32 0, 8
    %s219 = ssub.s32 0, 0
    %s220 = smul.u32 %s219, 8
    %p221 = scmp.lt.s32.totalorder %s218, 8
    %v222 = vld [vmem:[#allocation2] sm:$0xf]
    %v223 = vld [vmem:[#allocation2 + $0x4] sm:$0xf]
    %v224 = vld [vmem:[%s2] sm:$0xff]
    %v225 = vld [vmem:[%s2 + $0x8] sm:$0xff]
    %v226 = vld [vmem:[%s2 + $0x10] sm:$0xff]
    %v227 = vld [vmem:[%s2 + $0x18] sm:$0xff]
    %v228 = vld [vmem:[%s2 + $0x20] sm:$0xff]
    %v229 = vld [vmem:[%s2 + $0x28] sm:$0xff]
    %v230 = vld [vmem:[%s2 + $0x30] sm:$0xff]
    %v231 = vld [vmem:[%s2 + $0x38] sm:$0xff]
    %v232 = vld [vmem:[%s2 + $0x40] sm:$0xff]
    %v233 = vld [vmem:[%s2 + $0x48] sm:$0xff]
    %v234 = vld [vmem:[%s2 + $0x50] sm:$0xff]
    %v235 = vld [vmem:[%s2 + $0x58] sm:$0xff]
    %v236 = vld [vmem:[%s2 + $0x60] sm:$0xff]
    %v237 = vld [vmem:[%s2 + $0x68] sm:$0xff]
    %v238 = vld [vmem:[%s2 + $0x70] sm:$0xff]
    %v239 = vld [vmem:[%s2 + $0x78] sm:$0xff]
    %v240 = vld [vmem:[%s2 + $0x80] sm:$0xff]
    %v241 = vld [vmem:[%s2 + $0x88] sm:$0xff]
    %v242 = vld [vmem:[%s2 + $0x90] sm:$0xff]
    %v243 = vld [vmem:[%s2 + $0x98] sm:$0xff]
    %v244 = vld [vmem:[%s2 + $0xa0] sm:$0xff]
    %v245 = vld [vmem:[%s2 + $0xa8] sm:$0xff]
    %v246 = vld [vmem:[%s2 + $0xb0] sm:$0xff]
    %v247 = vld [vmem:[%s2 + $0xb8] sm:$0xff]
    %v248 = vld [vmem:[%s2 + $0xc0] sm:$0xff]
    %v249 = vld [vmem:[%s2 + $0xc8] sm:$0xff]
    %v250 = vld [vmem:[%s2 + $0xd0] sm:$0xff]
    %v251 = vld [vmem:[%s2 + $0xd8] sm:$0xff]
    %v252 = vld [vmem:[%s2 + $0xe0] sm:$0xff]
    %v253 = vld [vmem:[%s2 + $0xe8] sm:$0xff]
    %v254 = vld [vmem:[%s2 + $0xf0] sm:$0xff]
    %v255 = vld [vmem:[%s2 + $0xf8] sm:$0xff]
    %v258 = vunpack.c.l.b16 %v222
    %v259 = vunpack.c.l.b16 %v223
    %v260 = vpack.c.b16 %v259, %v258
    %v294 = vunpack.c.l.b16 %v224
    %v295 = vunpack.c.h.b16 %v224
    %v296 = vunpack.c.l.b16 %v225
    %v297 = vunpack.c.h.b16 %v225
    %v298 = vunpack.c.l.b16 %v226
    %v299 = vunpack.c.h.b16 %v226
    %v300 = vunpack.c.l.b16 %v227
    %v301 = vunpack.c.h.b16 %v227
    %v302 = vunpack.c.l.b16 %v228
    %v303 = vunpack.c.h.b16 %v228
    %v304 = vunpack.c.l.b16 %v229
    %v305 = vunpack.c.h.b16 %v229
    %v306 = vunpack.c.l.b16 %v230
    %v307 = vunpack.c.h.b16 %v230
    %v308 = vunpack.c.l.b16 %v231
    %v309 = vunpack.c.h.b16 %v231
    %v310 = vunpack.c.l.b16 %v232
    %v311 = vunpack.c.h.b16 %v232
    %v312 = vunpack.c.l.b16 %v233
    %v313 = vunpack.c.h.b16 %v233
    %v314 = vunpack.c.l.b16 %v234
    %v315 = vunpack.c.h.b16 %v234
    %v316 = vunpack.c.l.b16 %v235
    %v317 = vunpack.c.h.b16 %v235
    %v318 = vunpack.c.l.b16 %v236
    %v319 = vunpack.c.h.b16 %v236
    %v320 = vunpack.c.l.b16 %v237
    %v321 = vunpack.c.h.b16 %v237
    %v322 = vunpack.c.l.b16 %v238
    %v323 = vunpack.c.h.b16 %v238
    %v324 = vunpack.c.l.b16 %v239
    %v325 = vunpack.c.h.b16 %v239
    %v326 = vunpack.c.l.b16 %v240
    %v327 = vunpack.c.h.b16 %v240
    %v328 = vunpack.c.l.b16 %v241
    %v329 = vunpack.c.h.b16 %v241
    %v330 = vunpack.c.l.b16 %v242
    %v331 = vunpack.c.h.b16 %v242
    %v332 = vunpack.c.l.b16 %v243
    %v333 = vunpack.c.h.b16 %v243
    %v334 = vunpack.c.l.b16 %v244
    %v335 = vunpack.c.h.b16 %v244
    %v336 = vunpack.c.l.b16 %v245
    %v337 = vunpack.c.h.b16 %v245
    %v338 = vunpack.c.l.b16 %v246
    %v339 = vunpack.c.h.b16 %v246
    %v340 = vunpack.c.l.b16 %v247
    %v341 = vunpack.c.h.b16 %v247
    %v342 = vunpack.c.l.b16 %v248
    %v343 = vunpack.c.h.b16 %v248
    %v344 = vunpack.c.l.b16 %v249
    %v345 = vunpack.c.h.b16 %v249
    %v346 = vunpack.c.l.b16 %v250
    %v347 = vunpack.c.h.b16 %v250
    %v348 = vunpack.c.l.b16 %v251
    %v349 = vunpack.c.h.b16 %v251
    %v350 = vunpack.c.l.b16 %v252
    %v351 = vunpack.c.h.b16 %v252
    %v352 = vunpack.c.l.b16 %v253
    %v353 = vunpack.c.h.b16 %v253
    %v354 = vunpack.c.l.b16 %v254
    %v355 = vunpack.c.h.b16 %v254
    %v356 = vunpack.c.l.b16 %v255
    %v357 = vunpack.c.h.b16 %v255
    %v358 = vpack.c.b16 %v298, %v294
    %v359 = vpack.c.b16 %v299, %v295
    %v360 = vpack.c.b16 %v300, %v296
    %v361 = vpack.c.b16 %v301, %v297
    %v362 = vpack.c.b16 %v306, %v302
    %v363 = vpack.c.b16 %v307, %v303
    %v364 = vpack.c.b16 %v308, %v304
    %v365 = vpack.c.b16 %v309, %v305
    %v366 = vpack.c.b16 %v314, %v310
    %v367 = vpack.c.b16 %v315, %v311
    %v368 = vpack.c.b16 %v316, %v312
    %v369 = vpack.c.b16 %v317, %v313
    %v370 = vpack.c.b16 %v322, %v318
    %v371 = vpack.c.b16 %v323, %v319
    %v372 = vpack.c.b16 %v324, %v320
    %v373 = vpack.c.b16 %v325, %v321
    %v374 = vpack.c.b16 %v330, %v326
    %v375 = vpack.c.b16 %v331, %v327
    %v376 = vpack.c.b16 %v332, %v328
    %v377 = vpack.c.b16 %v333, %v329
    %v378 = vpack.c.b16 %v338, %v334
    %v379 = vpack.c.b16 %v339, %v335
    %v380 = vpack.c.b16 %v340, %v336
    %v381 = vpack.c.b16 %v341, %v337
    %v382 = vpack.c.b16 %v346, %v342
    %v383 = vpack.c.b16 %v347, %v343
    %v384 = vpack.c.b16 %v348, %v344
    %v385 = vpack.c.b16 %v349, %v345
    %v386 = vpack.c.b16 %v354, %v350
    %v387 = vpack.c.b16 %v355, %v351
    %v388 = vpack.c.b16 %v356, %v352
    %v389 = vpack.c.b16 %v357, %v353
    %422 = vmatprep.subr.bf16.mxu0 %v387
    %423 = vmatpush1.bf16.msra.mxu0 %v386
    %424 = vmatprep.subr.bf16.mxu0 %v383
    %425 = vmatpush1.bf16.msra.mxu0 %v382
    %426 = vmatprep.subr.bf16.mxu0 %v379
    %427 = vmatpush1.bf16.msra.mxu0 %v378
    %428 = vmatprep.subr.bf16.mxu0 %v375
    %429 = vmatpush1.bf16.msra.mxu0 %v374
    %430 = vmatprep.subr.bf16.mxu0 %v371
    %431 = vmatpush1.bf16.msra.mxu0 %v370
    %432 = vmatprep.subr.bf16.mxu0 %v367
    %433 = vmatpush1.bf16.msra.mxu0 %v366
    %434 = vmatprep.subr.bf16.mxu0 %v363
    %435 = vmatpush1.bf16.msra.mxu0 %v362
    %436 = vmatprep.subr.bf16.mxu0 %v359
    %437 = vmatpush1.bf16.msra.mxu0 %v358
    %438 = vmatprep.subr.bf16.mxu0 0
    %439 = vmatpush2.bf16.msra.mxu0 0
    %440 = vmatprep.subr.bf16.mxu0 0
    %441 = vmatpush2.bf16.msra.mxu0 0
    %442 = vmatprep.subr.bf16.mxu0 0
    %443 = vmatpush2.bf16.msra.mxu0 0
    %444 = vmatprep.subr.bf16.mxu0 0
    %445 = vmatpush2.bf16.msra.mxu0 0
    %446 = vmatprep.subr.bf16.mxu0 0
    %447 = vmatpush2.bf16.msra.mxu0 0
    %448 = vmatprep.subr.bf16.mxu0 0
    %449 = vmatpush2.bf16.msra.mxu0 0
    %450 = vmatprep.subr.bf16.mxu0 0
    %451 = vmatpush2.bf16.msra.mxu0 0
    %452 = vmatprep.subr.bf16.mxu0 0
    %453 = vmatpush2.bf16.msra.mxu0 0
    %454 = vmatprep.mubr.bf16.mxu0 0
    %455 = vmatmul.mubr.bf16.gmra.mxu0 %v260
    %v456 = vpop.f32.mrf.mxu0
    %v457 = vadd.f32 0.0, %v456
    %v458 = vpop.f32.mrf.mxu0
    %v459 = vadd.f32 0.0, %v458
    %v460 = vpop.f32.mrf.mxu0
    %v461 = vadd.f32 0.0, %v460
    %v462 = vpop.f32.mrf.mxu0
    %v463 = vadd.f32 0.0, %v462
    %464 = vdwg.mxu0
    %465 = vmatprep.subr.bf16.mxu0 %v389
    %466 = vmatpush1.bf16.msra.mxu0 %v388
    %467 = vmatprep.subr.bf16.mxu0 %v385
    %468 = vmatpush1.bf16.msra.mxu0 %v384
    %469 = vmatprep.subr.bf16.mxu0 %v381
    %470 = vmatpush1.bf16.msra.mxu0 %v380
    %471 = vmatprep.subr.bf16.mxu0 %v377
    %472 = vmatpush1.bf16.msra.mxu0 %v376
    %473 = vmatprep.subr.bf16.mxu0 %v373
    %474 = vmatpush1.bf16.msra.mxu0 %v372
    %475 = vmatprep.subr.bf16.mxu0 %v369
    %476 = vmatpush1.bf16.msra.mxu0 %v368
    %477 = vmatprep.subr.bf16.mxu0 %v365
    %478 = vmatpush1.bf16.msra.mxu0 %v364
    %479 = vmatprep.subr.bf16.mxu0 %v361
    %480 = vmatpush1.bf16.msra.mxu0 %v360
    %481 = vmatprep.subr.bf16.mxu0 0
    %482 = vmatpush2.bf16.msra.mxu0 0
    %483 = vmatprep.subr.bf16.mxu0 0
    %484 = vmatpush2.bf16.msra.mxu0 0
    %485 = vmatprep.subr.bf16.mxu0 0
    %486 = vmatpush2.bf16.msra.mxu0 0
    %487 = vmatprep.subr.bf16.mxu0 0
    %488 = vmatpush2.bf16.msra.mxu0 0
    %489 = vmatprep.subr.bf16.mxu0 0
    %490 = vmatpush2.bf16.msra.mxu0 0
    %491 = vmatprep.subr.bf16.mxu0 0
    %492 = vmatpush2.bf16.msra.mxu0 0
    %493 = vmatprep.subr.bf16.mxu0 0
    %494 = vmatpush2.bf16.msra.mxu0 0
    %495 = vmatprep.subr.bf16.mxu0 0
    %496 = vmatpush2.bf16.msra.mxu0 0
    %497 = vmatprep.mubr.bf16.mxu0 0
    %498 = vmatmul.mubr.bf16.gmra.mxu0 %v260
    %v499 = vpop.f32.mrf.mxu0
    %v500 = vadd.f32 0.0, %v499
    %v501 = vpop.f32.mrf.mxu0
    %v502 = vadd.f32 0.0, %v501
    %v503 = vpop.f32.mrf.mxu0
    %v504 = vadd.f32 0.0, %v503
    %v505 = vpop.f32.mrf.mxu0
    %v506 = vadd.f32 0.0, %v505
    %507 = vdwg.mxu0
    %v508 = vld [vmem:[#allocation6] sm:$0xf]
    %v509 = vld [vmem:[#allocation6 + $0x10] sm:$0xf]
    %v510 = vunpack.c.l.bf16 %v508
    %v511 = vunpack.c.l.bf16 %v509
    %v512 = vadd.f32 %v457, %v510
    %v513 = vadd.f32 %v461, %v511
    %v514 = vxor.u32 %v512, 2147483648
    %v515 = vxor.u32 %v513, 2147483648
    %v516 = vmul.f32 %v514, 1.442695
    %v517 = vpow.pop %v516
    %v518 = vmul.f32 %v515, 1.442695
    %v519 = vpow.pop %v518
    %v520 = vadd.f32 %v517, 1.0
    %v521 = vadd.f32 %v519, 1.0
    %v522 = vrcp.pop %v520
    %v523 = vmul.f32 1.0, %v522
    %v524 = vrcp.pop %v521
    %v525 = vmul.f32 1.0, %v524
    %v526 = vld [vmem:[#allocation6 + $0x4] sm:$0xf]
    %v527 = vld [vmem:[#allocation6 + $0x14] sm:$0xf]
    %v528 = vunpack.c.l.bf16 %v526
    %v529 = vunpack.c.l.bf16 %v527
    %v530 = vadd.f32 %v459, %v528
    %v531 = vadd.f32 %v463, %v529
    %v532 = vxor.u32 %v530, 2147483648
    %v533 = vxor.u32 %v531, 2147483648
    %v534 = vmul.f32 %v532, 1.442695
    %v535 = vpow.pop %v534
    %v536 = vmul.f32 %v533, 1.442695
    %v537 = vpow.pop %v536
    %v538 = vadd.f32 %v535, 1.0
    %v539 = vadd.f32 %v537, 1.0
    %v540 = vrcp.pop %v538
    %v541 = vmul.f32 1.0, %v540
    %v542 = vrcp.pop %v539
    %v543 = vmul.f32 1.0, %v542
    %v544 = vld [vmem:[#allocation6 + $0x8] sm:$0xf]
    %v545 = vld [vmem:[#allocation6 + $0x18] sm:$0xf]
    %v546 = vunpack.c.l.bf16 %v544
    %v547 = vunpack.c.l.bf16 %v545
    %v548 = vadd.f32 %v500, %v546
    %v549 = vadd.f32 %v504, %v547
    %v550 = vtanh.pop %v548
    %v551 = vtanh.pop %v549
    %v552 = vld [vmem:[#allocation6 + $0xc] sm:$0xf]
    %v553 = vld [vmem:[#allocation6 + $0x1c] sm:$0xf]
    %v554 = vunpack.c.l.bf16 %v552
    %v555 = vunpack.c.l.bf16 %v553
    %v556 = vadd.f32 %v502, %v554
    %v557 = vadd.f32 %v506, %v555
    %v558 = vxor.u32 %v556, 2147483648
    %v559 = vxor.u32 %v557, 2147483648
    %v560 = vmul.f32 %v558, 1.442695
    %v561 = vpow.pop %v560
    %v562 = vmul.f32 %v559, 1.442695
    %v563 = vpow.pop %v562
    %v564 = vadd.f32 %v561, 1.0
    %v565 = vadd.f32 %v563, 1.0
    %v566 = vrcp.pop %v564
    %v567 = vmul.f32 1.0, %v566
    %v568 = vrcp.pop %v565
    %v569 = vmul.f32 1.0, %v568
    %v570 = vld [vmem:[#allocation3] sm:$0xff]
    %v571 = vld [vmem:[#allocation3 + $0x8] sm:$0xff]
    %v572 = vmul.f32 %v541, %v570
    %v573 = vmul.f32 %v543, %v571
    %v574 = vmul.f32 %v523, %v550
    %v575 = vmul.f32 %v525, %v551
    %v576 = vadd.f32 %v572, %v574
    %v577 = vadd.f32 %v573, %v575
    %v578 = vtanh.pop %v576
    %v579 = vtanh.pop %v577
    %v580 = vmul.f32 %v567, %v578
    %v581 = vmul.f32 %v569, %v579
    %v582 = vpack.c.bf16 %v581, %v580
    %s583 = scalar_select %p221, 1, 0
    %v584 = vstv %s583
    %vm585 = vcmp.eq.s32.totalorder %v584, 1
    %v586 = vsel %vm585, %v576, %v570
    %v587 = vsel %vm585, %v577, %v571
    %588 = vst [vmem:[#allocation3] sm:$0xff] %v586
    %589 = vst [vmem:[#allocation3 + $0x8] sm:$0xff] %v587
    %v590 = vld [vmem:[#allocation2] sm:$0xf]
    %v591 = vld [vmem:[#allocation2 + $0x4] sm:$0xf]
    %v594 = vunpack.c.l.b16 %v590
    %v595 = vunpack.c.l.b16 %v591
    %v596 = vpack.c.b16 %v595, %v594
    %v598 = vsel %vm585, %v582, %v596
    %v600 = vunpack.c.l.b16 %v598
    %v601 = vunpack.c.h.b16 %v598
    %v602 = vpack.c.b16 %v600, %v600
    %v603 = vpack.c.b16 %v601, %v601
    %606 = vst [vmem:[#allocation2] sm:$0xf] %v602
    %607 = vst [vmem:[#allocation2 + $0x4] sm:$0xf] %v603
    %v609 = vunpack.c.l.b16 %v582
    %v610 = vunpack.c.h.b16 %v582
    %v611 = vpack.c.b16 %v609, %v609
    %v612 = vpack.c.b16 %v610, %v610
    %615 = vst [vmem:[%s4] sm:$0xf] %v611
    %616 = vst [vmem:[%s4 + $0x4] sm:$0xf] %v612
    %s617 = sadd.s32 %s220, 7
    %p618 = scmp.lt.s32.totalorder %s617, 8
    %v619 = vld [vmem:[#allocation4] sm:$0xf]
    %v620 = vld [vmem:[#allocation4 + $0x4] sm:$0xf]
    %v621 = vld [vmem:[%s3] sm:$0xff]
    %v622 = vld [vmem:[%s3 + $0x8] sm:$0xff]
    %v623 = vld [vmem:[%s3 + $0x10] sm:$0xff]
    %v624 = vld [vmem:[%s3 + $0x18] sm:$0xff]
    %v625 = vld [vmem:[%s3 + $0x20] sm:$0xff]
    %v626 = vld [vmem:[%s3 + $0x28] sm:$0xff]
    %v627 = vld [vmem:[%s3 + $0x30] sm:$0xff]
    %v628 = vld [vmem:[%s3 + $0x38] sm:$0xff]
    %v629 = vld [vmem:[%s3 + $0x40] sm:$0xff]
    %v630 = vld [vmem:[%s3 + $0x48] sm:$0xff]
    %v631 = vld [vmem:[%s3 + $0x50] sm:$0xff]
    %v632 = vld [vmem:[%s3 + $0x58] sm:$0xff]
    %v633 = vld [vmem:[%s3 + $0x60] sm:$0xff]
    %v634 = vld [vmem:[%s3 + $0x68] sm:$0xff]
    %v635 = vld [vmem:[%s3 + $0x70] sm:$0xff]
    %v636 = vld [vmem:[%s3 + $0x78] sm:$0xff]
    %v637 = vld [vmem:[%s3 + $0x80] sm:$0xff]
    %v638 = vld [vmem:[%s3 + $0x88] sm:$0xff]
    %v639 = vld [vmem:[%s3 + $0x90] sm:$0xff]
    %v640 = vld [vmem:[%s3 + $0x98] sm:$0xff]
    %v641 = vld [vmem:[%s3 + $0xa0] sm:$0xff]
    %v642 = vld [vmem:[%s3 + $0xa8] sm:$0xff]
    %v643 = vld [vmem:[%s3 + $0xb0] sm:$0xff]
    %v644 = vld [vmem:[%s3 + $0xb8] sm:$0xff]
    %v645 = vld [vmem:[%s3 + $0xc0] sm:$0xff]
    %v646 = vld [vmem:[%s3 + $0xc8] sm:$0xff]
    %v647 = vld [vmem:[%s3 + $0xd0] sm:$0xff]
    %v648 = vld [vmem:[%s3 + $0xd8] sm:$0xff]
    %v649 = vld [vmem:[%s3 + $0xe0] sm:$0xff]
    %v650 = vld [vmem:[%s3 + $0xe8] sm:$0xff]
    %v651 = vld [vmem:[%s3 + $0xf0] sm:$0xff]
    %v652 = vld [vmem:[%s3 + $0xf8] sm:$0xff]
    %v655 = vunpack.c.l.b16 %v619
    %v656 = vunpack.c.l.b16 %v620
    %v657 = vpack.c.b16 %v656, %v655
    %v691 = vunpack.c.l.b16 %v621
    %v692 = vunpack.c.h.b16 %v621
    %v693 = vunpack.c.l.b16 %v622
    %v694 = vunpack.c.h.b16 %v622
    %v695 = vunpack.c.l.b16 %v623
    %v696 = vunpack.c.h.b16 %v623
    %v697 = vunpack.c.l.b16 %v624
    %v698 = vunpack.c.h.b16 %v624
    %v699 = vunpack.c.l.b16 %v625
    %v700 = vunpack.c.h.b16 %v625
    %v701 = vunpack.c.l.b16 %v626
    %v702 = vunpack.c.h.b16 %v626
    %v703 = vunpack.c.l.b16 %v627
    %v704 = vunpack.c.h.b16 %v627
    %v705 = vunpack.c.l.b16 %v628
    %v706 = vunpack.c.h.b16 %v628
    %v707 = vunpack.c.l.b16 %v629
    %v708 = vunpack.c.h.b16 %v629
    %v709 = vunpack.c.l.b16 %v630
    %v710 = vunpack.c.h.b16 %v630
    %v711 = vunpack.c.l.b16 %v631
    %v712 = vunpack.c.h.b16 %v631
    %v713 = vunpack.c.l.b16 %v632
    %v714 = vunpack.c.h.b16 %v632
    %v715 = vunpack.c.l.b16 %v633
    %v716 = vunpack.c.h.b16 %v633
    %v717 = vunpack.c.l.b16 %v634
    %v718 = vunpack.c.h.b16 %v634
    %v719 = vunpack.c.l.b16 %v635
    %v720 = vunpack.c.h.b16 %v635
    %v721 = vunpack.c.l.b16 %v636
    %v722 = vunpack.c.h.b16 %v636
    %v723 = vunpack.c.l.b16 %v637
    %v724 = vunpack.c.h.b16 %v637
    %v725 = vunpack.c.l.b16 %v638
    %v726 = vunpack.c.h.b16 %v638
    %v727 = vunpack.c.l.b16 %v639
    %v728 = vunpack.c.h.b16 %v639
    %v729 = vunpack.c.l.b16 %v640
    %v730 = vunpack.c.h.b16 %v640
    %v731 = vunpack.c.l.b16 %v641
    %v732 = vunpack.c.h.b16 %v641
    %v733 = vunpack.c.l.b16 %v642
    %v734 = vunpack.c.h.b16 %v642
    %v735 = vunpack.c.l.b16 %v643
    %v736 = vunpack.c.h.b16 %v643
    %v737 = vunpack.c.l.b16 %v644
    %v738 = vunpack.c.h.b16 %v644
    %v739 = vunpack.c.l.b16 %v645
    %v740 = vunpack.c.h.b16 %v645
    %v741 = vunpack.c.l.b16 %v646
    %v742 = vunpack.c.h.b16 %v646
    %v743 = vunpack.c.l.b16 %v647
    %v744 = vunpack.c.h.b16 %v647
    %v745 = vunpack.c.l.b16 %v648
    %v746 = vunpack.c.h.b16 %v648
    %v747 = vunpack.c.l.b16 %v649
    %v748 = vunpack.c.h.b16 %v649
    %v749 = vunpack.c.l.b16 %v650
    %v750 = vunpack.c.h.b16 %v650
    %v751 = vunpack.c.l.b16 %v651
    %v752 = vunpack.c.h.b16 %v651
    %v753 = vunpack.c.l.b16 %v652
    %v754 = vunpack.c.h.b16 %v652
    %v755 = vpack.c.b16 %v695, %v691
    %v756 = vpack.c.b16 %v696, %v692
    %v757 = vpack.c.b16 %v697, %v693
    %v758 = vpack.c.b16 %v698, %v694
    %v759 = vpack.c.b16 %v703, %v699
    %v760 = vpack.c.b16 %v704, %v700
    %v761 = vpack.c.b16 %v705, %v701
    %v762 = vpack.c.b16 %v706, %v702
    %v763 = vpack.c.b16 %v711, %v707
    %v764 = vpack.c.b16 %v712, %v708
    %v765 = vpack.c.b16 %v713, %v709
    %v766 = vpack.c.b16 %v714, %v710
    %v767 = vpack.c.b16 %v719, %v715
    %v768 = vpack.c.b16 %v720, %v716
    %v769 = vpack.c.b16 %v721, %v717
    %v770 = vpack.c.b16 %v722, %v718
    %v771 = vpack.c.b16 %v727, %v723
    %v772 = vpack.c.b16 %v728, %v724
    %v773 = vpack.c.b16 %v729, %v725
    %v774 = vpack.c.b16 %v730, %v726
    %v775 = vpack.c.b16 %v735, %v731
    %v776 = vpack.c.b16 %v736, %v732
    %v777 = vpack.c.b16 %v737, %v733
    %v778 = vpack.c.b16 %v738, %v734
    %v779 = vpack.c.b16 %v743, %v739
    %v780 = vpack.c.b16 %v744, %v740
    %v781 = vpack.c.b16 %v745, %v741
    %v782 = vpack.c.b16 %v746, %v742
    %v783 = vpack.c.b16 %v751, %v747
    %v784 = vpack.c.b16 %v752, %v748
    %v785 = vpack.c.b16 %v753, %v749
    %v786 = vpack.c.b16 %v754, %v750
    %819 = vmatprep.subr.bf16.mxu0 %v784
    %820 = vmatpush1.bf16.msra.mxu0 %v783
    %821 = vmatprep.subr.bf16.mxu0 %v780
    %822 = vmatpush1.bf16.msra.mxu0 %v779
    %823 = vmatprep.subr.bf16.mxu0 %v776
    %824 = vmatpush1.bf16.msra.mxu0 %v775
    %825 = vmatprep.subr.bf16.mxu0 %v772
    %826 = vmatpush1.bf16.msra.mxu0 %v771
    %827 = vmatprep.subr.bf16.mxu0 %v768
    %828 = vmatpush1.bf16.msra.mxu0 %v767
    %829 = vmatprep.subr.bf16.mxu0 %v764
    %830 = vmatpush1.bf16.msra.mxu0 %v763
    %831 = vmatprep.subr.bf16.mxu0 %v760
    %832 = vmatpush1.bf16.msra.mxu0 %v759
    %833 = vmatprep.subr.bf16.mxu0 %v756
    %834 = vmatpush1.bf16.msra.mxu0 %v755
    %835 = vmatprep.subr.bf16.mxu0 0
    %836 = vmatpush2.bf16.msra.mxu0 0
    %837 = vmatprep.subr.bf16.mxu0 0
    %838 = vmatpush2.bf16.msra.mxu0 0
    %839 = vmatprep.subr.bf16.mxu0 0
    %840 = vmatpush2.bf16.msra.mxu0 0
    %841 = vmatprep.subr.bf16.mxu0 0
    %842 = vmatpush2.bf16.msra.mxu0 0
    %843 = vmatprep.subr.bf16.mxu0 0
    %844 = vmatpush2.bf16.msra.mxu0 0
    %845 = vmatprep.subr.bf16.mxu0 0
    %846 = vmatpush2.bf16.msra.mxu0 0
    %847 = vmatprep.subr.bf16.mxu0 0
    %848 = vmatpush2.bf16.msra.mxu0 0
    %849 = vmatprep.subr.bf16.mxu0 0
    %850 = vmatpush2.bf16.msra.mxu0 0
    %851 = vmatprep.mubr.bf16.mxu0 0
    %852 = vmatmul.mubr.bf16.gmra.mxu0 %v657
    %v853 = vpop.f32.mrf.mxu0
    %v854 = vadd.f32 0.0, %v853
    %v855 = vpop.f32.mrf.mxu0
    %v856 = vadd.f32 0.0, %v855
    %v857 = vpop.f32.mrf.mxu0
    %v858 = vadd.f32 0.0, %v857
    %v859 = vpop.f32.mrf.mxu0
    %v860 = vadd.f32 0.0, %v859
    %861 = vdwg.mxu0
    %862 = vmatprep.subr.bf16.mxu0 %v786
    %863 = vmatpush1.bf16.msra.mxu0 %v785
    %864 = vmatprep.subr.bf16.mxu0 %v782
    %865 = vmatpush1.bf16.msra.mxu0 %v781
    %866 = vmatprep.subr.bf16.mxu0 %v778
    %867 = vmatpush1.bf16.msra.mxu0 %v777
    %868 = vmatprep.subr.bf16.mxu0 %v774
    %869 = vmatpush1.bf16.msra.mxu0 %v773
    %870 = vmatprep.subr.bf16.mxu0 %v770
    %871 = vmatpush1.bf16.msra.mxu0 %v769
    %872 = vmatprep.subr.bf16.mxu0 %v766
    %873 = vmatpush1.bf16.msra.mxu0 %v765
    %874 = vmatprep.subr.bf16.mxu0 %v762
    %875 = vmatpush1.bf16.msra.mxu0 %v761
    %876 = vmatprep.subr.bf16.mxu0 %v758
    %877 = vmatpush1.bf16.msra.mxu0 %v757
    %878 = vmatprep.subr.bf16.mxu0 0
    %879 = vmatpush2.bf16.msra.mxu0 0
    %880 = vmatprep.subr.bf16.mxu0 0
    %881 = vmatpush2.bf16.msra.mxu0 0
    %882 = vmatprep.subr.bf16.mxu0 0
    %883 = vmatpush2.bf16.msra.mxu0 0
    %884 = vmatprep.subr.bf16.mxu0 0
    %885 = vmatpush2.bf16.msra.mxu0 0
    %886 = vmatprep.subr.bf16.mxu0 0
    %887 = vmatpush2.bf16.msra.mxu0 0
    %888 = vmatprep.subr.bf16.mxu0 0
    %889 = vmatpush2.bf16.msra.mxu0 0
    %890 = vmatprep.subr.bf16.mxu0 0
    %891 = vmatpush2.bf16.msra.mxu0 0
    %892 = vmatprep.subr.bf16.mxu0 0
    %893 = vmatpush2.bf16.msra.mxu0 0
    %894 = vmatprep.mubr.bf16.mxu0 0
    %895 = vmatmul.mubr.bf16.gmra.mxu0 %v657
    %v896 = vpop.f32.mrf.mxu0
    %v897 = vadd.f32 0.0, %v896
    %v898 = vpop.f32.mrf.mxu0
    %v899 = vadd.f32 0.0, %v898
    %v900 = vpop.f32.mrf.mxu0
    %v901 = vadd.f32 0.0, %v900
    %v902 = vpop.f32.mrf.mxu0
    %v903 = vadd.f32 0.0, %v902
    %904 = vdwg.mxu0
    %s905 = scalar_lea.vmem [#allocation7], 224
    %v906 = vld [vmem:[%s905] sm:$0xf]
    %v907 = vld [vmem:[%s905 + $0x10] sm:$0xf]
    %v908 = vunpack.c.l.bf16 %v906
    %v909 = vunpack.c.l.bf16 %v907
    %v910 = vadd.f32 %v854, %v908
    %v911 = vadd.f32 %v858, %v909
    %v912 = vxor.u32 %v910, 2147483648
    %v913 = vxor.u32 %v911, 2147483648
    %v914 = vmul.f32 %v912, 1.442695
    %v915 = vpow.pop %v914
    %v916 = vmul.f32 %v913, 1.442695
    %v917 = vpow.pop %v916
    %v918 = vadd.f32 %v915, 1.0
    %v919 = vadd.f32 %v917, 1.0
    %v920 = vrcp.pop %v918
    %v921 = vmul.f32 1.0, %v920
    %v922 = vrcp.pop %v919
    %v923 = vmul.f32 1.0, %v922
    %v924 = vld [vmem:[%s905 + $0x4] sm:$0xf]
    %v925 = vld [vmem:[%s905 + $0x14] sm:$0xf]
    %v926 = vunpack.c.l.bf16 %v924
    %v927 = vunpack.c.l.bf16 %v925
    %v928 = vadd.f32 %v856, %v926
    %v929 = vadd.f32 %v860, %v927
    %v930 = vxor.u32 %v928, 2147483648
    %v931 = vxor.u32 %v929, 2147483648
    %v932 = vmul.f32 %v930, 1.442695
    %v933 = vpow.pop %v932
    %v934 = vmul.f32 %v931, 1.442695
    %v935 = vpow.pop %v934
    %v936 = vadd.f32 %v933, 1.0
    %v937 = vadd.f32 %v935, 1.0
    %v938 = vrcp.pop %v936
    %v939 = vmul.f32 1.0, %v938
    %v940 = vrcp.pop %v937
    %v941 = vmul.f32 1.0, %v940
    %v942 = vld [vmem:[%s905 + $0x8] sm:$0xf]
    %v943 = vld [vmem:[%s905 + $0x18] sm:$0xf]
    %v944 = vunpack.c.l.bf16 %v942
    %v945 = vunpack.c.l.bf16 %v943
    %v946 = vadd.f32 %v897, %v944
    %v947 = vadd.f32 %v901, %v945
    %v948 = vtanh.pop %v946
    %v949 = vtanh.pop %v947
    %v950 = vld [vmem:[%s905 + $0xc] sm:$0xf]
    %v951 = vld [vmem:[%s905 + $0x1c] sm:$0xf]
    %v952 = vunpack.c.l.bf16 %v950
    %v953 = vunpack.c.l.bf16 %v951
    %v954 = vadd.f32 %v899, %v952
    %v955 = vadd.f32 %v903, %v953
    %v956 = vxor.u32 %v954, 2147483648
    %v957 = vxor.u32 %v955, 2147483648
    %v958 = vmul.f32 %v956, 1.442695
    %v959 = vpow.pop %v958
    %v960 = vmul.f32 %v957, 1.442695
    %v961 = vpow.pop %v960
    %v962 = vadd.f32 %v959, 1.0
    %v963 = vadd.f32 %v961, 1.0
    %v964 = vrcp.pop %v962
    %v965 = vmul.f32 1.0, %v964
    %v966 = vrcp.pop %v963
    %v967 = vmul.f32 1.0, %v966
    %v968 = vld [vmem:[#allocation5] sm:$0xff]
    %v969 = vld [vmem:[#allocation5 + $0x8] sm:$0xff]
    %v970 = vmul.f32 %v939, %v968
    %v971 = vmul.f32 %v941, %v969
    %v972 = vmul.f32 %v921, %v948
    %v973 = vmul.f32 %v923, %v949
    %v974 = vadd.f32 %v970, %v972
    %v975 = vadd.f32 %v971, %v973
    %v976 = vtanh.pop %v974
    %v977 = vtanh.pop %v975
    %v978 = vmul.f32 %v965, %v976
    %v979 = vmul.f32 %v967, %v977
    %v980 = vpack.c.bf16 %v979, %v978
    %s981 = scalar_select %p618, 1, 0
    %v982 = vstv %s981
    %vm983 = vcmp.eq.s32.totalorder %v982, 1
    %v984 = vsel %vm983, %v974, %v968
    %v985 = vsel %vm983, %v975, %v969
    %986 = vst [vmem:[#allocation5] sm:$0xff] %v984
    %987 = vst [vmem:[#allocation5 + $0x8] sm:$0xff] %v985
    %v988 = vld [vmem:[#allocation4] sm:$0xf]
    %v989 = vld [vmem:[#allocation4 + $0x4] sm:$0xf]
    %v992 = vunpack.c.l.b16 %v988
    %v993 = vunpack.c.l.b16 %v989
    %v994 = vpack.c.b16 %v993, %v992
    %v996 = vsel %vm983, %v980, %v994
    %v998 = vunpack.c.l.b16 %v996
    %v999 = vunpack.c.h.b16 %v996
    %v1000 = vpack.c.b16 %v998, %v998
    %v1001 = vpack.c.b16 %v999, %v999
    %1004 = vst [vmem:[#allocation4] sm:$0xf] %v1000
    %1005 = vst [vmem:[#allocation4 + $0x4] sm:$0xf] %v1001
    %v1007 = vunpack.c.l.b16 %v980
    %v1008 = vunpack.c.h.b16 %v980
    %v1009 = vpack.c.b16 %v1007, %v1007
    %v1010 = vpack.c.b16 %v1008, %v1008
    %s1013 = scalar_lea.vmem %s202, 56
    %1014 = vst [vmem:[%s1013] sm:$0xf] %v1009
    %1015 = vst [vmem:[%s1013 + $0x4] sm:$0xf] %v1010
    %s1016 = sadd.s32 %s218, 1
    %p1017 = scmp.lt.s32.totalorder %s1016, 8
    %v1018 = vld [vmem:[#allocation2] sm:$0xf]
    %v1019 = vld [vmem:[#allocation2 + $0x4] sm:$0xf]
    %v1020 = vld [vmem:[%s2] sm:$0xff]
    %v1021 = vld [vmem:[%s2 + $0x8] sm:$0xff]
    %v1022 = vld [vmem:[%s2 + $0x10] sm:$0xff]
    %v1023 = vld [vmem:[%s2 + $0x18] sm:$0xff]
    %v1024 = vld [vmem:[%s2 + $0x20] sm:$0xff]
    %v1025 = vld [vmem:[%s2 + $0x28] sm:$0xff]
    %v1026 = vld [vmem:[%s2 + $0x30] sm:$0xff]
    %v1027 = vld [vmem:[%s2 + $0x38] sm:$0xff]
    %v1028 = vld [vmem:[%s2 + $0x40] sm:$0xff]
    %v1029 = vld [vmem:[%s2 + $0x48] sm:$0xff]
    %v1030 = vld [vmem:[%s2 + $0x50] sm:$0xff]
    %v1031 = vld [vmem:[%s2 + $0x58] sm:$0xff]
    %v1032 = vld [vmem:[%s2 + $0x60] sm:$0xff]
    %v1033 = vld [vmem:[%s2 + $0x68] sm:$0xff]
    %v1034 = vld [vmem:[%s2 + $0x70] sm:$0xff]
    %v1035 = vld [vmem:[%s2 + $0x78] sm:$0xff]
    %v1036 = vld [vmem:[%s2 + $0x80] sm:$0xff]
    %v1037 = vld [vmem:[%s2 + $0x88] sm:$0xff]
    %v1038 = vld [vmem:[%s2 + $0x90] sm:$0xff]
    %v1039 = vld [vmem:[%s2 + $0x98] sm:$0xff]
    %v1040 = vld [vmem:[%s2 + $0xa0] sm:$0xff]
    %v1041 = vld [vmem:[%s2 + $0xa8] sm:$0xff]
    %v1042 = vld [vmem:[%s2 + $0xb0] sm:$0xff]
    %v1043 = vld [vmem:[%s2 + $0xb8] sm:$0xff]
    %v1044 = vld [vmem:[%s2 + $0xc0] sm:$0xff]
    %v1045 = vld [vmem:[%s2 + $0xc8] sm:$0xff]
    %v1046 = vld [vmem:[%s2 + $0xd0] sm:$0xff]
    %v1047 = vld [vmem:[%s2 + $0xd8] sm:$0xff]
    %v1048 = vld [vmem:[%s2 + $0xe0] sm:$0xff]
    %v1049 = vld [vmem:[%s2 + $0xe8] sm:$0xff]
    %v1050 = vld [vmem:[%s2 + $0xf0] sm:$0xff]
    %v1051 = vld [vmem:[%s2 + $0xf8] sm:$0xff]
    %v1054 = vunpack.c.l.b16 %v1018
    %v1055 = vunpack.c.l.b16 %v1019
    %v1056 = vpack.c.b16 %v1055, %v1054
    %v1090 = vunpack.c.l.b16 %v1020
    %v1091 = vunpack.c.h.b16 %v1020
    %v1092 = vunpack.c.l.b16 %v1021
    %v1093 = vunpack.c.h.b16 %v1021
    %v1094 = vunpack.c.l.b16 %v1022
    %v1095 = vunpack.c.h.b16 %v1022
    %v1096 = vunpack.c.l.b16 %v1023
    %v1097 = vunpack.c.h.b16 %v1023
    %v1098 = vunpack.c.l.b16 %v1024
    %v1099 = vunpack.c.h.b16 %v1024
    %v1100 = vunpack.c.l.b16 %v1025
    %v1101 = vunpack.c.h.b16 %v1025
    %v1102 = vunpack.c.l.b16 %v1026
    %v1103 = vunpack.c.h.b16 %v1026
    %v1104 = vunpack.c.l.b16 %v1027
    %v1105 = vunpack.c.h.b16 %v1027
    %v1106 = vunpack.c.l.b16 %v1028
    %v1107 = vunpack.c.h.b16 %v1028
    %v1108 = vunpack.c.l.b16 %v1029
    %v1109 = vunpack.c.h.b16 %v1029
    %v1110 = vunpack.c.l.b16 %v1030
    %v1111 = vunpack.c.h.b16 %v1030
    %v1112 = vunpack.c.l.b16 %v1031
    %v1113 = vunpack.c.h.b16 %v1031
    %v1114 = vunpack.c.l.b16 %v1032
    %v1115 = vunpack.c.h.b16 %v1032
    %v1116 = vunpack.c.l.b16 %v1033
    %v1117 = vunpack.c.h.b16 %v1033
    %v1118 = vunpack.c.l.b16 %v1034
    %v1119 = vunpack.c.h.b16 %v1034
    %v1120 = vunpack.c.l.b16 %v1035
    %v1121 = vunpack.c.h.b16 %v1035
    %v1122 = vunpack.c.l.b16 %v1036
    %v1123 = vunpack.c.h.b16 %v1036
    %v1124 = vunpack.c.l.b16 %v1037
    %v1125 = vunpack.c.h.b16 %v1037
    %v1126 = vunpack.c.l.b16 %v1038
    %v1127 = vunpack.c.h.b16 %v1038
    %v1128 = vunpack.c.l.b16 %v1039
    %v1129 = vunpack.c.h.b16 %v1039
    %v1130 = vunpack.c.l.b16 %v1040
    %v1131 = vunpack.c.h.b16 %v1040
    %v1132 = vunpack.c.l.b16 %v1041
    %v1133 = vunpack.c.h.b16 %v1041
    %v1134 = vunpack.c.l.b16 %v1042
    %v1135 = vunpack.c.h.b16 %v1042
    %v1136 = vunpack.c.l.b16 %v1043
    %v1137 = vunpack.c.h.b16 %v1043
    %v1138 = vunpack.c.l.b16 %v1044
    %v1139 = vunpack.c.h.b16 %v1044
    %v1140 = vunpack.c.l.b16 %v1045
    %v1141 = vunpack.c.h.b16 %v1045
    %v1142 = vunpack.c.l.b16 %v1046
    %v1143 = vunpack.c.h.b16 %v1046
    %v1144 = vunpack.c.l.b16 %v1047
    %v1145 = vunpack.c.h.b16 %v1047
    %v1146 = vunpack.c.l.b16 %v1048
    %v1147 = vunpack.c.h.b16 %v1048
    %v1148 = vunpack.c.l.b16 %v1049
    %v1149 = vunpack.c.h.b16 %v1049
    %v1150 = vunpack.c.l.b16 %v1050
    %v1151 = vunpack.c.h.b16 %v1050
    %v1152 = vunpack.c.l.b16 %v1051
    %v1153 = vunpack.c.h.b16 %v1051
    %v1154 = vpack.c.b16 %v1094, %v1090
    %v1155 = vpack.c.b16 %v1095, %v1091
    %v1156 = vpack.c.b16 %v1096, %v1092
    %v1157 = vpack.c.b16 %v1097, %v1093
    %v1158 = vpack.c.b16 %v1102, %v1098
    %v1159 = vpack.c.b16 %v1103, %v1099
    %v1160 = vpack.c.b16 %v1104, %v1100
    %v1161 = vpack.c.b16 %v1105, %v1101
    %v1162 = vpack.c.b16 %v1110, %v1106
    %v1163 = vpack.c.b16 %v1111, %v1107
    %v1164 = vpack.c.b16 %v1112, %v1108
    %v1165 = vpack.c.b16 %v1113, %v1109
    %v1166 = vpack.c.b16 %v1118, %v1114
    %v1167 = vpack.c.b16 %v1119, %v1115
    %v1168 = vpack.c.b16 %v1120, %v1116
    %v1169 = vpack.c.b16 %v1121, %v1117
    %v1170 = vpack.c.b16 %v1126, %v1122
    %v1171 = vpack.c.b16 %v1127, %v1123
    %v1172 = vpack.c.b16 %v1128, %v1124
    %v1173 = vpack.c.b16 %v1129, %v1125
    %v1174 = vpack.c.b16 %v1134, %v1130
    %v1175 = vpack.c.b16 %v1135, %v1131
    %v1176 = vpack.c.b16 %v1136, %v1132
    %v1177 = vpack.c.b16 %v1137, %v1133
    %v1178 = vpack.c.b16 %v1142, %v1138
    %v1179 = vpack.c.b16 %v1143, %v1139
    %v1180 = vpack.c.b16 %v1144, %v1140
    %v1181 = vpack.c.b16 %v1145, %v1141
    %v1182 = vpack.c.b16 %v1150, %v1146
    %v1183 = vpack.c.b16 %v1151, %v1147
    %v1184 = vpack.c.b16 %v1152, %v1148
    %v1185 = vpack.c.b16 %v1153, %v1149
    %1218 = vmatprep.subr.bf16.mxu0 %v1183
    %1219 = vmatpush1.bf16.msra.mxu0 %v1182
    %1220 = vmatprep.subr.bf16.mxu0 %v1179
    %1221 = vmatpush1.bf16.msra.mxu0 %v1178
    %1222 = vmatprep.subr.bf16.mxu0 %v1175
    %1223 = vmatpush1.bf16.msra.mxu0 %v1174
    %1224 = vmatprep.subr.bf16.mxu0 %v1171
    %1225 = vmatpush1.bf16.msra.mxu0 %v1170
    %1226 = vmatprep.subr.bf16.mxu0 %v1167
    %1227 = vmatpush1.bf16.msra.mxu0 %v1166
    %1228 = vmatprep.subr.bf16.mxu0 %v1163
    %1229 = vmatpush1.bf16.msra.mxu0 %v1162
    %1230 = vmatprep.subr.bf16.mxu0 %v1159
    %1231 = vmatpush1.bf16.msra.mxu0 %v1158
    %1232 = vmatprep.subr.bf16.mxu0 %v1155
    %1233 = vmatpush1.bf16.msra.mxu0 %v1154
    %1234 = vmatprep.subr.bf16.mxu0 0
    %1235 = vmatpush2.bf16.msra.mxu0 0
    %1236 = vmatprep.subr.bf16.mxu0 0
    %1237 = vmatpush2.bf16.msra.mxu0 0
    %1238 = vmatprep.subr.bf16.mxu0 0
    %1239 = vmatpush2.bf16.msra.mxu0 0
    %1240 = vmatprep.subr.bf16.mxu0 0
    %1241 = vmatpush2.bf16.msra.mxu0 0
    %1242 = vmatprep.subr.bf16.mxu0 0
    %1243 = vmatpush2.bf16.msra.mxu0 0
    %1244 = vmatprep.subr.bf16.mxu0 0
    %1245 = vmatpush2.bf16.msra.mxu0 0
    %1246 = vmatprep.subr.bf16.mxu0 0
    %1247 = vmatpush2.bf16.msra.mxu0 0
    %1248 = vmatprep.subr.bf16.mxu0 0
    %1249 = vmatpush2.bf16.msra.mxu0 0
    %1250 = vmatprep.mubr.bf16.mxu0 0
    %1251 = vmatmul.mubr.bf16.gmra.mxu0 %v1056
    %v1252 = vpop.f32.mrf.mxu0
    %v1253 = vadd.f32 0.0, %v1252
    %v1254 = vpop.f32.mrf.mxu0
    %v1255 = vadd.f32 0.0, %v1254
    %v1256 = vpop.f32.mrf.mxu0
    %v1257 = vadd.f32 0.0, %v1256
    %v1258 = vpop.f32.mrf.mxu0
    %v1259 = vadd.f32 0.0, %v1258
    %1260 = vdwg.mxu0
    %1261 = vmatprep.subr.bf16.mxu0 %v1185
    %1262 = vmatpush1.bf16.msra.mxu0 %v1184
    %1263 = vmatprep.subr.bf16.mxu0 %v1181
    %1264 = vmatpush1.bf16.msra.mxu0 %v1180
    %1265 = vmatprep.subr.bf16.mxu0 %v1177
    %1266 = vmatpush1.bf16.msra.mxu0 %v1176
    %1267 = vmatprep.subr.bf16.mxu0 %v1173
    %1268 = vmatpush1.bf16.msra.mxu0 %v1172
    %1269 = vmatprep.subr.bf16.mxu0 %v1169
    %1270 = vmatpush1.bf16.msra.mxu0 %v1168
    %1271 = vmatprep.subr.bf16.mxu0 %v1165
    %1272 = vmatpush1.bf16.msra.mxu0 %v1164
    %1273 = vmatprep.subr.bf16.mxu0 %v1161
    %1274 = vmatpush1.bf16.msra.mxu0 %v1160
    %1275 = vmatprep.subr.bf16.mxu0 %v1157
    %1276 = vmatpush1.bf16.msra.mxu0 %v1156
    %1277 = vmatprep.subr.bf16.mxu0 0
    %1278 = vmatpush2.bf16.msra.mxu0 0
    %1279 = vmatprep.subr.bf16.mxu0 0
    %1280 = vmatpush2.bf16.msra.mxu0 0
    %1281 = vmatprep.subr.bf16.mxu0 0
    %1282 = vmatpush2.bf16.msra.mxu0 0
    %1283 = vmatprep.subr.bf16.mxu0 0
    %1284 = vmatpush2.bf16.msra.mxu0 0
    %1285 = vmatprep.subr.bf16.mxu0 0
    %1286 = vmatpush2.bf16.msra.mxu0 0
    %1287 = vmatprep.subr.bf16.mxu0 0
    %1288 = vmatpush2.bf16.msra.mxu0 0
    %1289 = vmatprep.subr.bf16.mxu0 0
    %1290 = vmatpush2.bf16.msra.mxu0 0
    %1291 = vmatprep.subr.bf16.mxu0 0
    %1292 = vmatpush2.bf16.msra.mxu0 0
    %1293 = vmatprep.mubr.bf16.mxu0 0
    %1294 = vmatmul.mubr.bf16.gmra.mxu0 %v1056
    %v1295 = vpop.f32.mrf.mxu0
    %v1296 = vadd.f32 0.0, %v1295
    %v1297 = vpop.f32.mrf.mxu0
    %v1298 = vadd.f32 0.0, %v1297
    %v1299 = vpop.f32.mrf.mxu0
    %v1300 = vadd.f32 0.0, %v1299
    %v1301 = vpop.f32.mrf.mxu0
    %v1302 = vadd.f32 0.0, %v1301
    %1303 = vdwg.mxu0
    %s1304 = scalar_lea.vmem [#allocation6], 32
    %v1305 = vld [vmem:[%s1304] sm:$0xf]
    %v1306 = vld [vmem:[%s1304 + $0x10] sm:$0xf]
    %v1307 = vunpack.c.l.bf16 %v1305
    %v1308 = vunpack.c.l.bf16 %v1306
    %v1309 = vadd.f32 %v1253, %v1307
    %v1310 = vadd.f32 %v1257, %v1308
    %v1311 = vxor.u32 %v1309, 2147483648
    %v1312 = vxor.u32 %v1310, 2147483648
    %v1313 = vmul.f32 %v1311, 1.442695
    %v1314 = vpow.pop %v1313
    %v1315 = vmul.f32 %v1312, 1.442695
    %v1316 = vpow.pop %v1315
    %v1317 = vadd.f32 %v1314, 1.0
    %v1318 = vadd.f32 %v1316, 1.0
    %v1319 = vrcp.pop %v1317
    %v1320 = vmul.f32 1.0, %v1319
    %v1321 = vrcp.pop %v1318
    %v1322 = vmul.f32 1.0, %v1321
    %v1323 = vld [vmem:[%s1304 + $0x4] sm:$0xf]
    %v1324 = vld [vmem:[%s1304 + $0x14] sm:$0xf]
    %v1325 = vunpack.c.l.bf16 %v1323
    %v1326 = vunpack.c.l.bf16 %v1324
    %v1327 = vadd.f32 %v1255, %v1325
    %v1328 = vadd.f32 %v1259, %v1326
    %v1329 = vxor.u32 %v1327, 2147483648
    %v1330 = vxor.u32 %v1328, 2147483648
    %v1331 = vmul.f32 %v1329, 1.442695
    %v1332 = vpow.pop %v1331
    %v1333 = vmul.f32 %v1330, 1.442695
    %v1334 = vpow.pop %v1333
    %v1335 = vadd.f32 %v1332, 1.0
    %v1336 = vadd.f32 %v1334, 1.0
    %v1337 = vrcp.pop %v1335
    %v1338 = vmul.f32 1.0, %v1337
    %v1339 = vrcp.pop %v1336
    %v1340 = vmul.f32 1.0, %v1339
    %v1341 = vld [vmem:[%s1304 + $0x8] sm:$0xf]
    %v1342 = vld [vmem:[%s1304 + $0x18] sm:$0xf]
    %v1343 = vunpack.c.l.bf16 %v1341
    %v1344 = vunpack.c.l.bf16 %v1342
    %v1345 = vadd.f32 %v1296, %v1343
    %v1346 = vadd.f32 %v1300, %v1344
    %v1347 = vtanh.pop %v1345
    %v1348 = vtanh.pop %v1346
    %v1349 = vld [vmem:[%s1304 + $0xc] sm:$0xf]
    %v1350 = vld [vmem:[%s1304 + $0x1c] sm:$0xf]
    %v1351 = vunpack.c.l.bf16 %v1349
    %v1352 = vunpack.c.l.bf16 %v1350
    %v1353 = vadd.f32 %v1298, %v1351
    %v1354 = vadd.f32 %v1302, %v1352
    %v1355 = vxor.u32 %v1353, 2147483648
    %v1356 = vxor.u32 %v1354, 2147483648
    %v1357 = vmul.f32 %v1355, 1.442695
    %v1358 = vpow.pop %v1357
    %v1359 = vmul.f32 %v1356, 1.442695
    %v1360 = vpow.pop %v1359
    %v1361 = vadd.f32 %v1358, 1.0
    %v1362 = vadd.f32 %v1360, 1.0
    %v1363 = vrcp.pop %v1361
    %v1364 = vmul.f32 1.0, %v1363
    %v1365 = vrcp.pop %v1362
    %v1366 = vmul.f32 1.0, %v1365
    %v1367 = vld [vmem:[#allocation3] sm:$0xff]
    %v1368 = vld [vmem:[#allocation3 + $0x8] sm:$0xff]
    %v1369 = vmul.f32 %v1338, %v1367
    %v1370 = vmul.f32 %v1340, %v1368
    %v1371 = vmul.f32 %v1320, %v1347
    %v1372 = vmul.f32 %v1322, %v1348
    %v1373 = vadd.f32 %v1369, %v1371
    %v1374 = vadd.f32 %v1370, %v1372
    %v1375 = vtanh.pop %v1373
    %v1376 = vtanh.pop %v1374
    %v1377 = vmul.f32 %v1364, %v1375
    %v1378 = vmul.f32 %v1366, %v1376
    %v1379 = vpack.c.bf16 %v1378, %v1377
    %s1380 = scalar_select %p1017, 1, 0
    %v1381 = vstv %s1380
    %vm1382 = vcmp.eq.s32.totalorder %v1381, 1
    %v1383 = vsel %vm1382, %v1373, %v1367
    %v1384 = vsel %vm1382, %v1374, %v1368
    %1385 = vst [vmem:[#allocation3] sm:$0xff] %v1383
    %1386 = vst [vmem:[#allocation3 + $0x8] sm:$0xff] %v1384
    %v1387 = vld [vmem:[#allocation2] sm:$0xf]
    %v1388 = vld [vmem:[#allocation2 + $0x4] sm:$0xf]
    %v1391 = vunpack.c.l.b16 %v1387
    %v1392 = vunpack.c.l.b16 %v1388
    %v1393 = vpack.c.b16 %v1392, %v1391
    %v1395 = vsel %vm1382, %v1379, %v1393
    %v1397 = vunpack.c.l.b16 %v1395
    %v1398 = vunpack.c.h.b16 %v1395
    %v1399 = vpack.c.b16 %v1397, %v1397
    %v1400 = vpack.c.b16 %v1398, %v1398
    %1403 = vst [vmem:[#allocation2] sm:$0xf] %v1399
    %1404 = vst [vmem:[#allocation2 + $0x4] sm:$0xf] %v1400
    %v1406 = vunpack.c.l.b16 %v1379
    %v1407 = vunpack.c.h.b16 %v1379
    %v1408 = vpack.c.b16 %v1406, %v1406
    %v1409 = vpack.c.b16 %v1407, %v1407
    %s1412 = scalar_lea.vmem %s4, 8
    %1413 = vst [vmem:[%s1412] sm:$0xf] %v1408
    %1414 = vst [vmem:[%s1412 + $0x4] sm:$0xf] %v1409
    %s1415 = sadd.s32 %s220, 6
    %p1416 = scmp.lt.s32.totalorder %s1415, 8
    %v1417 = vld [vmem:[#allocation4] sm:$0xf]
    %v1418 = vld [vmem:[#allocation4 + $0x4] sm:$0xf]
    %v1419 = vld [vmem:[%s3] sm:$0xff]
    %v1420 = vld [vmem:[%s3 + $0x8] sm:$0xff]
    %v1421 = vld [vmem:[%s3 + $0x10] sm:$0xff]
    %v1422 = vld [vmem:[%s3 + $0x18] sm:$0xff]
    %v1423 = vld [vmem:[%s3 + $0x20] sm:$0xff]
    %v1424 = vld [vmem:[%s3 + $0x28] sm:$0xff]
    %v1425 = vld [vmem:[%s3 + $0x30] sm:$0xff]
    %v1426 = vld [vmem:[%s3 + $0x38] sm:$0xff]
    %v1427 = vld [vmem:[%s3 + $0x40] sm:$0xff]
    %v1428 = vld [vmem:[%s3 + $0x48] sm:$0xff]
    %v1429 = vld [vmem:[%s3 + $0x50] sm:$0xff]
    %v1430 = vld [vmem:[%s3 + $0x58] sm:$0xff]
    %v1431 = vld [vmem:[%s3 + $0x60] sm:$0xff]
    %v1432 = vld [vmem:[%s3 + $0x68] sm:$0xff]
    %v1433 = vld [vmem:[%s3 + $0x70] sm:$0xff]
    %v1434 = vld [vmem:[%s3 + $0x78] sm:$0xff]
    %v1435 = vld [vmem:[%s3 + $0x80] sm:$0xff]
    %v1436 = vld [vmem:[%s3 + $0x88] sm:$0xff]
    %v1437 = vld [vmem:[%s3 + $0x90] sm:$0xff]
    %v1438 = vld [vmem:[%s3 + $0x98] sm:$0xff]
    %v1439 = vld [vmem:[%s3 + $0xa0] sm:$0xff]
    %v1440 = vld [vmem:[%s3 + $0xa8] sm:$0xff]
    %v1441 = vld [vmem:[%s3 + $0xb0] sm:$0xff]
    %v1442 = vld [vmem:[%s3 + $0xb8] sm:$0xff]
    %v1443 = vld [vmem:[%s3 + $0xc0] sm:$0xff]
    %v1444 = vld [vmem:[%s3 + $0xc8] sm:$0xff]
    %v1445 = vld [vmem:[%s3 + $0xd0] sm:$0xff]
    %v1446 = vld [vmem:[%s3 + $0xd8] sm:$0xff]
    %v1447 = vld [vmem:[%s3 + $0xe0] sm:$0xff]
    %v1448 = vld [vmem:[%s3 + $0xe8] sm:$0xff]
    %v1449 = vld [vmem:[%s3 + $0xf0] sm:$0xff]
    %v1450 = vld [vmem:[%s3 + $0xf8] sm:$0xff]
    %v1453 = vunpack.c.l.b16 %v1417
    %v1454 = vunpack.c.l.b16 %v1418
    %v1455 = vpack.c.b16 %v1454, %v1453
    %v1489 = vunpack.c.l.b16 %v1419
    %v1490 = vunpack.c.h.b16 %v1419
    %v1491 = vunpack.c.l.b16 %v1420
    %v1492 = vunpack.c.h.b16 %v1420
    %v1493 = vunpack.c.l.b16 %v1421
    %v1494 = vunpack.c.h.b16 %v1421
    %v1495 = vunpack.c.l.b16 %v1422
    %v1496 = vunpack.c.h.b16 %v1422
    %v1497 = vunpack.c.l.b16 %v1423
    %v1498 = vunpack.c.h.b16 %v1423
    %v1499 = vunpack.c.l.b16 %v1424
    %v1500 = vunpack.c.h.b16 %v1424
    %v1501 = vunpack.c.l.b16 %v1425
    %v1502 = vunpack.c.h.b16 %v1425
    %v1503 = vunpack.c.l.b16 %v1426
    %v1504 = vunpack.c.h.b16 %v1426
    %v1505 = vunpack.c.l.b16 %v1427
    %v1506 = vunpack.c.h.b16 %v1427
    %v1507 = vunpack.c.l.b16 %v1428
    %v1508 = vunpack.c.h.b16 %v1428
    %v1509 = vunpack.c.l.b16 %v1429
    %v1510 = vunpack.c.h.b16 %v1429
    %v1511 = vunpack.c.l.b16 %v1430
    %v1512 = vunpack.c.h.b16 %v1430
    %v1513 = vunpack.c.l.b16 %v1431
    %v1514 = vunpack.c.h.b16 %v1431
    %v1515 = vunpack.c.l.b16 %v1432
    %v1516 = vunpack.c.h.b16 %v1432
    %v1517 = vunpack.c.l.b16 %v1433
    %v1518 = vunpack.c.h.b16 %v1433
    %v1519 = vunpack.c.l.b16 %v1434
    %v1520 = vunpack.c.h.b16 %v1434
    %v1521 = vunpack.c.l.b16 %v1435
    %v1522 = vunpack.c.h.b16 %v1435
    %v1523 = vunpack.c.l.b16 %v1436
    %v1524 = vunpack.c.h.b16 %v1436
    %v1525 = vunpack.c.l.b16 %v1437
    %v1526 = vunpack.c.h.b16 %v1437
    %v1527 = vunpack.c.l.b16 %v1438
    %v1528 = vunpack.c.h.b16 %v1438
    %v1529 = vunpack.c.l.b16 %v1439
    %v1530 = vunpack.c.h.b16 %v1439
    %v1531 = vunpack.c.l.b16 %v1440
    %v1532 = vunpack.c.h.b16 %v1440
    %v1533 = vunpack.c.l.b16 %v1441
    %v1534 = vunpack.c.h.b16 %v1441
    %v1535 = vunpack.c.l.b16 %v1442
    %v1536 = vunpack.c.h.b16 %v1442
    %v1537 = vunpack.c.l.b16 %v1443
    %v1538 = vunpack.c.h.b16 %v1443
    %v1539 = vunpack.c.l.b16 %v1444
    %v1540 = vunpack.c.h.b16 %v1444
    %v1541 = vunpack.c.l.b16 %v1445
    %v1542 = vunpack.c.h.b16 %v1445
    %v1543 = vunpack.c.l.b16 %v1446
    %v1544 = vunpack.c.h.b16 %v1446
    %v1545 = vunpack.c.l.b16 %v1447
    %v1546 = vunpack.c.h.b16 %v1447
    %v1547 = vunpack.c.l.b16 %v1448
    %v1548 = vunpack.c.h.b16 %v1448
    %v1549 = vunpack.c.l.b16 %v1449
    %v1550 = vunpack.c.h.b16 %v1449
    %v1551 = vunpack.c.l.b16 %v1450
    %v1552 = vunpack.c.h.b16 %v1450
    %v1553 = vpack.c.b16 %v1493, %v1489
    %v1554 = vpack.c.b16 %v1494, %v1490
    %v1555 = vpack.c.b16 %v1495, %v1491
    %v1556 = vpack.c.b16 %v1496, %v1492
    %v1557 = vpack.c.b16 %v1501, %v1497
    %v1558 = vpack.c.b16 %v1502, %v1498
    %v1559 = vpack.c.b16 %v1503, %v1499
    %v1560 = vpack.c.b16 %v1504, %v1500
    %v1561 = vpack.c.b16 %v1509, %v1505
    %v1562 = vpack.c.b16 %v1510, %v1506
    %v1563 = vpack.c.b16 %v1511, %v1507
    %v1564 = vpack.c.b16 %v1512, %v1508
    %v1565 = vpack.c.b16 %v1517, %v1513
    %v1566 = vpack.c.b16 %v1518, %v1514
    %v1567 = vpack.c.b16 %v1519, %v1515
    %v1568 = vpack.c.b16 %v1520, %v1516
    %v1569 = vpack.c.b16 %v1525, %v1521
    %v1570 = vpack.c.b16 %v1526, %v1522
    %v1571 = vpack.c.b16 %v1527, %v1523
    %v1572 = vpack.c.b16 %v1528, %v1524
    %v1573 = vpack.c.b16 %v1533, %v1529
    %v1574 = vpack.c.b16 %v1534, %v1530
    %v1575 = vpack.c.b16 %v1535, %v1531
    %v1576 = vpack.c.b16 %v1536, %v1532
    %v1577 = vpack.c.b16 %v1541, %v1537
    %v1578 = vpack.c.b16 %v1542, %v1538
    %v1579 = vpack.c.b16 %v1543, %v1539
    %v1580 = vpack.c.b16 %v1544, %v1540
    %v1581 = vpack.c.b16 %v1549, %v1545
    %v1582 = vpack.c.b16 %v1550, %v1546
    %v1583 = vpack.c.b16 %v1551, %v1547
    %v1584 = vpack.c.b16 %v1552, %v1548
    %1617 = vmatprep.subr.bf16.mxu0 %v1582
    %1618 = vmatpush1.bf16.msra.mxu0 %v1581
    %1619 = vmatprep.subr.bf16.mxu0 %v1578
    %1620 = vmatpush1.bf16.msra.mxu0 %v1577
    %1621 = vmatprep.subr.bf16.mxu0 %v1574
    %1622 = vmatpush1.bf16.msra.mxu0 %v1573
    %1623 = vmatprep.subr.bf16.mxu0 %v1570
    %1624 = vmatpush1.bf16.msra.mxu0 %v1569
    %1625 = vmatprep.subr.bf16.mxu0 %v1566
    %1626 = vmatpush1.bf16.msra.mxu0 %v1565
    %1627 = vmatprep.subr.bf16.mxu0 %v1562
    %1628 = vmatpush1.bf16.msra.mxu0 %v1561
    %1629 = vmatprep.subr.bf16.mxu0 %v1558
    %1630 = vmatpush1.bf16.msra.mxu0 %v1557
    %1631 = vmatprep.subr.bf16.mxu0 %v1554
    %1632 = vmatpush1.bf16.msra.mxu0 %v1553
    %1633 = vmatprep.subr.bf16.mxu0 0
    %1634 = vmatpush2.bf16.msra.mxu0 0
    %1635 = vmatprep.subr.bf16.mxu0 0
    %1636 = vmatpush2.bf16.msra.mxu0 0
    %1637 = vmatprep.subr.bf16.mxu0 0
    %1638 = vmatpush2.bf16.msra.mxu0 0
    %1639 = vmatprep.subr.bf16.mxu0 0
    %1640 = vmatpush2.bf16.msra.mxu0 0
    %1641 = vmatprep.subr.bf16.mxu0 0
    %1642 = vmatpush2.bf16.msra.mxu0 0
    %1643 = vmatprep.subr.bf16.mxu0 0
    %1644 = vmatpush2.bf16.msra.mxu0 0
    %1645 = vmatprep.subr.bf16.mxu0 0
    %1646 = vmatpush2.bf16.msra.mxu0 0
    %1647 = vmatprep.subr.bf16.mxu0 0
    %1648 = vmatpush2.bf16.msra.mxu0 0
    %1649 = vmatprep.mubr.bf16.mxu0 0
    %1650 = vmatmul.mubr.bf16.gmra.mxu0 %v1455
    %v1651 = vpop.f32.mrf.mxu0
    %v1652 = vadd.f32 0.0, %v1651
    %v1653 = vpop.f32.mrf.mxu0
    %v1654 = vadd.f32 0.0, %v1653
    %v1655 = vpop.f32.mrf.mxu0
    %v1656 = vadd.f32 0.0, %v1655
    %v1657 = vpop.f32.mrf.mxu0
    %v1658 = vadd.f32 0.0, %v1657
    %1659 = vdwg.mxu0
    %1660 = vmatprep.subr.bf16.mxu0 %v1584
    %1661 = vmatpush1.bf16.msra.mxu0 %v1583
    %1662 = vmatprep.subr.bf16.mxu0 %v1580
    %1663 = vmatpush1.bf16.msra.mxu0 %v1579
    %1664 = vmatprep.subr.bf16.mxu0 %v1576
    %1665 = vmatpush1.bf16.msra.mxu0 %v1575
    %1666 = vmatprep.subr.bf16.mxu0 %v1572
    %1667 = vmatpush1.bf16.msra.mxu0 %v1571
    %1668 = vmatprep.subr.bf16.mxu0 %v1568
    %1669 = vmatpush1.bf16.msra.mxu0 %v1567
    %1670 = vmatprep.subr.bf16.mxu0 %v1564
    %1671 = vmatpush1.bf16.msra.mxu0 %v1563
    %1672 = vmatprep.subr.bf16.mxu0 %v1560
    %1673 = vmatpush1.bf16.msra.mxu0 %v1559
    %1674 = vmatprep.subr.bf16.mxu0 %v1556
    %1675 = vmatpush1.bf16.msra.mxu0 %v1555
    %1676 = vmatprep.subr.bf16.mxu0 0
    %1677 = vmatpush2.bf16.msra.mxu0 0
    %1678 = vmatprep.subr.bf16.mxu0 0
    %1679 = vmatpush2.bf16.msra.mxu0 0
    %1680 = vmatprep.subr.bf16.mxu0 0
    %1681 = vmatpush2.bf16.msra.mxu0 0
    %1682 = vmatprep.subr.bf16.mxu0 0
    %1683 = vmatpush2.bf16.msra.mxu0 0
    %1684 = vmatprep.subr.bf16.mxu0 0
    %1685 = vmatpush2.bf16.msra.mxu0 0
    %1686 = vmatprep.subr.bf16.mxu0 0
    %1687 = vmatpush2.bf16.msra.mxu0 0
    %1688 = vmatprep.subr.bf16.mxu0 0
    %1689 = vmatpush2.bf16.msra.mxu0 0
    %1690 = vmatprep.subr.bf16.mxu0 0
    %1691 = vmatpush2.bf16.msra.mxu0 0
    %1692 = vmatprep.mubr.bf16.mxu0 0
    %1693 = vmatmul.mubr.bf16.gmra.mxu0 %v1455
    %v1694 = vpop.f32.mrf.mxu0
    %v1695 = vadd.f32 0.0, %v1694
    %v1696 = vpop.f32.mrf.mxu0
    %v1697 = vadd.f32 0.0, %v1696
    %v1698 = vpop.f32.mrf.mxu0
    %v1699 = vadd.f32 0.0, %v1698
    %v1700 = vpop.f32.mrf.mxu0
    %v1701 = vadd.f32 0.0, %v1700
    %1702 = vdwg.mxu0
    %s1703 = scalar_lea.vmem [#allocation7], 192
    %v1704 = vld [vmem:[%s1703] sm:$0xf]
    %v1705 = vld [vmem:[%s1703 + $0x10] sm:$0xf]
    %v1706 = vunpack.c.l.bf16 %v1704
    %v1707 = vunpack.c.l.bf16 %v1705
    %v1708 = vadd.f32 %v1652, %v1706
    %v1709 = vadd.f32 %v1656, %v1707
    %v1710 = vxor.u32 %v1708, 2147483648
    %v1711 = vxor.u32 %v1709, 2147483648
    %v1712 = vmul.f32 %v1710, 1.442695
    %v1713 = vpow.pop %v1712
    %v1714 = vmul.f32 %v1711, 1.442695
    %v1715 = vpow.pop %v1714
    %v1716 = vadd.f32 %v1713, 1.0
    %v1717 = vadd.f32 %v1715, 1.0
    %v1718 = vrcp.pop %v1716
    %v1719 = vmul.f32 1.0, %v1718
    %v1720 = vrcp.pop %v1717
    %v1721 = vmul.f32 1.0, %v1720
    %v1722 = vld [vmem:[%s1703 + $0x4] sm:$0xf]
    %v1723 = vld [vmem:[%s1703 + $0x14] sm:$0xf]
    %v1724 = vunpack.c.l.bf16 %v1722
    %v1725 = vunpack.c.l.bf16 %v1723
    %v1726 = vadd.f32 %v1654, %v1724
    %v1727 = vadd.f32 %v1658, %v1725
    %v1728 = vxor.u32 %v1726, 2147483648
    %v1729 = vxor.u32 %v1727, 2147483648
    %v1730 = vmul.f32 %v1728, 1.442695
    %v1731 = vpow.pop %v1730
    %v1732 = vmul.f32 %v1729, 1.442695
    %v1733 = vpow.pop %v1732
    %v1734 = vadd.f32 %v1731, 1.0
    %v1735 = vadd.f32 %v1733, 1.0
    %v1736 = vrcp.pop %v1734
    %v1737 = vmul.f32 1.0, %v1736
    %v1738 = vrcp.pop %v1735
    %v1739 = vmul.f32 1.0, %v1738
    %v1740 = vld [vmem:[%s1703 + $0x8] sm:$0xf]
    %v1741 = vld [vmem:[%s1703 + $0x18] sm:$0xf]
    %v1742 = vunpack.c.l.bf16 %v1740
    %v1743 = vunpack.c.l.bf16 %v1741
    %v1744 = vadd.f32 %v1695, %v1742
    %v1745 = vadd.f32 %v1699, %v1743
    %v1746 = vtanh.pop %v1744
    %v1747 = vtanh.pop %v1745
    %v1748 = vld [vmem:[%s1703 + $0xc] sm:$0xf]
    %v1749 = vld [vmem:[%s1703 + $0x1c] sm:$0xf]
    %v1750 = vunpack.c.l.bf16 %v1748
    %v1751 = vunpack.c.l.bf16 %v1749
    %v1752 = vadd.f32 %v1697, %v1750
    %v1753 = vadd.f32 %v1701, %v1751
    %v1754 = vxor.u32 %v1752, 2147483648
    %v1755 = vxor.u32 %v1753, 2147483648
    %v1756 = vmul.f32 %v1754, 1.442695
    %v1757 = vpow.pop %v1756
    %v1758 = vmul.f32 %v1755, 1.442695
    %v1759 = vpow.pop %v1758
    %v1760 = vadd.f32 %v1757, 1.0
    %v1761 = vadd.f32 %v1759, 1.0
    %v1762 = vrcp.pop %v1760
    %v1763 = vmul.f32 1.0, %v1762
    %v1764 = vrcp.pop %v1761
    %v1765 = vmul.f32 1.0, %v1764
    %v1766 = vld [vmem:[#allocation5] sm:$0xff]
    %v1767 = vld [vmem:[#allocation5 + $0x8] sm:$0xff]
    %v1768 = vmul.f32 %v1737, %v1766
    %v1769 = vmul.f32 %v1739, %v1767
    %v1770 = vmul.f32 %v1719, %v1746
    %v1771 = vmul.f32 %v1721, %v1747
    %v1772 = vadd.f32 %v1768, %v1770
    %v1773 = vadd.f32 %v1769, %v1771
    %v1774 = vtanh.pop %v1772
    %v1775 = vtanh.pop %v1773
    %v1776 = vmul.f32 %v1763, %v1774
    %v1777 = vmul.f32 %v1765, %v1775
    %v1778 = vpack.c.bf16 %v1777, %v1776
    %s1779 = scalar_select %p1416, 1, 0
    %v1780 = vstv %s1779
    %vm1781 = vcmp.eq.s32.totalorder %v1780, 1
    %v1782 = vsel %vm1781, %v1772, %v1766
    %v1783 = vsel %vm1781, %v1773, %v1767
    %1784 = vst [vmem:[#allocation5] sm:$0xff] %v1782
    %1785 = vst [vmem:[#allocation5 + $0x8] sm:$0xff] %v1783
    %v1786 = vld [vmem:[#allocation4] sm:$0xf]
    %v1787 = vld [vmem:[#allocation4 + $0x4] sm:$0xf]
    %v1790 = vunpack.c.l.b16 %v1786
    %v1791 = vunpack.c.l.b16 %v1787
    %v1792 = vpack.c.b16 %v1791, %v1790
    %v1794 = vsel %vm1781, %v1778, %v1792
    %v1796 = vunpack.c.l.b16 %v1794
    %v1797 = vunpack.c.h.b16 %v1794
    %v1798 = vpack.c.b16 %v1796, %v1796
    %v1799 = vpack.c.b16 %v1797, %v1797
    %1802 = vst [vmem:[#allocation4] sm:$0xf] %v1798
    %1803 = vst [vmem:[#allocation4 + $0x4] sm:$0xf] %v1799
    %v1805 = vunpack.c.l.b16 %v1778
    %v1806 = vunpack.c.h.b16 %v1778
    %v1807 = vpack.c.b16 %v1805, %v1805
    %v1808 = vpack.c.b16 %v1806, %v1806
    %s1811 = scalar_lea.vmem %s202, 48
    %1812 = vst [vmem:[%s1811] sm:$0xf] %v1807
    %1813 = vst [vmem:[%s1811 + $0x4] sm:$0xf] %v1808
    %s1814 = sadd.s32 %s218, 2
    %p1815 = scmp.lt.s32.totalorder %s1814, 8
    %v1816 = vld [vmem:[#allocation2] sm:$0xf]
    %v1817 = vld [vmem:[#allocation2 + $0x4] sm:$0xf]
    %v1818 = vld [vmem:[%s2] sm:$0xff]
    %v1819 = vld [vmem:[%s2 + $0x8] sm:$0xff]
    %v1820 = vld [vmem:[%s2 + $0x10] sm:$0xff]
    %v1821 = vld [vmem:[%s2 + $0x18] sm:$0xff]
    %v1822 = vld [vmem:[%s2 + $0x20] sm:$0xff]
    %v1823 = vld [vmem:[%s2 + $0x28] sm:$0xff]
    %v1824 = vld [vmem:[%s2 + $0x30] sm:$0xff]
    %v1825 = vld [vmem:[%s2 + $0x38] sm:$0xff]
    %v1826 = vld [vmem:[%s2 + $0x40] sm:$0xff]
    %v1827 = vld [vmem:[%s2 + $0x48] sm:$0xff]
    %v1828 = vld [vmem:[%s2 + $0x50] sm:$0xff]
    %v1829 = vld [vmem:[%s2 + $0x58] sm:$0xff]
    %v1830 = vld [vmem:[%s2 + $0x60] sm:$0xff]
    %v1831 = vld [vmem:[%s2 + $0x68] sm:$0xff]
    %v1832 = vld [vmem:[%s2 + $0x70] sm:$0xff]
    %v1833 = vld [vmem:[%s2 + $0x78] sm:$0xff]
    %v1834 = vld [vmem:[%s2 + $0x80] sm:$0xff]
    %v1835 = vld [vmem:[%s2 + $0x88] sm:$0xff]
    %v1836 = vld [vmem:[%s2 + $0x90] sm:$0xff]
    %v1837 = vld [vmem:[%s2 + $0x98] sm:$0xff]
    %v1838 = vld [vmem:[%s2 + $0xa0] sm:$0xff]
    %v1839 = vld [vmem:[%s2 + $0xa8] sm:$0xff]
    %v1840 = vld [vmem:[%s2 + $0xb0] sm:$0xff]
    %v1841 = vld [vmem:[%s2 + $0xb8] sm:$0xff]
    %v1842 = vld [vmem:[%s2 + $0xc0] sm:$0xff]
    %v1843 = vld [vmem:[%s2 + $0xc8] sm:$0xff]
    %v1844 = vld [vmem:[%s2 + $0xd0] sm:$0xff]
    %v1845 = vld [vmem:[%s2 + $0xd8] sm:$0xff]
    %v1846 = vld [vmem:[%s2 + $0xe0] sm:$0xff]
    %v1847 = vld [vmem:[%s2 + $0xe8] sm:$0xff]
    %v1848 = vld [vmem:[%s2 + $0xf0] sm:$0xff]
    %v1849 = vld [vmem:[%s2 + $0xf8] sm:$0xff]
    %v1852 = vunpack.c.l.b16 %v1816
    %v1853 = vunpack.c.l.b16 %v1817
    %v1854 = vpack.c.b16 %v1853, %v1852
    %v1888 = vunpack.c.l.b16 %v1818
    %v1889 = vunpack.c.h.b16 %v1818
    %v1890 = vunpack.c.l.b16 %v1819
    %v1891 = vunpack.c.h.b16 %v1819
    %v1892 = vunpack.c.l.b16 %v1820
    %v1893 = vunpack.c.h.b16 %v1820
    %v1894 = vunpack.c.l.b16 %v1821
    %v1895 = vunpack.c.h.b16 %v1821
    %v1896 = vunpack.c.l.b16 %v1822
    %v1897 = vunpack.c.h.b16 %v1822
    %v1898 = vunpack.c.l.b16 %v1823
    %v1899 = vunpack.c.h.b16 %v1823
    %v1900 = vunpack.c.l.b16 %v1824
    %v1901 = vunpack.c.h.b16 %v1824
    %v1902 = vunpack.c.l.b16 %v1825
    %v1903 = vunpack.c.h.b16 %v1825
    %v1904 = vunpack.c.l.b16 %v1826
    %v1905 = vunpack.c.h.b16 %v1826
    %v1906 = vunpack.c.l.b16 %v1827
    %v1907 = vunpack.c.h.b16 %v1827
    %v1908 = vunpack.c.l.b16 %v1828
    %v1909 = vunpack.c.h.b16 %v1828
    %v1910 = vunpack.c.l.b16 %v1829
    %v1911 = vunpack.c.h.b16 %v1829
    %v1912 = vunpack.c.l.b16 %v1830
    %v1913 = vunpack.c.h.b16 %v1830
    %v1914 = vunpack.c.l.b16 %v1831
    %v1915 = vunpack.c.h.b16 %v1831
    %v1916 = vunpack.c.l.b16 %v1832
    %v1917 = vunpack.c.h.b16 %v1832
    %v1918 = vunpack.c.l.b16 %v1833
    %v1919 = vunpack.c.h.b16 %v1833
    %v1920 = vunpack.c.l.b16 %v1834
    %v1921 = vunpack.c.h.b16 %v1834
    %v1922 = vunpack.c.l.b16 %v1835
    %v1923 = vunpack.c.h.b16 %v1835
    %v1924 = vunpack.c.l.b16 %v1836
    %v1925 = vunpack.c.h.b16 %v1836
    %v1926 = vunpack.c.l.b16 %v1837
    %v1927 = vunpack.c.h.b16 %v1837
    %v1928 = vunpack.c.l.b16 %v1838
    %v1929 = vunpack.c.h.b16 %v1838
    %v1930 = vunpack.c.l.b16 %v1839
    %v1931 = vunpack.c.h.b16 %v1839
    %v1932 = vunpack.c.l.b16 %v1840
    %v1933 = vunpack.c.h.b16 %v1840
    %v1934 = vunpack.c.l.b16 %v1841
    %v1935 = vunpack.c.h.b16 %v1841
    %v1936 = vunpack.c.l.b16 %v1842
    %v1937 = vunpack.c.h.b16 %v1842
    %v1938 = vunpack.c.l.b16 %v1843
    %v1939 = vunpack.c.h.b16 %v1843
    %v1940 = vunpack.c.l.b16 %v1844
    %v1941 = vunpack.c.h.b16 %v1844
    %v1942 = vunpack.c.l.b16 %v1845
    %v1943 = vunpack.c.h.b16 %v1845
    %v1944 = vunpack.c.l.b16 %v1846
    %v1945 = vunpack.c.h.b16 %v1846
    %v1946 = vunpack.c.l.b16 %v1847
    %v1947 = vunpack.c.h.b16 %v1847
    %v1948 = vunpack.c.l.b16 %v1848
    %v1949 = vunpack.c.h.b16 %v1848
    %v1950 = vunpack.c.l.b16 %v1849
    %v1951 = vunpack.c.h.b16 %v1849
    %v1952 = vpack.c.b16 %v1892, %v1888
    %v1953 = vpack.c.b16 %v1893, %v1889
    %v1954 = vpack.c.b16 %v1894, %v1890
    %v1955 = vpack.c.b16 %v1895, %v1891
    %v1956 = vpack.c.b16 %v1900, %v1896
    %v1957 = vpack.c.b16 %v1901, %v1897
    %v1958 = vpack.c.b16 %v1902, %v1898
    %v1959 = vpack.c.b16 %v1903, %v1899
    %v1960 = vpack.c.b16 %v1908, %v1904
    %v1961 = vpack.c.b16 %v1909, %v1905
    %v1962 = vpack.c.b16 %v1910, %v1906
    %v1963 = vpack.c.b16 %v1911, %v1907
    %v1964 = vpack.c.b16 %v1916, %v1912
    %v1965 = vpack.c.b16 %v1917, %v1913
    %v1966 = vpack.c.b16 %v1918, %v1914
    %v1967 = vpack.c.b16 %v1919, %v1915
    %v1968 = vpack.c.b16 %v1924, %v1920
    %v1969 = vpack.c.b16 %v1925, %v1921
    %v1970 = vpack.c.b16 %v1926, %v1922
    %v1971 = vpack.c.b16 %v1927, %v1923
    %v1972 = vpack.c.b16 %v1932, %v1928
    %v1973 = vpack.c.b16 %v1933, %v1929
    %v1974 = vpack.c.b16 %v1934, %v1930
    %v1975 = vpack.c.b16 %v1935, %v1931
    %v1976 = vpack.c.b16 %v1940, %v1936
    %v1977 = vpack.c.b16 %v1941, %v1937
    %v1978 = vpack.c.b16 %v1942, %v1938
    %v1979 = vpack.c.b16 %v1943, %v1939
    %v1980 = vpack.c.b16 %v1948, %v1944
    %v1981 = vpack.c.b16 %v1949, %v1945
    %v1982 = vpack.c.b16 %v1950, %v1946
    %v1983 = vpack.c.b16 %v1951, %v1947
    %2016 = vmatprep.subr.bf16.mxu0 %v1981
    %2017 = vmatpush1.bf16.msra.mxu0 %v1980
    %2018 = vmatprep.subr.bf16.mxu0 %v1977
    %2019 = vmatpush1.bf16.msra.mxu0 %v1976
    %2020 = vmatprep.subr.bf16.mxu0 %v1973
    %2021 = vmatpush1.bf16.msra.mxu0 %v1972
    %2022 = vmatprep.subr.bf16.mxu0 %v1969
    %2023 = vmatpush1.bf16.msra.mxu0 %v1968
    %2024 = vmatprep.subr.bf16.mxu0 %v1965
    %2025 = vmatpush1.bf16.msra.mxu0 %v1964
    %2026 = vmatprep.subr.bf16.mxu0 %v1961
    %2027 = vmatpush1.bf16.msra.mxu0 %v1960
    %2028 = vmatprep.subr.bf16.mxu0 %v1957
    %2029 = vmatpush1.bf16.msra.mxu0 %v1956
    %2030 = vmatprep.subr.bf16.mxu0 %v1953
    %2031 = vmatpush1.bf16.msra.mxu0 %v1952
    %2032 = vmatprep.subr.bf16.mxu0 0
    %2033 = vmatpush2.bf16.msra.mxu0 0
    %2034 = vmatprep.subr.bf16.mxu0 0
    %2035 = vmatpush2.bf16.msra.mxu0 0
    %2036 = vmatprep.subr.bf16.mxu0 0
    %2037 = vmatpush2.bf16.msra.mxu0 0
    %2038 = vmatprep.subr.bf16.mxu0 0
    %2039 = vmatpush2.bf16.msra.mxu0 0
    %2040 = vmatprep.subr.bf16.mxu0 0
    %2041 = vmatpush2.bf16.msra.mxu0 0
    %2042 = vmatprep.subr.bf16.mxu0 0
    %2043 = vmatpush2.bf16.msra.mxu0 0
    %2044 = vmatprep.subr.bf16.mxu0 0
    %2045 = vmatpush2.bf16.msra.mxu0 0
    %2046 = vmatprep.subr.bf16.mxu0 0
    %2047 = vmatpush2.bf16.msra.mxu0 0
    %2048 = vmatprep.mubr.bf16.mxu0 0
    %2049 = vmatmul.mubr.bf16.gmra.mxu0 %v1854
    %v2050 = vpop.f32.mrf.mxu0
    %v2051 = vadd.f32 0.0, %v2050
    %v2052 = vpop.f32.mrf.mxu0
    %v2053 = vadd.f32 0.0, %v2052
    %v2054 = vpop.f32.mrf.mxu0
    %v2055 = vadd.f32 0.0, %v2054
    %v2056 = vpop.f32.mrf.mxu0
    %v2057 = vadd.f32 0.0, %v2056
    %2058 = vdwg.mxu0
    %2059 = vmatprep.subr.bf16.mxu0 %v1983
    %2060 = vmatpush1.bf16.msra.mxu0 %v1982
    %2061 = vmatprep.subr.bf16.mxu0 %v1979
    %2062 = vmatpush1.bf16.msra.mxu0 %v1978
    %2063 = vmatprep.subr.bf16.mxu0 %v1975
    %2064 = vmatpush1.bf16.msra.mxu0 %v1974
    %2065 = vmatprep.subr.bf16.mxu0 %v1971
    %2066 = vmatpush1.bf16.msra.mxu0 %v1970
    %2067 = vmatprep.subr.bf16.mxu0 %v1967
    %2068 = vmatpush1.bf16.msra.mxu0 %v1966
    %2069 = vmatprep.subr.bf16.mxu0 %v1963
    %2070 = vmatpush1.bf16.msra.mxu0 %v1962
    %2071 = vmatprep.subr.bf16.mxu0 %v1959
    %2072 = vmatpush1.bf16.msra.mxu0 %v1958
    %2073 = vmatprep.subr.bf16.mxu0 %v1955
    %2074 = vmatpush1.bf16.msra.mxu0 %v1954
    %2075 = vmatprep.subr.bf16.mxu0 0
    %2076 = vmatpush2.bf16.msra.mxu0 0
    %2077 = vmatprep.subr.bf16.mxu0 0
    %2078 = vmatpush2.bf16.msra.mxu0 0
    %2079 = vmatprep.subr.bf16.mxu0 0
    %2080 = vmatpush2.bf16.msra.mxu0 0
    %2081 = vmatprep.subr.bf16.mxu0 0
    %2082 = vmatpush2.bf16.msra.mxu0 0
    %2083 = vmatprep.subr.bf16.mxu0 0
    %2084 = vmatpush2.bf16.msra.mxu0 0
    %2085 = vmatprep.subr.bf16.mxu0 0
    %2086 = vmatpush2.bf16.msra.mxu0 0
    %2087 = vmatprep.subr.bf16.mxu0 0
    %2088 = vmatpush2.bf16.msra.mxu0 0
    %2089 = vmatprep.subr.bf16.mxu0 0
    %2090 = vmatpush2.bf16.msra.mxu0 0
    %2091 = vmatprep.mubr.bf16.mxu0 0
    %2092 = vmatmul.mubr.bf16.gmra.mxu0 %v1854
    %v2093 = vpop.f32.mrf.mxu0
    %v2094 = vadd.f32 0.0, %v2093
    %v2095 = vpop.f32.mrf.mxu0
    %v2096 = vadd.f32 0.0, %v2095
    %v2097 = vpop.f32.mrf.mxu0
    %v2098 = vadd.f32 0.0, %v2097
    %v2099 = vpop.f32.mrf.mxu0
    %v2100 = vadd.f32 0.0, %v2099
    %2101 = vdwg.mxu0
    %s2102 = scalar_lea.vmem [#allocation6], 64
    %v2103 = vld [vmem:[%s2102] sm:$0xf]
    %v2104 = vld [vmem:[%s2102 + $0x10] sm:$0xf]
    %v2105 = vunpack.c.l.bf16 %v2103
    %v2106 = vunpack.c.l.bf16 %v2104
    %v2107 = vadd.f32 %v2051, %v2105
    %v2108 = vadd.f32 %v2055, %v2106
    %v2109 = vxor.u32 %v2107, 2147483648
    %v2110 = vxor.u32 %v2108, 2147483648
    %v2111 = vmul.f32 %v2109, 1.442695
    %v2112 = vpow.pop %v2111
    %v2113 = vmul.f32 %v2110, 1.442695
    %v2114 = vpow.pop %v2113
    %v2115 = vadd.f32 %v2112, 1.0
    %v2116 = vadd.f32 %v2114, 1.0
    %v2117 = vrcp.pop %v2115
    %v2118 = vmul.f32 1.0, %v2117
    %v2119 = vrcp.pop %v2116
    %v2120 = vmul.f32 1.0, %v2119
    %v2121 = vld [vmem:[%s2102 + $0x4] sm:$0xf]
    %v2122 = vld [vmem:[%s2102 + $0x14] sm:$0xf]
    %v2123 = vunpack.c.l.bf16 %v2121
    %v2124 = vunpack.c.l.bf16 %v2122
    %v2125 = vadd.f32 %v2053, %v2123
    %v2126 = vadd.f32 %v2057, %v2124
    %v2127 = vxor.u32 %v2125, 2147483648
    %v2128 = vxor.u32 %v2126, 2147483648
    %v2129 = vmul.f32 %v2127, 1.442695
    %v2130 = vpow.pop %v2129
    %v2131 = vmul.f32 %v2128, 1.442695
    %v2132 = vpow.pop %v2131
    %v2133 = vadd.f32 %v2130, 1.0
    %v2134 = vadd.f32 %v2132, 1.0
    %v2135 = vrcp.pop %v2133
    %v2136 = vmul.f32 1.0, %v2135
    %v2137 = vrcp.pop %v2134
    %v2138 = vmul.f32 1.0, %v2137
    %v2139 = vld [vmem:[%s2102 + $0x8] sm:$0xf]
    %v2140 = vld [vmem:[%s2102 + $0x18] sm:$0xf]
    %v2141 = vunpack.c.l.bf16 %v2139
    %v2142 = vunpack.c.l.bf16 %v2140
    %v2143 = vadd.f32 %v2094, %v2141
    %v2144 = vadd.f32 %v2098, %v2142
    %v2145 = vtanh.pop %v2143
    %v2146 = vtanh.pop %v2144
    %v2147 = vld [vmem:[%s2102 + $0xc] sm:$0xf]
    %v2148 = vld [vmem:[%s2102 + $0x1c] sm:$0xf]
    %v2149 = vunpack.c.l.bf16 %v2147
    %v2150 = vunpack.c.l.bf16 %v2148
    %v2151 = vadd.f32 %v2096, %v2149
    %v2152 = vadd.f32 %v2100, %v2150
    %v2153 = vxor.u32 %v2151, 2147483648
    %v2154 = vxor.u32 %v2152, 2147483648
    %v2155 = vmul.f32 %v2153, 1.442695
    %v2156 = vpow.pop %v2155
    %v2157 = vmul.f32 %v2154, 1.442695
    %v2158 = vpow.pop %v2157
    %v2159 = vadd.f32 %v2156, 1.0
    %v2160 = vadd.f32 %v2158, 1.0
    %v2161 = vrcp.pop %v2159
    %v2162 = vmul.f32 1.0, %v2161
    %v2163 = vrcp.pop %v2160
    %v2164 = vmul.f32 1.0, %v2163
    %v2165 = vld [vmem:[#allocation3] sm:$0xff]
    %v2166 = vld [vmem:[#allocation3 + $0x8] sm:$0xff]
    %v2167 = vmul.f32 %v2136, %v2165
    %v2168 = vmul.f32 %v2138, %v2166
    %v2169 = vmul.f32 %v2118, %v2145
    %v2170 = vmul.f32 %v2120, %v2146
    %v2171 = vadd.f32 %v2167, %v2169
    %v2172 = vadd.f32 %v2168, %v2170
    %v2173 = vtanh.pop %v2171
    %v2174 = vtanh.pop %v2172
    %v2175 = vmul.f32 %v2162, %v2173
    %v2176 = vmul.f32 %v2164, %v2174
    %v2177 = vpack.c.bf16 %v2176, %v2175
    %s2178 = scalar_select %p1815, 1, 0
    %v2179 = vstv %s2178
    %vm2180 = vcmp.eq.s32.totalorder %v2179, 1
    %v2181 = vsel %vm2180, %v2171, %v2165
    %v2182 = vsel %vm2180, %v2172, %v2166
    %2183 = vst [vmem:[#allocation3] sm:$0xff] %v2181
    %2184 = vst [vmem:[#allocation3 + $0x8] sm:$0xff] %v2182
    %v2185 = vld [vmem:[#allocation2] sm:$0xf]
    %v2186 = vld [vmem:[#allocation2 + $0x4] sm:$0xf]
    %v2189 = vunpack.c.l.b16 %v2185
    %v2190 = vunpack.c.l.b16 %v2186
    %v2191 = vpack.c.b16 %v2190, %v2189
    %v2193 = vsel %vm2180, %v2177, %v2191
    %v2195 = vunpack.c.l.b16 %v2193
    %v2196 = vunpack.c.h.b16 %v2193
    %v2197 = vpack.c.b16 %v2195, %v2195
    %v2198 = vpack.c.b16 %v2196, %v2196
    %2201 = vst [vmem:[#allocation2] sm:$0xf] %v2197
    %2202 = vst [vmem:[#allocation2 + $0x4] sm:$0xf] %v2198
    %v2204 = vunpack.c.l.b16 %v2177
    %v2205 = vunpack.c.h.b16 %v2177
    %v2206 = vpack.c.b16 %v2204, %v2204
    %v2207 = vpack.c.b16 %v2205, %v2205
    %s2210 = scalar_lea.vmem %s4, 16
    %2211 = vst [vmem:[%s2210] sm:$0xf] %v2206
    %2212 = vst [vmem:[%s2210 + $0x4] sm:$0xf] %v2207
    %s2213 = sadd.s32 %s220, 5
    %p2214 = scmp.lt.s32.totalorder %s2213, 8
    %v2215 = vld [vmem:[#allocation4] sm:$0xf]
    %v2216 = vld [vmem:[#allocation4 + $0x4] sm:$0xf]
    %v2217 = vld [vmem:[%s3] sm:$0xff]
    %v2218 = vld [vmem:[%s3 + $0x8] sm:$0xff]
    %v2219 = vld [vmem:[%s3 + $0x10] sm:$0xff]
    %v2220 = vld [vmem:[%s3 + $0x18] sm:$0xff]
    %v2221 = vld [vmem:[%s3 + $0x20] sm:$0xff]
    %v2222 = vld [vmem:[%s3 + $0x28] sm:$0xff]
    %v2223 = vld [vmem:[%s3 + $0x30] sm:$0xff]
    %v2224 = vld [vmem:[%s3 + $0x38] sm:$0xff]
    %v2225 = vld [vmem:[%s3 + $0x40] sm:$0xff]
    %v2226 = vld [vmem:[%s3 + $0x48] sm:$0xff]
    %v2227 = vld [vmem:[%s3 + $0x50] sm:$0xff]
    %v2228 = vld [vmem:[%s3 + $0x58] sm:$0xff]
    %v2229 = vld [vmem:[%s3 + $0x60] sm:$0xff]
    %v2230 = vld [vmem:[%s3 + $0x68] sm:$0xff]
    %v2231 = vld [vmem:[%s3 + $0x70] sm:$0xff]
    %v2232 = vld [vmem:[%s3 + $0x78] sm:$0xff]
    %v2233 = vld [vmem:[%s3 + $0x80] sm:$0xff]
    %v2234 = vld [vmem:[%s3 + $0x88] sm:$0xff]
    %v2235 = vld [vmem:[%s3 + $0x90] sm:$0xff]
    %v2236 = vld [vmem:[%s3 + $0x98] sm:$0xff]
    %v2237 = vld [vmem:[%s3 + $0xa0] sm:$0xff]
    %v2238 = vld [vmem:[%s3 + $0xa8] sm:$0xff]
    %v2239 = vld [vmem:[%s3 + $0xb0] sm:$0xff]
    %v2240 = vld [vmem:[%s3 + $0xb8] sm:$0xff]
    %v2241 = vld [vmem:[%s3 + $0xc0] sm:$0xff]
    %v2242 = vld [vmem:[%s3 + $0xc8] sm:$0xff]
    %v2243 = vld [vmem:[%s3 + $0xd0] sm:$0xff]
    %v2244 = vld [vmem:[%s3 + $0xd8] sm:$0xff]
    %v2245 = vld [vmem:[%s3 + $0xe0] sm:$0xff]
    %v2246 = vld [vmem:[%s3 + $0xe8] sm:$0xff]
    %v2247 = vld [vmem:[%s3 + $0xf0] sm:$0xff]
    %v2248 = vld [vmem:[%s3 + $0xf8] sm:$0xff]
    %v2251 = vunpack.c.l.b16 %v2215
    %v2252 = vunpack.c.l.b16 %v2216
    %v2253 = vpack.c.b16 %v2252, %v2251
    %v2287 = vunpack.c.l.b16 %v2217
    %v2288 = vunpack.c.h.b16 %v2217
    %v2289 = vunpack.c.l.b16 %v2218
    %v2290 = vunpack.c.h.b16 %v2218
    %v2291 = vunpack.c.l.b16 %v2219
    %v2292 = vunpack.c.h.b16 %v2219
    %v2293 = vunpack.c.l.b16 %v2220
    %v2294 = vunpack.c.h.b16 %v2220
    %v2295 = vunpack.c.l.b16 %v2221
    %v2296 = vunpack.c.h.b16 %v2221
    %v2297 = vunpack.c.l.b16 %v2222
    %v2298 = vunpack.c.h.b16 %v2222
    %v2299 = vunpack.c.l.b16 %v2223
    %v2300 = vunpack.c.h.b16 %v2223
    %v2301 = vunpack.c.l.b16 %v2224
    %v2302 = vunpack.c.h.b16 %v2224
    %v2303 = vunpack.c.l.b16 %v2225
    %v2304 = vunpack.c.h.b16 %v2225
    %v2305 = vunpack.c.l.b16 %v2226
    %v2306 = vunpack.c.h.b16 %v2226
    %v2307 = vunpack.c.l.b16 %v2227
    %v2308 = vunpack.c.h.b16 %v2227
    %v2309 = vunpack.c.l.b16 %v2228
    %v2310 = vunpack.c.h.b16 %v2228
    %v2311 = vunpack.c.l.b16 %v2229
    %v2312 = vunpack.c.h.b16 %v2229
    %v2313 = vunpack.c.l.b16 %v2230
    %v2314 = vunpack.c.h.b16 %v2230
    %v2315 = vunpack.c.l.b16 %v2231
    %v2316 = vunpack.c.h.b16 %v2231
    %v2317 = vunpack.c.l.b16 %v2232
    %v2318 = vunpack.c.h.b16 %v2232
    %v2319 = vunpack.c.l.b16 %v2233
    %v2320 = vunpack.c.h.b16 %v2233
    %v2321 = vunpack.c.l.b16 %v2234
    %v2322 = vunpack.c.h.b16 %v2234
    %v2323 = vunpack.c.l.b16 %v2235
    %v2324 = vunpack.c.h.b16 %v2235
    %v2325 = vunpack.c.l.b16 %v2236
    %v2326 = vunpack.c.h.b16 %v2236
    %v2327 = vunpack.c.l.b16 %v2237
    %v2328 = vunpack.c.h.b16 %v2237
    %v2329 = vunpack.c.l.b16 %v2238
    %v2330 = vunpack.c.h.b16 %v2238
    %v2331 = vunpack.c.l.b16 %v2239
    %v2332 = vunpack.c.h.b16 %v2239
    %v2333 = vunpack.c.l.b16 %v2240
    %v2334 = vunpack.c.h.b16 %v2240
    %v2335 = vunpack.c.l.b16 %v2241
    %v2336 = vunpack.c.h.b16 %v2241
    %v2337 = vunpack.c.l.b16 %v2242
    %v2338 = vunpack.c.h.b16 %v2242
    %v2339 = vunpack.c.l.b16 %v2243
    %v2340 = vunpack.c.h.b16 %v2243
    %v2341 = vunpack.c.l.b16 %v2244
    %v2342 = vunpack.c.h.b16 %v2244
    %v2343 = vunpack.c.l.b16 %v2245
    %v2344 = vunpack.c.h.b16 %v2245
    %v2345 = vunpack.c.l.b16 %v2246
    %v2346 = vunpack.c.h.b16 %v2246
    %v2347 = vunpack.c.l.b16 %v2247
    %v2348 = vunpack.c.h.b16 %v2247
    %v2349 = vunpack.c.l.b16 %v2248
    %v2350 = vunpack.c.h.b16 %v2248
    %v2351 = vpack.c.b16 %v2291, %v2287
    %v2352 = vpack.c.b16 %v2292, %v2288
    %v2353 = vpack.c.b16 %v2293, %v2289
    %v2354 = vpack.c.b16 %v2294, %v2290
    %v2355 = vpack.c.b16 %v2299, %v2295
    %v2356 = vpack.c.b16 %v2300, %v2296
    %v2357 = vpack.c.b16 %v2301, %v2297
    %v2358 = vpack.c.b16 %v2302, %v2298
    %v2359 = vpack.c.b16 %v2307, %v2303
    %v2360 = vpack.c.b16 %v2308, %v2304
    %v2361 = vpack.c.b16 %v2309, %v2305
    %v2362 = vpack.c.b16 %v2310, %v2306
    %v2363 = vpack.c.b16 %v2315, %v2311
    %v2364 = vpack.c.b16 %v2316, %v2312
    %v2365 = vpack.c.b16 %v2317, %v2313
    %v2366 = vpack.c.b16 %v2318, %v2314
    %v2367 = vpack.c.b16 %v2323, %v2319
    %v2368 = vpack.c.b16 %v2324, %v2320
    %v2369 = vpack.c.b16 %v2325, %v2321
    %v2370 = vpack.c.b16 %v2326, %v2322
    %v2371 = vpack.c.b16 %v2331, %v2327
    %v2372 = vpack.c.b16 %v2332, %v2328
    %v2373 = vpack.c.b16 %v2333, %v2329
    %v2374 = vpack.c.b16 %v2334, %v2330
    %v2375 = vpack.c.b16 %v2339, %v2335
    %v2376 = vpack.c.b16 %v2340, %v2336
    %v2377 = vpack.c.b16 %v2341, %v2337
    %v2378 = vpack.c.b16 %v2342, %v2338
    %v2379 = vpack.c.b16 %v2347, %v2343
    %v2380 = vpack.c.b16 %v2348, %v2344
    %v2381 = vpack.c.b16 %v2349, %v2345
    %v2382 = vpack.c.b16 %v2350, %v2346
    %2415 = vmatprep.subr.bf16.mxu0 %v2380
    %2416 = vmatpush1.bf16.msra.mxu0 %v2379
    %2417 = vmatprep.subr.bf16.mxu0 %v2376
    %2418 = vmatpush1.bf16.msra.mxu0 %v2375
    %2419 = vmatprep.subr.bf16.mxu0 %v2372
    %2420 = vmatpush1.bf16.msra.mxu0 %v2371
    %2421 = vmatprep.subr.bf16.mxu0 %v2368
    %2422 = vmatpush1.bf16.msra.mxu0 %v2367
    %2423 = vmatprep.subr.bf16.mxu0 %v2364
    %2424 = vmatpush1.bf16.msra.mxu0 %v2363
    %2425 = vmatprep.subr.bf16.mxu0 %v2360
    %2426 = vmatpush1.bf16.msra.mxu0 %v2359
    %2427 = vmatprep.subr.bf16.mxu0 %v2356
    %2428 = vmatpush1.bf16.msra.mxu0 %v2355
    %2429 = vmatprep.subr.bf16.mxu0 %v2352
    %2430 = vmatpush1.bf16.msra.mxu0 %v2351
    %2431 = vmatprep.subr.bf16.mxu0 0
    %2432 = vmatpush2.bf16.msra.mxu0 0
    %2433 = vmatprep.subr.bf16.mxu0 0
    %2434 = vmatpush2.bf16.msra.mxu0 0
    %2435 = vmatprep.subr.bf16.mxu0 0
    %2436 = vmatpush2.bf16.msra.mxu0 0
    %2437 = vmatprep.subr.bf16.mxu0 0
    %2438 = vmatpush2.bf16.msra.mxu0 0
    %2439 = vmatprep.subr.bf16.mxu0 0
    %2440 = vmatpush2.bf16.msra.mxu0 0
    %2441 = vmatprep.subr.bf16.mxu0 0
    %2442 = vmatpush2.bf16.msra.mxu0 0
    %2443 = vmatprep.subr.bf16.mxu0 0
    %2444 = vmatpush2.bf16.msra.mxu0 0
    %2445 = vmatprep.subr.bf16.mxu0 0
    %2446 = vmatpush2.bf16.msra.mxu0 0
    %2447 = vmatprep.mubr.bf16.mxu0 0
    %2448 = vmatmul.mubr.bf16.gmra.mxu0 %v2253
    %v2449 = vpop.f32.mrf.mxu0
    %v2450 = vadd.f32 0.0, %v2449
    %v2451 = vpop.f32.mrf.mxu0
    %v2452 = vadd.f32 0.0, %v2451
    %v2453 = vpop.f32.mrf.mxu0
    %v2454 = vadd.f32 0.0, %v2453
    %v2455 = vpop.f32.mrf.mxu0
    %v2456 = vadd.f32 0.0, %v2455
    %2457 = vdwg.mxu0
    %2458 = vmatprep.subr.bf16.mxu0 %v2382
    %2459 = vmatpush1.bf16.msra.mxu0 %v2381
    %2460 = vmatprep.subr.bf16.mxu0 %v2378
    %2461 = vmatpush1.bf16.msra.mxu0 %v2377
    %2462 = vmatprep.subr.bf16.mxu0 %v2374
    %2463 = vmatpush1.bf16.msra.mxu0 %v2373
    %2464 = vmatprep.subr.bf16.mxu0 %v2370
    %2465 = vmatpush1.bf16.msra.mxu0 %v2369
    %2466 = vmatprep.subr.bf16.mxu0 %v2366
    %2467 = vmatpush1.bf16.msra.mxu0 %v2365
    %2468 = vmatprep.subr.bf16.mxu0 %v2362
    %2469 = vmatpush1.bf16.msra.mxu0 %v2361
    %2470 = vmatprep.subr.bf16.mxu0 %v2358
    %2471 = vmatpush1.bf16.msra.mxu0 %v2357
    %2472 = vmatprep.subr.bf16.mxu0 %v2354
    %2473 = vmatpush1.bf16.msra.mxu0 %v2353
    %2474 = vmatprep.subr.bf16.mxu0 0
    %2475 = vmatpush2.bf16.msra.mxu0 0
    %2476 = vmatprep.subr.bf16.mxu0 0
    %2477 = vmatpush2.bf16.msra.mxu0 0
    %2478 = vmatprep.subr.bf16.mxu0 0
    %2479 = vmatpush2.bf16.msra.mxu0 0
    %2480 = vmatprep.subr.bf16.mxu0 0
    %2481 = vmatpush2.bf16.msra.mxu0 0
    %2482 = vmatprep.subr.bf16.mxu0 0
    %2483 = vmatpush2.bf16.msra.mxu0 0
    %2484 = vmatprep.subr.bf16.mxu0 0
    %2485 = vmatpush2.bf16.msra.mxu0 0
    %2486 = vmatprep.subr.bf16.mxu0 0
    %2487 = vmatpush2.bf16.msra.mxu0 0
    %2488 = vmatprep.subr.bf16.mxu0 0
    %2489 = vmatpush2.bf16.msra.mxu0 0
    %2490 = vmatprep.mubr.bf16.mxu0 0
    %2491 = vmatmul.mubr.bf16.gmra.mxu0 %v2253
    %v2492 = vpop.f32.mrf.mxu0
    %v2493 = vadd.f32 0.0, %v2492
    %v2494 = vpop.f32.mrf.mxu0
    %v2495 = vadd.f32 0.0, %v2494
    %v2496 = vpop.f32.mrf.mxu0
    %v2497 = vadd.f32 0.0, %v2496
    %v2498 = vpop.f32.mrf.mxu0
    %v2499 = vadd.f32 0.0, %v2498
    %2500 = vdwg.mxu0
    %s2501 = scalar_lea.vmem [#allocation7], 160
    %v2502 = vld [vmem:[%s2501] sm:$0xf]
    %v2503 = vld [vmem:[%s2501 + $0x10] sm:$0xf]
    %v2504 = vunpack.c.l.bf16 %v2502
    %v2505 = vunpack.c.l.bf16 %v2503
    %v2506 = vadd.f32 %v2450, %v2504
    %v2507 = vadd.f32 %v2454, %v2505
    %v2508 = vxor.u32 %v2506, 2147483648
    %v2509 = vxor.u32 %v2507, 2147483648
    %v2510 = vmul.f32 %v2508, 1.442695
    %v2511 = vpow.pop %v2510
    %v2512 = vmul.f32 %v2509, 1.442695
    %v2513 = vpow.pop %v2512
    %v2514 = vadd.f32 %v2511, 1.0
    %v2515 = vadd.f32 %v2513, 1.0
    %v2516 = vrcp.pop %v2514
    %v2517 = vmul.f32 1.0, %v2516
    %v2518 = vrcp.pop %v2515
    %v2519 = vmul.f32 1.0, %v2518
    %v2520 = vld [vmem:[%s2501 + $0x4] sm:$0xf]
    %v2521 = vld [vmem:[%s2501 + $0x14] sm:$0xf]
    %v2522 = vunpack.c.l.bf16 %v2520
    %v2523 = vunpack.c.l.bf16 %v2521
    %v2524 = vadd.f32 %v2452, %v2522
    %v2525 = vadd.f32 %v2456, %v2523
    %v2526 = vxor.u32 %v2524, 2147483648
    %v2527 = vxor.u32 %v2525, 2147483648
    %v2528 = vmul.f32 %v2526, 1.442695
    %v2529 = vpow.pop %v2528
    %v2530 = vmul.f32 %v2527, 1.442695
    %v2531 = vpow.pop %v2530
    %v2532 = vadd.f32 %v2529, 1.0
    %v2533 = vadd.f32 %v2531, 1.0
    %v2534 = vrcp.pop %v2532
    %v2535 = vmul.f32 1.0, %v2534
    %v2536 = vrcp.pop %v2533
    %v2537 = vmul.f32 1.0, %v2536
    %v2538 = vld [vmem:[%s2501 + $0x8] sm:$0xf]
    %v2539 = vld [vmem:[%s2501 + $0x18] sm:$0xf]
    %v2540 = vunpack.c.l.bf16 %v2538
    %v2541 = vunpack.c.l.bf16 %v2539
    %v2542 = vadd.f32 %v2493, %v2540
    %v2543 = vadd.f32 %v2497, %v2541
    %v2544 = vtanh.pop %v2542
    %v2545 = vtanh.pop %v2543
    %v2546 = vld [vmem:[%s2501 + $0xc] sm:$0xf]
    %v2547 = vld [vmem:[%s2501 + $0x1c] sm:$0xf]
    %v2548 = vunpack.c.l.bf16 %v2546
    %v2549 = vunpack.c.l.bf16 %v2547
    %v2550 = vadd.f32 %v2495, %v2548
    %v2551 = vadd.f32 %v2499, %v2549
    %v2552 = vxor.u32 %v2550, 2147483648
    %v2553 = vxor.u32 %v2551, 2147483648
    %v2554 = vmul.f32 %v2552, 1.442695
    %v2555 = vpow.pop %v2554
    %v2556 = vmul.f32 %v2553, 1.442695
    %v2557 = vpow.pop %v2556
    %v2558 = vadd.f32 %v2555, 1.0
    %v2559 = vadd.f32 %v2557, 1.0
    %v2560 = vrcp.pop %v2558
    %v2561 = vmul.f32 1.0, %v2560
    %v2562 = vrcp.pop %v2559
    %v2563 = vmul.f32 1.0, %v2562
    %v2564 = vld [vmem:[#allocation5] sm:$0xff]
    %v2565 = vld [vmem:[#allocation5 + $0x8] sm:$0xff]
    %v2566 = vmul.f32 %v2535, %v2564
    %v2567 = vmul.f32 %v2537, %v2565
    %v2568 = vmul.f32 %v2517, %v2544
    %v2569 = vmul.f32 %v2519, %v2545
    %v2570 = vadd.f32 %v2566, %v2568
    %v2571 = vadd.f32 %v2567, %v2569
    %v2572 = vtanh.pop %v2570
    %v2573 = vtanh.pop %v2571
    %v2574 = vmul.f32 %v2561, %v2572
    %v2575 = vmul.f32 %v2563, %v2573
    %v2576 = vpack.c.bf16 %v2575, %v2574
    %s2577 = scalar_select %p2214, 1, 0
    %v2578 = vstv %s2577
    %vm2579 = vcmp.eq.s32.totalorder %v2578, 1
    %v2580 = vsel %vm2579, %v2570, %v2564
    %v2581 = vsel %vm2579, %v2571, %v2565
    %2582 = vst [vmem:[#allocation5] sm:$0xff] %v2580
    %2583 = vst [vmem:[#allocation5 + $0x8] sm:$0xff] %v2581
    %v2584 = vld [vmem:[#allocation4] sm:$0xf]
    %v2585 = vld [vmem:[#allocation4 + $0x4] sm:$0xf]
    %v2588 = vunpack.c.l.b16 %v2584
    %v2589 = vunpack.c.l.b16 %v2585
    %v2590 = vpack.c.b16 %v2589, %v2588
    %v2592 = vsel %vm2579, %v2576, %v2590
    %v2594 = vunpack.c.l.b16 %v2592
    %v2595 = vunpack.c.h.b16 %v2592
    %v2596 = vpack.c.b16 %v2594, %v2594
    %v2597 = vpack.c.b16 %v2595, %v2595
    %2600 = vst [vmem:[#allocation4] sm:$0xf] %v2596
    %2601 = vst [vmem:[#allocation4 + $0x4] sm:$0xf] %v2597
    %v2603 = vunpack.c.l.b16 %v2576
    %v2604 = vunpack.c.h.b16 %v2576
    %v2605 = vpack.c.b16 %v2603, %v2603
    %v2606 = vpack.c.b16 %v2604, %v2604
    %s2609 = scalar_lea.vmem %s202, 40
    %2610 = vst [vmem:[%s2609] sm:$0xf] %v2605
    %2611 = vst [vmem:[%s2609 + $0x4] sm:$0xf] %v2606
    %s2612 = sadd.s32 %s218, 3
    %p2613 = scmp.lt.s32.totalorder %s2612, 8
    %v2614 = vld [vmem:[#allocation2] sm:$0xf]
    %v2615 = vld [vmem:[#allocation2 + $0x4] sm:$0xf]
    %v2616 = vld [vmem:[%s2] sm:$0xff]
    %v2617 = vld [vmem:[%s2 + $0x8] sm:$0xff]
    %v2618 = vld [vmem:[%s2 + $0x10] sm:$0xff]
    %v2619 = vld [vmem:[%s2 + $0x18] sm:$0xff]
    %v2620 = vld [vmem:[%s2 + $0x20] sm:$0xff]
    %v2621 = vld [vmem:[%s2 + $0x28] sm:$0xff]
    %v2622 = vld [vmem:[%s2 + $0x30] sm:$0xff]
    %v2623 = vld [vmem:[%s2 + $0x38] sm:$0xff]
    %v2624 = vld [vmem:[%s2 + $0x40] sm:$0xff]
    %v2625 = vld [vmem:[%s2 + $0x48] sm:$0xff]
    %v2626 = vld [vmem:[%s2 + $0x50] sm:$0xff]
    %v2627 = vld [vmem:[%s2 + $0x58] sm:$0xff]
    %v2628 = vld [vmem:[%s2 + $0x60] sm:$0xff]
    %v2629 = vld [vmem:[%s2 + $0x68] sm:$0xff]
    %v2630 = vld [vmem:[%s2 + $0x70] sm:$0xff]
    %v2631 = vld [vmem:[%s2 + $0x78] sm:$0xff]
    %v2632 = vld [vmem:[%s2 + $0x80] sm:$0xff]
    %v2633 = vld [vmem:[%s2 + $0x88] sm:$0xff]
    %v2634 = vld [vmem:[%s2 + $0x90] sm:$0xff]
    %v2635 = vld [vmem:[%s2 + $0x98] sm:$0xff]
    %v2636 = vld [vmem:[%s2 + $0xa0] sm:$0xff]
    %v2637 = vld [vmem:[%s2 + $0xa8] sm:$0xff]
    %v2638 = vld [vmem:[%s2 + $0xb0] sm:$0xff]
    %v2639 = vld [vmem:[%s2 + $0xb8] sm:$0xff]
    %v2640 = vld [vmem:[%s2 + $0xc0] sm:$0xff]
    %v2641 = vld [vmem:[%s2 + $0xc8] sm:$0xff]
    %v2642 = vld [vmem:[%s2 + $0xd0] sm:$0xff]
    %v2643 = vld [vmem:[%s2 + $0xd8] sm:$0xff]
    %v2644 = vld [vmem:[%s2 + $0xe0] sm:$0xff]
    %v2645 = vld [vmem:[%s2 + $0xe8] sm:$0xff]
    %v2646 = vld [vmem:[%s2 + $0xf0] sm:$0xff]
    %v2647 = vld [vmem:[%s2 + $0xf8] sm:$0xff]
    %v2650 = vunpack.c.l.b16 %v2614
    %v2651 = vunpack.c.l.b16 %v2615
    %v2652 = vpack.c.b16 %v2651, %v2650
    %v2686 = vunpack.c.l.b16 %v2616
    %v2687 = vunpack.c.h.b16 %v2616
    %v2688 = vunpack.c.l.b16 %v2617
    %v2689 = vunpack.c.h.b16 %v2617
    %v2690 = vunpack.c.l.b16 %v2618
    %v2691 = vunpack.c.h.b16 %v2618
    %v2692 = vunpack.c.l.b16 %v2619
    %v2693 = vunpack.c.h.b16 %v2619
    %v2694 = vunpack.c.l.b16 %v2620
    %v2695 = vunpack.c.h.b16 %v2620
    %v2696 = vunpack.c.l.b16 %v2621
    %v2697 = vunpack.c.h.b16 %v2621
    %v2698 = vunpack.c.l.b16 %v2622
    %v2699 = vunpack.c.h.b16 %v2622
    %v2700 = vunpack.c.l.b16 %v2623
    %v2701 = vunpack.c.h.b16 %v2623
    %v2702 = vunpack.c.l.b16 %v2624
    %v2703 = vunpack.c.h.b16 %v2624
    %v2704 = vunpack.c.l.b16 %v2625
    %v2705 = vunpack.c.h.b16 %v2625
    %v2706 = vunpack.c.l.b16 %v2626
    %v2707 = vunpack.c.h.b16 %v2626
    %v2708 = vunpack.c.l.b16 %v2627
    %v2709 = vunpack.c.h.b16 %v2627
    %v2710 = vunpack.c.l.b16 %v2628
    %v2711 = vunpack.c.h.b16 %v2628
    %v2712 = vunpack.c.l.b16 %v2629
    %v2713 = vunpack.c.h.b16 %v2629
    %v2714 = vunpack.c.l.b16 %v2630
    %v2715 = vunpack.c.h.b16 %v2630
    %v2716 = vunpack.c.l.b16 %v2631
    %v2717 = vunpack.c.h.b16 %v2631
    %v2718 = vunpack.c.l.b16 %v2632
    %v2719 = vunpack.c.h.b16 %v2632
    %v2720 = vunpack.c.l.b16 %v2633
    %v2721 = vunpack.c.h.b16 %v2633
    %v2722 = vunpack.c.l.b16 %v2634
    %v2723 = vunpack.c.h.b16 %v2634
    %v2724 = vunpack.c.l.b16 %v2635
    %v2725 = vunpack.c.h.b16 %v2635
    %v2726 = vunpack.c.l.b16 %v2636
    %v2727 = vunpack.c.h.b16 %v2636
    %v2728 = vunpack.c.l.b16 %v2637
    %v2729 = vunpack.c.h.b16 %v2637
    %v2730 = vunpack.c.l.b16 %v2638
    %v2731 = vunpack.c.h.b16 %v2638
    %v2732 = vunpack.c.l.b16 %v2639
    %v2733 = vunpack.c.h.b16 %v2639
    %v2734 = vunpack.c.l.b16 %v2640
    %v2735 = vunpack.c.h.b16 %v2640
    %v2736 = vunpack.c.l.b16 %v2641
    %v2737 = vunpack.c.h.b16 %v2641
    %v2738 = vunpack.c.l.b16 %v2642
    %v2739 = vunpack.c.h.b16 %v2642
    %v2740 = vunpack.c.l.b16 %v2643
    %v2741 = vunpack.c.h.b16 %v2643
    %v2742 = vunpack.c.l.b16 %v2644
    %v2743 = vunpack.c.h.b16 %v2644
    %v2744 = vunpack.c.l.b16 %v2645
    %v2745 = vunpack.c.h.b16 %v2645
    %v2746 = vunpack.c.l.b16 %v2646
    %v2747 = vunpack.c.h.b16 %v2646
    %v2748 = vunpack.c.l.b16 %v2647
    %v2749 = vunpack.c.h.b16 %v2647
    %v2750 = vpack.c.b16 %v2690, %v2686
    %v2751 = vpack.c.b16 %v2691, %v2687
    %v2752 = vpack.c.b16 %v2692, %v2688
    %v2753 = vpack.c.b16 %v2693, %v2689
    %v2754 = vpack.c.b16 %v2698, %v2694
    %v2755 = vpack.c.b16 %v2699, %v2695
    %v2756 = vpack.c.b16 %v2700, %v2696
    %v2757 = vpack.c.b16 %v2701, %v2697
    %v2758 = vpack.c.b16 %v2706, %v2702
    %v2759 = vpack.c.b16 %v2707, %v2703
    %v2760 = vpack.c.b16 %v2708, %v2704
    %v2761 = vpack.c.b16 %v2709, %v2705
    %v2762 = vpack.c.b16 %v2714, %v2710
    %v2763 = vpack.c.b16 %v2715, %v2711
    %v2764 = vpack.c.b16 %v2716, %v2712
    %v2765 = vpack.c.b16 %v2717, %v2713
    %v2766 = vpack.c.b16 %v2722, %v2718
    %v2767 = vpack.c.b16 %v2723, %v2719
    %v2768 = vpack.c.b16 %v2724, %v2720
    %v2769 = vpack.c.b16 %v2725, %v2721
    %v2770 = vpack.c.b16 %v2730, %v2726
    %v2771 = vpack.c.b16 %v2731, %v2727
    %v2772 = vpack.c.b16 %v2732, %v2728
    %v2773 = vpack.c.b16 %v2733, %v2729
    %v2774 = vpack.c.b16 %v2738, %v2734
    %v2775 = vpack.c.b16 %v2739, %v2735
    %v2776 = vpack.c.b16 %v2740, %v2736
    %v2777 = vpack.c.b16 %v2741, %v2737
    %v2778 = vpack.c.b16 %v2746, %v2742
    %v2779 = vpack.c.b16 %v2747, %v2743
    %v2780 = vpack.c.b16 %v2748, %v2744
    %v2781 = vpack.c.b16 %v2749, %v2745
    %2814 = vmatprep.subr.bf16.mxu0 %v2779
    %2815 = vmatpush1.bf16.msra.mxu0 %v2778
    %2816 = vmatprep.subr.bf16.mxu0 %v2775
    %2817 = vmatpush1.bf16.msra.mxu0 %v2774
    %2818 = vmatprep.subr.bf16.mxu0 %v2771
    %2819 = vmatpush1.bf16.msra.mxu0 %v2770
    %2820 = vmatprep.subr.bf16.mxu0 %v2767
    %2821 = vmatpush1.bf16.msra.mxu0 %v2766
    %2822 = vmatprep.subr.bf16.mxu0 %v2763
    %2823 = vmatpush1.bf16.msra.mxu0 %v2762
    %2824 = vmatprep.subr.bf16.mxu0 %v2759
    %2825 = vmatpush1.bf16.msra.mxu0 %v2758
    %2826 = vmatprep.subr.bf16.mxu0 %v2755
    %2827 = vmatpush1.bf16.msra.mxu0 %v2754
    %2828 = vmatprep.subr.bf16.mxu0 %v2751
    %2829 = vmatpush1.bf16.msra.mxu0 %v2750
    %2830 = vmatprep.subr.bf16.mxu0 0
    %2831 = vmatpush2.bf16.msra.mxu0 0
    %2832 = vmatprep.subr.bf16.mxu0 0
    %2833 = vmatpush2.bf16.msra.mxu0 0
    %2834 = vmatprep.subr.bf16.mxu0 0
    %2835 = vmatpush2.bf16.msra.mxu0 0
    %2836 = vmatprep.subr.bf16.mxu0 0
    %2837 = vmatpush2.bf16.msra.mxu0 0
    %2838 = vmatprep.subr.bf16.mxu0 0
    %2839 = vmatpush2.bf16.msra.mxu0 0
    %2840 = vmatprep.subr.bf16.mxu0 0
    %2841 = vmatpush2.bf16.msra.mxu0 0
    %2842 = vmatprep.subr.bf16.mxu0 0
    %2843 = vmatpush2.bf16.msra.mxu0 0
    %2844 = vmatprep.subr.bf16.mxu0 0
    %2845 = vmatpush2.bf16.msra.mxu0 0
    %2846 = vmatprep.mubr.bf16.mxu0 0
    %2847 = vmatmul.mubr.bf16.gmra.mxu0 %v2652
    %v2848 = vpop.f32.mrf.mxu0
    %v2849 = vadd.f32 0.0, %v2848
    %v2850 = vpop.f32.mrf.mxu0
    %v2851 = vadd.f32 0.0, %v2850
    %v2852 = vpop.f32.mrf.mxu0
    %v2853 = vadd.f32 0.0, %v2852
    %v2854 = vpop.f32.mrf.mxu0
    %v2855 = vadd.f32 0.0, %v2854
    %2856 = vdwg.mxu0
    %2857 = vmatprep.subr.bf16.mxu0 %v2781
    %2858 = vmatpush1.bf16.msra.mxu0 %v2780
    %2859 = vmatprep.subr.bf16.mxu0 %v2777
    %2860 = vmatpush1.bf16.msra.mxu0 %v2776
    %2861 = vmatprep.subr.bf16.mxu0 %v2773
    %2862 = vmatpush1.bf16.msra.mxu0 %v2772
    %2863 = vmatprep.subr.bf16.mxu0 %v2769
    %2864 = vmatpush1.bf16.msra.mxu0 %v2768
    %2865 = vmatprep.subr.bf16.mxu0 %v2765
    %2866 = vmatpush1.bf16.msra.mxu0 %v2764
    %2867 = vmatprep.subr.bf16.mxu0 %v2761
    %2868 = vmatpush1.bf16.msra.mxu0 %v2760
    %2869 = vmatprep.subr.bf16.mxu0 %v2757
    %2870 = vmatpush1.bf16.msra.mxu0 %v2756
    %2871 = vmatprep.subr.bf16.mxu0 %v2753
    %2872 = vmatpush1.bf16.msra.mxu0 %v2752
    %2873 = vmatprep.subr.bf16.mxu0 0
    %2874 = vmatpush2.bf16.msra.mxu0 0
    %2875 = vmatprep.subr.bf16.mxu0 0
    %2876 = vmatpush2.bf16.msra.mxu0 0
    %2877 = vmatprep.subr.bf16.mxu0 0
    %2878 = vmatpush2.bf16.msra.mxu0 0
    %2879 = vmatprep.subr.bf16.mxu0 0
    %2880 = vmatpush2.bf16.msra.mxu0 0
    %2881 = vmatprep.subr.bf16.mxu0 0
    %2882 = vmatpush2.bf16.msra.mxu0 0
    %2883 = vmatprep.subr.bf16.mxu0 0
    %2884 = vmatpush2.bf16.msra.mxu0 0
    %2885 = vmatprep.subr.bf16.mxu0 0
    %2886 = vmatpush2.bf16.msra.mxu0 0
    %2887 = vmatprep.subr.bf16.mxu0 0
    %2888 = vmatpush2.bf16.msra.mxu0 0
    %2889 = vmatprep.mubr.bf16.mxu0 0
    %2890 = vmatmul.mubr.bf16.gmra.mxu0 %v2652
    %v2891 = vpop.f32.mrf.mxu0
    %v2892 = vadd.f32 0.0, %v2891
    %v2893 = vpop.f32.mrf.mxu0
    %v2894 = vadd.f32 0.0, %v2893
    %v2895 = vpop.f32.mrf.mxu0
    %v2896 = vadd.f32 0.0, %v2895
    %v2897 = vpop.f32.mrf.mxu0
    %v2898 = vadd.f32 0.0, %v2897
    %2899 = vdwg.mxu0
    %s2900 = scalar_lea.vmem [#allocation6], 96
    %v2901 = vld [vmem:[%s2900] sm:$0xf]
    %v2902 = vld [vmem:[%s2900 + $0x10] sm:$0xf]
    %v2903 = vunpack.c.l.bf16 %v2901
    %v2904 = vunpack.c.l.bf16 %v2902
    %v2905 = vadd.f32 %v2849, %v2903
    %v2906 = vadd.f32 %v2853, %v2904
    %v2907 = vxor.u32 %v2905, 2147483648
    %v2908 = vxor.u32 %v2906, 2147483648
    %v2909 = vmul.f32 %v2907, 1.442695
    %v2910 = vpow.pop %v2909
    %v2911 = vmul.f32 %v2908, 1.442695
    %v2912 = vpow.pop %v2911
    %v2913 = vadd.f32 %v2910, 1.0
    %v2914 = vadd.f32 %v2912, 1.0
    %v2915 = vrcp.pop %v2913
    %v2916 = vmul.f32 1.0, %v2915
    %v2917 = vrcp.pop %v2914
    %v2918 = vmul.f32 1.0, %v2917
    %v2919 = vld [vmem:[%s2900 + $0x4] sm:$0xf]
    %v2920 = vld [vmem:[%s2900 + $0x14] sm:$0xf]
    %v2921 = vunpack.c.l.bf16 %v2919
    %v2922 = vunpack.c.l.bf16 %v2920
    %v2923 = vadd.f32 %v2851, %v2921
    %v2924 = vadd.f32 %v2855, %v2922
    %v2925 = vxor.u32 %v2923, 2147483648
    %v2926 = vxor.u32 %v2924, 2147483648
    %v2927 = vmul.f32 %v2925, 1.442695
    %v2928 = vpow.pop %v2927
    %v2929 = vmul.f32 %v2926, 1.442695
    %v2930 = vpow.pop %v2929
    %v2931 = vadd.f32 %v2928, 1.0
    %v2932 = vadd.f32 %v2930, 1.0
    %v2933 = vrcp.pop %v2931
    %v2934 = vmul.f32 1.0, %v2933
    %v2935 = vrcp.pop %v2932
    %v2936 = vmul.f32 1.0, %v2935
    %v2937 = vld [vmem:[%s2900 + $0x8] sm:$0xf]
    %v2938 = vld [vmem:[%s2900 + $0x18] sm:$0xf]
    %v2939 = vunpack.c.l.bf16 %v2937
    %v2940 = vunpack.c.l.bf16 %v2938
    %v2941 = vadd.f32 %v2892, %v2939
    %v2942 = vadd.f32 %v2896, %v2940
    %v2943 = vtanh.pop %v2941
    %v2944 = vtanh.pop %v2942
    %v2945 = vld [vmem:[%s2900 + $0xc] sm:$0xf]
    %v2946 = vld [vmem:[%s2900 + $0x1c] sm:$0xf]
    %v2947 = vunpack.c.l.bf16 %v2945
    %v2948 = vunpack.c.l.bf16 %v2946
    %v2949 = vadd.f32 %v2894, %v2947
    %v2950 = vadd.f32 %v2898, %v2948
    %v2951 = vxor.u32 %v2949, 2147483648
    %v2952 = vxor.u32 %v2950, 2147483648
    %v2953 = vmul.f32 %v2951, 1.442695
    %v2954 = vpow.pop %v2953
    %v2955 = vmul.f32 %v2952, 1.442695
    %v2956 = vpow.pop %v2955
    %v2957 = vadd.f32 %v2954, 1.0
    %v2958 = vadd.f32 %v2956, 1.0
    %v2959 = vrcp.pop %v2957
    %v2960 = vmul.f32 1.0, %v2959
    %v2961 = vrcp.pop %v2958
    %v2962 = vmul.f32 1.0, %v2961
    %v2963 = vld [vmem:[#allocation3] sm:$0xff]
    %v2964 = vld [vmem:[#allocation3 + $0x8] sm:$0xff]
    %v2965 = vmul.f32 %v2934, %v2963
    %v2966 = vmul.f32 %v2936, %v2964
    %v2967 = vmul.f32 %v2916, %v2943
    %v2968 = vmul.f32 %v2918, %v2944
    %v2969 = vadd.f32 %v2965, %v2967
    %v2970 = vadd.f32 %v2966, %v2968
    %v2971 = vtanh.pop %v2969
    %v2972 = vtanh.pop %v2970
    %v2973 = vmul.f32 %v2960, %v2971
    %v2974 = vmul.f32 %v2962, %v2972
    %v2975 = vpack.c.bf16 %v2974, %v2973
    %s2976 = scalar_select %p2613, 1, 0
    %v2977 = vstv %s2976
    %vm2978 = vcmp.eq.s32.totalorder %v2977, 1
    %v2979 = vsel %vm2978, %v2969, %v2963
    %v2980 = vsel %vm2978, %v2970, %v2964
    %2981 = vst [vmem:[#allocation3] sm:$0xff] %v2979
    %2982 = vst [vmem:[#allocation3 + $0x8] sm:$0xff] %v2980
    %v2983 = vld [vmem:[#allocation2] sm:$0xf]
    %v2984 = vld [vmem:[#allocation2 + $0x4] sm:$0xf]
    %v2987 = vunpack.c.l.b16 %v2983
    %v2988 = vunpack.c.l.b16 %v2984
    %v2989 = vpack.c.b16 %v2988, %v2987
    %v2991 = vsel %vm2978, %v2975, %v2989
    %v2993 = vunpack.c.l.b16 %v2991
    %v2994 = vunpack.c.h.b16 %v2991
    %v2995 = vpack.c.b16 %v2993, %v2993
    %v2996 = vpack.c.b16 %v2994, %v2994
    %2999 = vst [vmem:[#allocation2] sm:$0xf] %v2995
    %3000 = vst [vmem:[#allocation2 + $0x4] sm:$0xf] %v2996
    %v3002 = vunpack.c.l.b16 %v2975
    %v3003 = vunpack.c.h.b16 %v2975
    %v3004 = vpack.c.b16 %v3002, %v3002
    %v3005 = vpack.c.b16 %v3003, %v3003
    %s3008 = scalar_lea.vmem %s4, 24
    %3009 = vst [vmem:[%s3008] sm:$0xf] %v3004
    %3010 = vst [vmem:[%s3008 + $0x4] sm:$0xf] %v3005
    %s3011 = sadd.s32 %s220, 4
    %p3012 = scmp.lt.s32.totalorder %s3011, 8
    %v3013 = vld [vmem:[#allocation4] sm:$0xf]
    %v3014 = vld [vmem:[#allocation4 + $0x4] sm:$0xf]
    %v3015 = vld [vmem:[%s3] sm:$0xff]
    %v3016 = vld [vmem:[%s3 + $0x8] sm:$0xff]
    %v3017 = vld [vmem:[%s3 + $0x10] sm:$0xff]
    %v3018 = vld [vmem:[%s3 + $0x18] sm:$0xff]
    %v3019 = vld [vmem:[%s3 + $0x20] sm:$0xff]
    %v3020 = vld [vmem:[%s3 + $0x28] sm:$0xff]
    %v3021 = vld [vmem:[%s3 + $0x30] sm:$0xff]
    %v3022 = vld [vmem:[%s3 + $0x38] sm:$0xff]
    %v3023 = vld [vmem:[%s3 + $0x40] sm:$0xff]
    %v3024 = vld [vmem:[%s3 + $0x48] sm:$0xff]
    %v3025 = vld [vmem:[%s3 + $0x50] sm:$0xff]
    %v3026 = vld [vmem:[%s3 + $0x58] sm:$0xff]
    %v3027 = vld [vmem:[%s3 + $0x60] sm:$0xff]
    %v3028 = vld [vmem:[%s3 + $0x68] sm:$0xff]
    %v3029 = vld [vmem:[%s3 + $0x70] sm:$0xff]
    %v3030 = vld [vmem:[%s3 + $0x78] sm:$0xff]
    %v3031 = vld [vmem:[%s3 + $0x80] sm:$0xff]
    %v3032 = vld [vmem:[%s3 + $0x88] sm:$0xff]
    %v3033 = vld [vmem:[%s3 + $0x90] sm:$0xff]
    %v3034 = vld [vmem:[%s3 + $0x98] sm:$0xff]
    %v3035 = vld [vmem:[%s3 + $0xa0] sm:$0xff]
    %v3036 = vld [vmem:[%s3 + $0xa8] sm:$0xff]
    %v3037 = vld [vmem:[%s3 + $0xb0] sm:$0xff]
    %v3038 = vld [vmem:[%s3 + $0xb8] sm:$0xff]
    %v3039 = vld [vmem:[%s3 + $0xc0] sm:$0xff]
    %v3040 = vld [vmem:[%s3 + $0xc8] sm:$0xff]
    %v3041 = vld [vmem:[%s3 + $0xd0] sm:$0xff]
    %v3042 = vld [vmem:[%s3 + $0xd8] sm:$0xff]
    %v3043 = vld [vmem:[%s3 + $0xe0] sm:$0xff]
    %v3044 = vld [vmem:[%s3 + $0xe8] sm:$0xff]
    %v3045 = vld [vmem:[%s3 + $0xf0] sm:$0xff]
    %v3046 = vld [vmem:[%s3 + $0xf8] sm:$0xff]
    %v3049 = vunpack.c.l.b16 %v3013
    %v3050 = vunpack.c.l.b16 %v3014
    %v3051 = vpack.c.b16 %v3050, %v3049
    %v3085 = vunpack.c.l.b16 %v3015
    %v3086 = vunpack.c.h.b16 %v3015
    %v3087 = vunpack.c.l.b16 %v3016
    %v3088 = vunpack.c.h.b16 %v3016
    %v3089 = vunpack.c.l.b16 %v3017
    %v3090 = vunpack.c.h.b16 %v3017
    %v3091 = vunpack.c.l.b16 %v3018
    %v3092 = vunpack.c.h.b16 %v3018
    %v3093 = vunpack.c.l.b16 %v3019
    %v3094 = vunpack.c.h.b16 %v3019
    %v3095 = vunpack.c.l.b16 %v3020
    %v3096 = vunpack.c.h.b16 %v3020
    %v3097 = vunpack.c.l.b16 %v3021
    %v3098 = vunpack.c.h.b16 %v3021
    %v3099 = vunpack.c.l.b16 %v3022
    %v3100 = vunpack.c.h.b16 %v3022
    %v3101 = vunpack.c.l.b16 %v3023
    %v3102 = vunpack.c.h.b16 %v3023
    %v3103 = vunpack.c.l.b16 %v3024
    %v3104 = vunpack.c.h.b16 %v3024
    %v3105 = vunpack.c.l.b16 %v3025
    %v3106 = vunpack.c.h.b16 %v3025
    %v3107 = vunpack.c.l.b16 %v3026
    %v3108 = vunpack.c.h.b16 %v3026
    %v3109 = vunpack.c.l.b16 %v3027
    %v3110 = vunpack.c.h.b16 %v3027
    %v3111 = vunpack.c.l.b16 %v3028
    %v3112 = vunpack.c.h.b16 %v3028
    %v3113 = vunpack.c.l.b16 %v3029
    %v3114 = vunpack.c.h.b16 %v3029
    %v3115 = vunpack.c.l.b16 %v3030
    %v3116 = vunpack.c.h.b16 %v3030
    %v3117 = vunpack.c.l.b16 %v3031
    %v3118 = vunpack.c.h.b16 %v3031
    %v3119 = vunpack.c.l.b16 %v3032
    %v3120 = vunpack.c.h.b16 %v3032
    %v3121 = vunpack.c.l.b16 %v3033
    %v3122 = vunpack.c.h.b16 %v3033
    %v3123 = vunpack.c.l.b16 %v3034
    %v3124 = vunpack.c.h.b16 %v3034
    %v3125 = vunpack.c.l.b16 %v3035
    %v3126 = vunpack.c.h.b16 %v3035
    %v3127 = vunpack.c.l.b16 %v3036
    %v3128 = vunpack.c.h.b16 %v3036
    %v3129 = vunpack.c.l.b16 %v3037
    %v3130 = vunpack.c.h.b16 %v3037
    %v3131 = vunpack.c.l.b16 %v3038
    %v3132 = vunpack.c.h.b16 %v3038
    %v3133 = vunpack.c.l.b16 %v3039
    %v3134 = vunpack.c.h.b16 %v3039
    %v3135 = vunpack.c.l.b16 %v3040
    %v3136 = vunpack.c.h.b16 %v3040
    %v3137 = vunpack.c.l.b16 %v3041
    %v3138 = vunpack.c.h.b16 %v3041
    %v3139 = vunpack.c.l.b16 %v3042
    %v3140 = vunpack.c.h.b16 %v3042
    %v3141 = vunpack.c.l.b16 %v3043
    %v3142 = vunpack.c.h.b16 %v3043
    %v3143 = vunpack.c.l.b16 %v3044
    %v3144 = vunpack.c.h.b16 %v3044
    %v3145 = vunpack.c.l.b16 %v3045
    %v3146 = vunpack.c.h.b16 %v3045
    %v3147 = vunpack.c.l.b16 %v3046
    %v3148 = vunpack.c.h.b16 %v3046
    %v3149 = vpack.c.b16 %v3089, %v3085
    %v3150 = vpack.c.b16 %v3090, %v3086
    %v3151 = vpack.c.b16 %v3091, %v3087
    %v3152 = vpack.c.b16 %v3092, %v3088
    %v3153 = vpack.c.b16 %v3097, %v3093
    %v3154 = vpack.c.b16 %v3098, %v3094
    %v3155 = vpack.c.b16 %v3099, %v3095
    %v3156 = vpack.c.b16 %v3100, %v3096
    %v3157 = vpack.c.b16 %v3105, %v3101
    %v3158 = vpack.c.b16 %v3106, %v3102
    %v3159 = vpack.c.b16 %v3107, %v3103
    %v3160 = vpack.c.b16 %v3108, %v3104
    %v3161 = vpack.c.b16 %v3113, %v3109
    %v3162 = vpack.c.b16 %v3114, %v3110
    %v3163 = vpack.c.b16 %v3115, %v3111
    %v3164 = vpack.c.b16 %v3116, %v3112
    %v3165 = vpack.c.b16 %v3121, %v3117
    %v3166 = vpack.c.b16 %v3122, %v3118
    %v3167 = vpack.c.b16 %v3123, %v3119
    %v3168 = vpack.c.b16 %v3124, %v3120
    %v3169 = vpack.c.b16 %v3129, %v3125
    %v3170 = vpack.c.b16 %v3130, %v3126
    %v3171 = vpack.c.b16 %v3131, %v3127
    %v3172 = vpack.c.b16 %v3132, %v3128
    %v3173 = vpack.c.b16 %v3137, %v3133
    %v3174 = vpack.c.b16 %v3138, %v3134
    %v3175 = vpack.c.b16 %v3139, %v3135
    %v3176 = vpack.c.b16 %v3140, %v3136
    %v3177 = vpack.c.b16 %v3145, %v3141
    %v3178 = vpack.c.b16 %v3146, %v3142
    %v3179 = vpack.c.b16 %v3147, %v3143
    %v3180 = vpack.c.b16 %v3148, %v3144
    %3213 = vmatprep.subr.bf16.mxu0 %v3178
    %3214 = vmatpush1.bf16.msra.mxu0 %v3177
    %3215 = vmatprep.subr.bf16.mxu0 %v3174
    %3216 = vmatpush1.bf16.msra.mxu0 %v3173
    %3217 = vmatprep.subr.bf16.mxu0 %v3170
    %3218 = vmatpush1.bf16.msra.mxu0 %v3169
    %3219 = vmatprep.subr.bf16.mxu0 %v3166
    %3220 = vmatpush1.bf16.msra.mxu0 %v3165
    %3221 = vmatprep.subr.bf16.mxu0 %v3162
    %3222 = vmatpush1.bf16.msra.mxu0 %v3161
    %3223 = vmatprep.subr.bf16.mxu0 %v3158
    %3224 = vmatpush1.bf16.msra.mxu0 %v3157
    %3225 = vmatprep.subr.bf16.mxu0 %v3154
    %3226 = vmatpush1.bf16.msra.mxu0 %v3153
    %3227 = vmatprep.subr.bf16.mxu0 %v3150
    %3228 = vmatpush1.bf16.msra.mxu0 %v3149
    %3229 = vmatprep.subr.bf16.mxu0 0
    %3230 = vmatpush2.bf16.msra.mxu0 0
    %3231 = vmatprep.subr.bf16.mxu0 0
    %3232 = vmatpush2.bf16.msra.mxu0 0
    %3233 = vmatprep.subr.bf16.mxu0 0
    %3234 = vmatpush2.bf16.msra.mxu0 0
    %3235 = vmatprep.subr.bf16.mxu0 0
    %3236 = vmatpush2.bf16.msra.mxu0 0
    %3237 = vmatprep.subr.bf16.mxu0 0
    %3238 = vmatpush2.bf16.msra.mxu0 0
    %3239 = vmatprep.subr.bf16.mxu0 0
    %3240 = vmatpush2.bf16.msra.mxu0 0
    %3241 = vmatprep.subr.bf16.mxu0 0
    %3242 = vmatpush2.bf16.msra.mxu0 0
    %3243 = vmatprep.subr.bf16.mxu0 0
    %3244 = vmatpush2.bf16.msra.mxu0 0
    %3245 = vmatprep.mubr.bf16.mxu0 0
    %3246 = vmatmul.mubr.bf16.gmra.mxu0 %v3051
    %v3247 = vpop.f32.mrf.mxu0
    %v3248 = vadd.f32 0.0, %v3247
    %v3249 = vpop.f32.mrf.mxu0
    %v3250 = vadd.f32 0.0, %v3249
    %v3251 = vpop.f32.mrf.mxu0
    %v3252 = vadd.f32 0.0, %v3251
    %v3253 = vpop.f32.mrf.mxu0
    %v3254 = vadd.f32 0.0, %v3253
    %3255 = vdwg.mxu0
    %3256 = vmatprep.subr.bf16.mxu0 %v3180
    %3257 = vmatpush1.bf16.msra.mxu0 %v3179
    %3258 = vmatprep.subr.bf16.mxu0 %v3176
    %3259 = vmatpush1.bf16.msra.mxu0 %v3175
    %3260 = vmatprep.subr.bf16.mxu0 %v3172
    %3261 = vmatpush1.bf16.msra.mxu0 %v3171
    %3262 = vmatprep.subr.bf16.mxu0 %v3168
    %3263 = vmatpush1.bf16.msra.mxu0 %v3167
    %3264 = vmatprep.subr.bf16.mxu0 %v3164
    %3265 = vmatpush1.bf16.msra.mxu0 %v3163
    %3266 = vmatprep.subr.bf16.mxu0 %v3160
    %3267 = vmatpush1.bf16.msra.mxu0 %v3159
    %3268 = vmatprep.subr.bf16.mxu0 %v3156
    %3269 = vmatpush1.bf16.msra.mxu0 %v3155
    %3270 = vmatprep.subr.bf16.mxu0 %v3152
    %3271 = vmatpush1.bf16.msra.mxu0 %v3151
    %3272 = vmatprep.subr.bf16.mxu0 0
    %3273 = vmatpush2.bf16.msra.mxu0 0
    %3274 = vmatprep.subr.bf16.mxu0 0
    %3275 = vmatpush2.bf16.msra.mxu0 0
    %3276 = vmatprep.subr.bf16.mxu0 0
    %3277 = vmatpush2.bf16.msra.mxu0 0
    %3278 = vmatprep.subr.bf16.mxu0 0
    %3279 = vmatpush2.bf16.msra.mxu0 0
    %3280 = vmatprep.subr.bf16.mxu0 0
    %3281 = vmatpush2.bf16.msra.mxu0 0
    %3282 = vmatprep.subr.bf16.mxu0 0
    %3283 = vmatpush2.bf16.msra.mxu0 0
    %3284 = vmatprep.subr.bf16.mxu0 0
    %3285 = vmatpush2.bf16.msra.mxu0 0
    %3286 = vmatprep.subr.bf16.mxu0 0
    %3287 = vmatpush2.bf16.msra.mxu0 0
    %3288 = vmatprep.mubr.bf16.mxu0 0
    %3289 = vmatmul.mubr.bf16.gmra.mxu0 %v3051
    %v3290 = vpop.f32.mrf.mxu0
    %v3291 = vadd.f32 0.0, %v3290
    %v3292 = vpop.f32.mrf.mxu0
    %v3293 = vadd.f32 0.0, %v3292
    %v3294 = vpop.f32.mrf.mxu0
    %v3295 = vadd.f32 0.0, %v3294
    %v3296 = vpop.f32.mrf.mxu0
    %v3297 = vadd.f32 0.0, %v3296
    %3298 = vdwg.mxu0
    %s3299 = scalar_lea.vmem [#allocation7], 128
    %v3300 = vld [vmem:[%s3299] sm:$0xf]
    %v3301 = vld [vmem:[%s3299 + $0x10] sm:$0xf]
    %v3302 = vunpack.c.l.bf16 %v3300
    %v3303 = vunpack.c.l.bf16 %v3301
    %v3304 = vadd.f32 %v3248, %v3302
    %v3305 = vadd.f32 %v3252, %v3303
    %v3306 = vxor.u32 %v3304, 2147483648
    %v3307 = vxor.u32 %v3305, 2147483648
    %v3308 = vmul.f32 %v3306, 1.442695
    %v3309 = vpow.pop %v3308
    %v3310 = vmul.f32 %v3307, 1.442695
    %v3311 = vpow.pop %v3310
    %v3312 = vadd.f32 %v3309, 1.0
    %v3313 = vadd.f32 %v3311, 1.0
    %v3314 = vrcp.pop %v3312
    %v3315 = vmul.f32 1.0, %v3314
    %v3316 = vrcp.pop %v3313
    %v3317 = vmul.f32 1.0, %v3316
    %v3318 = vld [vmem:[%s3299 + $0x4] sm:$0xf]
    %v3319 = vld [vmem:[%s3299 + $0x14] sm:$0xf]
    %v3320 = vunpack.c.l.bf16 %v3318
    %v3321 = vunpack.c.l.bf16 %v3319
    %v3322 = vadd.f32 %v3250, %v3320
    %v3323 = vadd.f32 %v3254, %v3321
    %v3324 = vxor.u32 %v3322, 2147483648
    %v3325 = vxor.u32 %v3323, 2147483648
    %v3326 = vmul.f32 %v3324, 1.442695
    %v3327 = vpow.pop %v3326
    %v3328 = vmul.f32 %v3325, 1.442695
    %v3329 = vpow.pop %v3328
    %v3330 = vadd.f32 %v3327, 1.0
    %v3331 = vadd.f32 %v3329, 1.0
    %v3332 = vrcp.pop %v3330
    %v3333 = vmul.f32 1.0, %v3332
    %v3334 = vrcp.pop %v3331
    %v3335 = vmul.f32 1.0, %v3334
    %v3336 = vld [vmem:[%s3299 + $0x8] sm:$0xf]
    %v3337 = vld [vmem:[%s3299 + $0x18] sm:$0xf]
    %v3338 = vunpack.c.l.bf16 %v3336
    %v3339 = vunpack.c.l.bf16 %v3337
    %v3340 = vadd.f32 %v3291, %v3338
    %v3341 = vadd.f32 %v3295, %v3339
    %v3342 = vtanh.pop %v3340
    %v3343 = vtanh.pop %v3341
    %v3344 = vld [vmem:[%s3299 + $0xc] sm:$0xf]
    %v3345 = vld [vmem:[%s3299 + $0x1c] sm:$0xf]
    %v3346 = vunpack.c.l.bf16 %v3344
    %v3347 = vunpack.c.l.bf16 %v3345
    %v3348 = vadd.f32 %v3293, %v3346
    %v3349 = vadd.f32 %v3297, %v3347
    %v3350 = vxor.u32 %v3348, 2147483648
    %v3351 = vxor.u32 %v3349, 2147483648
    %v3352 = vmul.f32 %v3350, 1.442695
    %v3353 = vpow.pop %v3352
    %v3354 = vmul.f32 %v3351, 1.442695
    %v3355 = vpow.pop %v3354
    %v3356 = vadd.f32 %v3353, 1.0
    %v3357 = vadd.f32 %v3355, 1.0
    %v3358 = vrcp.pop %v3356
    %v3359 = vmul.f32 1.0, %v3358
    %v3360 = vrcp.pop %v3357
    %v3361 = vmul.f32 1.0, %v3360
    %v3362 = vld [vmem:[#allocation5] sm:$0xff]
    %v3363 = vld [vmem:[#allocation5 + $0x8] sm:$0xff]
    %v3364 = vmul.f32 %v3333, %v3362
    %v3365 = vmul.f32 %v3335, %v3363
    %v3366 = vmul.f32 %v3315, %v3342
    %v3367 = vmul.f32 %v3317, %v3343
    %v3368 = vadd.f32 %v3364, %v3366
    %v3369 = vadd.f32 %v3365, %v3367
    %v3370 = vtanh.pop %v3368
    %v3371 = vtanh.pop %v3369
    %v3372 = vmul.f32 %v3359, %v3370
    %v3373 = vmul.f32 %v3361, %v3371
    %v3374 = vpack.c.bf16 %v3373, %v3372
    %s3375 = scalar_select %p3012, 1, 0
    %v3376 = vstv %s3375
    %vm3377 = vcmp.eq.s32.totalorder %v3376, 1
    %v3378 = vsel %vm3377, %v3368, %v3362
    %v3379 = vsel %vm3377, %v3369, %v3363
    %3380 = vst [vmem:[#allocation5] sm:$0xff] %v3378
    %3381 = vst [vmem:[#allocation5 + $0x8] sm:$0xff] %v3379
    %v3382 = vld [vmem:[#allocation4] sm:$0xf]
    %v3383 = vld [vmem:[#allocation4 + $0x4] sm:$0xf]
    %v3386 = vunpack.c.l.b16 %v3382
    %v3387 = vunpack.c.l.b16 %v3383
    %v3388 = vpack.c.b16 %v3387, %v3386
    %v3390 = vsel %vm3377, %v3374, %v3388
    %v3392 = vunpack.c.l.b16 %v3390
    %v3393 = vunpack.c.h.b16 %v3390
    %v3394 = vpack.c.b16 %v3392, %v3392
    %v3395 = vpack.c.b16 %v3393, %v3393
    %3398 = vst [vmem:[#allocation4] sm:$0xf] %v3394
    %3399 = vst [vmem:[#allocation4 + $0x4] sm:$0xf] %v3395
    %v3401 = vunpack.c.l.b16 %v3374
    %v3402 = vunpack.c.h.b16 %v3374
    %v3403 = vpack.c.b16 %v3401, %v3401
    %v3404 = vpack.c.b16 %v3402, %v3402
    %s3407 = scalar_lea.vmem %s202, 32
    %3408 = vst [vmem:[%s3407] sm:$0xf] %v3403
    %3409 = vst [vmem:[%s3407 + $0x4] sm:$0xf] %v3404
    %s3410 = sadd.s32 %s218, 4
    %p3411 = scmp.lt.s32.totalorder %s3410, 8
    %v3412 = vld [vmem:[#allocation2] sm:$0xf]
    %v3413 = vld [vmem:[#allocation2 + $0x4] sm:$0xf]
    %v3414 = vld [vmem:[%s2] sm:$0xff]
    %v3415 = vld [vmem:[%s2 + $0x8] sm:$0xff]
    %v3416 = vld [vmem:[%s2 + $0x10] sm:$0xff]
    %v3417 = vld [vmem:[%s2 + $0x18] sm:$0xff]
    %v3418 = vld [vmem:[%s2 + $0x20] sm:$0xff]
    %v3419 = vld [vmem:[%s2 + $0x28] sm:$0xff]
    %v3420 = vld [vmem:[%s2 + $0x30] sm:$0xff]
    %v3421 = vld [vmem:[%s2 + $0x38] sm:$0xff]
    %v3422 = vld [vmem:[%s2 + $0x40] sm:$0xff]
    %v3423 = vld [vmem:[%s2 + $0x48] sm:$0xff]
    %v3424 = vld [vmem:[%s2 + $0x50] sm:$0xff]
    %v3425 = vld [vmem:[%s2 + $0x58] sm:$0xff]
    %v3426 = vld [vmem:[%s2 + $0x60] sm:$0xff]
    %v3427 = vld [vmem:[%s2 + $0x68] sm:$0xff]
    %v3428 = vld [vmem:[%s2 + $0x70] sm:$0xff]
    %v3429 = vld [vmem:[%s2 + $0x78] sm:$0xff]
    %v3430 = vld [vmem:[%s2 + $0x80] sm:$0xff]
    %v3431 = vld [vmem:[%s2 + $0x88] sm:$0xff]
    %v3432 = vld [vmem:[%s2 + $0x90] sm:$0xff]
    %v3433 = vld [vmem:[%s2 + $0x98] sm:$0xff]
    %v3434 = vld [vmem:[%s2 + $0xa0] sm:$0xff]
    %v3435 = vld [vmem:[%s2 + $0xa8] sm:$0xff]
    %v3436 = vld [vmem:[%s2 + $0xb0] sm:$0xff]
    %v3437 = vld [vmem:[%s2 + $0xb8] sm:$0xff]
    %v3438 = vld [vmem:[%s2 + $0xc0] sm:$0xff]
    %v3439 = vld [vmem:[%s2 + $0xc8] sm:$0xff]
    %v3440 = vld [vmem:[%s2 + $0xd0] sm:$0xff]
    %v3441 = vld [vmem:[%s2 + $0xd8] sm:$0xff]
    %v3442 = vld [vmem:[%s2 + $0xe0] sm:$0xff]
    %v3443 = vld [vmem:[%s2 + $0xe8] sm:$0xff]
    %v3444 = vld [vmem:[%s2 + $0xf0] sm:$0xff]
    %v3445 = vld [vmem:[%s2 + $0xf8] sm:$0xff]
    %v3448 = vunpack.c.l.b16 %v3412
    %v3449 = vunpack.c.l.b16 %v3413
    %v3450 = vpack.c.b16 %v3449, %v3448
    %v3484 = vunpack.c.l.b16 %v3414
    %v3485 = vunpack.c.h.b16 %v3414
    %v3486 = vunpack.c.l.b16 %v3415
    %v3487 = vunpack.c.h.b16 %v3415
    %v3488 = vunpack.c.l.b16 %v3416
    %v3489 = vunpack.c.h.b16 %v3416
    %v3490 = vunpack.c.l.b16 %v3417
    %v3491 = vunpack.c.h.b16 %v3417
    %v3492 = vunpack.c.l.b16 %v3418
    %v3493 = vunpack.c.h.b16 %v3418
    %v3494 = vunpack.c.l.b16 %v3419
    %v3495 = vunpack.c.h.b16 %v3419
    %v3496 = vunpack.c.l.b16 %v3420
    %v3497 = vunpack.c.h.b16 %v3420
    %v3498 = vunpack.c.l.b16 %v3421
    %v3499 = vunpack.c.h.b16 %v3421
    %v3500 = vunpack.c.l.b16 %v3422
    %v3501 = vunpack.c.h.b16 %v3422
    %v3502 = vunpack.c.l.b16 %v3423
    %v3503 = vunpack.c.h.b16 %v3423
    %v3504 = vunpack.c.l.b16 %v3424
    %v3505 = vunpack.c.h.b16 %v3424
    %v3506 = vunpack.c.l.b16 %v3425
    %v3507 = vunpack.c.h.b16 %v3425
    %v3508 = vunpack.c.l.b16 %v3426
    %v3509 = vunpack.c.h.b16 %v3426
    %v3510 = vunpack.c.l.b16 %v3427
    %v3511 = vunpack.c.h.b16 %v3427
    %v3512 = vunpack.c.l.b16 %v3428
    %v3513 = vunpack.c.h.b16 %v3428
    %v3514 = vunpack.c.l.b16 %v3429
    %v3515 = vunpack.c.h.b16 %v3429
    %v3516 = vunpack.c.l.b16 %v3430
    %v3517 = vunpack.c.h.b16 %v3430
    %v3518 = vunpack.c.l.b16 %v3431
    %v3519 = vunpack.c.h.b16 %v3431
    %v3520 = vunpack.c.l.b16 %v3432
    %v3521 = vunpack.c.h.b16 %v3432
    %v3522 = vunpack.c.l.b16 %v3433
    %v3523 = vunpack.c.h.b16 %v3433
    %v3524 = vunpack.c.l.b16 %v3434
    %v3525 = vunpack.c.h.b16 %v3434
    %v3526 = vunpack.c.l.b16 %v3435
    %v3527 = vunpack.c.h.b16 %v3435
    %v3528 = vunpack.c.l.b16 %v3436
    %v3529 = vunpack.c.h.b16 %v3436
    %v3530 = vunpack.c.l.b16 %v3437
    %v3531 = vunpack.c.h.b16 %v3437
    %v3532 = vunpack.c.l.b16 %v3438
    %v3533 = vunpack.c.h.b16 %v3438
    %v3534 = vunpack.c.l.b16 %v3439
    %v3535 = vunpack.c.h.b16 %v3439
    %v3536 = vunpack.c.l.b16 %v3440
    %v3537 = vunpack.c.h.b16 %v3440
    %v3538 = vunpack.c.l.b16 %v3441
    %v3539 = vunpack.c.h.b16 %v3441
    %v3540 = vunpack.c.l.b16 %v3442
    %v3541 = vunpack.c.h.b16 %v3442
    %v3542 = vunpack.c.l.b16 %v3443
    %v3543 = vunpack.c.h.b16 %v3443
    %v3544 = vunpack.c.l.b16 %v3444
    %v3545 = vunpack.c.h.b16 %v3444
    %v3546 = vunpack.c.l.b16 %v3445
    %v3547 = vunpack.c.h.b16 %v3445
    %v3548 = vpack.c.b16 %v3488, %v3484
    %v3549 = vpack.c.b16 %v3489, %v3485
    %v3550 = vpack.c.b16 %v3490, %v3486
    %v3551 = vpack.c.b16 %v3491, %v3487
    %v3552 = vpack.c.b16 %v3496, %v3492
    %v3553 = vpack.c.b16 %v3497, %v3493
    %v3554 = vpack.c.b16 %v3498, %v3494
    %v3555 = vpack.c.b16 %v3499, %v3495
    %v3556 = vpack.c.b16 %v3504, %v3500
    %v3557 = vpack.c.b16 %v3505, %v3501
    %v3558 = vpack.c.b16 %v3506, %v3502
    %v3559 = vpack.c.b16 %v3507, %v3503
    %v3560 = vpack.c.b16 %v3512, %v3508
    %v3561 = vpack.c.b16 %v3513, %v3509
    %v3562 = vpack.c.b16 %v3514, %v3510
    %v3563 = vpack.c.b16 %v3515, %v3511
    %v3564 = vpack.c.b16 %v3520, %v3516
    %v3565 = vpack.c.b16 %v3521, %v3517
    %v3566 = vpack.c.b16 %v3522, %v3518
    %v3567 = vpack.c.b16 %v3523, %v3519
    %v3568 = vpack.c.b16 %v3528, %v3524
    %v3569 = vpack.c.b16 %v3529, %v3525
    %v3570 = vpack.c.b16 %v3530, %v3526
    %v3571 = vpack.c.b16 %v3531, %v3527
    %v3572 = vpack.c.b16 %v3536, %v3532
    %v3573 = vpack.c.b16 %v3537, %v3533
    %v3574 = vpack.c.b16 %v3538, %v3534
    %v3575 = vpack.c.b16 %v3539, %v3535
    %v3576 = vpack.c.b16 %v3544, %v3540
    %v3577 = vpack.c.b16 %v3545, %v3541
    %v3578 = vpack.c.b16 %v3546, %v3542
    %v3579 = vpack.c.b16 %v3547, %v3543
    %3612 = vmatprep.subr.bf16.mxu0 %v3577
    %3613 = vmatpush1.bf16.msra.mxu0 %v3576
    %3614 = vmatprep.subr.bf16.mxu0 %v3573
    %3615 = vmatpush1.bf16.msra.mxu0 %v3572
    %3616 = vmatprep.subr.bf16.mxu0 %v3569
    %3617 = vmatpush1.bf16.msra.mxu0 %v3568
    %3618 = vmatprep.subr.bf16.mxu0 %v3565
    %3619 = vmatpush1.bf16.msra.mxu0 %v3564
    %3620 = vmatprep.subr.bf16.mxu0 %v3561
    %3621 = vmatpush1.bf16.msra.mxu0 %v3560
    %3622 = vmatprep.subr.bf16.mxu0 %v3557
    %3623 = vmatpush1.bf16.msra.mxu0 %v3556
    %3624 = vmatprep.subr.bf16.mxu0 %v3553
    %3625 = vmatpush1.bf16.msra.mxu0 %v3552
    %3626 = vmatprep.subr.bf16.mxu0 %v3549
    %3627 = vmatpush1.bf16.msra.mxu0 %v3548
    %3628 = vmatprep.subr.bf16.mxu0 0
    %3629 = vmatpush2.bf16.msra.mxu0 0
    %3630 = vmatprep.subr.bf16.mxu0 0
    %3631 = vmatpush2.bf16.msra.mxu0 0
    %3632 = vmatprep.subr.bf16.mxu0 0
    %3633 = vmatpush2.bf16.msra.mxu0 0
    %3634 = vmatprep.subr.bf16.mxu0 0
    %3635 = vmatpush2.bf16.msra.mxu0 0
    %3636 = vmatprep.subr.bf16.mxu0 0
    %3637 = vmatpush2.bf16.msra.mxu0 0
    %3638 = vmatprep.subr.bf16.mxu0 0
    %3639 = vmatpush2.bf16.msra.mxu0 0
    %3640 = vmatprep.subr.bf16.mxu0 0
    %3641 = vmatpush2.bf16.msra.mxu0 0
    %3642 = vmatprep.subr.bf16.mxu0 0
    %3643 = vmatpush2.bf16.msra.mxu0 0
    %3644 = vmatprep.mubr.bf16.mxu0 0
    %3645 = vmatmul.mubr.bf16.gmra.mxu0 %v3450
    %v3646 = vpop.f32.mrf.mxu0
    %v3647 = vadd.f32 0.0, %v3646
    %v3648 = vpop.f32.mrf.mxu0
    %v3649 = vadd.f32 0.0, %v3648
    %v3650 = vpop.f32.mrf.mxu0
    %v3651 = vadd.f32 0.0, %v3650
    %v3652 = vpop.f32.mrf.mxu0
    %v3653 = vadd.f32 0.0, %v3652
    %3654 = vdwg.mxu0
    %3655 = vmatprep.subr.bf16.mxu0 %v3579
    %3656 = vmatpush1.bf16.msra.mxu0 %v3578
    %3657 = vmatprep.subr.bf16.mxu0 %v3575
    %3658 = vmatpush1.bf16.msra.mxu0 %v3574
    %3659 = vmatprep.subr.bf16.mxu0 %v3571
    %3660 = vmatpush1.bf16.msra.mxu0 %v3570
    %3661 = vmatprep.subr.bf16.mxu0 %v3567
    %3662 = vmatpush1.bf16.msra.mxu0 %v3566
    %3663 = vmatprep.subr.bf16.mxu0 %v3563
    %3664 = vmatpush1.bf16.msra.mxu0 %v3562
    %3665 = vmatprep.subr.bf16.mxu0 %v3559
    %3666 = vmatpush1.bf16.msra.mxu0 %v3558
    %3667 = vmatprep.subr.bf16.mxu0 %v3555
    %3668 = vmatpush1.bf16.msra.mxu0 %v3554
    %3669 = vmatprep.subr.bf16.mxu0 %v3551
    %3670 = vmatpush1.bf16.msra.mxu0 %v3550
    %3671 = vmatprep.subr.bf16.mxu0 0
    %3672 = vmatpush2.bf16.msra.mxu0 0
    %3673 = vmatprep.subr.bf16.mxu0 0
    %3674 = vmatpush2.bf16.msra.mxu0 0
    %3675 = vmatprep.subr.bf16.mxu0 0
    %3676 = vmatpush2.bf16.msra.mxu0 0
    %3677 = vmatprep.subr.bf16.mxu0 0
    %3678 = vmatpush2.bf16.msra.mxu0 0
    %3679 = vmatprep.subr.bf16.mxu0 0
    %3680 = vmatpush2.bf16.msra.mxu0 0
    %3681 = vmatprep.subr.bf16.mxu0 0
    %3682 = vmatpush2.bf16.msra.mxu0 0
    %3683 = vmatprep.subr.bf16.mxu0 0
    %3684 = vmatpush2.bf16.msra.mxu0 0
    %3685 = vmatprep.subr.bf16.mxu0 0
    %3686 = vmatpush2.bf16.msra.mxu0 0
    %3687 = vmatprep.mubr.bf16.mxu0 0
    %3688 = vmatmul.mubr.bf16.gmra.mxu0 %v3450
    %v3689 = vpop.f32.mrf.mxu0
    %v3690 = vadd.f32 0.0, %v3689
    %v3691 = vpop.f32.mrf.mxu0
    %v3692 = vadd.f32 0.0, %v3691
    %v3693 = vpop.f32.mrf.mxu0
    %v3694 = vadd.f32 0.0, %v3693
    %v3695 = vpop.f32.mrf.mxu0
    %v3696 = vadd.f32 0.0, %v3695
    %3697 = vdwg.mxu0
    %s3698 = scalar_lea.vmem [#allocation6], 128
    %v3699 = vld [vmem:[%s3698] sm:$0xf]
    %v3700 = vld [vmem:[%s3698 + $0x10] sm:$0xf]
    %v3701 = vunpack.c.l.bf16 %v3699
    %v3702 = vunpack.c.l.bf16 %v3700
    %v3703 = vadd.f32 %v3647, %v3701
    %v3704 = vadd.f32 %v3651, %v3702
    %v3705 = vxor.u32 %v3703, 2147483648
    %v3706 = vxor.u32 %v3704, 2147483648
    %v3707 = vmul.f32 %v3705, 1.442695
    %v3708 = vpow.pop %v3707
    %v3709 = vmul.f32 %v3706, 1.442695
    %v3710 = vpow.pop %v3709
    %v3711 = vadd.f32 %v3708, 1.0
    %v3712 = vadd.f32 %v3710, 1.0
    %v3713 = vrcp.pop %v3711
    %v3714 = vmul.f32 1.0, %v3713
    %v3715 = vrcp.pop %v3712
    %v3716 = vmul.f32 1.0, %v3715
    %v3717 = vld [vmem:[%s3698 + $0x4] sm:$0xf]
    %v3718 = vld [vmem:[%s3698 + $0x14] sm:$0xf]
    %v3719 = vunpack.c.l.bf16 %v3717
    %v3720 = vunpack.c.l.bf16 %v3718
    %v3721 = vadd.f32 %v3649, %v3719
    %v3722 = vadd.f32 %v3653, %v3720
    %v3723 = vxor.u32 %v3721, 2147483648
    %v3724 = vxor.u32 %v3722, 2147483648
    %v3725 = vmul.f32 %v3723, 1.442695
    %v3726 = vpow.pop %v3725
    %v3727 = vmul.f32 %v3724, 1.442695
    %v3728 = vpow.pop %v3727
    %v3729 = vadd.f32 %v3726, 1.0
    %v3730 = vadd.f32 %v3728, 1.0
    %v3731 = vrcp.pop %v3729
    %v3732 = vmul.f32 1.0, %v3731
    %v3733 = vrcp.pop %v3730
    %v3734 = vmul.f32 1.0, %v3733
    %v3735 = vld [vmem:[%s3698 + $0x8] sm:$0xf]
    %v3736 = vld [vmem:[%s3698 + $0x18] sm:$0xf]
    %v3737 = vunpack.c.l.bf16 %v3735
    %v3738 = vunpack.c.l.bf16 %v3736
    %v3739 = vadd.f32 %v3690, %v3737
    %v3740 = vadd.f32 %v3694, %v3738
    %v3741 = vtanh.pop %v3739
    %v3742 = vtanh.pop %v3740
    %v3743 = vld [vmem:[%s3698 + $0xc] sm:$0xf]
    %v3744 = vld [vmem:[%s3698 + $0x1c] sm:$0xf]
    %v3745 = vunpack.c.l.bf16 %v3743
    %v3746 = vunpack.c.l.bf16 %v3744
    %v3747 = vadd.f32 %v3692, %v3745
    %v3748 = vadd.f32 %v3696, %v3746
    %v3749 = vxor.u32 %v3747, 2147483648
    %v3750 = vxor.u32 %v3748, 2147483648
    %v3751 = vmul.f32 %v3749, 1.442695
    %v3752 = vpow.pop %v3751
    %v3753 = vmul.f32 %v3750, 1.442695
    %v3754 = vpow.pop %v3753
    %v3755 = vadd.f32 %v3752, 1.0
    %v3756 = vadd.f32 %v3754, 1.0
    %v3757 = vrcp.pop %v3755
    %v3758 = vmul.f32 1.0, %v3757
    %v3759 = vrcp.pop %v3756
    %v3760 = vmul.f32 1.0, %v3759
    %v3761 = vld [vmem:[#allocation3] sm:$0xff]
    %v3762 = vld [vmem:[#allocation3 + $0x8] sm:$0xff]
    %v3763 = vmul.f32 %v3732, %v3761
    %v3764 = vmul.f32 %v3734, %v3762
    %v3765 = vmul.f32 %v3714, %v3741
    %v3766 = vmul.f32 %v3716, %v3742
    %v3767 = vadd.f32 %v3763, %v3765
    %v3768 = vadd.f32 %v3764, %v3766
    %v3769 = vtanh.pop %v3767
    %v3770 = vtanh.pop %v3768
    %v3771 = vmul.f32 %v3758, %v3769
    %v3772 = vmul.f32 %v3760, %v3770
    %v3773 = vpack.c.bf16 %v3772, %v3771
    %s3774 = scalar_select %p3411, 1, 0
    %v3775 = vstv %s3774
    %vm3776 = vcmp.eq.s32.totalorder %v3775, 1
    %v3777 = vsel %vm3776, %v3767, %v3761
    %v3778 = vsel %vm3776, %v3768, %v3762
    %3779 = vst [vmem:[#allocation3] sm:$0xff] %v3777
    %3780 = vst [vmem:[#allocation3 + $0x8] sm:$0xff] %v3778
    %v3781 = vld [vmem:[#allocation2] sm:$0xf]
    %v3782 = vld [vmem:[#allocation2 + $0x4] sm:$0xf]
    %v3785 = vunpack.c.l.b16 %v3781
    %v3786 = vunpack.c.l.b16 %v3782
    %v3787 = vpack.c.b16 %v3786, %v3785
    %v3789 = vsel %vm3776, %v3773, %v3787
    %v3791 = vunpack.c.l.b16 %v3789
    %v3792 = vunpack.c.h.b16 %v3789
    %v3793 = vpack.c.b16 %v3791, %v3791
    %v3794 = vpack.c.b16 %v3792, %v3792
    %3797 = vst [vmem:[#allocation2] sm:$0xf] %v3793
    %3798 = vst [vmem:[#allocation2 + $0x4] sm:$0xf] %v3794
    %v3800 = vunpack.c.l.b16 %v3773
    %v3801 = vunpack.c.h.b16 %v3773
    %v3802 = vpack.c.b16 %v3800, %v3800
    %v3803 = vpack.c.b16 %v3801, %v3801
    %s3806 = scalar_lea.vmem %s4, 32
    %3807 = vst [vmem:[%s3806] sm:$0xf] %v3802
    %3808 = vst [vmem:[%s3806 + $0x4] sm:$0xf] %v3803
    %s3809 = sadd.s32 %s220, 3
    %p3810 = scmp.lt.s32.totalorder %s3809, 8
    %v3811 = vld [vmem:[#allocation4] sm:$0xf]
    %v3812 = vld [vmem:[#allocation4 + $0x4] sm:$0xf]
    %v3813 = vld [vmem:[%s3] sm:$0xff]
    %v3814 = vld [vmem:[%s3 + $0x8] sm:$0xff]
    %v3815 = vld [vmem:[%s3 + $0x10] sm:$0xff]
    %v3816 = vld [vmem:[%s3 + $0x18] sm:$0xff]
    %v3817 = vld [vmem:[%s3 + $0x20] sm:$0xff]
    %v3818 = vld [vmem:[%s3 + $0x28] sm:$0xff]
    %v3819 = vld [vmem:[%s3 + $0x30] sm:$0xff]
    %v3820 = vld [vmem:[%s3 + $0x38] sm:$0xff]
    %v3821 = vld [vmem:[%s3 + $0x40] sm:$0xff]
    %v3822 = vld [vmem:[%s3 + $0x48] sm:$0xff]
    %v3823 = vld [vmem:[%s3 + $0x50] sm:$0xff]
    %v3824 = vld [vmem:[%s3 + $0x58] sm:$0xff]
    %v3825 = vld [vmem:[%s3 + $0x60] sm:$0xff]
    %v3826 = vld [vmem:[%s3 + $0x68] sm:$0xff]
    %v3827 = vld [vmem:[%s3 + $0x70] sm:$0xff]
    %v3828 = vld [vmem:[%s3 + $0x78] sm:$0xff]
    %v3829 = vld [vmem:[%s3 + $0x80] sm:$0xff]
    %v3830 = vld [vmem:[%s3 + $0x88] sm:$0xff]
    %v3831 = vld [vmem:[%s3 + $0x90] sm:$0xff]
    %v3832 = vld [vmem:[%s3 + $0x98] sm:$0xff]
    %v3833 = vld [vmem:[%s3 + $0xa0] sm:$0xff]
    %v3834 = vld [vmem:[%s3 + $0xa8] sm:$0xff]
    %v3835 = vld [vmem:[%s3 + $0xb0] sm:$0xff]
    %v3836 = vld [vmem:[%s3 + $0xb8] sm:$0xff]
    %v3837 = vld [vmem:[%s3 + $0xc0] sm:$0xff]
    %v3838 = vld [vmem:[%s3 + $0xc8] sm:$0xff]
    %v3839 = vld [vmem:[%s3 + $0xd0] sm:$0xff]
    %v3840 = vld [vmem:[%s3 + $0xd8] sm:$0xff]
    %v3841 = vld [vmem:[%s3 + $0xe0] sm:$0xff]
    %v3842 = vld [vmem:[%s3 + $0xe8] sm:$0xff]
    %v3843 = vld [vmem:[%s3 + $0xf0] sm:$0xff]
    %v3844 = vld [vmem:[%s3 + $0xf8] sm:$0xff]
    %v3847 = vunpack.c.l.b16 %v3811
    %v3848 = vunpack.c.l.b16 %v3812
    %v3849 = vpack.c.b16 %v3848, %v3847
    %v3883 = vunpack.c.l.b16 %v3813
    %v3884 = vunpack.c.h.b16 %v3813
    %v3885 = vunpack.c.l.b16 %v3814
    %v3886 = vunpack.c.h.b16 %v3814
    %v3887 = vunpack.c.l.b16 %v3815
    %v3888 = vunpack.c.h.b16 %v3815
    %v3889 = vunpack.c.l.b16 %v3816
    %v3890 = vunpack.c.h.b16 %v3816
    %v3891 = vunpack.c.l.b16 %v3817
    %v3892 = vunpack.c.h.b16 %v3817
    %v3893 = vunpack.c.l.b16 %v3818
    %v3894 = vunpack.c.h.b16 %v3818
    %v3895 = vunpack.c.l.b16 %v3819
    %v3896 = vunpack.c.h.b16 %v3819
    %v3897 = vunpack.c.l.b16 %v3820
    %v3898 = vunpack.c.h.b16 %v3820
    %v3899 = vunpack.c.l.b16 %v3821
    %v3900 = vunpack.c.h.b16 %v3821
    %v3901 = vunpack.c.l.b16 %v3822
    %v3902 = vunpack.c.h.b16 %v3822
    %v3903 = vunpack.c.l.b16 %v3823
    %v3904 = vunpack.c.h.b16 %v3823
    %v3905 = vunpack.c.l.b16 %v3824
    %v3906 = vunpack.c.h.b16 %v3824
    %v3907 = vunpack.c.l.b16 %v3825
    %v3908 = vunpack.c.h.b16 %v3825
    %v3909 = vunpack.c.l.b16 %v3826
    %v3910 = vunpack.c.h.b16 %v3826
    %v3911 = vunpack.c.l.b16 %v3827
    %v3912 = vunpack.c.h.b16 %v3827
    %v3913 = vunpack.c.l.b16 %v3828
    %v3914 = vunpack.c.h.b16 %v3828
    %v3915 = vunpack.c.l.b16 %v3829
    %v3916 = vunpack.c.h.b16 %v3829
    %v3917 = vunpack.c.l.b16 %v3830
    %v3918 = vunpack.c.h.b16 %v3830
    %v3919 = vunpack.c.l.b16 %v3831
    %v3920 = vunpack.c.h.b16 %v3831
    %v3921 = vunpack.c.l.b16 %v3832
    %v3922 = vunpack.c.h.b16 %v3832
    %v3923 = vunpack.c.l.b16 %v3833
    %v3924 = vunpack.c.h.b16 %v3833
    %v3925 = vunpack.c.l.b16 %v3834
    %v3926 = vunpack.c.h.b16 %v3834
    %v3927 = vunpack.c.l.b16 %v3835
    %v3928 = vunpack.c.h.b16 %v3835
    %v3929 = vunpack.c.l.b16 %v3836
    %v3930 = vunpack.c.h.b16 %v3836
    %v3931 = vunpack.c.l.b16 %v3837
    %v3932 = vunpack.c.h.b16 %v3837
    %v3933 = vunpack.c.l.b16 %v3838
    %v3934 = vunpack.c.h.b16 %v3838
    %v3935 = vunpack.c.l.b16 %v3839
    %v3936 = vunpack.c.h.b16 %v3839
    %v3937 = vunpack.c.l.b16 %v3840
    %v3938 = vunpack.c.h.b16 %v3840
    %v3939 = vunpack.c.l.b16 %v3841
    %v3940 = vunpack.c.h.b16 %v3841
    %v3941 = vunpack.c.l.b16 %v3842
    %v3942 = vunpack.c.h.b16 %v3842
    %v3943 = vunpack.c.l.b16 %v3843
    %v3944 = vunpack.c.h.b16 %v3843
    %v3945 = vunpack.c.l.b16 %v3844
    %v3946 = vunpack.c.h.b16 %v3844
    %v3947 = vpack.c.b16 %v3887, %v3883
    %v3948 = vpack.c.b16 %v3888, %v3884
    %v3949 = vpack.c.b16 %v3889, %v3885
    %v3950 = vpack.c.b16 %v3890, %v3886
    %v3951 = vpack.c.b16 %v3895, %v3891
    %v3952 = vpack.c.b16 %v3896, %v3892
    %v3953 = vpack.c.b16 %v3897, %v3893
    %v3954 = vpack.c.b16 %v3898, %v3894
    %v3955 = vpack.c.b16 %v3903, %v3899
    %v3956 = vpack.c.b16 %v3904, %v3900
    %v3957 = vpack.c.b16 %v3905, %v3901
    %v3958 = vpack.c.b16 %v3906, %v3902
    %v3959 = vpack.c.b16 %v3911, %v3907
    %v3960 = vpack.c.b16 %v3912, %v3908
    %v3961 = vpack.c.b16 %v3913, %v3909
    %v3962 = vpack.c.b16 %v3914, %v3910
    %v3963 = vpack.c.b16 %v3919, %v3915
    %v3964 = vpack.c.b16 %v3920, %v3916
    %v3965 = vpack.c.b16 %v3921, %v3917
    %v3966 = vpack.c.b16 %v3922, %v3918
    %v3967 = vpack.c.b16 %v3927, %v3923
    %v3968 = vpack.c.b16 %v3928, %v3924
    %v3969 = vpack.c.b16 %v3929, %v3925
    %v3970 = vpack.c.b16 %v3930, %v3926
    %v3971 = vpack.c.b16 %v3935, %v3931
    %v3972 = vpack.c.b16 %v3936, %v3932
    %v3973 = vpack.c.b16 %v3937, %v3933
    %v3974 = vpack.c.b16 %v3938, %v3934
    %v3975 = vpack.c.b16 %v3943, %v3939
    %v3976 = vpack.c.b16 %v3944, %v3940
    %v3977 = vpack.c.b16 %v3945, %v3941
    %v3978 = vpack.c.b16 %v3946, %v3942
    %4011 = vmatprep.subr.bf16.mxu0 %v3976
    %4012 = vmatpush1.bf16.msra.mxu0 %v3975
    %4013 = vmatprep.subr.bf16.mxu0 %v3972
    %4014 = vmatpush1.bf16.msra.mxu0 %v3971
    %4015 = vmatprep.subr.bf16.mxu0 %v3968
    %4016 = vmatpush1.bf16.msra.mxu0 %v3967
    %4017 = vmatprep.subr.bf16.mxu0 %v3964
    %4018 = vmatpush1.bf16.msra.mxu0 %v3963
    %4019 = vmatprep.subr.bf16.mxu0 %v3960
    %4020 = vmatpush1.bf16.msra.mxu0 %v3959
    %4021 = vmatprep.subr.bf16.mxu0 %v3956
    %4022 = vmatpush1.bf16.msra.mxu0 %v3955
    %4023 = vmatprep.subr.bf16.mxu0 %v3952
    %4024 = vmatpush1.bf16.msra.mxu0 %v3951
    %4025 = vmatprep.subr.bf16.mxu0 %v3948
    %4026 = vmatpush1.bf16.msra.mxu0 %v3947
    %4027 = vmatprep.subr.bf16.mxu0 0
    %4028 = vmatpush2.bf16.msra.mxu0 0
    %4029 = vmatprep.subr.bf16.mxu0 0
    %4030 = vmatpush2.bf16.msra.mxu0 0
    %4031 = vmatprep.subr.bf16.mxu0 0
    %4032 = vmatpush2.bf16.msra.mxu0 0
    %4033 = vmatprep.subr.bf16.mxu0 0
    %4034 = vmatpush2.bf16.msra.mxu0 0
    %4035 = vmatprep.subr.bf16.mxu0 0
    %4036 = vmatpush2.bf16.msra.mxu0 0
    %4037 = vmatprep.subr.bf16.mxu0 0
    %4038 = vmatpush2.bf16.msra.mxu0 0
    %4039 = vmatprep.subr.bf16.mxu0 0
    %4040 = vmatpush2.bf16.msra.mxu0 0
    %4041 = vmatprep.subr.bf16.mxu0 0
    %4042 = vmatpush2.bf16.msra.mxu0 0
    %4043 = vmatprep.mubr.bf16.mxu0 0
    %4044 = vmatmul.mubr.bf16.gmra.mxu0 %v3849
    %v4045 = vpop.f32.mrf.mxu0
    %v4046 = vadd.f32 0.0, %v4045
    %v4047 = vpop.f32.mrf.mxu0
    %v4048 = vadd.f32 0.0, %v4047
    %v4049 = vpop.f32.mrf.mxu0
    %v4050 = vadd.f32 0.0, %v4049
    %v4051 = vpop.f32.mrf.mxu0
    %v4052 = vadd.f32 0.0, %v4051
    %4053 = vdwg.mxu0
    %4054 = vmatprep.subr.bf16.mxu0 %v3978
    %4055 = vmatpush1.bf16.msra.mxu0 %v3977
    %4056 = vmatprep.subr.bf16.mxu0 %v3974
    %4057 = vmatpush1.bf16.msra.mxu0 %v3973
    %4058 = vmatprep.subr.bf16.mxu0 %v3970
    %4059 = vmatpush1.bf16.msra.mxu0 %v3969
    %4060 = vmatprep.subr.bf16.mxu0 %v3966
    %4061 = vmatpush1.bf16.msra.mxu0 %v3965
    %4062 = vmatprep.subr.bf16.mxu0 %v3962
    %4063 = vmatpush1.bf16.msra.mxu0 %v3961
    %4064 = vmatprep.subr.bf16.mxu0 %v3958
    %4065 = vmatpush1.bf16.msra.mxu0 %v3957
    %4066 = vmatprep.subr.bf16.mxu0 %v3954
    %4067 = vmatpush1.bf16.msra.mxu0 %v3953
    %4068 = vmatprep.subr.bf16.mxu0 %v3950
    %4069 = vmatpush1.bf16.msra.mxu0 %v3949
    %4070 = vmatprep.subr.bf16.mxu0 0
    %4071 = vmatpush2.bf16.msra.mxu0 0
    %4072 = vmatprep.subr.bf16.mxu0 0
    %4073 = vmatpush2.bf16.msra.mxu0 0
    %4074 = vmatprep.subr.bf16.mxu0 0
    %4075 = vmatpush2.bf16.msra.mxu0 0
    %4076 = vmatprep.subr.bf16.mxu0 0
    %4077 = vmatpush2.bf16.msra.mxu0 0
    %4078 = vmatprep.subr.bf16.mxu0 0
    %4079 = vmatpush2.bf16.msra.mxu0 0
    %4080 = vmatprep.subr.bf16.mxu0 0
    %4081 = vmatpush2.bf16.msra.mxu0 0
    %4082 = vmatprep.subr.bf16.mxu0 0
    %4083 = vmatpush2.bf16.msra.mxu0 0
    %4084 = vmatprep.subr.bf16.mxu0 0
    %4085 = vmatpush2.bf16.msra.mxu0 0
    %4086 = vmatprep.mubr.bf16.mxu0 0
    %4087 = vmatmul.mubr.bf16.gmra.mxu0 %v3849
    %v4088 = vpop.f32.mrf.mxu0
    %v4089 = vadd.f32 0.0, %v4088
    %v4090 = vpop.f32.mrf.mxu0
    %v4091 = vadd.f32 0.0, %v4090
    %v4092 = vpop.f32.mrf.mxu0
    %v4093 = vadd.f32 0.0, %v4092
    %v4094 = vpop.f32.mrf.mxu0
    %v4095 = vadd.f32 0.0, %v4094
    %4096 = vdwg.mxu0
    %s4097 = scalar_lea.vmem [#allocation7], 96
    %v4098 = vld [vmem:[%s4097] sm:$0xf]
    %v4099 = vld [vmem:[%s4097 + $0x10] sm:$0xf]
    %v4100 = vunpack.c.l.bf16 %v4098
    %v4101 = vunpack.c.l.bf16 %v4099
    %v4102 = vadd.f32 %v4046, %v4100
    %v4103 = vadd.f32 %v4050, %v4101
    %v4104 = vxor.u32 %v4102, 2147483648
    %v4105 = vxor.u32 %v4103, 2147483648
    %v4106 = vmul.f32 %v4104, 1.442695
    %v4107 = vpow.pop %v4106
    %v4108 = vmul.f32 %v4105, 1.442695
    %v4109 = vpow.pop %v4108
    %v4110 = vadd.f32 %v4107, 1.0
    %v4111 = vadd.f32 %v4109, 1.0
    %v4112 = vrcp.pop %v4110
    %v4113 = vmul.f32 1.0, %v4112
    %v4114 = vrcp.pop %v4111
    %v4115 = vmul.f32 1.0, %v4114
    %v4116 = vld [vmem:[%s4097 + $0x4] sm:$0xf]
    %v4117 = vld [vmem:[%s4097 + $0x14] sm:$0xf]
    %v4118 = vunpack.c.l.bf16 %v4116
    %v4119 = vunpack.c.l.bf16 %v4117
    %v4120 = vadd.f32 %v4048, %v4118
    %v4121 = vadd.f32 %v4052, %v4119
    %v4122 = vxor.u32 %v4120, 2147483648
    %v4123 = vxor.u32 %v4121, 2147483648
    %v4124 = vmul.f32 %v4122, 1.442695
    %v4125 = vpow.pop %v4124
    %v4126 = vmul.f32 %v4123, 1.442695
    %v4127 = vpow.pop %v4126
    %v4128 = vadd.f32 %v4125, 1.0
    %v4129 = vadd.f32 %v4127, 1.0
    %v4130 = vrcp.pop %v4128
    %v4131 = vmul.f32 1.0, %v4130
    %v4132 = vrcp.pop %v4129
    %v4133 = vmul.f32 1.0, %v4132
    %v4134 = vld [vmem:[%s4097 + $0x8] sm:$0xf]
    %v4135 = vld [vmem:[%s4097 + $0x18] sm:$0xf]
    %v4136 = vunpack.c.l.bf16 %v4134
    %v4137 = vunpack.c.l.bf16 %v4135
    %v4138 = vadd.f32 %v4089, %v4136
    %v4139 = vadd.f32 %v4093, %v4137
    %v4140 = vtanh.pop %v4138
    %v4141 = vtanh.pop %v4139
    %v4142 = vld [vmem:[%s4097 + $0xc] sm:$0xf]
    %v4143 = vld [vmem:[%s4097 + $0x1c] sm:$0xf]
    %v4144 = vunpack.c.l.bf16 %v4142
    %v4145 = vunpack.c.l.bf16 %v4143
    %v4146 = vadd.f32 %v4091, %v4144
    %v4147 = vadd.f32 %v4095, %v4145
    %v4148 = vxor.u32 %v4146, 2147483648
    %v4149 = vxor.u32 %v4147, 2147483648
    %v4150 = vmul.f32 %v4148, 1.442695
    %v4151 = vpow.pop %v4150
    %v4152 = vmul.f32 %v4149, 1.442695
    %v4153 = vpow.pop %v4152
    %v4154 = vadd.f32 %v4151, 1.0
    %v4155 = vadd.f32 %v4153, 1.0
    %v4156 = vrcp.pop %v4154
    %v4157 = vmul.f32 1.0, %v4156
    %v4158 = vrcp.pop %v4155
    %v4159 = vmul.f32 1.0, %v4158
    %v4160 = vld [vmem:[#allocation5] sm:$0xff]
    %v4161 = vld [vmem:[#allocation5 + $0x8] sm:$0xff]
    %v4162 = vmul.f32 %v4131, %v4160
    %v4163 = vmul.f32 %v4133, %v4161
    %v4164 = vmul.f32 %v4113, %v4140
    %v4165 = vmul.f32 %v4115, %v4141
    %v4166 = vadd.f32 %v4162, %v4164
    %v4167 = vadd.f32 %v4163, %v4165
    %v4168 = vtanh.pop %v4166
    %v4169 = vtanh.pop %v4167
    %v4170 = vmul.f32 %v4157, %v4168
    %v4171 = vmul.f32 %v4159, %v4169
    %v4172 = vpack.c.bf16 %v4171, %v4170
    %s4173 = scalar_select %p3810, 1, 0
    %v4174 = vstv %s4173
    %vm4175 = vcmp.eq.s32.totalorder %v4174, 1
    %v4176 = vsel %vm4175, %v4166, %v4160
    %v4177 = vsel %vm4175, %v4167, %v4161
    %4178 = vst [vmem:[#allocation5] sm:$0xff] %v4176
    %4179 = vst [vmem:[#allocation5 + $0x8] sm:$0xff] %v4177
    %v4180 = vld [vmem:[#allocation4] sm:$0xf]
    %v4181 = vld [vmem:[#allocation4 + $0x4] sm:$0xf]
    %v4184 = vunpack.c.l.b16 %v4180
    %v4185 = vunpack.c.l.b16 %v4181
    %v4186 = vpack.c.b16 %v4185, %v4184
    %v4188 = vsel %vm4175, %v4172, %v4186
    %v4190 = vunpack.c.l.b16 %v4188
    %v4191 = vunpack.c.h.b16 %v4188
    %v4192 = vpack.c.b16 %v4190, %v4190
    %v4193 = vpack.c.b16 %v4191, %v4191
    %4196 = vst [vmem:[#allocation4] sm:$0xf] %v4192
    %4197 = vst [vmem:[#allocation4 + $0x4] sm:$0xf] %v4193
    %v4199 = vunpack.c.l.b16 %v4172
    %v4200 = vunpack.c.h.b16 %v4172
    %v4201 = vpack.c.b16 %v4199, %v4199
    %v4202 = vpack.c.b16 %v4200, %v4200
    %s4205 = scalar_lea.vmem %s202, 24
    %4206 = vst [vmem:[%s4205] sm:$0xf] %v4201
    %4207 = vst [vmem:[%s4205 + $0x4] sm:$0xf] %v4202
    %s4208 = sadd.s32 %s218, 5
    %p4209 = scmp.lt.s32.totalorder %s4208, 8
    %v4210 = vld [vmem:[#allocation2] sm:$0xf]
    %v4211 = vld [vmem:[#allocation2 + $0x4] sm:$0xf]
    %v4212 = vld [vmem:[%s2] sm:$0xff]
    %v4213 = vld [vmem:[%s2 + $0x8] sm:$0xff]
    %v4214 = vld [vmem:[%s2 + $0x10] sm:$0xff]
    %v4215 = vld [vmem:[%s2 + $0x18] sm:$0xff]
    %v4216 = vld [vmem:[%s2 + $0x20] sm:$0xff]
    %v4217 = vld [vmem:[%s2 + $0x28] sm:$0xff]
    %v4218 = vld [vmem:[%s2 + $0x30] sm:$0xff]
    %v4219 = vld [vmem:[%s2 + $0x38] sm:$0xff]
    %v4220 = vld [vmem:[%s2 + $0x40] sm:$0xff]
    %v4221 = vld [vmem:[%s2 + $0x48] sm:$0xff]
    %v4222 = vld [vmem:[%s2 + $0x50] sm:$0xff]
    %v4223 = vld [vmem:[%s2 + $0x58] sm:$0xff]
    %v4224 = vld [vmem:[%s2 + $0x60] sm:$0xff]
    %v4225 = vld [vmem:[%s2 + $0x68] sm:$0xff]
    %v4226 = vld [vmem:[%s2 + $0x70] sm:$0xff]
    %v4227 = vld [vmem:[%s2 + $0x78] sm:$0xff]
    %v4228 = vld [vmem:[%s2 + $0x80] sm:$0xff]
    %v4229 = vld [vmem:[%s2 + $0x88] sm:$0xff]
    %v4230 = vld [vmem:[%s2 + $0x90] sm:$0xff]
    %v4231 = vld [vmem:[%s2 + $0x98] sm:$0xff]
    %v4232 = vld [vmem:[%s2 + $0xa0] sm:$0xff]
    %v4233 = vld [vmem:[%s2 + $0xa8] sm:$0xff]
    %v4234 = vld [vmem:[%s2 + $0xb0] sm:$0xff]
    %v4235 = vld [vmem:[%s2 + $0xb8] sm:$0xff]
    %v4236 = vld [vmem:[%s2 + $0xc0] sm:$0xff]
    %v4237 = vld [vmem:[%s2 + $0xc8] sm:$0xff]
    %v4238 = vld [vmem:[%s2 + $0xd0] sm:$0xff]
    %v4239 = vld [vmem:[%s2 + $0xd8] sm:$0xff]
    %v4240 = vld [vmem:[%s2 + $0xe0] sm:$0xff]
    %v4241 = vld [vmem:[%s2 + $0xe8] sm:$0xff]
    %v4242 = vld [vmem:[%s2 + $0xf0] sm:$0xff]
    %v4243 = vld [vmem:[%s2 + $0xf8] sm:$0xff]
    %v4246 = vunpack.c.l.b16 %v4210
    %v4247 = vunpack.c.l.b16 %v4211
    %v4248 = vpack.c.b16 %v4247, %v4246
    %v4282 = vunpack.c.l.b16 %v4212
    %v4283 = vunpack.c.h.b16 %v4212
    %v4284 = vunpack.c.l.b16 %v4213
    %v4285 = vunpack.c.h.b16 %v4213
    %v4286 = vunpack.c.l.b16 %v4214
    %v4287 = vunpack.c.h.b16 %v4214
    %v4288 = vunpack.c.l.b16 %v4215
    %v4289 = vunpack.c.h.b16 %v4215
    %v4290 = vunpack.c.l.b16 %v4216
    %v4291 = vunpack.c.h.b16 %v4216
    %v4292 = vunpack.c.l.b16 %v4217
    %v4293 = vunpack.c.h.b16 %v4217
    %v4294 = vunpack.c.l.b16 %v4218
    %v4295 = vunpack.c.h.b16 %v4218
    %v4296 = vunpack.c.l.b16 %v4219
    %v4297 = vunpack.c.h.b16 %v4219
    %v4298 = vunpack.c.l.b16 %v4220
    %v4299 = vunpack.c.h.b16 %v4220
    %v4300 = vunpack.c.l.b16 %v4221
    %v4301 = vunpack.c.h.b16 %v4221
    %v4302 = vunpack.c.l.b16 %v4222
    %v4303 = vunpack.c.h.b16 %v4222
    %v4304 = vunpack.c.l.b16 %v4223
    %v4305 = vunpack.c.h.b16 %v4223
    %v4306 = vunpack.c.l.b16 %v4224
    %v4307 = vunpack.c.h.b16 %v4224
    %v4308 = vunpack.c.l.b16 %v4225
    %v4309 = vunpack.c.h.b16 %v4225
    %v4310 = vunpack.c.l.b16 %v4226
    %v4311 = vunpack.c.h.b16 %v4226
    %v4312 = vunpack.c.l.b16 %v4227
    %v4313 = vunpack.c.h.b16 %v4227
    %v4314 = vunpack.c.l.b16 %v4228
    %v4315 = vunpack.c.h.b16 %v4228
    %v4316 = vunpack.c.l.b16 %v4229
    %v4317 = vunpack.c.h.b16 %v4229
    %v4318 = vunpack.c.l.b16 %v4230
    %v4319 = vunpack.c.h.b16 %v4230
    %v4320 = vunpack.c.l.b16 %v4231
    %v4321 = vunpack.c.h.b16 %v4231
    %v4322 = vunpack.c.l.b16 %v4232
    %v4323 = vunpack.c.h.b16 %v4232
    %v4324 = vunpack.c.l.b16 %v4233
    %v4325 = vunpack.c.h.b16 %v4233
    %v4326 = vunpack.c.l.b16 %v4234
    %v4327 = vunpack.c.h.b16 %v4234
    %v4328 = vunpack.c.l.b16 %v4235
    %v4329 = vunpack.c.h.b16 %v4235
    %v4330 = vunpack.c.l.b16 %v4236
    %v4331 = vunpack.c.h.b16 %v4236
    %v4332 = vunpack.c.l.b16 %v4237
    %v4333 = vunpack.c.h.b16 %v4237
    %v4334 = vunpack.c.l.b16 %v4238
    %v4335 = vunpack.c.h.b16 %v4238
    %v4336 = vunpack.c.l.b16 %v4239
    %v4337 = vunpack.c.h.b16 %v4239
    %v4338 = vunpack.c.l.b16 %v4240
    %v4339 = vunpack.c.h.b16 %v4240
    %v4340 = vunpack.c.l.b16 %v4241
    %v4341 = vunpack.c.h.b16 %v4241
    %v4342 = vunpack.c.l.b16 %v4242
    %v4343 = vunpack.c.h.b16 %v4242
    %v4344 = vunpack.c.l.b16 %v4243
    %v4345 = vunpack.c.h.b16 %v4243
    %v4346 = vpack.c.b16 %v4286, %v4282
    %v4347 = vpack.c.b16 %v4287, %v4283
    %v4348 = vpack.c.b16 %v4288, %v4284
    %v4349 = vpack.c.b16 %v4289, %v4285
    %v4350 = vpack.c.b16 %v4294, %v4290
    %v4351 = vpack.c.b16 %v4295, %v4291
    %v4352 = vpack.c.b16 %v4296, %v4292
    %v4353 = vpack.c.b16 %v4297, %v4293
    %v4354 = vpack.c.b16 %v4302, %v4298
    %v4355 = vpack.c.b16 %v4303, %v4299
    %v4356 = vpack.c.b16 %v4304, %v4300
    %v4357 = vpack.c.b16 %v4305, %v4301
    %v4358 = vpack.c.b16 %v4310, %v4306
    %v4359 = vpack.c.b16 %v4311, %v4307
    %v4360 = vpack.c.b16 %v4312, %v4308
    %v4361 = vpack.c.b16 %v4313, %v4309
    %v4362 = vpack.c.b16 %v4318, %v4314
    %v4363 = vpack.c.b16 %v4319, %v4315
    %v4364 = vpack.c.b16 %v4320, %v4316
    %v4365 = vpack.c.b16 %v4321, %v4317
    %v4366 = vpack.c.b16 %v4326, %v4322
    %v4367 = vpack.c.b16 %v4327, %v4323
    %v4368 = vpack.c.b16 %v4328, %v4324
    %v4369 = vpack.c.b16 %v4329, %v4325
    %v4370 = vpack.c.b16 %v4334, %v4330
    %v4371 = vpack.c.b16 %v4335, %v4331
    %v4372 = vpack.c.b16 %v4336, %v4332
    %v4373 = vpack.c.b16 %v4337, %v4333
    %v4374 = vpack.c.b16 %v4342, %v4338
    %v4375 = vpack.c.b16 %v4343, %v4339
    %v4376 = vpack.c.b16 %v4344, %v4340
    %v4377 = vpack.c.b16 %v4345, %v4341
    %4410 = vmatprep.subr.bf16.mxu0 %v4375
    %4411 = vmatpush1.bf16.msra.mxu0 %v4374
    %4412 = vmatprep.subr.bf16.mxu0 %v4371
    %4413 = vmatpush1.bf16.msra.mxu0 %v4370
    %4414 = vmatprep.subr.bf16.mxu0 %v4367
    %4415 = vmatpush1.bf16.msra.mxu0 %v4366
    %4416 = vmatprep.subr.bf16.mxu0 %v4363
    %4417 = vmatpush1.bf16.msra.mxu0 %v4362
    %4418 = vmatprep.subr.bf16.mxu0 %v4359
    %4419 = vmatpush1.bf16.msra.mxu0 %v4358
    %4420 = vmatprep.subr.bf16.mxu0 %v4355
    %4421 = vmatpush1.bf16.msra.mxu0 %v4354
    %4422 = vmatprep.subr.bf16.mxu0 %v4351
    %4423 = vmatpush1.bf16.msra.mxu0 %v4350
    %4424 = vmatprep.subr.bf16.mxu0 %v4347
    %4425 = vmatpush1.bf16.msra.mxu0 %v4346
    %4426 = vmatprep.subr.bf16.mxu0 0
    %4427 = vmatpush2.bf16.msra.mxu0 0
    %4428 = vmatprep.subr.bf16.mxu0 0
    %4429 = vmatpush2.bf16.msra.mxu0 0
    %4430 = vmatprep.subr.bf16.mxu0 0
    %4431 = vmatpush2.bf16.msra.mxu0 0
    %4432 = vmatprep.subr.bf16.mxu0 0
    %4433 = vmatpush2.bf16.msra.mxu0 0
    %4434 = vmatprep.subr.bf16.mxu0 0
    %4435 = vmatpush2.bf16.msra.mxu0 0
    %4436 = vmatprep.subr.bf16.mxu0 0
    %4437 = vmatpush2.bf16.msra.mxu0 0
    %4438 = vmatprep.subr.bf16.mxu0 0
    %4439 = vmatpush2.bf16.msra.mxu0 0
    %4440 = vmatprep.subr.bf16.mxu0 0
    %4441 = vmatpush2.bf16.msra.mxu0 0
    %4442 = vmatprep.mubr.bf16.mxu0 0
    %4443 = vmatmul.mubr.bf16.gmra.mxu0 %v4248
    %v4444 = vpop.f32.mrf.mxu0
    %v4445 = vadd.f32 0.0, %v4444
    %v4446 = vpop.f32.mrf.mxu0
    %v4447 = vadd.f32 0.0, %v4446
    %v4448 = vpop.f32.mrf.mxu0
    %v4449 = vadd.f32 0.0, %v4448
    %v4450 = vpop.f32.mrf.mxu0
    %v4451 = vadd.f32 0.0, %v4450
    %4452 = vdwg.mxu0
    %4453 = vmatprep.subr.bf16.mxu0 %v4377
    %4454 = vmatpush1.bf16.msra.mxu0 %v4376
    %4455 = vmatprep.subr.bf16.mxu0 %v4373
    %4456 = vmatpush1.bf16.msra.mxu0 %v4372
    %4457 = vmatprep.subr.bf16.mxu0 %v4369
    %4458 = vmatpush1.bf16.msra.mxu0 %v4368
    %4459 = vmatprep.subr.bf16.mxu0 %v4365
    %4460 = vmatpush1.bf16.msra.mxu0 %v4364
    %4461 = vmatprep.subr.bf16.mxu0 %v4361
    %4462 = vmatpush1.bf16.msra.mxu0 %v4360
    %4463 = vmatprep.subr.bf16.mxu0 %v4357
    %4464 = vmatpush1.bf16.msra.mxu0 %v4356
    %4465 = vmatprep.subr.bf16.mxu0 %v4353
    %4466 = vmatpush1.bf16.msra.mxu0 %v4352
    %4467 = vmatprep.subr.bf16.mxu0 %v4349
    %4468 = vmatpush1.bf16.msra.mxu0 %v4348
    %4469 = vmatprep.subr.bf16.mxu0 0
    %4470 = vmatpush2.bf16.msra.mxu0 0
    %4471 = vmatprep.subr.bf16.mxu0 0
    %4472 = vmatpush2.bf16.msra.mxu0 0
    %4473 = vmatprep.subr.bf16.mxu0 0
    %4474 = vmatpush2.bf16.msra.mxu0 0
    %4475 = vmatprep.subr.bf16.mxu0 0
    %4476 = vmatpush2.bf16.msra.mxu0 0
    %4477 = vmatprep.subr.bf16.mxu0 0
    %4478 = vmatpush2.bf16.msra.mxu0 0
    %4479 = vmatprep.subr.bf16.mxu0 0
    %4480 = vmatpush2.bf16.msra.mxu0 0
    %4481 = vmatprep.subr.bf16.mxu0 0
    %4482 = vmatpush2.bf16.msra.mxu0 0
    %4483 = vmatprep.subr.bf16.mxu0 0
    %4484 = vmatpush2.bf16.msra.mxu0 0
    %4485 = vmatprep.mubr.bf16.mxu0 0
    %4486 = vmatmul.mubr.bf16.gmra.mxu0 %v4248
    %v4487 = vpop.f32.mrf.mxu0
    %v4488 = vadd.f32 0.0, %v4487
    %v4489 = vpop.f32.mrf.mxu0
    %v4490 = vadd.f32 0.0, %v4489
    %v4491 = vpop.f32.mrf.mxu0
    %v4492 = vadd.f32 0.0, %v4491
    %v4493 = vpop.f32.mrf.mxu0
    %v4494 = vadd.f32 0.0, %v4493
    %4495 = vdwg.mxu0
    %s4496 = scalar_lea.vmem [#allocation6], 160
    %v4497 = vld [vmem:[%s4496] sm:$0xf]
    %v4498 = vld [vmem:[%s4496 + $0x10] sm:$0xf]
    %v4499 = vunpack.c.l.bf16 %v4497
    %v4500 = vunpack.c.l.bf16 %v4498
    %v4501 = vadd.f32 %v4445, %v4499
    %v4502 = vadd.f32 %v4449, %v4500
    %v4503 = vxor.u32 %v4501, 2147483648
    %v4504 = vxor.u32 %v4502, 2147483648
    %v4505 = vmul.f32 %v4503, 1.442695
    %v4506 = vpow.pop %v4505
    %v4507 = vmul.f32 %v4504, 1.442695
    %v4508 = vpow.pop %v4507
    %v4509 = vadd.f32 %v4506, 1.0
    %v4510 = vadd.f32 %v4508, 1.0
    %v4511 = vrcp.pop %v4509
    %v4512 = vmul.f32 1.0, %v4511
    %v4513 = vrcp.pop %v4510
    %v4514 = vmul.f32 1.0, %v4513
    %v4515 = vld [vmem:[%s4496 + $0x4] sm:$0xf]
    %v4516 = vld [vmem:[%s4496 + $0x14] sm:$0xf]
    %v4517 = vunpack.c.l.bf16 %v4515
    %v4518 = vunpack.c.l.bf16 %v4516
    %v4519 = vadd.f32 %v4447, %v4517
    %v4520 = vadd.f32 %v4451, %v4518
    %v4521 = vxor.u32 %v4519, 2147483648
    %v4522 = vxor.u32 %v4520, 2147483648
    %v4523 = vmul.f32 %v4521, 1.442695
    %v4524 = vpow.pop %v4523
    %v4525 = vmul.f32 %v4522, 1.442695
    %v4526 = vpow.pop %v4525
    %v4527 = vadd.f32 %v4524, 1.0
    %v4528 = vadd.f32 %v4526, 1.0
    %v4529 = vrcp.pop %v4527
    %v4530 = vmul.f32 1.0, %v4529
    %v4531 = vrcp.pop %v4528
    %v4532 = vmul.f32 1.0, %v4531
    %v4533 = vld [vmem:[%s4496 + $0x8] sm:$0xf]
    %v4534 = vld [vmem:[%s4496 + $0x18] sm:$0xf]
    %v4535 = vunpack.c.l.bf16 %v4533
    %v4536 = vunpack.c.l.bf16 %v4534
    %v4537 = vadd.f32 %v4488, %v4535
    %v4538 = vadd.f32 %v4492, %v4536
    %v4539 = vtanh.pop %v4537
    %v4540 = vtanh.pop %v4538
    %v4541 = vld [vmem:[%s4496 + $0xc] sm:$0xf]
    %v4542 = vld [vmem:[%s4496 + $0x1c] sm:$0xf]
    %v4543 = vunpack.c.l.bf16 %v4541
    %v4544 = vunpack.c.l.bf16 %v4542
    %v4545 = vadd.f32 %v4490, %v4543
    %v4546 = vadd.f32 %v4494, %v4544
    %v4547 = vxor.u32 %v4545, 2147483648
    %v4548 = vxor.u32 %v4546, 2147483648
    %v4549 = vmul.f32 %v4547, 1.442695
    %v4550 = vpow.pop %v4549
    %v4551 = vmul.f32 %v4548, 1.442695
    %v4552 = vpow.pop %v4551
    %v4553 = vadd.f32 %v4550, 1.0
    %v4554 = vadd.f32 %v4552, 1.0
    %v4555 = vrcp.pop %v4553
    %v4556 = vmul.f32 1.0, %v4555
    %v4557 = vrcp.pop %v4554
    %v4558 = vmul.f32 1.0, %v4557
    %v4559 = vld [vmem:[#allocation3] sm:$0xff]
    %v4560 = vld [vmem:[#allocation3 + $0x8] sm:$0xff]
    %v4561 = vmul.f32 %v4530, %v4559
    %v4562 = vmul.f32 %v4532, %v4560
    %v4563 = vmul.f32 %v4512, %v4539
    %v4564 = vmul.f32 %v4514, %v4540
    %v4565 = vadd.f32 %v4561, %v4563
    %v4566 = vadd.f32 %v4562, %v4564
    %v4567 = vtanh.pop %v4565
    %v4568 = vtanh.pop %v4566
    %v4569 = vmul.f32 %v4556, %v4567
    %v4570 = vmul.f32 %v4558, %v4568
    %v4571 = vpack.c.bf16 %v4570, %v4569
    %s4572 = scalar_select %p4209, 1, 0
    %v4573 = vstv %s4572
    %vm4574 = vcmp.eq.s32.totalorder %v4573, 1
    %v4575 = vsel %vm4574, %v4565, %v4559
    %v4576 = vsel %vm4574, %v4566, %v4560
    %4577 = vst [vmem:[#allocation3] sm:$0xff] %v4575
    %4578 = vst [vmem:[#allocation3 + $0x8] sm:$0xff] %v4576
    %v4579 = vld [vmem:[#allocation2] sm:$0xf]
    %v4580 = vld [vmem:[#allocation2 + $0x4] sm:$0xf]
    %v4583 = vunpack.c.l.b16 %v4579
    %v4584 = vunpack.c.l.b16 %v4580
    %v4585 = vpack.c.b16 %v4584, %v4583
    %v4587 = vsel %vm4574, %v4571, %v4585
    %v4589 = vunpack.c.l.b16 %v4587
    %v4590 = vunpack.c.h.b16 %v4587
    %v4591 = vpack.c.b16 %v4589, %v4589
    %v4592 = vpack.c.b16 %v4590, %v4590
    %4595 = vst [vmem:[#allocation2] sm:$0xf] %v4591
    %4596 = vst [vmem:[#allocation2 + $0x4] sm:$0xf] %v4592
    %v4598 = vunpack.c.l.b16 %v4571
    %v4599 = vunpack.c.h.b16 %v4571
    %v4600 = vpack.c.b16 %v4598, %v4598
    %v4601 = vpack.c.b16 %v4599, %v4599
    %s4604 = scalar_lea.vmem %s4, 40
    %4605 = vst [vmem:[%s4604] sm:$0xf] %v4600
    %4606 = vst [vmem:[%s4604 + $0x4] sm:$0xf] %v4601
    %s4607 = sadd.s32 %s220, 2
    %p4608 = scmp.lt.s32.totalorder %s4607, 8
    %v4609 = vld [vmem:[#allocation4] sm:$0xf]
    %v4610 = vld [vmem:[#allocation4 + $0x4] sm:$0xf]
    %v4611 = vld [vmem:[%s3] sm:$0xff]
    %v4612 = vld [vmem:[%s3 + $0x8] sm:$0xff]
    %v4613 = vld [vmem:[%s3 + $0x10] sm:$0xff]
    %v4614 = vld [vmem:[%s3 + $0x18] sm:$0xff]
    %v4615 = vld [vmem:[%s3 + $0x20] sm:$0xff]
    %v4616 = vld [vmem:[%s3 + $0x28] sm:$0xff]
    %v4617 = vld [vmem:[%s3 + $0x30] sm:$0xff]
    %v4618 = vld [vmem:[%s3 + $0x38] sm:$0xff]
    %v4619 = vld [vmem:[%s3 + $0x40] sm:$0xff]
    %v4620 = vld [vmem:[%s3 + $0x48] sm:$0xff]
    %v4621 = vld [vmem:[%s3 + $0x50] sm:$0xff]
    %v4622 = vld [vmem:[%s3 + $0x58] sm:$0xff]
    %v4623 = vld [vmem:[%s3 + $0x60] sm:$0xff]
    %v4624 = vld [vmem:[%s3 + $0x68] sm:$0xff]
    %v4625 = vld [vmem:[%s3 + $0x70] sm:$0xff]
    %v4626 = vld [vmem:[%s3 + $0x78] sm:$0xff]
    %v4627 = vld [vmem:[%s3 + $0x80] sm:$0xff]
    %v4628 = vld [vmem:[%s3 + $0x88] sm:$0xff]
    %v4629 = vld [vmem:[%s3 + $0x90] sm:$0xff]
    %v4630 = vld [vmem:[%s3 + $0x98] sm:$0xff]
    %v4631 = vld [vmem:[%s3 + $0xa0] sm:$0xff]
    %v4632 = vld [vmem:[%s3 + $0xa8] sm:$0xff]
    %v4633 = vld [vmem:[%s3 + $0xb0] sm:$0xff]
    %v4634 = vld [vmem:[%s3 + $0xb8] sm:$0xff]
    %v4635 = vld [vmem:[%s3 + $0xc0] sm:$0xff]
    %v4636 = vld [vmem:[%s3 + $0xc8] sm:$0xff]
    %v4637 = vld [vmem:[%s3 + $0xd0] sm:$0xff]
    %v4638 = vld [vmem:[%s3 + $0xd8] sm:$0xff]
    %v4639 = vld [vmem:[%s3 + $0xe0] sm:$0xff]
    %v4640 = vld [vmem:[%s3 + $0xe8] sm:$0xff]
    %v4641 = vld [vmem:[%s3 + $0xf0] sm:$0xff]
    %v4642 = vld [vmem:[%s3 + $0xf8] sm:$0xff]
    %v4645 = vunpack.c.l.b16 %v4609
    %v4646 = vunpack.c.l.b16 %v4610
    %v4647 = vpack.c.b16 %v4646, %v4645
    %v4681 = vunpack.c.l.b16 %v4611
    %v4682 = vunpack.c.h.b16 %v4611
    %v4683 = vunpack.c.l.b16 %v4612
    %v4684 = vunpack.c.h.b16 %v4612
    %v4685 = vunpack.c.l.b16 %v4613
    %v4686 = vunpack.c.h.b16 %v4613
    %v4687 = vunpack.c.l.b16 %v4614
    %v4688 = vunpack.c.h.b16 %v4614
    %v4689 = vunpack.c.l.b16 %v4615
    %v4690 = vunpack.c.h.b16 %v4615
    %v4691 = vunpack.c.l.b16 %v4616
    %v4692 = vunpack.c.h.b16 %v4616
    %v4693 = vunpack.c.l.b16 %v4617
    %v4694 = vunpack.c.h.b16 %v4617
    %v4695 = vunpack.c.l.b16 %v4618
    %v4696 = vunpack.c.h.b16 %v4618
    %v4697 = vunpack.c.l.b16 %v4619
    %v4698 = vunpack.c.h.b16 %v4619
    %v4699 = vunpack.c.l.b16 %v4620
    %v4700 = vunpack.c.h.b16 %v4620
    %v4701 = vunpack.c.l.b16 %v4621
    %v4702 = vunpack.c.h.b16 %v4621
    %v4703 = vunpack.c.l.b16 %v4622
    %v4704 = vunpack.c.h.b16 %v4622
    %v4705 = vunpack.c.l.b16 %v4623
    %v4706 = vunpack.c.h.b16 %v4623
    %v4707 = vunpack.c.l.b16 %v4624
    %v4708 = vunpack.c.h.b16 %v4624
    %v4709 = vunpack.c.l.b16 %v4625
    %v4710 = vunpack.c.h.b16 %v4625
    %v4711 = vunpack.c.l.b16 %v4626
    %v4712 = vunpack.c.h.b16 %v4626
    %v4713 = vunpack.c.l.b16 %v4627
    %v4714 = vunpack.c.h.b16 %v4627
    %v4715 = vunpack.c.l.b16 %v4628
    %v4716 = vunpack.c.h.b16 %v4628
    %v4717 = vunpack.c.l.b16 %v4629
    %v4718 = vunpack.c.h.b16 %v4629
    %v4719 = vunpack.c.l.b16 %v4630
    %v4720 = vunpack.c.h.b16 %v4630
    %v4721 = vunpack.c.l.b16 %v4631
    %v4722 = vunpack.c.h.b16 %v4631
    %v4723 = vunpack.c.l.b16 %v4632
    %v4724 = vunpack.c.h.b16 %v4632
    %v4725 = vunpack.c.l.b16 %v4633
    %v4726 = vunpack.c.h.b16 %v4633
    %v4727 = vunpack.c.l.b16 %v4634
    %v4728 = vunpack.c.h.b16 %v4634
    %v4729 = vunpack.c.l.b16 %v4635
    %v4730 = vunpack.c.h.b16 %v4635
    %v4731 = vunpack.c.l.b16 %v4636
    %v4732 = vunpack.c.h.b16 %v4636
    %v4733 = vunpack.c.l.b16 %v4637
    %v4734 = vunpack.c.h.b16 %v4637
    %v4735 = vunpack.c.l.b16 %v4638
    %v4736 = vunpack.c.h.b16 %v4638
    %v4737 = vunpack.c.l.b16 %v4639
    %v4738 = vunpack.c.h.b16 %v4639
    %v4739 = vunpack.c.l.b16 %v4640
    %v4740 = vunpack.c.h.b16 %v4640
    %v4741 = vunpack.c.l.b16 %v4641
    %v4742 = vunpack.c.h.b16 %v4641
    %v4743 = vunpack.c.l.b16 %v4642
    %v4744 = vunpack.c.h.b16 %v4642
    %v4745 = vpack.c.b16 %v4685, %v4681
    %v4746 = vpack.c.b16 %v4686, %v4682
    %v4747 = vpack.c.b16 %v4687, %v4683
    %v4748 = vpack.c.b16 %v4688, %v4684
    %v4749 = vpack.c.b16 %v4693, %v4689
    %v4750 = vpack.c.b16 %v4694, %v4690
    %v4751 = vpack.c.b16 %v4695, %v4691
    %v4752 = vpack.c.b16 %v4696, %v4692
    %v4753 = vpack.c.b16 %v4701, %v4697
    %v4754 = vpack.c.b16 %v4702, %v4698
    %v4755 = vpack.c.b16 %v4703, %v4699
    %v4756 = vpack.c.b16 %v4704, %v4700
    %v4757 = vpack.c.b16 %v4709, %v4705
    %v4758 = vpack.c.b16 %v4710, %v4706
    %v4759 = vpack.c.b16 %v4711, %v4707
    %v4760 = vpack.c.b16 %v4712, %v4708
    %v4761 = vpack.c.b16 %v4717, %v4713
    %v4762 = vpack.c.b16 %v4718, %v4714
    %v4763 = vpack.c.b16 %v4719, %v4715
    %v4764 = vpack.c.b16 %v4720, %v4716
    %v4765 = vpack.c.b16 %v4725, %v4721
    %v4766 = vpack.c.b16 %v4726, %v4722
    %v4767 = vpack.c.b16 %v4727, %v4723
    %v4768 = vpack.c.b16 %v4728, %v4724
    %v4769 = vpack.c.b16 %v4733, %v4729
    %v4770 = vpack.c.b16 %v4734, %v4730
    %v4771 = vpack.c.b16 %v4735, %v4731
    %v4772 = vpack.c.b16 %v4736, %v4732
    %v4773 = vpack.c.b16 %v4741, %v4737
    %v4774 = vpack.c.b16 %v4742, %v4738
    %v4775 = vpack.c.b16 %v4743, %v4739
    %v4776 = vpack.c.b16 %v4744, %v4740
    %4809 = vmatprep.subr.bf16.mxu0 %v4774
    %4810 = vmatpush1.bf16.msra.mxu0 %v4773
    %4811 = vmatprep.subr.bf16.mxu0 %v4770
    %4812 = vmatpush1.bf16.msra.mxu0 %v4769
    %4813 = vmatprep.subr.bf16.mxu0 %v4766
    %4814 = vmatpush1.bf16.msra.mxu0 %v4765
    %4815 = vmatprep.subr.bf16.mxu0 %v4762
    %4816 = vmatpush1.bf16.msra.mxu0 %v4761
    %4817 = vmatprep.subr.bf16.mxu0 %v4758
    %4818 = vmatpush1.bf16.msra.mxu0 %v4757
    %4819 = vmatprep.subr.bf16.mxu0 %v4754
    %4820 = vmatpush1.bf16.msra.mxu0 %v4753
    %4821 = vmatprep.subr.bf16.mxu0 %v4750
    %4822 = vmatpush1.bf16.msra.mxu0 %v4749
    %4823 = vmatprep.subr.bf16.mxu0 %v4746
    %4824 = vmatpush1.bf16.msra.mxu0 %v4745
    %4825 = vmatprep.subr.bf16.mxu0 0
    %4826 = vmatpush2.bf16.msra.mxu0 0
    %4827 = vmatprep.subr.bf16.mxu0 0
    %4828 = vmatpush2.bf16.msra.mxu0 0
    %4829 = vmatprep.subr.bf16.mxu0 0
    %4830 = vmatpush2.bf16.msra.mxu0 0
    %4831 = vmatprep.subr.bf16.mxu0 0
    %4832 = vmatpush2.bf16.msra.mxu0 0
    %4833 = vmatprep.subr.bf16.mxu0 0
    %4834 = vmatpush2.bf16.msra.mxu0 0
    %4835 = vmatprep.subr.bf16.mxu0 0
    %4836 = vmatpush2.bf16.msra.mxu0 0
    %4837 = vmatprep.subr.bf16.mxu0 0
    %4838 = vmatpush2.bf16.msra.mxu0 0
    %4839 = vmatprep.subr.bf16.mxu0 0
    %4840 = vmatpush2.bf16.msra.mxu0 0
    %4841 = vmatprep.mubr.bf16.mxu0 0
    %4842 = vmatmul.mubr.bf16.gmra.mxu0 %v4647
    %v4843 = vpop.f32.mrf.mxu0
    %v4844 = vadd.f32 0.0, %v4843
    %v4845 = vpop.f32.mrf.mxu0
    %v4846 = vadd.f32 0.0, %v4845
    %v4847 = vpop.f32.mrf.mxu0
    %v4848 = vadd.f32 0.0, %v4847
    %v4849 = vpop.f32.mrf.mxu0
    %v4850 = vadd.f32 0.0, %v4849
    %4851 = vdwg.mxu0
    %4852 = vmatprep.subr.bf16.mxu0 %v4776
    %4853 = vmatpush1.bf16.msra.mxu0 %v4775
    %4854 = vmatprep.subr.bf16.mxu0 %v4772
    %4855 = vmatpush1.bf16.msra.mxu0 %v4771
    %4856 = vmatprep.subr.bf16.mxu0 %v4768
    %4857 = vmatpush1.bf16.msra.mxu0 %v4767
    %4858 = vmatprep.subr.bf16.mxu0 %v4764
    %4859 = vmatpush1.bf16.msra.mxu0 %v4763
    %4860 = vmatprep.subr.bf16.mxu0 %v4760
    %4861 = vmatpush1.bf16.msra.mxu0 %v4759
    %4862 = vmatprep.subr.bf16.mxu0 %v4756
    %4863 = vmatpush1.bf16.msra.mxu0 %v4755
    %4864 = vmatprep.subr.bf16.mxu0 %v4752
    %4865 = vmatpush1.bf16.msra.mxu0 %v4751
    %4866 = vmatprep.subr.bf16.mxu0 %v4748
    %4867 = vmatpush1.bf16.msra.mxu0 %v4747
    %4868 = vmatprep.subr.bf16.mxu0 0
    %4869 = vmatpush2.bf16.msra.mxu0 0
    %4870 = vmatprep.subr.bf16.mxu0 0
    %4871 = vmatpush2.bf16.msra.mxu0 0
    %4872 = vmatprep.subr.bf16.mxu0 0
    %4873 = vmatpush2.bf16.msra.mxu0 0
    %4874 = vmatprep.subr.bf16.mxu0 0
    %4875 = vmatpush2.bf16.msra.mxu0 0
    %4876 = vmatprep.subr.bf16.mxu0 0
    %4877 = vmatpush2.bf16.msra.mxu0 0
    %4878 = vmatprep.subr.bf16.mxu0 0
    %4879 = vmatpush2.bf16.msra.mxu0 0
    %4880 = vmatprep.subr.bf16.mxu0 0
    %4881 = vmatpush2.bf16.msra.mxu0 0
    %4882 = vmatprep.subr.bf16.mxu0 0
    %4883 = vmatpush2.bf16.msra.mxu0 0
    %4884 = vmatprep.mubr.bf16.mxu0 0
    %4885 = vmatmul.mubr.bf16.gmra.mxu0 %v4647
    %v4886 = vpop.f32.mrf.mxu0
    %v4887 = vadd.f32 0.0, %v4886
    %v4888 = vpop.f32.mrf.mxu0
    %v4889 = vadd.f32 0.0, %v4888
    %v4890 = vpop.f32.mrf.mxu0
    %v4891 = vadd.f32 0.0, %v4890
    %v4892 = vpop.f32.mrf.mxu0
    %v4893 = vadd.f32 0.0, %v4892
    %4894 = vdwg.mxu0
    %s4895 = scalar_lea.vmem [#allocation7], 64
    %v4896 = vld [vmem:[%s4895] sm:$0xf]
    %v4897 = vld [vmem:[%s4895 + $0x10] sm:$0xf]
    %v4898 = vunpack.c.l.bf16 %v4896
    %v4899 = vunpack.c.l.bf16 %v4897
    %v4900 = vadd.f32 %v4844, %v4898
    %v4901 = vadd.f32 %v4848, %v4899
    %v4902 = vxor.u32 %v4900, 2147483648
    %v4903 = vxor.u32 %v4901, 2147483648
    %v4904 = vmul.f32 %v4902, 1.442695
    %v4905 = vpow.pop %v4904
    %v4906 = vmul.f32 %v4903, 1.442695
    %v4907 = vpow.pop %v4906
    %v4908 = vadd.f32 %v4905, 1.0
    %v4909 = vadd.f32 %v4907, 1.0
    %v4910 = vrcp.pop %v4908
    %v4911 = vmul.f32 1.0, %v4910
    %v4912 = vrcp.pop %v4909
    %v4913 = vmul.f32 1.0, %v4912
    %v4914 = vld [vmem:[%s4895 + $0x4] sm:$0xf]
    %v4915 = vld [vmem:[%s4895 + $0x14] sm:$0xf]
    %v4916 = vunpack.c.l.bf16 %v4914
    %v4917 = vunpack.c.l.bf16 %v4915
    %v4918 = vadd.f32 %v4846, %v4916
    %v4919 = vadd.f32 %v4850, %v4917
    %v4920 = vxor.u32 %v4918, 2147483648
    %v4921 = vxor.u32 %v4919, 2147483648
    %v4922 = vmul.f32 %v4920, 1.442695
    %v4923 = vpow.pop %v4922
    %v4924 = vmul.f32 %v4921, 1.442695
    %v4925 = vpow.pop %v4924
    %v4926 = vadd.f32 %v4923, 1.0
    %v4927 = vadd.f32 %v4925, 1.0
    %v4928 = vrcp.pop %v4926
    %v4929 = vmul.f32 1.0, %v4928
    %v4930 = vrcp.pop %v4927
    %v4931 = vmul.f32 1.0, %v4930
    %v4932 = vld [vmem:[%s4895 + $0x8] sm:$0xf]
    %v4933 = vld [vmem:[%s4895 + $0x18] sm:$0xf]
    %v4934 = vunpack.c.l.bf16 %v4932
    %v4935 = vunpack.c.l.bf16 %v4933
    %v4936 = vadd.f32 %v4887, %v4934
    %v4937 = vadd.f32 %v4891, %v4935
    %v4938 = vtanh.pop %v4936
    %v4939 = vtanh.pop %v4937
    %v4940 = vld [vmem:[%s4895 + $0xc] sm:$0xf]
    %v4941 = vld [vmem:[%s4895 + $0x1c] sm:$0xf]
    %v4942 = vunpack.c.l.bf16 %v4940
    %v4943 = vunpack.c.l.bf16 %v4941
    %v4944 = vadd.f32 %v4889, %v4942
    %v4945 = vadd.f32 %v4893, %v4943
    %v4946 = vxor.u32 %v4944, 2147483648
    %v4947 = vxor.u32 %v4945, 2147483648
    %v4948 = vmul.f32 %v4946, 1.442695
    %v4949 = vpow.pop %v4948
    %v4950 = vmul.f32 %v4947, 1.442695
    %v4951 = vpow.pop %v4950
    %v4952 = vadd.f32 %v4949, 1.0
    %v4953 = vadd.f32 %v4951, 1.0
    %v4954 = vrcp.pop %v4952
    %v4955 = vmul.f32 1.0, %v4954
    %v4956 = vrcp.pop %v4953
    %v4957 = vmul.f32 1.0, %v4956
    %v4958 = vld [vmem:[#allocation5] sm:$0xff]
    %v4959 = vld [vmem:[#allocation5 + $0x8] sm:$0xff]
    %v4960 = vmul.f32 %v4929, %v4958
    %v4961 = vmul.f32 %v4931, %v4959
    %v4962 = vmul.f32 %v4911, %v4938
    %v4963 = vmul.f32 %v4913, %v4939
    %v4964 = vadd.f32 %v4960, %v4962
    %v4965 = vadd.f32 %v4961, %v4963
    %v4966 = vtanh.pop %v4964
    %v4967 = vtanh.pop %v4965
    %v4968 = vmul.f32 %v4955, %v4966
    %v4969 = vmul.f32 %v4957, %v4967
    %v4970 = vpack.c.bf16 %v4969, %v4968
    %s4971 = scalar_select %p4608, 1, 0
    %v4972 = vstv %s4971
    %vm4973 = vcmp.eq.s32.totalorder %v4972, 1
    %v4974 = vsel %vm4973, %v4964, %v4958
    %v4975 = vsel %vm4973, %v4965, %v4959
    %4976 = vst [vmem:[#allocation5] sm:$0xff] %v4974
    %4977 = vst [vmem:[#allocation5 + $0x8] sm:$0xff] %v4975
    %v4978 = vld [vmem:[#allocation4] sm:$0xf]
    %v4979 = vld [vmem:[#allocation4 + $0x4] sm:$0xf]
    %v4982 = vunpack.c.l.b16 %v4978
    %v4983 = vunpack.c.l.b16 %v4979
    %v4984 = vpack.c.b16 %v4983, %v4982
    %v4986 = vsel %vm4973, %v4970, %v4984
    %v4988 = vunpack.c.l.b16 %v4986
    %v4989 = vunpack.c.h.b16 %v4986
    %v4990 = vpack.c.b16 %v4988, %v4988
    %v4991 = vpack.c.b16 %v4989, %v4989
    %4994 = vst [vmem:[#allocation4] sm:$0xf] %v4990
    %4995 = vst [vmem:[#allocation4 + $0x4] sm:$0xf] %v4991
    %v4997 = vunpack.c.l.b16 %v4970
    %v4998 = vunpack.c.h.b16 %v4970
    %v4999 = vpack.c.b16 %v4997, %v4997
    %v5000 = vpack.c.b16 %v4998, %v4998
    %s5003 = scalar_lea.vmem %s202, 16
    %5004 = vst [vmem:[%s5003] sm:$0xf] %v4999
    %5005 = vst [vmem:[%s5003 + $0x4] sm:$0xf] %v5000
    %s5006 = sadd.s32 %s218, 6
    %p5007 = scmp.lt.s32.totalorder %s5006, 8
    %v5008 = vld [vmem:[#allocation2] sm:$0xf]
    %v5009 = vld [vmem:[#allocation2 + $0x4] sm:$0xf]
    %v5010 = vld [vmem:[%s2] sm:$0xff]
    %v5011 = vld [vmem:[%s2 + $0x8] sm:$0xff]
    %v5012 = vld [vmem:[%s2 + $0x10] sm:$0xff]
    %v5013 = vld [vmem:[%s2 + $0x18] sm:$0xff]
    %v5014 = vld [vmem:[%s2 + $0x20] sm:$0xff]
    %v5015 = vld [vmem:[%s2 + $0x28] sm:$0xff]
    %v5016 = vld [vmem:[%s2 + $0x30] sm:$0xff]
    %v5017 = vld [vmem:[%s2 + $0x38] sm:$0xff]
    %v5018 = vld [vmem:[%s2 + $0x40] sm:$0xff]
    %v5019 = vld [vmem:[%s2 + $0x48] sm:$0xff]
    %v5020 = vld [vmem:[%s2 + $0x50] sm:$0xff]
    %v5021 = vld [vmem:[%s2 + $0x58] sm:$0xff]
    %v5022 = vld [vmem:[%s2 + $0x60] sm:$0xff]
    %v5023 = vld [vmem:[%s2 + $0x68] sm:$0xff]
    %v5024 = vld [vmem:[%s2 + $0x70] sm:$0xff]
    %v5025 = vld [vmem:[%s2 + $0x78] sm:$0xff]
    %v5026 = vld [vmem:[%s2 + $0x80] sm:$0xff]
    %v5027 = vld [vmem:[%s2 + $0x88] sm:$0xff]
    %v5028 = vld [vmem:[%s2 + $0x90] sm:$0xff]
    %v5029 = vld [vmem:[%s2 + $0x98] sm:$0xff]
    %v5030 = vld [vmem:[%s2 + $0xa0] sm:$0xff]
    %v5031 = vld [vmem:[%s2 + $0xa8] sm:$0xff]
    %v5032 = vld [vmem:[%s2 + $0xb0] sm:$0xff]
    %v5033 = vld [vmem:[%s2 + $0xb8] sm:$0xff]
    %v5034 = vld [vmem:[%s2 + $0xc0] sm:$0xff]
    %v5035 = vld [vmem:[%s2 + $0xc8] sm:$0xff]
    %v5036 = vld [vmem:[%s2 + $0xd0] sm:$0xff]
    %v5037 = vld [vmem:[%s2 + $0xd8] sm:$0xff]
    %v5038 = vld [vmem:[%s2 + $0xe0] sm:$0xff]
    %v5039 = vld [vmem:[%s2 + $0xe8] sm:$0xff]
    %v5040 = vld [vmem:[%s2 + $0xf0] sm:$0xff]
    %v5041 = vld [vmem:[%s2 + $0xf8] sm:$0xff]
    %v5044 = vunpack.c.l.b16 %v5008
    %v5045 = vunpack.c.l.b16 %v5009
    %v5046 = vpack.c.b16 %v5045, %v5044
    %v5080 = vunpack.c.l.b16 %v5010
    %v5081 = vunpack.c.h.b16 %v5010
    %v5082 = vunpack.c.l.b16 %v5011
    %v5083 = vunpack.c.h.b16 %v5011
    %v5084 = vunpack.c.l.b16 %v5012
    %v5085 = vunpack.c.h.b16 %v5012
    %v5086 = vunpack.c.l.b16 %v5013
    %v5087 = vunpack.c.h.b16 %v5013
    %v5088 = vunpack.c.l.b16 %v5014
    %v5089 = vunpack.c.h.b16 %v5014
    %v5090 = vunpack.c.l.b16 %v5015
    %v5091 = vunpack.c.h.b16 %v5015
    %v5092 = vunpack.c.l.b16 %v5016
    %v5093 = vunpack.c.h.b16 %v5016
    %v5094 = vunpack.c.l.b16 %v5017
    %v5095 = vunpack.c.h.b16 %v5017
    %v5096 = vunpack.c.l.b16 %v5018
    %v5097 = vunpack.c.h.b16 %v5018
    %v5098 = vunpack.c.l.b16 %v5019
    %v5099 = vunpack.c.h.b16 %v5019
    %v5100 = vunpack.c.l.b16 %v5020
    %v5101 = vunpack.c.h.b16 %v5020
    %v5102 = vunpack.c.l.b16 %v5021
    %v5103 = vunpack.c.h.b16 %v5021
    %v5104 = vunpack.c.l.b16 %v5022
    %v5105 = vunpack.c.h.b16 %v5022
    %v5106 = vunpack.c.l.b16 %v5023
    %v5107 = vunpack.c.h.b16 %v5023
    %v5108 = vunpack.c.l.b16 %v5024
    %v5109 = vunpack.c.h.b16 %v5024
    %v5110 = vunpack.c.l.b16 %v5025
    %v5111 = vunpack.c.h.b16 %v5025
    %v5112 = vunpack.c.l.b16 %v5026
    %v5113 = vunpack.c.h.b16 %v5026
    %v5114 = vunpack.c.l.b16 %v5027
    %v5115 = vunpack.c.h.b16 %v5027
    %v5116 = vunpack.c.l.b16 %v5028
    %v5117 = vunpack.c.h.b16 %v5028
    %v5118 = vunpack.c.l.b16 %v5029
    %v5119 = vunpack.c.h.b16 %v5029
    %v5120 = vunpack.c.l.b16 %v5030
    %v5121 = vunpack.c.h.b16 %v5030
    %v5122 = vunpack.c.l.b16 %v5031
    %v5123 = vunpack.c.h.b16 %v5031
    %v5124 = vunpack.c.l.b16 %v5032
    %v5125 = vunpack.c.h.b16 %v5032
    %v5126 = vunpack.c.l.b16 %v5033
    %v5127 = vunpack.c.h.b16 %v5033
    %v5128 = vunpack.c.l.b16 %v5034
    %v5129 = vunpack.c.h.b16 %v5034
    %v5130 = vunpack.c.l.b16 %v5035
    %v5131 = vunpack.c.h.b16 %v5035
    %v5132 = vunpack.c.l.b16 %v5036
    %v5133 = vunpack.c.h.b16 %v5036
    %v5134 = vunpack.c.l.b16 %v5037
    %v5135 = vunpack.c.h.b16 %v5037
    %v5136 = vunpack.c.l.b16 %v5038
    %v5137 = vunpack.c.h.b16 %v5038
    %v5138 = vunpack.c.l.b16 %v5039
    %v5139 = vunpack.c.h.b16 %v5039
    %v5140 = vunpack.c.l.b16 %v5040
    %v5141 = vunpack.c.h.b16 %v5040
    %v5142 = vunpack.c.l.b16 %v5041
    %v5143 = vunpack.c.h.b16 %v5041
    %v5144 = vpack.c.b16 %v5084, %v5080
    %v5145 = vpack.c.b16 %v5085, %v5081
    %v5146 = vpack.c.b16 %v5086, %v5082
    %v5147 = vpack.c.b16 %v5087, %v5083
    %v5148 = vpack.c.b16 %v5092, %v5088
    %v5149 = vpack.c.b16 %v5093, %v5089
    %v5150 = vpack.c.b16 %v5094, %v5090
    %v5151 = vpack.c.b16 %v5095, %v5091
    %v5152 = vpack.c.b16 %v5100, %v5096
    %v5153 = vpack.c.b16 %v5101, %v5097
    %v5154 = vpack.c.b16 %v5102, %v5098
    %v5155 = vpack.c.b16 %v5103, %v5099
    %v5156 = vpack.c.b16 %v5108, %v5104
    %v5157 = vpack.c.b16 %v5109, %v5105
    %v5158 = vpack.c.b16 %v5110, %v5106
    %v5159 = vpack.c.b16 %v5111, %v5107
    %v5160 = vpack.c.b16 %v5116, %v5112
    %v5161 = vpack.c.b16 %v5117, %v5113
    %v5162 = vpack.c.b16 %v5118, %v5114
    %v5163 = vpack.c.b16 %v5119, %v5115
    %v5164 = vpack.c.b16 %v5124, %v5120
    %v5165 = vpack.c.b16 %v5125, %v5121
    %v5166 = vpack.c.b16 %v5126, %v5122
    %v5167 = vpack.c.b16 %v5127, %v5123
    %v5168 = vpack.c.b16 %v5132, %v5128
    %v5169 = vpack.c.b16 %v5133, %v5129
    %v5170 = vpack.c.b16 %v5134, %v5130
    %v5171 = vpack.c.b16 %v5135, %v5131
    %v5172 = vpack.c.b16 %v5140, %v5136
    %v5173 = vpack.c.b16 %v5141, %v5137
    %v5174 = vpack.c.b16 %v5142, %v5138
    %v5175 = vpack.c.b16 %v5143, %v5139
    %5208 = vmatprep.subr.bf16.mxu0 %v5173
    %5209 = vmatpush1.bf16.msra.mxu0 %v5172
    %5210 = vmatprep.subr.bf16.mxu0 %v5169
    %5211 = vmatpush1.bf16.msra.mxu0 %v5168
    %5212 = vmatprep.subr.bf16.mxu0 %v5165
    %5213 = vmatpush1.bf16.msra.mxu0 %v5164
    %5214 = vmatprep.subr.bf16.mxu0 %v5161
    %5215 = vmatpush1.bf16.msra.mxu0 %v5160
    %5216 = vmatprep.subr.bf16.mxu0 %v5157
    %5217 = vmatpush1.bf16.msra.mxu0 %v5156
    %5218 = vmatprep.subr.bf16.mxu0 %v5153
    %5219 = vmatpush1.bf16.msra.mxu0 %v5152
    %5220 = vmatprep.subr.bf16.mxu0 %v5149
    %5221 = vmatpush1.bf16.msra.mxu0 %v5148
    %5222 = vmatprep.subr.bf16.mxu0 %v5145
    %5223 = vmatpush1.bf16.msra.mxu0 %v5144
    %5224 = vmatprep.subr.bf16.mxu0 0
    %5225 = vmatpush2.bf16.msra.mxu0 0
    %5226 = vmatprep.subr.bf16.mxu0 0
    %5227 = vmatpush2.bf16.msra.mxu0 0
    %5228 = vmatprep.subr.bf16.mxu0 0
    %5229 = vmatpush2.bf16.msra.mxu0 0
    %5230 = vmatprep.subr.bf16.mxu0 0
    %5231 = vmatpush2.bf16.msra.mxu0 0
    %5232 = vmatprep.subr.bf16.mxu0 0
    %5233 = vmatpush2.bf16.msra.mxu0 0
    %5234 = vmatprep.subr.bf16.mxu0 0
    %5235 = vmatpush2.bf16.msra.mxu0 0
    %5236 = vmatprep.subr.bf16.mxu0 0
    %5237 = vmatpush2.bf16.msra.mxu0 0
    %5238 = vmatprep.subr.bf16.mxu0 0
    %5239 = vmatpush2.bf16.msra.mxu0 0
    %5240 = vmatprep.mubr.bf16.mxu0 0
    %5241 = vmatmul.mubr.bf16.gmra.mxu0 %v5046
    %v5242 = vpop.f32.mrf.mxu0
    %v5243 = vadd.f32 0.0, %v5242
    %v5244 = vpop.f32.mrf.mxu0
    %v5245 = vadd.f32 0.0, %v5244
    %v5246 = vpop.f32.mrf.mxu0
    %v5247 = vadd.f32 0.0, %v5246
    %v5248 = vpop.f32.mrf.mxu0
    %v5249 = vadd.f32 0.0, %v5248
    %5250 = vdwg.mxu0
    %5251 = vmatprep.subr.bf16.mxu0 %v5175
    %5252 = vmatpush1.bf16.msra.mxu0 %v5174
    %5253 = vmatprep.subr.bf16.mxu0 %v5171
    %5254 = vmatpush1.bf16.msra.mxu0 %v5170
    %5255 = vmatprep.subr.bf16.mxu0 %v5167
    %5256 = vmatpush1.bf16.msra.mxu0 %v5166
    %5257 = vmatprep.subr.bf16.mxu0 %v5163
    %5258 = vmatpush1.bf16.msra.mxu0 %v5162
    %5259 = vmatprep.subr.bf16.mxu0 %v5159
    %5260 = vmatpush1.bf16.msra.mxu0 %v5158
    %5261 = vmatprep.subr.bf16.mxu0 %v5155
    %5262 = vmatpush1.bf16.msra.mxu0 %v5154
    %5263 = vmatprep.subr.bf16.mxu0 %v5151
    %5264 = vmatpush1.bf16.msra.mxu0 %v5150
    %5265 = vmatprep.subr.bf16.mxu0 %v5147
    %5266 = vmatpush1.bf16.msra.mxu0 %v5146
    %5267 = vmatprep.subr.bf16.mxu0 0
    %5268 = vmatpush2.bf16.msra.mxu0 0
    %5269 = vmatprep.subr.bf16.mxu0 0
    %5270 = vmatpush2.bf16.msra.mxu0 0
    %5271 = vmatprep.subr.bf16.mxu0 0
    %5272 = vmatpush2.bf16.msra.mxu0 0
    %5273 = vmatprep.subr.bf16.mxu0 0
    %5274 = vmatpush2.bf16.msra.mxu0 0
    %5275 = vmatprep.subr.bf16.mxu0 0
    %5276 = vmatpush2.bf16.msra.mxu0 0
    %5277 = vmatprep.subr.bf16.mxu0 0
    %5278 = vmatpush2.bf16.msra.mxu0 0
    %5279 = vmatprep.subr.bf16.mxu0 0
    %5280 = vmatpush2.bf16.msra.mxu0 0
    %5281 = vmatprep.subr.bf16.mxu0 0
    %5282 = vmatpush2.bf16.msra.mxu0 0
    %5283 = vmatprep.mubr.bf16.mxu0 0
    %5284 = vmatmul.mubr.bf16.gmra.mxu0 %v5046
    %v5285 = vpop.f32.mrf.mxu0
    %v5286 = vadd.f32 0.0, %v5285
    %v5287 = vpop.f32.mrf.mxu0
    %v5288 = vadd.f32 0.0, %v5287
    %v5289 = vpop.f32.mrf.mxu0
    %v5290 = vadd.f32 0.0, %v5289
    %v5291 = vpop.f32.mrf.mxu0
    %v5292 = vadd.f32 0.0, %v5291
    %5293 = vdwg.mxu0
    %s5294 = scalar_lea.vmem [#allocation6], 192
    %v5295 = vld [vmem:[%s5294] sm:$0xf]
    %v5296 = vld [vmem:[%s5294 + $0x10] sm:$0xf]
    %v5297 = vunpack.c.l.bf16 %v5295
    %v5298 = vunpack.c.l.bf16 %v5296
    %v5299 = vadd.f32 %v5243, %v5297
    %v5300 = vadd.f32 %v5247, %v5298
    %v5301 = vxor.u32 %v5299, 2147483648
    %v5302 = vxor.u32 %v5300, 2147483648
    %v5303 = vmul.f32 %v5301, 1.442695
    %v5304 = vpow.pop %v5303
    %v5305 = vmul.f32 %v5302, 1.442695
    %v5306 = vpow.pop %v5305
    %v5307 = vadd.f32 %v5304, 1.0
    %v5308 = vadd.f32 %v5306, 1.0
    %v5309 = vrcp.pop %v5307
    %v5310 = vmul.f32 1.0, %v5309
    %v5311 = vrcp.pop %v5308
    %v5312 = vmul.f32 1.0, %v5311
    %v5313 = vld [vmem:[%s5294 + $0x4] sm:$0xf]
    %v5314 = vld [vmem:[%s5294 + $0x14] sm:$0xf]
    %v5315 = vunpack.c.l.bf16 %v5313
    %v5316 = vunpack.c.l.bf16 %v5314
    %v5317 = vadd.f32 %v5245, %v5315
    %v5318 = vadd.f32 %v5249, %v5316
    %v5319 = vxor.u32 %v5317, 2147483648
    %v5320 = vxor.u32 %v5318, 2147483648
    %v5321 = vmul.f32 %v5319, 1.442695
    %v5322 = vpow.pop %v5321
    %v5323 = vmul.f32 %v5320, 1.442695
    %v5324 = vpow.pop %v5323
    %v5325 = vadd.f32 %v5322, 1.0
    %v5326 = vadd.f32 %v5324, 1.0
    %v5327 = vrcp.pop %v5325
    %v5328 = vmul.f32 1.0, %v5327
    %v5329 = vrcp.pop %v5326
    %v5330 = vmul.f32 1.0, %v5329
    %v5331 = vld [vmem:[%s5294 + $0x8] sm:$0xf]
    %v5332 = vld [vmem:[%s5294 + $0x18] sm:$0xf]
    %v5333 = vunpack.c.l.bf16 %v5331
    %v5334 = vunpack.c.l.bf16 %v5332
    %v5335 = vadd.f32 %v5286, %v5333
    %v5336 = vadd.f32 %v5290, %v5334
    %v5337 = vtanh.pop %v5335
    %v5338 = vtanh.pop %v5336
    %v5339 = vld [vmem:[%s5294 + $0xc] sm:$0xf]
    %v5340 = vld [vmem:[%s5294 + $0x1c] sm:$0xf]
    %v5341 = vunpack.c.l.bf16 %v5339
    %v5342 = vunpack.c.l.bf16 %v5340
    %v5343 = vadd.f32 %v5288, %v5341
    %v5344 = vadd.f32 %v5292, %v5342
    %v5345 = vxor.u32 %v5343, 2147483648
    %v5346 = vxor.u32 %v5344, 2147483648
    %v5347 = vmul.f32 %v5345, 1.442695
    %v5348 = vpow.pop %v5347
    %v5349 = vmul.f32 %v5346, 1.442695
    %v5350 = vpow.pop %v5349
    %v5351 = vadd.f32 %v5348, 1.0
    %v5352 = vadd.f32 %v5350, 1.0
    %v5353 = vrcp.pop %v5351
    %v5354 = vmul.f32 1.0, %v5353
    %v5355 = vrcp.pop %v5352
    %v5356 = vmul.f32 1.0, %v5355
    %v5357 = vld [vmem:[#allocation3] sm:$0xff]
    %v5358 = vld [vmem:[#allocation3 + $0x8] sm:$0xff]
    %v5359 = vmul.f32 %v5328, %v5357
    %v5360 = vmul.f32 %v5330, %v5358
    %v5361 = vmul.f32 %v5310, %v5337
    %v5362 = vmul.f32 %v5312, %v5338
    %v5363 = vadd.f32 %v5359, %v5361
    %v5364 = vadd.f32 %v5360, %v5362
    %v5365 = vtanh.pop %v5363
    %v5366 = vtanh.pop %v5364
    %v5367 = vmul.f32 %v5354, %v5365
    %v5368 = vmul.f32 %v5356, %v5366
    %v5369 = vpack.c.bf16 %v5368, %v5367
    %s5370 = scalar_select %p5007, 1, 0
    %v5371 = vstv %s5370
    %vm5372 = vcmp.eq.s32.totalorder %v5371, 1
    %v5373 = vsel %vm5372, %v5363, %v5357
    %v5374 = vsel %vm5372, %v5364, %v5358
    %5375 = vst [vmem:[#allocation3] sm:$0xff] %v5373
    %5376 = vst [vmem:[#allocation3 + $0x8] sm:$0xff] %v5374
    %v5377 = vld [vmem:[#allocation2] sm:$0xf]
    %v5378 = vld [vmem:[#allocation2 + $0x4] sm:$0xf]
    %v5381 = vunpack.c.l.b16 %v5377
    %v5382 = vunpack.c.l.b16 %v5378
    %v5383 = vpack.c.b16 %v5382, %v5381
    %v5385 = vsel %vm5372, %v5369, %v5383
    %v5387 = vunpack.c.l.b16 %v5385
    %v5388 = vunpack.c.h.b16 %v5385
    %v5389 = vpack.c.b16 %v5387, %v5387
    %v5390 = vpack.c.b16 %v5388, %v5388
    %5393 = vst [vmem:[#allocation2] sm:$0xf] %v5389
    %5394 = vst [vmem:[#allocation2 + $0x4] sm:$0xf] %v5390
    %v5396 = vunpack.c.l.b16 %v5369
    %v5397 = vunpack.c.h.b16 %v5369
    %v5398 = vpack.c.b16 %v5396, %v5396
    %v5399 = vpack.c.b16 %v5397, %v5397
    %s5402 = scalar_lea.vmem %s4, 48
    %5403 = vst [vmem:[%s5402] sm:$0xf] %v5398
    %5404 = vst [vmem:[%s5402 + $0x4] sm:$0xf] %v5399
    %s5405 = sadd.s32 %s220, 1
    %p5406 = scmp.lt.s32.totalorder %s5405, 8
    %v5407 = vld [vmem:[#allocation4] sm:$0xf]
    %v5408 = vld [vmem:[#allocation4 + $0x4] sm:$0xf]
    %v5409 = vld [vmem:[%s3] sm:$0xff]
    %v5410 = vld [vmem:[%s3 + $0x8] sm:$0xff]
    %v5411 = vld [vmem:[%s3 + $0x10] sm:$0xff]
    %v5412 = vld [vmem:[%s3 + $0x18] sm:$0xff]
    %v5413 = vld [vmem:[%s3 + $0x20] sm:$0xff]
    %v5414 = vld [vmem:[%s3 + $0x28] sm:$0xff]
    %v5415 = vld [vmem:[%s3 + $0x30] sm:$0xff]
    %v5416 = vld [vmem:[%s3 + $0x38] sm:$0xff]
    %v5417 = vld [vmem:[%s3 + $0x40] sm:$0xff]
    %v5418 = vld [vmem:[%s3 + $0x48] sm:$0xff]
    %v5419 = vld [vmem:[%s3 + $0x50] sm:$0xff]
    %v5420 = vld [vmem:[%s3 + $0x58] sm:$0xff]
    %v5421 = vld [vmem:[%s3 + $0x60] sm:$0xff]
    %v5422 = vld [vmem:[%s3 + $0x68] sm:$0xff]
    %v5423 = vld [vmem:[%s3 + $0x70] sm:$0xff]
    %v5424 = vld [vmem:[%s3 + $0x78] sm:$0xff]
    %v5425 = vld [vmem:[%s3 + $0x80] sm:$0xff]
    %v5426 = vld [vmem:[%s3 + $0x88] sm:$0xff]
    %v5427 = vld [vmem:[%s3 + $0x90] sm:$0xff]
    %v5428 = vld [vmem:[%s3 + $0x98] sm:$0xff]
    %v5429 = vld [vmem:[%s3 + $0xa0] sm:$0xff]
    %v5430 = vld [vmem:[%s3 + $0xa8] sm:$0xff]
    %v5431 = vld [vmem:[%s3 + $0xb0] sm:$0xff]
    %v5432 = vld [vmem:[%s3 + $0xb8] sm:$0xff]
    %v5433 = vld [vmem:[%s3 + $0xc0] sm:$0xff]
    %v5434 = vld [vmem:[%s3 + $0xc8] sm:$0xff]
    %v5435 = vld [vmem:[%s3 + $0xd0] sm:$0xff]
    %v5436 = vld [vmem:[%s3 + $0xd8] sm:$0xff]
    %v5437 = vld [vmem:[%s3 + $0xe0] sm:$0xff]
    %v5438 = vld [vmem:[%s3 + $0xe8] sm:$0xff]
    %v5439 = vld [vmem:[%s3 + $0xf0] sm:$0xff]
    %v5440 = vld [vmem:[%s3 + $0xf8] sm:$0xff]
    %v5443 = vunpack.c.l.b16 %v5407
    %v5444 = vunpack.c.l.b16 %v5408
    %v5445 = vpack.c.b16 %v5444, %v5443
    %v5479 = vunpack.c.l.b16 %v5409
    %v5480 = vunpack.c.h.b16 %v5409
    %v5481 = vunpack.c.l.b16 %v5410
    %v5482 = vunpack.c.h.b16 %v5410
    %v5483 = vunpack.c.l.b16 %v5411
    %v5484 = vunpack.c.h.b16 %v5411
    %v5485 = vunpack.c.l.b16 %v5412
    %v5486 = vunpack.c.h.b16 %v5412
    %v5487 = vunpack.c.l.b16 %v5413
    %v5488 = vunpack.c.h.b16 %v5413
    %v5489 = vunpack.c.l.b16 %v5414
    %v5490 = vunpack.c.h.b16 %v5414
    %v5491 = vunpack.c.l.b16 %v5415
    %v5492 = vunpack.c.h.b16 %v5415
    %v5493 = vunpack.c.l.b16 %v5416
    %v5494 = vunpack.c.h.b16 %v5416
    %v5495 = vunpack.c.l.b16 %v5417
    %v5496 = vunpack.c.h.b16 %v5417
    %v5497 = vunpack.c.l.b16 %v5418
    %v5498 = vunpack.c.h.b16 %v5418
    %v5499 = vunpack.c.l.b16 %v5419
    %v5500 = vunpack.c.h.b16 %v5419
    %v5501 = vunpack.c.l.b16 %v5420
    %v5502 = vunpack.c.h.b16 %v5420
    %v5503 = vunpack.c.l.b16 %v5421
    %v5504 = vunpack.c.h.b16 %v5421
    %v5505 = vunpack.c.l.b16 %v5422
    %v5506 = vunpack.c.h.b16 %v5422
    %v5507 = vunpack.c.l.b16 %v5423
    %v5508 = vunpack.c.h.b16 %v5423
    %v5509 = vunpack.c.l.b16 %v5424
    %v5510 = vunpack.c.h.b16 %v5424
    %v5511 = vunpack.c.l.b16 %v5425
    %v5512 = vunpack.c.h.b16 %v5425
    %v5513 = vunpack.c.l.b16 %v5426
    %v5514 = vunpack.c.h.b16 %v5426
    %v5515 = vunpack.c.l.b16 %v5427
    %v5516 = vunpack.c.h.b16 %v5427
    %v5517 = vunpack.c.l.b16 %v5428
    %v5518 = vunpack.c.h.b16 %v5428
    %v5519 = vunpack.c.l.b16 %v5429
    %v5520 = vunpack.c.h.b16 %v5429
    %v5521 = vunpack.c.l.b16 %v5430
    %v5522 = vunpack.c.h.b16 %v5430
    %v5523 = vunpack.c.l.b16 %v5431
    %v5524 = vunpack.c.h.b16 %v5431
    %v5525 = vunpack.c.l.b16 %v5432
    %v5526 = vunpack.c.h.b16 %v5432
    %v5527 = vunpack.c.l.b16 %v5433
    %v5528 = vunpack.c.h.b16 %v5433
    %v5529 = vunpack.c.l.b16 %v5434
    %v5530 = vunpack.c.h.b16 %v5434
    %v5531 = vunpack.c.l.b16 %v5435
    %v5532 = vunpack.c.h.b16 %v5435
    %v5533 = vunpack.c.l.b16 %v5436
    %v5534 = vunpack.c.h.b16 %v5436
    %v5535 = vunpack.c.l.b16 %v5437
    %v5536 = vunpack.c.h.b16 %v5437
    %v5537 = vunpack.c.l.b16 %v5438
    %v5538 = vunpack.c.h.b16 %v5438
    %v5539 = vunpack.c.l.b16 %v5439
    %v5540 = vunpack.c.h.b16 %v5439
    %v5541 = vunpack.c.l.b16 %v5440
    %v5542 = vunpack.c.h.b16 %v5440
    %v5543 = vpack.c.b16 %v5483, %v5479
    %v5544 = vpack.c.b16 %v5484, %v5480
    %v5545 = vpack.c.b16 %v5485, %v5481
    %v5546 = vpack.c.b16 %v5486, %v5482
    %v5547 = vpack.c.b16 %v5491, %v5487
    %v5548 = vpack.c.b16 %v5492, %v5488
    %v5549 = vpack.c.b16 %v5493, %v5489
    %v5550 = vpack.c.b16 %v5494, %v5490
    %v5551 = vpack.c.b16 %v5499, %v5495
    %v5552 = vpack.c.b16 %v5500, %v5496
    %v5553 = vpack.c.b16 %v5501, %v5497
    %v5554 = vpack.c.b16 %v5502, %v5498
    %v5555 = vpack.c.b16 %v5507, %v5503
    %v5556 = vpack.c.b16 %v5508, %v5504
    %v5557 = vpack.c.b16 %v5509, %v5505
    %v5558 = vpack.c.b16 %v5510, %v5506
    %v5559 = vpack.c.b16 %v5515, %v5511
    %v5560 = vpack.c.b16 %v5516, %v5512
    %v5561 = vpack.c.b16 %v5517, %v5513
    %v5562 = vpack.c.b16 %v5518, %v5514
    %v5563 = vpack.c.b16 %v5523, %v5519
    %v5564 = vpack.c.b16 %v5524, %v5520
    %v5565 = vpack.c.b16 %v5525, %v5521
    %v5566 = vpack.c.b16 %v5526, %v5522
    %v5567 = vpack.c.b16 %v5531, %v5527
    %v5568 = vpack.c.b16 %v5532, %v5528
    %v5569 = vpack.c.b16 %v5533, %v5529
    %v5570 = vpack.c.b16 %v5534, %v5530
    %v5571 = vpack.c.b16 %v5539, %v5535
    %v5572 = vpack.c.b16 %v5540, %v5536
    %v5573 = vpack.c.b16 %v5541, %v5537
    %v5574 = vpack.c.b16 %v5542, %v5538
    %5607 = vmatprep.subr.bf16.mxu0 %v5572
    %5608 = vmatpush1.bf16.msra.mxu0 %v5571
    %5609 = vmatprep.subr.bf16.mxu0 %v5568
    %5610 = vmatpush1.bf16.msra.mxu0 %v5567
    %5611 = vmatprep.subr.bf16.mxu0 %v5564
    %5612 = vmatpush1.bf16.msra.mxu0 %v5563
    %5613 = vmatprep.subr.bf16.mxu0 %v5560
    %5614 = vmatpush1.bf16.msra.mxu0 %v5559
    %5615 = vmatprep.subr.bf16.mxu0 %v5556
    %5616 = vmatpush1.bf16.msra.mxu0 %v5555
    %5617 = vmatprep.subr.bf16.mxu0 %v5552
    %5618 = vmatpush1.bf16.msra.mxu0 %v5551
    %5619 = vmatprep.subr.bf16.mxu0 %v5548
    %5620 = vmatpush1.bf16.msra.mxu0 %v5547
    %5621 = vmatprep.subr.bf16.mxu0 %v5544
    %5622 = vmatpush1.bf16.msra.mxu0 %v5543
    %5623 = vmatprep.subr.bf16.mxu0 0
    %5624 = vmatpush2.bf16.msra.mxu0 0
    %5625 = vmatprep.subr.bf16.mxu0 0
    %5626 = vmatpush2.bf16.msra.mxu0 0
    %5627 = vmatprep.subr.bf16.mxu0 0
    %5628 = vmatpush2.bf16.msra.mxu0 0
    %5629 = vmatprep.subr.bf16.mxu0 0
    %5630 = vmatpush2.bf16.msra.mxu0 0
    %5631 = vmatprep.subr.bf16.mxu0 0
    %5632 = vmatpush2.bf16.msra.mxu0 0
    %5633 = vmatprep.subr.bf16.mxu0 0
    %5634 = vmatpush2.bf16.msra.mxu0 0
    %5635 = vmatprep.subr.bf16.mxu0 0
    %5636 = vmatpush2.bf16.msra.mxu0 0
    %5637 = vmatprep.subr.bf16.mxu0 0
    %5638 = vmatpush2.bf16.msra.mxu0 0
    %5639 = vmatprep.mubr.bf16.mxu0 0
    %5640 = vmatmul.mubr.bf16.gmra.mxu0 %v5445
    %v5641 = vpop.f32.mrf.mxu0
    %v5642 = vadd.f32 0.0, %v5641
    %v5643 = vpop.f32.mrf.mxu0
    %v5644 = vadd.f32 0.0, %v5643
    %v5645 = vpop.f32.mrf.mxu0
    %v5646 = vadd.f32 0.0, %v5645
    %v5647 = vpop.f32.mrf.mxu0
    %v5648 = vadd.f32 0.0, %v5647
    %5649 = vdwg.mxu0
    %5650 = vmatprep.subr.bf16.mxu0 %v5574
    %5651 = vmatpush1.bf16.msra.mxu0 %v5573
    %5652 = vmatprep.subr.bf16.mxu0 %v5570
    %5653 = vmatpush1.bf16.msra.mxu0 %v5569
    %5654 = vmatprep.subr.bf16.mxu0 %v5566
    %5655 = vmatpush1.bf16.msra.mxu0 %v5565
    %5656 = vmatprep.subr.bf16.mxu0 %v5562
    %5657 = vmatpush1.bf16.msra.mxu0 %v5561
    %5658 = vmatprep.subr.bf16.mxu0 %v5558
    %5659 = vmatpush1.bf16.msra.mxu0 %v5557
    %5660 = vmatprep.subr.bf16.mxu0 %v5554
    %5661 = vmatpush1.bf16.msra.mxu0 %v5553
    %5662 = vmatprep.subr.bf16.mxu0 %v5550
    %5663 = vmatpush1.bf16.msra.mxu0 %v5549
    %5664 = vmatprep.subr.bf16.mxu0 %v5546
    %5665 = vmatpush1.bf16.msra.mxu0 %v5545
    %5666 = vmatprep.subr.bf16.mxu0 0
    %5667 = vmatpush2.bf16.msra.mxu0 0
    %5668 = vmatprep.subr.bf16.mxu0 0
    %5669 = vmatpush2.bf16.msra.mxu0 0
    %5670 = vmatprep.subr.bf16.mxu0 0
    %5671 = vmatpush2.bf16.msra.mxu0 0
    %5672 = vmatprep.subr.bf16.mxu0 0
    %5673 = vmatpush2.bf16.msra.mxu0 0
    %5674 = vmatprep.subr.bf16.mxu0 0
    %5675 = vmatpush2.bf16.msra.mxu0 0
    %5676 = vmatprep.subr.bf16.mxu0 0
    %5677 = vmatpush2.bf16.msra.mxu0 0
    %5678 = vmatprep.subr.bf16.mxu0 0
    %5679 = vmatpush2.bf16.msra.mxu0 0
    %5680 = vmatprep.subr.bf16.mxu0 0
    %5681 = vmatpush2.bf16.msra.mxu0 0
    %5682 = vmatprep.mubr.bf16.mxu0 0
    %5683 = vmatmul.mubr.bf16.gmra.mxu0 %v5445
    %v5684 = vpop.f32.mrf.mxu0
    %v5685 = vadd.f32 0.0, %v5684
    %v5686 = vpop.f32.mrf.mxu0
    %v5687 = vadd.f32 0.0, %v5686
    %v5688 = vpop.f32.mrf.mxu0
    %v5689 = vadd.f32 0.0, %v5688
    %v5690 = vpop.f32.mrf.mxu0
    %v5691 = vadd.f32 0.0, %v5690
    %5692 = vdwg.mxu0
    %s5693 = scalar_lea.vmem [#allocation7], 32
    %v5694 = vld [vmem:[%s5693] sm:$0xf]
    %v5695 = vld [vmem:[%s5693 + $0x10] sm:$0xf]
    %v5696 = vunpack.c.l.bf16 %v5694
    %v5697 = vunpack.c.l.bf16 %v5695
    %v5698 = vadd.f32 %v5642, %v5696
    %v5699 = vadd.f32 %v5646, %v5697
    %v5700 = vxor.u32 %v5698, 2147483648
    %v5701 = vxor.u32 %v5699, 2147483648
    %v5702 = vmul.f32 %v5700, 1.442695
    %v5703 = vpow.pop %v5702
    %v5704 = vmul.f32 %v5701, 1.442695
    %v5705 = vpow.pop %v5704
    %v5706 = vadd.f32 %v5703, 1.0
    %v5707 = vadd.f32 %v5705, 1.0
    %v5708 = vrcp.pop %v5706
    %v5709 = vmul.f32 1.0, %v5708
    %v5710 = vrcp.pop %v5707
    %v5711 = vmul.f32 1.0, %v5710
    %v5712 = vld [vmem:[%s5693 + $0x4] sm:$0xf]
    %v5713 = vld [vmem:[%s5693 + $0x14] sm:$0xf]
    %v5714 = vunpack.c.l.bf16 %v5712
    %v5715 = vunpack.c.l.bf16 %v5713
    %v5716 = vadd.f32 %v5644, %v5714
    %v5717 = vadd.f32 %v5648, %v5715
    %v5718 = vxor.u32 %v5716, 2147483648
    %v5719 = vxor.u32 %v5717, 2147483648
    %v5720 = vmul.f32 %v5718, 1.442695
    %v5721 = vpow.pop %v5720
    %v5722 = vmul.f32 %v5719, 1.442695
    %v5723 = vpow.pop %v5722
    %v5724 = vadd.f32 %v5721, 1.0
    %v5725 = vadd.f32 %v5723, 1.0
    %v5726 = vrcp.pop %v5724
    %v5727 = vmul.f32 1.0, %v5726
    %v5728 = vrcp.pop %v5725
    %v5729 = vmul.f32 1.0, %v5728
    %v5730 = vld [vmem:[%s5693 + $0x8] sm:$0xf]
    %v5731 = vld [vmem:[%s5693 + $0x18] sm:$0xf]
    %v5732 = vunpack.c.l.bf16 %v5730
    %v5733 = vunpack.c.l.bf16 %v5731
    %v5734 = vadd.f32 %v5685, %v5732
    %v5735 = vadd.f32 %v5689, %v5733
    %v5736 = vtanh.pop %v5734
    %v5737 = vtanh.pop %v5735
    %v5738 = vld [vmem:[%s5693 + $0xc] sm:$0xf]
    %v5739 = vld [vmem:[%s5693 + $0x1c] sm:$0xf]
    %v5740 = vunpack.c.l.bf16 %v5738
    %v5741 = vunpack.c.l.bf16 %v5739
    %v5742 = vadd.f32 %v5687, %v5740
    %v5743 = vadd.f32 %v5691, %v5741
    %v5744 = vxor.u32 %v5742, 2147483648
    %v5745 = vxor.u32 %v5743, 2147483648
    %v5746 = vmul.f32 %v5744, 1.442695
    %v5747 = vpow.pop %v5746
    %v5748 = vmul.f32 %v5745, 1.442695
    %v5749 = vpow.pop %v5748
    %v5750 = vadd.f32 %v5747, 1.0
    %v5751 = vadd.f32 %v5749, 1.0
    %v5752 = vrcp.pop %v5750
    %v5753 = vmul.f32 1.0, %v5752
    %v5754 = vrcp.pop %v5751
    %v5755 = vmul.f32 1.0, %v5754
    %v5756 = vld [vmem:[#allocation5] sm:$0xff]
    %v5757 = vld [vmem:[#allocation5 + $0x8] sm:$0xff]
    %v5758 = vmul.f32 %v5727, %v5756
    %v5759 = vmul.f32 %v5729, %v5757
    %v5760 = vmul.f32 %v5709, %v5736
    %v5761 = vmul.f32 %v5711, %v5737
    %v5762 = vadd.f32 %v5758, %v5760
    %v5763 = vadd.f32 %v5759, %v5761
    %v5764 = vtanh.pop %v5762
    %v5765 = vtanh.pop %v5763
    %v5766 = vmul.f32 %v5753, %v5764
    %v5767 = vmul.f32 %v5755, %v5765
    %v5768 = vpack.c.bf16 %v5767, %v5766
    %s5769 = scalar_select %p5406, 1, 0
    %v5770 = vstv %s5769
    %vm5771 = vcmp.eq.s32.totalorder %v5770, 1
    %v5772 = vsel %vm5771, %v5762, %v5756
    %v5773 = vsel %vm5771, %v5763, %v5757
    %5774 = vst [vmem:[#allocation5] sm:$0xff] %v5772
    %5775 = vst [vmem:[#allocation5 + $0x8] sm:$0xff] %v5773
    %v5776 = vld [vmem:[#allocation4] sm:$0xf]
    %v5777 = vld [vmem:[#allocation4 + $0x4] sm:$0xf]
    %v5780 = vunpack.c.l.b16 %v5776
    %v5781 = vunpack.c.l.b16 %v5777
    %v5782 = vpack.c.b16 %v5781, %v5780
    %v5784 = vsel %vm5771, %v5768, %v5782
    %v5786 = vunpack.c.l.b16 %v5784
    %v5787 = vunpack.c.h.b16 %v5784
    %v5788 = vpack.c.b16 %v5786, %v5786
    %v5789 = vpack.c.b16 %v5787, %v5787
    %5792 = vst [vmem:[#allocation4] sm:$0xf] %v5788
    %5793 = vst [vmem:[#allocation4 + $0x4] sm:$0xf] %v5789
    %v5795 = vunpack.c.l.b16 %v5768
    %v5796 = vunpack.c.h.b16 %v5768
    %v5797 = vpack.c.b16 %v5795, %v5795
    %v5798 = vpack.c.b16 %v5796, %v5796
    %s5801 = scalar_lea.vmem %s202, 8
    %5802 = vst [vmem:[%s5801] sm:$0xf] %v5797
    %5803 = vst [vmem:[%s5801 + $0x4] sm:$0xf] %v5798
    %s5804 = sadd.s32 %s218, 7
    %p5805 = scmp.lt.s32.totalorder %s5804, 8
    %v5806 = vld [vmem:[#allocation2] sm:$0xf]
    %v5807 = vld [vmem:[#allocation2 + $0x4] sm:$0xf]
    %v5808 = vld [vmem:[%s2] sm:$0xff]
    %v5809 = vld [vmem:[%s2 + $0x8] sm:$0xff]
    %v5810 = vld [vmem:[%s2 + $0x10] sm:$0xff]
    %v5811 = vld [vmem:[%s2 + $0x18] sm:$0xff]
    %v5812 = vld [vmem:[%s2 + $0x20] sm:$0xff]
    %v5813 = vld [vmem:[%s2 + $0x28] sm:$0xff]
    %v5814 = vld [vmem:[%s2 + $0x30] sm:$0xff]
    %v5815 = vld [vmem:[%s2 + $0x38] sm:$0xff]
    %v5816 = vld [vmem:[%s2 + $0x40] sm:$0xff]
    %v5817 = vld [vmem:[%s2 + $0x48] sm:$0xff]
    %v5818 = vld [vmem:[%s2 + $0x50] sm:$0xff]
    %v5819 = vld [vmem:[%s2 + $0x58] sm:$0xff]
    %v5820 = vld [vmem:[%s2 + $0x60] sm:$0xff]
    %v5821 = vld [vmem:[%s2 + $0x68] sm:$0xff]
    %v5822 = vld [vmem:[%s2 + $0x70] sm:$0xff]
    %v5823 = vld [vmem:[%s2 + $0x78] sm:$0xff]
    %v5824 = vld [vmem:[%s2 + $0x80] sm:$0xff]
    %v5825 = vld [vmem:[%s2 + $0x88] sm:$0xff]
    %v5826 = vld [vmem:[%s2 + $0x90] sm:$0xff]
    %v5827 = vld [vmem:[%s2 + $0x98] sm:$0xff]
    %v5828 = vld [vmem:[%s2 + $0xa0] sm:$0xff]
    %v5829 = vld [vmem:[%s2 + $0xa8] sm:$0xff]
    %v5830 = vld [vmem:[%s2 + $0xb0] sm:$0xff]
    %v5831 = vld [vmem:[%s2 + $0xb8] sm:$0xff]
    %v5832 = vld [vmem:[%s2 + $0xc0] sm:$0xff]
    %v5833 = vld [vmem:[%s2 + $0xc8] sm:$0xff]
    %v5834 = vld [vmem:[%s2 + $0xd0] sm:$0xff]
    %v5835 = vld [vmem:[%s2 + $0xd8] sm:$0xff]
    %v5836 = vld [vmem:[%s2 + $0xe0] sm:$0xff]
    %v5837 = vld [vmem:[%s2 + $0xe8] sm:$0xff]
    %v5838 = vld [vmem:[%s2 + $0xf0] sm:$0xff]
    %v5839 = vld [vmem:[%s2 + $0xf8] sm:$0xff]
    %v5842 = vunpack.c.l.b16 %v5806
    %v5843 = vunpack.c.l.b16 %v5807
    %v5844 = vpack.c.b16 %v5843, %v5842
    %v5878 = vunpack.c.l.b16 %v5808
    %v5879 = vunpack.c.h.b16 %v5808
    %v5880 = vunpack.c.l.b16 %v5809
    %v5881 = vunpack.c.h.b16 %v5809
    %v5882 = vunpack.c.l.b16 %v5810
    %v5883 = vunpack.c.h.b16 %v5810
    %v5884 = vunpack.c.l.b16 %v5811
    %v5885 = vunpack.c.h.b16 %v5811
    %v5886 = vunpack.c.l.b16 %v5812
    %v5887 = vunpack.c.h.b16 %v5812
    %v5888 = vunpack.c.l.b16 %v5813
    %v5889 = vunpack.c.h.b16 %v5813
    %v5890 = vunpack.c.l.b16 %v5814
    %v5891 = vunpack.c.h.b16 %v5814
    %v5892 = vunpack.c.l.b16 %v5815
    %v5893 = vunpack.c.h.b16 %v5815
    %v5894 = vunpack.c.l.b16 %v5816
    %v5895 = vunpack.c.h.b16 %v5816
    %v5896 = vunpack.c.l.b16 %v5817
    %v5897 = vunpack.c.h.b16 %v5817
    %v5898 = vunpack.c.l.b16 %v5818
    %v5899 = vunpack.c.h.b16 %v5818
    %v5900 = vunpack.c.l.b16 %v5819
    %v5901 = vunpack.c.h.b16 %v5819
    %v5902 = vunpack.c.l.b16 %v5820
    %v5903 = vunpack.c.h.b16 %v5820
    %v5904 = vunpack.c.l.b16 %v5821
    %v5905 = vunpack.c.h.b16 %v5821
    %v5906 = vunpack.c.l.b16 %v5822
    %v5907 = vunpack.c.h.b16 %v5822
    %v5908 = vunpack.c.l.b16 %v5823
    %v5909 = vunpack.c.h.b16 %v5823
    %v5910 = vunpack.c.l.b16 %v5824
    %v5911 = vunpack.c.h.b16 %v5824
    %v5912 = vunpack.c.l.b16 %v5825
    %v5913 = vunpack.c.h.b16 %v5825
    %v5914 = vunpack.c.l.b16 %v5826
    %v5915 = vunpack.c.h.b16 %v5826
    %v5916 = vunpack.c.l.b16 %v5827
    %v5917 = vunpack.c.h.b16 %v5827
    %v5918 = vunpack.c.l.b16 %v5828
    %v5919 = vunpack.c.h.b16 %v5828
    %v5920 = vunpack.c.l.b16 %v5829
    %v5921 = vunpack.c.h.b16 %v5829
    %v5922 = vunpack.c.l.b16 %v5830
    %v5923 = vunpack.c.h.b16 %v5830
    %v5924 = vunpack.c.l.b16 %v5831
    %v5925 = vunpack.c.h.b16 %v5831
    %v5926 = vunpack.c.l.b16 %v5832
    %v5927 = vunpack.c.h.b16 %v5832
    %v5928 = vunpack.c.l.b16 %v5833
    %v5929 = vunpack.c.h.b16 %v5833
    %v5930 = vunpack.c.l.b16 %v5834
    %v5931 = vunpack.c.h.b16 %v5834
    %v5932 = vunpack.c.l.b16 %v5835
    %v5933 = vunpack.c.h.b16 %v5835
    %v5934 = vunpack.c.l.b16 %v5836
    %v5935 = vunpack.c.h.b16 %v5836
    %v5936 = vunpack.c.l.b16 %v5837
    %v5937 = vunpack.c.h.b16 %v5837
    %v5938 = vunpack.c.l.b16 %v5838
    %v5939 = vunpack.c.h.b16 %v5838
    %v5940 = vunpack.c.l.b16 %v5839
    %v5941 = vunpack.c.h.b16 %v5839
    %v5942 = vpack.c.b16 %v5882, %v5878
    %v5943 = vpack.c.b16 %v5883, %v5879
    %v5944 = vpack.c.b16 %v5884, %v5880
    %v5945 = vpack.c.b16 %v5885, %v5881
    %v5946 = vpack.c.b16 %v5890, %v5886
    %v5947 = vpack.c.b16 %v5891, %v5887
    %v5948 = vpack.c.b16 %v5892, %v5888
    %v5949 = vpack.c.b16 %v5893, %v5889
    %v5950 = vpack.c.b16 %v5898, %v5894
    %v5951 = vpack.c.b16 %v5899, %v5895
    %v5952 = vpack.c.b16 %v5900, %v5896
    %v5953 = vpack.c.b16 %v5901, %v5897
    %v5954 = vpack.c.b16 %v5906, %v5902
    %v5955 = vpack.c.b16 %v5907, %v5903
    %v5956 = vpack.c.b16 %v5908, %v5904
    %v5957 = vpack.c.b16 %v5909, %v5905
    %v5958 = vpack.c.b16 %v5914, %v5910
    %v5959 = vpack.c.b16 %v5915, %v5911
    %v5960 = vpack.c.b16 %v5916, %v5912
    %v5961 = vpack.c.b16 %v5917, %v5913
    %v5962 = vpack.c.b16 %v5922, %v5918
    %v5963 = vpack.c.b16 %v5923, %v5919
    %v5964 = vpack.c.b16 %v5924, %v5920
    %v5965 = vpack.c.b16 %v5925, %v5921
    %v5966 = vpack.c.b16 %v5930, %v5926
    %v5967 = vpack.c.b16 %v5931, %v5927
    %v5968 = vpack.c.b16 %v5932, %v5928
    %v5969 = vpack.c.b16 %v5933, %v5929
    %v5970 = vpack.c.b16 %v5938, %v5934
    %v5971 = vpack.c.b16 %v5939, %v5935
    %v5972 = vpack.c.b16 %v5940, %v5936
    %v5973 = vpack.c.b16 %v5941, %v5937
    %6006 = vmatprep.subr.bf16.mxu0 %v5971
    %6007 = vmatpush1.bf16.msra.mxu0 %v5970
    %6008 = vmatprep.subr.bf16.mxu0 %v5967
    %6009 = vmatpush1.bf16.msra.mxu0 %v5966
    %6010 = vmatprep.subr.bf16.mxu0 %v5963
    %6011 = vmatpush1.bf16.msra.mxu0 %v5962
    %6012 = vmatprep.subr.bf16.mxu0 %v5959
    %6013 = vmatpush1.bf16.msra.mxu0 %v5958
    %6014 = vmatprep.subr.bf16.mxu0 %v5955
    %6015 = vmatpush1.bf16.msra.mxu0 %v5954
    %6016 = vmatprep.subr.bf16.mxu0 %v5951
    %6017 = vmatpush1.bf16.msra.mxu0 %v5950
    %6018 = vmatprep.subr.bf16.mxu0 %v5947
    %6019 = vmatpush1.bf16.msra.mxu0 %v5946
    %6020 = vmatprep.subr.bf16.mxu0 %v5943
    %6021 = vmatpush1.bf16.msra.mxu0 %v5942
    %6022 = vmatprep.subr.bf16.mxu0 0
    %6023 = vmatpush2.bf16.msra.mxu0 0
    %6024 = vmatprep.subr.bf16.mxu0 0
    %6025 = vmatpush2.bf16.msra.mxu0 0
    %6026 = vmatprep.subr.bf16.mxu0 0
    %6027 = vmatpush2.bf16.msra.mxu0 0
    %6028 = vmatprep.subr.bf16.mxu0 0
    %6029 = vmatpush2.bf16.msra.mxu0 0
    %6030 = vmatprep.subr.bf16.mxu0 0
    %6031 = vmatpush2.bf16.msra.mxu0 0
    %6032 = vmatprep.subr.bf16.mxu0 0
    %6033 = vmatpush2.bf16.msra.mxu0 0
    %6034 = vmatprep.subr.bf16.mxu0 0
    %6035 = vmatpush2.bf16.msra.mxu0 0
    %6036 = vmatprep.subr.bf16.mxu0 0
    %6037 = vmatpush2.bf16.msra.mxu0 0
    %6038 = vmatprep.mubr.bf16.mxu0 0
    %6039 = vmatmul.mubr.bf16.gmra.mxu0 %v5844
    %v6040 = vpop.f32.mrf.mxu0
    %v6041 = vadd.f32 0.0, %v6040
    %v6042 = vpop.f32.mrf.mxu0
    %v6043 = vadd.f32 0.0, %v6042
    %v6044 = vpop.f32.mrf.mxu0
    %v6045 = vadd.f32 0.0, %v6044
    %v6046 = vpop.f32.mrf.mxu0
    %v6047 = vadd.f32 0.0, %v6046
    %6048 = vdwg.mxu0
    %6049 = vmatprep.subr.bf16.mxu0 %v5973
    %6050 = vmatpush1.bf16.msra.mxu0 %v5972
    %6051 = vmatprep.subr.bf16.mxu0 %v5969
    %6052 = vmatpush1.bf16.msra.mxu0 %v5968
    %6053 = vmatprep.subr.bf16.mxu0 %v5965
    %6054 = vmatpush1.bf16.msra.mxu0 %v5964
    %6055 = vmatprep.subr.bf16.mxu0 %v5961
    %6056 = vmatpush1.bf16.msra.mxu0 %v5960
    %6057 = vmatprep.subr.bf16.mxu0 %v5957
    %6058 = vmatpush1.bf16.msra.mxu0 %v5956
    %6059 = vmatprep.subr.bf16.mxu0 %v5953
    %6060 = vmatpush1.bf16.msra.mxu0 %v5952
    %6061 = vmatprep.subr.bf16.mxu0 %v5949
    %6062 = vmatpush1.bf16.msra.mxu0 %v5948
    %6063 = vmatprep.subr.bf16.mxu0 %v5945
    %6064 = vmatpush1.bf16.msra.mxu0 %v5944
    %6065 = vmatprep.subr.bf16.mxu0 0
    %6066 = vmatpush2.bf16.msra.mxu0 0
    %6067 = vmatprep.subr.bf16.mxu0 0
    %6068 = vmatpush2.bf16.msra.mxu0 0
    %6069 = vmatprep.subr.bf16.mxu0 0
    %6070 = vmatpush2.bf16.msra.mxu0 0
    %6071 = vmatprep.subr.bf16.mxu0 0
    %6072 = vmatpush2.bf16.msra.mxu0 0
    %6073 = vmatprep.subr.bf16.mxu0 0
    %6074 = vmatpush2.bf16.msra.mxu0 0
    %6075 = vmatprep.subr.bf16.mxu0 0
    %6076 = vmatpush2.bf16.msra.mxu0 0
    %6077 = vmatprep.subr.bf16.mxu0 0
    %6078 = vmatpush2.bf16.msra.mxu0 0
    %6079 = vmatprep.subr.bf16.mxu0 0
    %6080 = vmatpush2.bf16.msra.mxu0 0
    %6081 = vmatprep.mubr.bf16.mxu0 0
    %6082 = vmatmul.mubr.bf16.gmra.mxu0 %v5844
    %v6083 = vpop.f32.mrf.mxu0
    %v6084 = vadd.f32 0.0, %v6083
    %v6085 = vpop.f32.mrf.mxu0
    %v6086 = vadd.f32 0.0, %v6085
    %v6087 = vpop.f32.mrf.mxu0
    %v6088 = vadd.f32 0.0, %v6087
    %v6089 = vpop.f32.mrf.mxu0
    %v6090 = vadd.f32 0.0, %v6089
    %6091 = vdwg.mxu0
    %s6092 = scalar_lea.vmem [#allocation6], 224
    %v6093 = vld [vmem:[%s6092] sm:$0xf]
    %v6094 = vld [vmem:[%s6092 + $0x10] sm:$0xf]
    %v6095 = vunpack.c.l.bf16 %v6093
    %v6096 = vunpack.c.l.bf16 %v6094
    %v6097 = vadd.f32 %v6041, %v6095
    %v6098 = vadd.f32 %v6045, %v6096
    %v6099 = vxor.u32 %v6097, 2147483648
    %v6100 = vxor.u32 %v6098, 2147483648
    %v6101 = vmul.f32 %v6099, 1.442695
    %v6102 = vpow.pop %v6101
    %v6103 = vmul.f32 %v6100, 1.442695
    %v6104 = vpow.pop %v6103
    %v6105 = vadd.f32 %v6102, 1.0
    %v6106 = vadd.f32 %v6104, 1.0
    %v6107 = vrcp.pop %v6105
    %v6108 = vmul.f32 1.0, %v6107
    %v6109 = vrcp.pop %v6106
    %v6110 = vmul.f32 1.0, %v6109
    %v6111 = vld [vmem:[%s6092 + $0x4] sm:$0xf]
    %v6112 = vld [vmem:[%s6092 + $0x14] sm:$0xf]
    %v6113 = vunpack.c.l.bf16 %v6111
    %v6114 = vunpack.c.l.bf16 %v6112
    %v6115 = vadd.f32 %v6043, %v6113
    %v6116 = vadd.f32 %v6047, %v6114
    %v6117 = vxor.u32 %v6115, 2147483648
    %v6118 = vxor.u32 %v6116, 2147483648
    %v6119 = vmul.f32 %v6117, 1.442695
    %v6120 = vpow.pop %v6119
    %v6121 = vmul.f32 %v6118, 1.442695
    %v6122 = vpow.pop %v6121
    %v6123 = vadd.f32 %v6120, 1.0
    %v6124 = vadd.f32 %v6122, 1.0
    %v6125 = vrcp.pop %v6123
    %v6126 = vmul.f32 1.0, %v6125
    %v6127 = vrcp.pop %v6124
    %v6128 = vmul.f32 1.0, %v6127
    %v6129 = vld [vmem:[%s6092 + $0x8] sm:$0xf]
    %v6130 = vld [vmem:[%s6092 + $0x18] sm:$0xf]
    %v6131 = vunpack.c.l.bf16 %v6129
    %v6132 = vunpack.c.l.bf16 %v6130
    %v6133 = vadd.f32 %v6084, %v6131
    %v6134 = vadd.f32 %v6088, %v6132
    %v6135 = vtanh.pop %v6133
    %v6136 = vtanh.pop %v6134
    %v6137 = vld [vmem:[%s6092 + $0xc] sm:$0xf]
    %v6138 = vld [vmem:[%s6092 + $0x1c] sm:$0xf]
    %v6139 = vunpack.c.l.bf16 %v6137
    %v6140 = vunpack.c.l.bf16 %v6138
    %v6141 = vadd.f32 %v6086, %v6139
    %v6142 = vadd.f32 %v6090, %v6140
    %v6143 = vxor.u32 %v6141, 2147483648
    %v6144 = vxor.u32 %v6142, 2147483648
    %v6145 = vmul.f32 %v6143, 1.442695
    %v6146 = vpow.pop %v6145
    %v6147 = vmul.f32 %v6144, 1.442695
    %v6148 = vpow.pop %v6147
    %v6149 = vadd.f32 %v6146, 1.0
    %v6150 = vadd.f32 %v6148, 1.0
    %v6151 = vrcp.pop %v6149
    %v6152 = vmul.f32 1.0, %v6151
    %v6153 = vrcp.pop %v6150
    %v6154 = vmul.f32 1.0, %v6153
    %v6155 = vld [vmem:[#allocation3] sm:$0xff]
    %v6156 = vld [vmem:[#allocation3 + $0x8] sm:$0xff]
    %v6157 = vmul.f32 %v6126, %v6155
    %v6158 = vmul.f32 %v6128, %v6156
    %v6159 = vmul.f32 %v6108, %v6135
    %v6160 = vmul.f32 %v6110, %v6136
    %v6161 = vadd.f32 %v6157, %v6159
    %v6162 = vadd.f32 %v6158, %v6160
    %v6163 = vtanh.pop %v6161
    %v6164 = vtanh.pop %v6162
    %v6165 = vmul.f32 %v6152, %v6163
    %v6166 = vmul.f32 %v6154, %v6164
    %v6167 = vpack.c.bf16 %v6166, %v6165
    %s6168 = scalar_select %p5805, 1, 0
    %v6169 = vstv %s6168
    %vm6170 = vcmp.eq.s32.totalorder %v6169, 1
    %v6171 = vsel %vm6170, %v6161, %v6155
    %v6172 = vsel %vm6170, %v6162, %v6156
    %6173 = vst [vmem:[#allocation3] sm:$0xff] %v6171
    %6174 = vst [vmem:[#allocation3 + $0x8] sm:$0xff] %v6172
    %v6175 = vld [vmem:[#allocation2] sm:$0xf]
    %v6176 = vld [vmem:[#allocation2 + $0x4] sm:$0xf]
    %v6179 = vunpack.c.l.b16 %v6175
    %v6180 = vunpack.c.l.b16 %v6176
    %v6181 = vpack.c.b16 %v6180, %v6179
    %v6183 = vsel %vm6170, %v6167, %v6181
    %v6185 = vunpack.c.l.b16 %v6183
    %v6186 = vunpack.c.h.b16 %v6183
    %v6187 = vpack.c.b16 %v6185, %v6185
    %v6188 = vpack.c.b16 %v6186, %v6186
    %6191 = vst [vmem:[#allocation2] sm:$0xf] %v6187
    %6192 = vst [vmem:[#allocation2 + $0x4] sm:$0xf] %v6188
    %v6194 = vunpack.c.l.b16 %v6167
    %v6195 = vunpack.c.h.b16 %v6167
    %v6196 = vpack.c.b16 %v6194, %v6194
    %v6197 = vpack.c.b16 %v6195, %v6195
    %s6200 = scalar_lea.vmem %s4, 56
    %6201 = vst [vmem:[%s6200] sm:$0xf] %v6196
    %6202 = vst [vmem:[%s6200 + $0x4] sm:$0xf] %v6197
    %p6203 = scmp.lt.s32.totalorder %s220, 8
    %v6204 = vld [vmem:[#allocation4] sm:$0xf]
    %v6205 = vld [vmem:[#allocation4 + $0x4] sm:$0xf]
    %v6206 = vld [vmem:[%s3] sm:$0xff]
    %v6207 = vld [vmem:[%s3 + $0x8] sm:$0xff]
    %v6208 = vld [vmem:[%s3 + $0x10] sm:$0xff]
    %v6209 = vld [vmem:[%s3 + $0x18] sm:$0xff]
    %v6210 = vld [vmem:[%s3 + $0x20] sm:$0xff]
    %v6211 = vld [vmem:[%s3 + $0x28] sm:$0xff]
    %v6212 = vld [vmem:[%s3 + $0x30] sm:$0xff]
    %v6213 = vld [vmem:[%s3 + $0x38] sm:$0xff]
    %v6214 = vld [vmem:[%s3 + $0x40] sm:$0xff]
    %v6215 = vld [vmem:[%s3 + $0x48] sm:$0xff]
    %v6216 = vld [vmem:[%s3 + $0x50] sm:$0xff]
    %v6217 = vld [vmem:[%s3 + $0x58] sm:$0xff]
    %v6218 = vld [vmem:[%s3 + $0x60] sm:$0xff]
    %v6219 = vld [vmem:[%s3 + $0x68] sm:$0xff]
    %v6220 = vld [vmem:[%s3 + $0x70] sm:$0xff]
    %v6221 = vld [vmem:[%s3 + $0x78] sm:$0xff]
    %v6222 = vld [vmem:[%s3 + $0x80] sm:$0xff]
    %v6223 = vld [vmem:[%s3 + $0x88] sm:$0xff]
    %v6224 = vld [vmem:[%s3 + $0x90] sm:$0xff]
    %v6225 = vld [vmem:[%s3 + $0x98] sm:$0xff]
    %v6226 = vld [vmem:[%s3 + $0xa0] sm:$0xff]
    %v6227 = vld [vmem:[%s3 + $0xa8] sm:$0xff]
    %v6228 = vld [vmem:[%s3 + $0xb0] sm:$0xff]
    %v6229 = vld [vmem:[%s3 + $0xb8] sm:$0xff]
    %v6230 = vld [vmem:[%s3 + $0xc0] sm:$0xff]
    %v6231 = vld [vmem:[%s3 + $0xc8] sm:$0xff]
    %v6232 = vld [vmem:[%s3 + $0xd0] sm:$0xff]
    %v6233 = vld [vmem:[%s3 + $0xd8] sm:$0xff]
    %v6234 = vld [vmem:[%s3 + $0xe0] sm:$0xff]
    %v6235 = vld [vmem:[%s3 + $0xe8] sm:$0xff]
    %v6236 = vld [vmem:[%s3 + $0xf0] sm:$0xff]
    %v6237 = vld [vmem:[%s3 + $0xf8] sm:$0xff]
    %v6240 = vunpack.c.l.b16 %v6204
    %v6241 = vunpack.c.l.b16 %v6205
    %v6242 = vpack.c.b16 %v6241, %v6240
    %v6276 = vunpack.c.l.b16 %v6206
    %v6277 = vunpack.c.h.b16 %v6206
    %v6278 = vunpack.c.l.b16 %v6207
    %v6279 = vunpack.c.h.b16 %v6207
    %v6280 = vunpack.c.l.b16 %v6208
    %v6281 = vunpack.c.h.b16 %v6208
    %v6282 = vunpack.c.l.b16 %v6209
    %v6283 = vunpack.c.h.b16 %v6209
    %v6284 = vunpack.c.l.b16 %v6210
    %v6285 = vunpack.c.h.b16 %v6210
    %v6286 = vunpack.c.l.b16 %v6211
    %v6287 = vunpack.c.h.b16 %v6211
    %v6288 = vunpack.c.l.b16 %v6212
    %v6289 = vunpack.c.h.b16 %v6212
    %v6290 = vunpack.c.l.b16 %v6213
    %v6291 = vunpack.c.h.b16 %v6213
    %v6292 = vunpack.c.l.b16 %v6214
    %v6293 = vunpack.c.h.b16 %v6214
    %v6294 = vunpack.c.l.b16 %v6215
    %v6295 = vunpack.c.h.b16 %v6215
    %v6296 = vunpack.c.l.b16 %v6216
    %v6297 = vunpack.c.h.b16 %v6216
    %v6298 = vunpack.c.l.b16 %v6217
    %v6299 = vunpack.c.h.b16 %v6217
    %v6300 = vunpack.c.l.b16 %v6218
    %v6301 = vunpack.c.h.b16 %v6218
    %v6302 = vunpack.c.l.b16 %v6219
    %v6303 = vunpack.c.h.b16 %v6219
    %v6304 = vunpack.c.l.b16 %v6220
    %v6305 = vunpack.c.h.b16 %v6220
    %v6306 = vunpack.c.l.b16 %v6221
    %v6307 = vunpack.c.h.b16 %v6221
    %v6308 = vunpack.c.l.b16 %v6222
    %v6309 = vunpack.c.h.b16 %v6222
    %v6310 = vunpack.c.l.b16 %v6223
    %v6311 = vunpack.c.h.b16 %v6223
    %v6312 = vunpack.c.l.b16 %v6224
    %v6313 = vunpack.c.h.b16 %v6224
    %v6314 = vunpack.c.l.b16 %v6225
    %v6315 = vunpack.c.h.b16 %v6225
    %v6316 = vunpack.c.l.b16 %v6226
    %v6317 = vunpack.c.h.b16 %v6226
    %v6318 = vunpack.c.l.b16 %v6227
    %v6319 = vunpack.c.h.b16 %v6227
    %v6320 = vunpack.c.l.b16 %v6228
    %v6321 = vunpack.c.h.b16 %v6228
    %v6322 = vunpack.c.l.b16 %v6229
    %v6323 = vunpack.c.h.b16 %v6229
    %v6324 = vunpack.c.l.b16 %v6230
    %v6325 = vunpack.c.h.b16 %v6230
    %v6326 = vunpack.c.l.b16 %v6231
    %v6327 = vunpack.c.h.b16 %v6231
    %v6328 = vunpack.c.l.b16 %v6232
    %v6329 = vunpack.c.h.b16 %v6232
    %v6330 = vunpack.c.l.b16 %v6233
    %v6331 = vunpack.c.h.b16 %v6233
    %v6332 = vunpack.c.l.b16 %v6234
    %v6333 = vunpack.c.h.b16 %v6234
    %v6334 = vunpack.c.l.b16 %v6235
    %v6335 = vunpack.c.h.b16 %v6235
    %v6336 = vunpack.c.l.b16 %v6236
    %v6337 = vunpack.c.h.b16 %v6236
    %v6338 = vunpack.c.l.b16 %v6237
    %v6339 = vunpack.c.h.b16 %v6237
    %v6340 = vpack.c.b16 %v6280, %v6276
    %v6341 = vpack.c.b16 %v6281, %v6277
    %v6342 = vpack.c.b16 %v6282, %v6278
    %v6343 = vpack.c.b16 %v6283, %v6279
    %v6344 = vpack.c.b16 %v6288, %v6284
    %v6345 = vpack.c.b16 %v6289, %v6285
    %v6346 = vpack.c.b16 %v6290, %v6286
    %v6347 = vpack.c.b16 %v6291, %v6287
    %v6348 = vpack.c.b16 %v6296, %v6292
    %v6349 = vpack.c.b16 %v6297, %v6293
    %v6350 = vpack.c.b16 %v6298, %v6294
    %v6351 = vpack.c.b16 %v6299, %v6295
    %v6352 = vpack.c.b16 %v6304, %v6300
    %v6353 = vpack.c.b16 %v6305, %v6301
    %v6354 = vpack.c.b16 %v6306, %v6302
    %v6355 = vpack.c.b16 %v6307, %v6303
    %v6356 = vpack.c.b16 %v6312, %v6308
    %v6357 = vpack.c.b16 %v6313, %v6309
    %v6358 = vpack.c.b16 %v6314, %v6310
    %v6359 = vpack.c.b16 %v6315, %v6311
    %v6360 = vpack.c.b16 %v6320, %v6316
    %v6361 = vpack.c.b16 %v6321, %v6317
    %v6362 = vpack.c.b16 %v6322, %v6318
    %v6363 = vpack.c.b16 %v6323, %v6319
    %v6364 = vpack.c.b16 %v6328, %v6324
    %v6365 = vpack.c.b16 %v6329, %v6325
    %v6366 = vpack.c.b16 %v6330, %v6326
    %v6367 = vpack.c.b16 %v6331, %v6327
    %v6368 = vpack.c.b16 %v6336, %v6332
    %v6369 = vpack.c.b16 %v6337, %v6333
    %v6370 = vpack.c.b16 %v6338, %v6334
    %v6371 = vpack.c.b16 %v6339, %v6335
    %6404 = vmatprep.subr.bf16.mxu0 %v6369
    %6405 = vmatpush1.bf16.msra.mxu0 %v6368
    %6406 = vmatprep.subr.bf16.mxu0 %v6365
    %6407 = vmatpush1.bf16.msra.mxu0 %v6364
    %6408 = vmatprep.subr.bf16.mxu0 %v6361
    %6409 = vmatpush1.bf16.msra.mxu0 %v6360
    %6410 = vmatprep.subr.bf16.mxu0 %v6357
    %6411 = vmatpush1.bf16.msra.mxu0 %v6356
    %6412 = vmatprep.subr.bf16.mxu0 %v6353
    %6413 = vmatpush1.bf16.msra.mxu0 %v6352
    %6414 = vmatprep.subr.bf16.mxu0 %v6349
    %6415 = vmatpush1.bf16.msra.mxu0 %v6348
    %6416 = vmatprep.subr.bf16.mxu0 %v6345
    %6417 = vmatpush1.bf16.msra.mxu0 %v6344
    %6418 = vmatprep.subr.bf16.mxu0 %v6341
    %6419 = vmatpush1.bf16.msra.mxu0 %v6340
    %6420 = vmatprep.subr.bf16.mxu0 0
    %6421 = vmatpush2.bf16.msra.mxu0 0
    %6422 = vmatprep.subr.bf16.mxu0 0
    %6423 = vmatpush2.bf16.msra.mxu0 0
    %6424 = vmatprep.subr.bf16.mxu0 0
    %6425 = vmatpush2.bf16.msra.mxu0 0
    %6426 = vmatprep.subr.bf16.mxu0 0
    %6427 = vmatpush2.bf16.msra.mxu0 0
    %6428 = vmatprep.subr.bf16.mxu0 0
    %6429 = vmatpush2.bf16.msra.mxu0 0
    %6430 = vmatprep.subr.bf16.mxu0 0
    %6431 = vmatpush2.bf16.msra.mxu0 0
    %6432 = vmatprep.subr.bf16.mxu0 0
    %6433 = vmatpush2.bf16.msra.mxu0 0
    %6434 = vmatprep.subr.bf16.mxu0 0
    %6435 = vmatpush2.bf16.msra.mxu0 0
    %6436 = vmatprep.mubr.bf16.mxu0 0
    %6437 = vmatmul.mubr.bf16.gmra.mxu0 %v6242
    %v6438 = vpop.f32.mrf.mxu0
    %v6439 = vadd.f32 0.0, %v6438
    %v6440 = vpop.f32.mrf.mxu0
    %v6441 = vadd.f32 0.0, %v6440
    %v6442 = vpop.f32.mrf.mxu0
    %v6443 = vadd.f32 0.0, %v6442
    %v6444 = vpop.f32.mrf.mxu0
    %v6445 = vadd.f32 0.0, %v6444
    %6446 = vdwg.mxu0
    %6447 = vmatprep.subr.bf16.mxu0 %v6371
    %6448 = vmatpush1.bf16.msra.mxu0 %v6370
    %6449 = vmatprep.subr.bf16.mxu0 %v6367
    %6450 = vmatpush1.bf16.msra.mxu0 %v6366
    %6451 = vmatprep.subr.bf16.mxu0 %v6363
    %6452 = vmatpush1.bf16.msra.mxu0 %v6362
    %6453 = vmatprep.subr.bf16.mxu0 %v6359
    %6454 = vmatpush1.bf16.msra.mxu0 %v6358
    %6455 = vmatprep.subr.bf16.mxu0 %v6355
    %6456 = vmatpush1.bf16.msra.mxu0 %v6354
    %6457 = vmatprep.subr.bf16.mxu0 %v6351
    %6458 = vmatpush1.bf16.msra.mxu0 %v6350
    %6459 = vmatprep.subr.bf16.mxu0 %v6347
    %6460 = vmatpush1.bf16.msra.mxu0 %v6346
    %6461 = vmatprep.subr.bf16.mxu0 %v6343
    %6462 = vmatpush1.bf16.msra.mxu0 %v6342
    %6463 = vmatprep.subr.bf16.mxu0 0
    %6464 = vmatpush2.bf16.msra.mxu0 0
    %6465 = vmatprep.subr.bf16.mxu0 0
    %6466 = vmatpush2.bf16.msra.mxu0 0
    %6467 = vmatprep.subr.bf16.mxu0 0
    %6468 = vmatpush2.bf16.msra.mxu0 0
    %6469 = vmatprep.subr.bf16.mxu0 0
    %6470 = vmatpush2.bf16.msra.mxu0 0
    %6471 = vmatprep.subr.bf16.mxu0 0
    %6472 = vmatpush2.bf16.msra.mxu0 0
    %6473 = vmatprep.subr.bf16.mxu0 0
    %6474 = vmatpush2.bf16.msra.mxu0 0
    %6475 = vmatprep.subr.bf16.mxu0 0
    %6476 = vmatpush2.bf16.msra.mxu0 0
    %6477 = vmatprep.subr.bf16.mxu0 0
    %6478 = vmatpush2.bf16.msra.mxu0 0
    %6479 = vmatprep.mubr.bf16.mxu0 0
    %6480 = vmatmul.mubr.bf16.gmra.mxu0 %v6242
    %v6481 = vpop.f32.mrf.mxu0
    %v6482 = vadd.f32 0.0, %v6481
    %v6483 = vpop.f32.mrf.mxu0
    %v6484 = vadd.f32 0.0, %v6483
    %v6485 = vpop.f32.mrf.mxu0
    %v6486 = vadd.f32 0.0, %v6485
    %v6487 = vpop.f32.mrf.mxu0
    %v6488 = vadd.f32 0.0, %v6487
    %6489 = vdwg.mxu0
    %v6490 = vld [vmem:[#allocation7] sm:$0xf]
    %v6491 = vld [vmem:[#allocation7 + $0x10] sm:$0xf]
    %v6492 = vunpack.c.l.bf16 %v6490
    %v6493 = vunpack.c.l.bf16 %v6491
    %v6494 = vadd.f32 %v6439, %v6492
    %v6495 = vadd.f32 %v6443, %v6493
    %v6496 = vxor.u32 %v6494, 2147483648
    %v6497 = vxor.u32 %v6495, 2147483648
    %v6498 = vmul.f32 %v6496, 1.442695
    %v6499 = vpow.pop %v6498
    %v6500 = vmul.f32 %v6497, 1.442695
    %v6501 = vpow.pop %v6500
    %v6502 = vadd.f32 %v6499, 1.0
    %v6503 = vadd.f32 %v6501, 1.0
    %v6504 = vrcp.pop %v6502
    %v6505 = vmul.f32 1.0, %v6504
    %v6506 = vrcp.pop %v6503
    %v6507 = vmul.f32 1.0, %v6506
    %v6508 = vld [vmem:[#allocation7 + $0x4] sm:$0xf]
    %v6509 = vld [vmem:[#allocation7 + $0x14] sm:$0xf]
    %v6510 = vunpack.c.l.bf16 %v6508
    %v6511 = vunpack.c.l.bf16 %v6509
    %v6512 = vadd.f32 %v6441, %v6510
    %v6513 = vadd.f32 %v6445, %v6511
    %v6514 = vxor.u32 %v6512, 2147483648
    %v6515 = vxor.u32 %v6513, 2147483648
    %v6516 = vmul.f32 %v6514, 1.442695
    %v6517 = vpow.pop %v6516
    %v6518 = vmul.f32 %v6515, 1.442695
    %v6519 = vpow.pop %v6518
    %v6520 = vadd.f32 %v6517, 1.0
    %v6521 = vadd.f32 %v6519, 1.0
    %v6522 = vrcp.pop %v6520
    %v6523 = vmul.f32 1.0, %v6522
    %v6524 = vrcp.pop %v6521
    %v6525 = vmul.f32 1.0, %v6524
    %v6526 = vld [vmem:[#allocation7 + $0x8] sm:$0xf]
    %v6527 = vld [vmem:[#allocation7 + $0x18] sm:$0xf]
    %v6528 = vunpack.c.l.bf16 %v6526
    %v6529 = vunpack.c.l.bf16 %v6527
    %v6530 = vadd.f32 %v6482, %v6528
    %v6531 = vadd.f32 %v6486, %v6529
    %v6532 = vtanh.pop %v6530
    %v6533 = vtanh.pop %v6531
    %v6534 = vld [vmem:[#allocation7 + $0xc] sm:$0xf]
    %v6535 = vld [vmem:[#allocation7 + $0x1c] sm:$0xf]
    %v6536 = vunpack.c.l.bf16 %v6534
    %v6537 = vunpack.c.l.bf16 %v6535
    %v6538 = vadd.f32 %v6484, %v6536
    %v6539 = vadd.f32 %v6488, %v6537
    %v6540 = vxor.u32 %v6538, 2147483648
    %v6541 = vxor.u32 %v6539, 2147483648
    %v6542 = vmul.f32 %v6540, 1.442695
    %v6543 = vpow.pop %v6542
    %v6544 = vmul.f32 %v6541, 1.442695
    %v6545 = vpow.pop %v6544
    %v6546 = vadd.f32 %v6543, 1.0
    %v6547 = vadd.f32 %v6545, 1.0
    %v6548 = vrcp.pop %v6546
    %v6549 = vmul.f32 1.0, %v6548
    %v6550 = vrcp.pop %v6547
    %v6551 = vmul.f32 1.0, %v6550
    %v6552 = vld [vmem:[#allocation5] sm:$0xff]
    %v6553 = vld [vmem:[#allocation5 + $0x8] sm:$0xff]
    %v6554 = vmul.f32 %v6523, %v6552
    %v6555 = vmul.f32 %v6525, %v6553
    %v6556 = vmul.f32 %v6505, %v6532
    %v6557 = vmul.f32 %v6507, %v6533
    %v6558 = vadd.f32 %v6554, %v6556
    %v6559 = vadd.f32 %v6555, %v6557
    %v6560 = vtanh.pop %v6558
    %v6561 = vtanh.pop %v6559
    %v6562 = vmul.f32 %v6549, %v6560
    %v6563 = vmul.f32 %v6551, %v6561
    %v6564 = vpack.c.bf16 %v6563, %v6562
    %s6565 = scalar_select %p6203, 1, 0
    %v6566 = vstv %s6565
    %vm6567 = vcmp.eq.s32.totalorder %v6566, 1
    %v6568 = vsel %vm6567, %v6558, %v6552
    %v6569 = vsel %vm6567, %v6559, %v6553
    %6570 = vst [vmem:[#allocation5] sm:$0xff] %v6568
    %6571 = vst [vmem:[#allocation5 + $0x8] sm:$0xff] %v6569
    %v6572 = vld [vmem:[#allocation4] sm:$0xf]
    %v6573 = vld [vmem:[#allocation4 + $0x4] sm:$0xf]
    %v6576 = vunpack.c.l.b16 %v6572
    %v6577 = vunpack.c.l.b16 %v6573
    %v6578 = vpack.c.b16 %v6577, %v6576
    %v6580 = vsel %vm6567, %v6564, %v6578
    %v6582 = vunpack.c.l.b16 %v6580
    %v6583 = vunpack.c.h.b16 %v6580
    %v6584 = vpack.c.b16 %v6582, %v6582
    %v6585 = vpack.c.b16 %v6583, %v6583
    %6588 = vst [vmem:[#allocation4] sm:$0xf] %v6584
    %6589 = vst [vmem:[#allocation4 + $0x4] sm:$0xf] %v6585
    %v6591 = vunpack.c.l.b16 %v6564
    %v6592 = vunpack.c.h.b16 %v6564
    %v6593 = vpack.c.b16 %v6591, %v6591
    %v6594 = vpack.c.b16 %v6592, %v6592
    %6597 = vst [vmem:[%s202] sm:$0xf] %v6593
    %6598 = vst [vmem:[%s202 + $0x4] sm:$0xf] %v6594
    %s6599 = ssub.s32 0, 0
    %s6600 = smul.u32 8, %s6599
    %p6601 = scmp.lt.s32.totalorder %s6600, 7
    %s6602 = scalar_select %p6601, %s6600, 7
    %s6603 = smul.addr %s6602, 2
    %s6604 = smul.addr %s6603, 4
    %s6605 = scalar_lea.vmem %s5, %s6604
    // Predicated region
    $region68: #{lstm_encoder_forward.3} parent=1 // pred_check
      _
    $region69: #{lstm_encoder_forward.3} parent=1 // pred_check_branch
      %6607 = sbr.rel (0) target = $region71
    $region70: #{lstm_encoder_forward.3} parent=1 // pred_region
      _
    $region71: #{lstm_encoder_forward.3} parent=1 // pred_fallthru
      _
    // Predicated region
    $region72: #{lstm_encoder_forward.3} parent=1 // pred_check
      _
    $region73: #{lstm_encoder_forward.3} parent=1 // pred_check_branch
      %6609 = sbr.rel (0) target = $region75
    $region74: #{lstm_encoder_forward.3} parent=1 // pred_region
      %s6610 = ssub.s32 0, 0
      %s6611 = smul.u32 8, %s6610
    $region75: #{lstm_encoder_forward.3} parent=1 // pred_fallthru
      _
    // Predicated region
    $region76: #{lstm_encoder_forward.3} parent=1 // pred_check
      _
    $region77: #{lstm_encoder_forward.3} parent=1 // pred_check_branch
      %6613 = sbr.rel (0) target = $region79
    $region78: #{lstm_encoder_forward.3} parent=1 // pred_region
      _
    $region79: #{lstm_encoder_forward.3} parent=1 // pred_fallthru
      _
    // Predicated region
    $region80: #{lstm_encoder_forward.3} parent=1 // pred_check
      _
    $region81: #{lstm_encoder_forward.3} parent=1 // pred_check_branch
      %6615 = sbr.rel (0) target = $region83
    $region82: #{lstm_encoder_forward.3} parent=1 // pred_region
      %s6616 = ssub.s32 0, 0
      %s6617 = smul.u32 8, %s6616
      %p6618 = scmp.lt.s32.totalorder %s6617, 7
      %s6619 = scalar_select %p6618, %s6617, 7
      %s6620 = smul.addr %s6619, 2
      %s6621 = smul.addr %s6620, 4
      %s6622 = scalar_lea.vmem %s5, %s6621
    $region83: #{lstm_encoder_forward.3} parent=1 // pred_fallthru
      _

</llo_original>
